<compile_context>
chip_gen: v7x
topology: tpu7x:2x2x1
jax: 0.10.0
libtpu: 0.0.40
codegen_flags: <defaults>
</compile_context>

<pallas_src>
import jax
import jax.numpy as jnp
from jax.experimental import pallas as pl
from jax.experimental.pallas import tpu as pltpu


def _activated_sum_mlp_kernel(x_ref, w1p_ref, w1n_ref, b1_ref, w2t_ref, b2_ref, o_ref):
    x = x_ref[...]                          # (bb, D)
    xsq = x * x
    xp = jnp.where(x > 0.0, xsq, 0.0)       # contributes where sign(x) == sign(w) > 0
    xn = jnp.where(x < 0.0, xsq, 0.0)       # contributes where sign(x) == sign(w) < 0

    # RePU weighted sum as two MXU matmuls with f32 accumulation.
    h = jnp.dot(xp, w1p_ref[...], preferred_element_type=jnp.float32,
                precision=jax.lax.Precision.HIGHEST)
    h = h + jnp.dot(xn, w1n_ref[...], preferred_element_type=jnp.float32,
                    precision=jax.lax.Precision.HIGHEST)
    h = h + b1_ref[...]                     # (bb, H) + (1, H)

    # Output Linear layer.
    out = jnp.dot(h, w2t_ref[...], preferred_element_type=jnp.float32,
                  precision=jax.lax.Precision.HIGHEST)
    o_ref[...] = (out + b2_ref[...]).astype(o_ref.dtype)


def activated_sum_mlp(x, w1, b1, w2, b2, *, block_b=128):
    """x: (B, D) f32; w1: (H, D); b1: (H,); w2: (O, H); b2: (O,). Returns (B, O) f32."""
    B, D = x.shape
    H, D_w = w1.shape
    assert D == D_w
    O = w2.shape[0]

    # Static per-call precompute: sign-split squared weights, pre-transposed to
    # (D, H) so the in-kernel RePU sum is two plain matmuls.
    w1p = jnp.square(jnp.maximum(w1, 0.0)).T      # relu( W1)^2, shape (D, H)
    w1n = jnp.square(jnp.minimum(w1, 0.0)).T      # relu(-W1)^2, shape (D, H)
    b1_2d = b1.reshape(1, H)
    w2t = w2.T                                    # (H, O)
    b2_2d = b2.reshape(1, O)

    # Batch: pad to a sublane-dense multiple of 8 and block it on a single
    # "parallel" grid axis. Padded rows are zeros -> they only produce
    # b1 @ W2^T + b2 and are sliced away below.
    bb = min(block_b, pl.cdiv(B, 8) * 8)
    B_pad = pl.cdiv(B, bb) * bb
    if B_pad != B:
        x = jnp.pad(x, ((0, B_pad - B), (0, 0)))

    out = pl.pallas_call(
        _activated_sum_mlp_kernel,
        out_shape=jax.ShapeDtypeStruct((B_pad, O), jnp.float32),
        grid_spec=pltpu.PrefetchScalarGridSpec(
            num_scalar_prefetch=0,
            grid=(B_pad // bb,),
            in_specs=[
                pl.BlockSpec((bb, D), lambda i: (i, 0)),   # x batch tile (full D, no D pad)
                pl.BlockSpec((D, H), lambda i: (0, 0)),    # relu(W1)^2.T  (resident)
                pl.BlockSpec((D, H), lambda i: (0, 0)),    # relu(-W1)^2.T (resident)
                pl.BlockSpec((1, H), lambda i: (0, 0)),    # b1
                pl.BlockSpec((H, O), lambda i: (0, 0)),    # W2^T
                pl.BlockSpec((1, O), lambda i: (0, 0)),    # b2
            ],
            out_specs=pl.BlockSpec((bb, O), lambda i: (i, 0)),
        ),
        compiler_params=pltpu.CompilerParams(
            dimension_semantics=("parallel",),
        ),
    )(x, w1p, w1n, b1_2d, w2t, b2_2d)

    return out[:B] if B_pad != B else out


def _reference(x, w1, b1, w2, b2):
    prod = x[:, None, :] * w1[None, :, :]
    h = jnp.sum(jnp.square(jnp.maximum(prod, 0.0)), axis=-1) + b1
    return jnp.dot(h, w2.T, precision=jax.lax.Precision.HIGHEST) + b2


if __name__ == "__main__":
    B, D, H, O = 2, 784, 64, 10
    key = jax.random.PRNGKey(0)
    kx, kw1, kw2, kb2 = jax.random.split(key, 4)

    x = jax.random.normal(kx, (B, D), dtype=jnp.float32)

    # ActivatedWeightedSum: weight ~ randn(H, D), bias = zeros(H)
    w1 = jax.random.normal(kw1, (H, D), dtype=jnp.float32)
    b1 = jnp.zeros((H,), dtype=jnp.float32)

    # nn.Linear(64, 10): uniform(-1/sqrt(H), 1/sqrt(H)) init
    bound = 1.0 / jnp.sqrt(jnp.float32(H))
    w2 = jax.random.uniform(kw2, (O, H), minval=-bound, maxval=bound, dtype=jnp.float32)
    b2 = jax.random.uniform(kb2, (O,), minval=-bound, maxval=bound, dtype=jnp.float32)

    out = activated_sum_mlp(x, w1, b1, w2, b2)
    out = jax.block_until_ready(out)

    ref = _reference(x, w1, b1, w2, b2)
    assert out.shape == (B, O)
    # Tolerance accounts for MXU matmul summation order vs. elementwise f32 reference.
    assert jnp.allclose(out, ref, rtol=1e-3, atol=1e-3), "mismatch vs reference"

    print("KERNEL_OK")
</pallas_src>

<mosaic_0001>
module attributes {stable_mosaic.version = 11 : i64} {
  func.func @_activated_sum_mlp_kernel(%arg0: i32, %arg1: memref<8x784xf32, #tpu.memory_space<vmem>>, %arg2: memref<784x64xf32, #tpu.memory_space<vmem>>, %arg3: memref<784x64xf32, #tpu.memory_space<vmem>>, %arg4: memref<1x64xf32, #tpu.memory_space<vmem>>, %arg5: memref<64x10xf32, #tpu.memory_space<vmem>>, %arg6: memref<1x10xf32, #tpu.memory_space<vmem>>, %arg7: memref<8x10xf32, #tpu.memory_space<vmem>>) attributes {dimension_semantics = [#tpu.dimension_semantics<parallel>], iteration_bounds = array<i64: 1>, scalar_prefetch = 0 : i64, scratch_operands = 0 : i64, tpu.core_type = #tpu.core_type<tc>, window_params = [{transform_indices = @transform_0, window_bounds = array<i64: 8, 784>}, {pipeline_mode = #tpu.pipeline_mode<synchronous>, transform_indices = @transform_1, window_bounds = array<i64: 784, 64>}, {pipeline_mode = #tpu.pipeline_mode<synchronous>, transform_indices = @transform_2, window_bounds = array<i64: 784, 64>}, {pipeline_mode = #tpu.pipeline_mode<synchronous>, transform_indices = @transform_3, window_bounds = array<i64: 1, 64>}, {pipeline_mode = #tpu.pipeline_mode<synchronous>, transform_indices = @transform_4, window_bounds = array<i64: 64, 10>}, {pipeline_mode = #tpu.pipeline_mode<synchronous>, transform_indices = @transform_5, window_bounds = array<i64: 1, 10>}, {transform_indices = @transform_6, window_bounds = array<i64: 8, 10>}]} {
    %c0 = arith.constant 0 : index
    %c0_0 = arith.constant 0 : index
    %0 = vector.load %arg1[%c0, %c0_0] : memref<8x784xf32, #tpu.memory_space<vmem>>, vector<8x784xf32>
    %1 = arith.mulf %0, %0 : vector<8x784xf32>
    %cst = arith.constant 0.000000e+00 : f32
    %2 = vector.broadcast %cst : f32 to vector<8x784xf32>
    %3 = arith.cmpf ogt, %0, %2 : vector<8x784xf32>
    %cst_1 = arith.constant 0.000000e+00 : f32
    %4 = vector.broadcast %cst_1 : f32 to vector<8x784xf32>
    %5 = arith.select %3, %1, %4 : vector<8x784xi1>, vector<8x784xf32>
    %cst_2 = arith.constant 0.000000e+00 : f32
    %6 = vector.broadcast %cst_2 : f32 to vector<8x784xf32>
    %7 = arith.cmpf olt, %0, %6 : vector<8x784xf32>
    %cst_3 = arith.constant 0.000000e+00 : f32
    %8 = vector.broadcast %cst_3 : f32 to vector<8x784xf32>
    %9 = arith.select %7, %1, %8 : vector<8x784xi1>, vector<8x784xf32>
    %c0_4 = arith.constant 0 : index
    %c0_5 = arith.constant 0 : index
    %10 = vector.load %arg2[%c0_4, %c0_5] : memref<784x64xf32, #tpu.memory_space<vmem>>, vector<784x64xf32>
    %cst_6 = arith.constant dense<0.000000e+00> : vector<8x64xf32>
    %11 = tpu.matmul %5, %10, %cst_6 {dimension_numbers = #tpu.dot_dimension_numbers<[1], [0], [0], [1], [0, 0, 1, 1], [], []>, precision = #tpu.contract_precision<fp32>} : vector<8x784xf32>, vector<784x64xf32>, vector<8x64xf32> -> vector<8x64xf32>
    %c0_7 = arith.constant 0 : index
    %c0_8 = arith.constant 0 : index
    %12 = vector.load %arg3[%c0_7, %c0_8] : memref<784x64xf32, #tpu.memory_space<vmem>>, vector<784x64xf32>
    %cst_9 = arith.constant dense<0.000000e+00> : vector<8x64xf32>
    %13 = tpu.matmul %9, %12, %cst_9 {dimension_numbers = #tpu.dot_dimension_numbers<[1], [0], [0], [1], [0, 0, 1, 1], [], []>, precision = #tpu.contract_precision<fp32>} : vector<8x784xf32>, vector<784x64xf32>, vector<8x64xf32> -> vector<8x64xf32>
    %14 = arith.addf %11, %13 : vector<8x64xf32>
    %c0_10 = arith.constant 0 : index
    %c0_11 = arith.constant 0 : index
    %15 = vector.load %arg4[%c0_10, %c0_11] : memref<1x64xf32, #tpu.memory_space<vmem>>, vector<1x64xf32>
    %16 = vector.broadcast %15 : vector<1x64xf32> to vector<8x64xf32>
    %17 = arith.addf %14, %16 : vector<8x64xf32>
    %c0_12 = arith.constant 0 : index
    %c0_13 = arith.constant 0 : index
    %18 = vector.load %arg5[%c0_12, %c0_13] : memref<64x10xf32, #tpu.memory_space<vmem>>, vector<64x10xf32>
    %cst_14 = arith.constant dense<0.000000e+00> : vector<8x10xf32>
    %19 = tpu.matmul %17, %18, %cst_14 {dimension_numbers = #tpu.dot_dimension_numbers<[1], [0], [0], [1], [0, 0, 1, 1], [], []>, precision = #tpu.contract_precision<fp32>} : vector<8x64xf32>, vector<64x10xf32>, vector<8x10xf32> -> vector<8x10xf32>
    %c0_15 = arith.constant 0 : index
    %c0_16 = arith.constant 0 : index
    %20 = vector.load %arg6[%c0_15, %c0_16] : memref<1x10xf32, #tpu.memory_space<vmem>>, vector<1x10xf32>
    %21 = vector.broadcast %20 : vector<1x10xf32> to vector<8x10xf32>
    %22 = arith.addf %19, %21 : vector<8x10xf32>
    %c0_17 = arith.constant 0 : index
    %c0_18 = arith.constant 0 : index
    %23 = vector.load %arg7[%c0_17, %c0_18] : memref<8x10xf32, #tpu.memory_space<vmem>>, vector<8x10xf32>
    tpu.vector_store %arg7[%c0_17, %c0_18], %22 {strides = array<i32>} : memref<8x10xf32, #tpu.memory_space<vmem>>, vector<8x10xf32>,
    return
  }
  func.func @transform_0(%arg0: i32) -> (i32, i32) {
    %c0_i32 = arith.constant 0 : i32
    %c0_i32_0 = arith.constant 0 : i32
    return %arg0, %c0_i32 : i32, i32
  }
  func.func @transform_1(%arg0: i32) -> (i32, i32) {
    %c0_i32 = arith.constant 0 : i32
    %c0_i32_0 = arith.constant 0 : i32
    %c0_i32_1 = arith.constant 0 : i32
    return %c0_i32, %c0_i32_0 : i32, i32
  }
  func.func @transform_2(%arg0: i32) -> (i32, i32) {
    %c0_i32 = arith.constant 0 : i32
    %c0_i32_0 = arith.constant 0 : i32
    %c0_i32_1 = arith.constant 0 : i32
    return %c0_i32, %c0_i32_0 : i32, i32
  }
  func.func @transform_3(%arg0: i32) -> (i32, i32) {
    %c0_i32 = arith.constant 0 : i32
    %c0_i32_0 = arith.constant 0 : i32
    %c0_i32_1 = arith.constant 0 : i32
    return %c0_i32, %c0_i32_0 : i32, i32
  }
  func.func @transform_4(%arg0: i32) -> (i32, i32) {
    %c0_i32 = arith.constant 0 : i32
    %c0_i32_0 = arith.constant 0 : i32
    %c0_i32_1 = arith.constant 0 : i32
    return %c0_i32, %c0_i32_0 : i32, i32
  }
  func.func @transform_5(%arg0: i32) -> (i32, i32) {
    %c0_i32 = arith.constant 0 : i32
    %c0_i32_0 = arith.constant 0 : i32
    %c0_i32_1 = arith.constant 0 : i32
    return %c0_i32, %c0_i32_0 : i32, i32
  }
  func.func @transform_6(%arg0: i32) -> (i32, i32) {
    %c0_i32 = arith.constant 0 : i32
    %c0_i32_0 = arith.constant 0 : i32
    return %arg0, %c0_i32 : i32, i32
  }
}

</mosaic_0001>

<llo_original>
// kernel: tpu_custom_call.1
$region0: #{tpu_custom_call.1}
  #allocation0 [shape = 'u32[]', space=smem, size = 0x4, offset = 0x4, fixed_abs, tag = 'smem constant byte address 0x4 - core index']
  #allocation1 [shape = 'u32[144,128]{1,0:T(1,128)}', space=vmem, size = 0x12000, scoped, tag = 'internal scratch']
  %s0 = inlined_call_operand.vmem [shape: f32[8,784], index: 0, kind: input, shape index: {}]
  %s1 = inlined_call_operand.vmem [shape: f32[784,64], index: 1, kind: input, shape index: {}]
  %s2 = inlined_call_operand.vmem [shape: f32[784,64], index: 2, kind: input, shape index: {}]
  %s3 = inlined_call_operand.vmem [shape: f32[1,64], index: 3, kind: input, shape index: {}]
  %s4 = inlined_call_operand.vmem [shape: f32[64,10], index: 4, kind: input, shape index: {}]
  %s5 = inlined_call_operand.vmem [shape: f32[1,10], index: 5, kind: input, shape index: {}]
  %s6 = inlined_call_operand.hbm [shape: f32[8,10], index: 6, kind: output, shape index: {}]
  %s7 = sld [smem:[#allocation0]]
  $region34: #{tpu_custom_call.1} parent=0
    _
  %s9 = ssub.s32 1, %s7
  %s10 = scalar_select 0, %s9, %s7
  $region1: #{tpu_custom_call.1} parent=0
    #allocation2 [shape = 'u8[4096]{0}', space=vmem, size = 0x1000, scoped, tag = 'output window, operand 0, single buffered']
    #allocation3 [shape = 's32[1]{0}', space=sflag, size = 0x4, scoped, tag = 'scoped memory for tpu_custom_call.1']
    %11 = vsyncpa [#allocation3], 0
    // Predicated region
    $region2: #{tpu_custom_call.1} parent=1 // pred_check
      _
    $region3: #{tpu_custom_call.1} parent=1 // pred_check_branch
      %13 = sbr.rel (0) target = $region5
    $region4: #{tpu_custom_call.1} parent=1 // pred_region
      _
    $region5: #{tpu_custom_call.1} parent=1 // pred_fallthru
      _
    // Predicated region
    $region6: #{tpu_custom_call.1} parent=1 // pred_check
      _
    $region7: #{tpu_custom_call.1} parent=1 // pred_check_branch
      %15 = sbr.rel (0) target = $region9
    $region8: #{tpu_custom_call.1} parent=1 // pred_region
      _
    $region9: #{tpu_custom_call.1} parent=1 // pred_fallthru
      _
    // Predicated region
    $region10: #{tpu_custom_call.1} parent=1 // pred_check
      _
    $region11: #{tpu_custom_call.1} parent=1 // pred_check_branch
      %17 = sbr.rel (0) target = $region13
    $region12: #{tpu_custom_call.1} parent=1 // pred_region
      _
    $region13: #{tpu_custom_call.1} parent=1 // pred_fallthru
      _
    // Predicated region
    $region14: #{tpu_custom_call.1} parent=1 // pred_check
      _
    $region15: #{tpu_custom_call.1} parent=1 // pred_check_branch
      %19 = sbr.rel (0) target = $region17
    $region16: #{tpu_custom_call.1} parent=1 // pred_region
      _
    $region17: #{tpu_custom_call.1} parent=1 // pred_fallthru
      _
    // Predicated region
    $region18: #{tpu_custom_call.1} parent=1 // pred_check
      _
    $region19: #{tpu_custom_call.1} parent=1 // pred_check_branch
      %21 = sbr.rel (0) target = $region21
    $region20: #{tpu_custom_call.1} parent=1 // pred_region
      _
    $region21: #{tpu_custom_call.1} parent=1 // pred_fallthru
      _
    // Predicated region
    $region22: #{tpu_custom_call.1} parent=1 // pred_check
      _
    $region23: #{tpu_custom_call.1} parent=1 // pred_check_branch
      %23 = sbr.rel (0) target = $region25
    $region24: #{tpu_custom_call.1} parent=1 // pred_region
      _
    $region25: #{tpu_custom_call.1} parent=1 // pred_fallthru
      _
    %v24 = vld [vmem:[%s0] sm:$0xff]
    %v25 = vld [vmem:[%s0 + $0x8] sm:$0xff]
    %v26 = vld [vmem:[%s0 + $0x10] sm:$0xff]
    %v27 = vld [vmem:[%s0 + $0x18] sm:$0xff]
    %v28 = vld [vmem:[%s0 + $0x20] sm:$0xff]
    %v29 = vld [vmem:[%s0 + $0x28] sm:$0xff]
    %v30 = vld [vmem:[%s0 + $0x30] sm:$0xff]
    %v31 = vmul.f32 %v24, %v24
    %v32 = vmul.f32 %v25, %v25
    %v33 = vmul.f32 %v26, %v26
    %v34 = vmul.f32 %v27, %v27
    %v35 = vmul.f32 %v28, %v28
    %v36 = vmul.f32 %v29, %v29
    %v37 = vmul.f32 %v30, %v30
    %vm38 = vcmp.gt.f32.partialorder %v24, 0.0
    %vm39 = vcmp.gt.f32.partialorder %v25, 0.0
    %vm40 = vcmp.gt.f32.partialorder %v26, 0.0
    %vm41 = vcmp.gt.f32.partialorder %v27, 0.0
    %vm42 = vcmp.gt.f32.partialorder %v28, 0.0
    %vm43 = vcmp.gt.f32.partialorder %v29, 0.0
    %vm44 = vcmp.gt.f32.partialorder %v30, 0.0
    %v45 = vsel %vm38, %v31, 0.0
    %v46 = vsel %vm39, %v32, 0.0
    %v47 = vsel %vm40, %v33, 0.0
    %v48 = vsel %vm41, %v34, 0.0
    %v49 = vsel %vm42, %v35, 0.0
    %v50 = vsel %vm43, %v36, 0.0
    %v51 = vsel %vm44, %v37, 0.0
    %vm52 = vcmp.lt.f32.partialorder %v24, 0.0
    %vm53 = vcmp.lt.f32.partialorder %v25, 0.0
    %vm54 = vcmp.lt.f32.partialorder %v26, 0.0
    %vm55 = vcmp.lt.f32.partialorder %v27, 0.0
    %vm56 = vcmp.lt.f32.partialorder %v28, 0.0
    %vm57 = vcmp.lt.f32.partialorder %v29, 0.0
    %vm58 = vcmp.lt.f32.partialorder %v30, 0.0
    %v59 = vsel %vm52, %v31, 0.0
    %v60 = vsel %vm53, %v32, 0.0
    %v61 = vsel %vm54, %v33, 0.0
    %v62 = vsel %vm55, %v34, 0.0
    %v63 = vsel %vm56, %v35, 0.0
    %v64 = vsel %vm57, %v36, 0.0
    %v65 = vsel %vm58, %v37, 0.0
    %v66 = vld [vmem:[%s1] sm:$0xff]
    %v67 = vld [vmem:[%s1 + $0x8] sm:$0xff]
    %v68 = vld [vmem:[%s1 + $0x10] sm:$0xff]
    %v69 = vld [vmem:[%s1 + $0x18] sm:$0xff]
    %v70 = vld [vmem:[%s1 + $0x20] sm:$0xff]
    %v71 = vld [vmem:[%s1 + $0x28] sm:$0xff]
    %v72 = vld [vmem:[%s1 + $0x30] sm:$0xff]
    %v73 = vld [vmem:[%s1 + $0x38] sm:$0xff]
    %v74 = vld [vmem:[%s1 + $0x40] sm:$0xff]
    %v75 = vld [vmem:[%s1 + $0x48] sm:$0xff]
    %v76 = vld [vmem:[%s1 + $0x50] sm:$0xff]
    %v77 = vld [vmem:[%s1 + $0x58] sm:$0xff]
    %v78 = vld [vmem:[%s1 + $0x60] sm:$0xff]
    %v79 = vld [vmem:[%s1 + $0x68] sm:$0xff]
    %v80 = vld [vmem:[%s1 + $0x70] sm:$0xff]
    %v81 = vld [vmem:[%s1 + $0x78] sm:$0xff]
    %v82 = vld [vmem:[%s1 + $0x80] sm:$0xff]
    %v83 = vld [vmem:[%s1 + $0x88] sm:$0xff]
    %v84 = vld [vmem:[%s1 + $0x90] sm:$0xff]
    %v85 = vld [vmem:[%s1 + $0x98] sm:$0xff]
    %v86 = vld [vmem:[%s1 + $0xa0] sm:$0xff]
    %v87 = vld [vmem:[%s1 + $0xa8] sm:$0xff]
    %v88 = vld [vmem:[%s1 + $0xb0] sm:$0xff]
    %v89 = vld [vmem:[%s1 + $0xb8] sm:$0xff]
    %v90 = vld [vmem:[%s1 + $0xc0] sm:$0xff]
    %v91 = vld [vmem:[%s1 + $0xc8] sm:$0xff]
    %v92 = vld [vmem:[%s1 + $0xd0] sm:$0xff]
    %v93 = vld [vmem:[%s1 + $0xd8] sm:$0xff]
    %v94 = vld [vmem:[%s1 + $0xe0] sm:$0xff]
    %v95 = vld [vmem:[%s1 + $0xe8] sm:$0xff]
    %v96 = vld [vmem:[%s1 + $0xf0] sm:$0xff]
    %v97 = vld [vmem:[%s1 + $0xf8] sm:$0xff]
    %v98 = vld [vmem:[%s1 + $0x100] sm:$0xff]
    %v99 = vld [vmem:[%s1 + $0x108] sm:$0xff]
    %v100 = vld [vmem:[%s1 + $0x110] sm:$0xff]
    %v101 = vld [vmem:[%s1 + $0x118] sm:$0xff]
    %v102 = vld [vmem:[%s1 + $0x120] sm:$0xff]
    %v103 = vld [vmem:[%s1 + $0x128] sm:$0xff]
    %v104 = vld [vmem:[%s1 + $0x130] sm:$0xff]
    %v105 = vld [vmem:[%s1 + $0x138] sm:$0xff]
    %v106 = vld [vmem:[%s1 + $0x140] sm:$0xff]
    %v107 = vld [vmem:[%s1 + $0x148] sm:$0xff]
    %v108 = vld [vmem:[%s1 + $0x150] sm:$0xff]
    %v109 = vld [vmem:[%s1 + $0x158] sm:$0xff]
    %v110 = vld [vmem:[%s1 + $0x160] sm:$0xff]
    %v111 = vld [vmem:[%s1 + $0x168] sm:$0xff]
    %v112 = vld [vmem:[%s1 + $0x170] sm:$0xff]
    %v113 = vld [vmem:[%s1 + $0x178] sm:$0xff]
    %v114 = vld [vmem:[%s1 + $0x180] sm:$0xff]
    %v115 = vld [vmem:[%s1 + $0x188] sm:$0xff]
    %v116 = vld [vmem:[%s1 + $0x190] sm:$0xff]
    %v117 = vld [vmem:[%s1 + $0x198] sm:$0xff]
    %v118 = vld [vmem:[%s1 + $0x1a0] sm:$0xff]
    %v119 = vld [vmem:[%s1 + $0x1a8] sm:$0xff]
    %v120 = vld [vmem:[%s1 + $0x1b0] sm:$0xff]
    %v121 = vld [vmem:[%s1 + $0x1b8] sm:$0xff]
    %v122 = vld [vmem:[%s1 + $0x1c0] sm:$0xff]
    %v123 = vld [vmem:[%s1 + $0x1c8] sm:$0xff]
    %v124 = vld [vmem:[%s1 + $0x1d0] sm:$0xff]
    %v125 = vld [vmem:[%s1 + $0x1d8] sm:$0xff]
    %v126 = vld [vmem:[%s1 + $0x1e0] sm:$0xff]
    %v127 = vld [vmem:[%s1 + $0x1e8] sm:$0xff]
    %v128 = vld [vmem:[%s1 + $0x1f0] sm:$0xff]
    %v129 = vld [vmem:[%s1 + $0x1f8] sm:$0xff]
    %v130 = vld [vmem:[%s1 + $0x200] sm:$0xff]
    %v131 = vld [vmem:[%s1 + $0x208] sm:$0xff]
    %v132 = vld [vmem:[%s1 + $0x210] sm:$0xff]
    %v133 = vld [vmem:[%s1 + $0x218] sm:$0xff]
    %v134 = vld [vmem:[%s1 + $0x220] sm:$0xff]
    %v135 = vld [vmem:[%s1 + $0x228] sm:$0xff]
    %v136 = vld [vmem:[%s1 + $0x230] sm:$0xff]
    %v137 = vld [vmem:[%s1 + $0x238] sm:$0xff]
    %v138 = vld [vmem:[%s1 + $0x240] sm:$0xff]
    %v139 = vld [vmem:[%s1 + $0x248] sm:$0xff]
    %v140 = vld [vmem:[%s1 + $0x250] sm:$0xff]
    %v141 = vld [vmem:[%s1 + $0x258] sm:$0xff]
    %v142 = vld [vmem:[%s1 + $0x260] sm:$0xff]
    %v143 = vld [vmem:[%s1 + $0x268] sm:$0xff]
    %v144 = vld [vmem:[%s1 + $0x270] sm:$0xff]
    %v145 = vld [vmem:[%s1 + $0x278] sm:$0xff]
    %v146 = vld [vmem:[%s1 + $0x280] sm:$0xff]
    %v147 = vld [vmem:[%s1 + $0x288] sm:$0xff]
    %v148 = vld [vmem:[%s1 + $0x290] sm:$0xff]
    %v149 = vld [vmem:[%s1 + $0x298] sm:$0xff]
    %v150 = vld [vmem:[%s1 + $0x2a0] sm:$0xff]
    %v151 = vld [vmem:[%s1 + $0x2a8] sm:$0xff]
    %v152 = vld [vmem:[%s1 + $0x2b0] sm:$0xff]
    %v153 = vld [vmem:[%s1 + $0x2b8] sm:$0xff]
    %v154 = vld [vmem:[%s1 + $0x2c0] sm:$0xff]
    %v155 = vld [vmem:[%s1 + $0x2c8] sm:$0xff]
    %v156 = vld [vmem:[%s1 + $0x2d0] sm:$0xff]
    %v157 = vld [vmem:[%s1 + $0x2d8] sm:$0xff]
    %v158 = vld [vmem:[%s1 + $0x2e0] sm:$0xff]
    %v159 = vld [vmem:[%s1 + $0x2e8] sm:$0xff]
    %v160 = vld [vmem:[%s1 + $0x2f0] sm:$0xff]
    %v161 = vld [vmem:[%s1 + $0x2f8] sm:$0xff]
    %v162 = vld [vmem:[%s1 + $0x300] sm:$0xff]
    %v163 = vld [vmem:[%s1 + $0x308] sm:$0xff]
    %v164 = vld [vmem:[%s2] sm:$0xff]
    %v165 = vld [vmem:[%s2 + $0x8] sm:$0xff]
    %v166 = vld [vmem:[%s2 + $0x10] sm:$0xff]
    %v167 = vld [vmem:[%s2 + $0x18] sm:$0xff]
    %v168 = vld [vmem:[%s2 + $0x20] sm:$0xff]
    %v169 = vld [vmem:[%s2 + $0x28] sm:$0xff]
    %v170 = vld [vmem:[%s2 + $0x30] sm:$0xff]
    %v171 = vld [vmem:[%s2 + $0x38] sm:$0xff]
    %v172 = vld [vmem:[%s2 + $0x40] sm:$0xff]
    %v173 = vld [vmem:[%s2 + $0x48] sm:$0xff]
    %v174 = vld [vmem:[%s2 + $0x50] sm:$0xff]
    %v175 = vld [vmem:[%s2 + $0x58] sm:$0xff]
    %v176 = vld [vmem:[%s2 + $0x60] sm:$0xff]
    %v177 = vld [vmem:[%s2 + $0x68] sm:$0xff]
    %v178 = vld [vmem:[%s2 + $0x70] sm:$0xff]
    %v179 = vld [vmem:[%s2 + $0x78] sm:$0xff]
    %v180 = vld [vmem:[%s2 + $0x80] sm:$0xff]
    %v181 = vld [vmem:[%s2 + $0x88] sm:$0xff]
    %v182 = vld [vmem:[%s2 + $0x90] sm:$0xff]
    %v183 = vld [vmem:[%s2 + $0x98] sm:$0xff]
    %v184 = vld [vmem:[%s2 + $0xa0] sm:$0xff]
    %v185 = vld [vmem:[%s2 + $0xa8] sm:$0xff]
    %v186 = vld [vmem:[%s2 + $0xb0] sm:$0xff]
    %v187 = vld [vmem:[%s2 + $0xb8] sm:$0xff]
    %v188 = vld [vmem:[%s2 + $0xc0] sm:$0xff]
    %v189 = vld [vmem:[%s2 + $0xc8] sm:$0xff]
    %v190 = vld [vmem:[%s2 + $0xd0] sm:$0xff]
    %v191 = vld [vmem:[%s2 + $0xd8] sm:$0xff]
    %v192 = vld [vmem:[%s2 + $0xe0] sm:$0xff]
    %v193 = vld [vmem:[%s2 + $0xe8] sm:$0xff]
    %v194 = vld [vmem:[%s2 + $0xf0] sm:$0xff]
    %v195 = vld [vmem:[%s2 + $0xf8] sm:$0xff]
    %v196 = vld [vmem:[%s2 + $0x100] sm:$0xff]
    %v197 = vld [vmem:[%s2 + $0x108] sm:$0xff]
    %v198 = vld [vmem:[%s2 + $0x110] sm:$0xff]
    %v199 = vld [vmem:[%s2 + $0x118] sm:$0xff]
    %v200 = vld [vmem:[%s2 + $0x120] sm:$0xff]
    %v201 = vld [vmem:[%s2 + $0x128] sm:$0xff]
    %v202 = vld [vmem:[%s2 + $0x130] sm:$0xff]
    %v203 = vld [vmem:[%s2 + $0x138] sm:$0xff]
    %v204 = vld [vmem:[%s2 + $0x140] sm:$0xff]
    %v205 = vld [vmem:[%s2 + $0x148] sm:$0xff]
    %v206 = vld [vmem:[%s2 + $0x150] sm:$0xff]
    %v207 = vld [vmem:[%s2 + $0x158] sm:$0xff]
    %v208 = vld [vmem:[%s2 + $0x160] sm:$0xff]
    %v209 = vld [vmem:[%s2 + $0x168] sm:$0xff]
    %v210 = vld [vmem:[%s2 + $0x170] sm:$0xff]
    %v211 = vld [vmem:[%s2 + $0x178] sm:$0xff]
    %v212 = vld [vmem:[%s2 + $0x180] sm:$0xff]
    %v213 = vld [vmem:[%s2 + $0x188] sm:$0xff]
    %v214 = vld [vmem:[%s2 + $0x190] sm:$0xff]
    %v215 = vld [vmem:[%s2 + $0x198] sm:$0xff]
    %v216 = vld [vmem:[%s2 + $0x1a0] sm:$0xff]
    %v217 = vld [vmem:[%s2 + $0x1a8] sm:$0xff]
    %v218 = vld [vmem:[%s2 + $0x1b0] sm:$0xff]
    %v219 = vld [vmem:[%s2 + $0x1b8] sm:$0xff]
    %v220 = vld [vmem:[%s2 + $0x1c0] sm:$0xff]
    %v221 = vld [vmem:[%s2 + $0x1c8] sm:$0xff]
    %v222 = vld [vmem:[%s2 + $0x1d0] sm:$0xff]
    %v223 = vld [vmem:[%s2 + $0x1d8] sm:$0xff]
    %v224 = vld [vmem:[%s2 + $0x1e0] sm:$0xff]
    %v225 = vld [vmem:[%s2 + $0x1e8] sm:$0xff]
    %v226 = vld [vmem:[%s2 + $0x1f0] sm:$0xff]
    %v227 = vld [vmem:[%s2 + $0x1f8] sm:$0xff]
    %v228 = vld [vmem:[%s2 + $0x200] sm:$0xff]
    %v229 = vld [vmem:[%s2 + $0x208] sm:$0xff]
    %v230 = vld [vmem:[%s2 + $0x210] sm:$0xff]
    %v231 = vld [vmem:[%s2 + $0x218] sm:$0xff]
    %v232 = vld [vmem:[%s2 + $0x220] sm:$0xff]
    %v233 = vld [vmem:[%s2 + $0x228] sm:$0xff]
    %v234 = vld [vmem:[%s2 + $0x230] sm:$0xff]
    %v235 = vld [vmem:[%s2 + $0x238] sm:$0xff]
    %v236 = vld [vmem:[%s2 + $0x240] sm:$0xff]
    %v237 = vld [vmem:[%s2 + $0x248] sm:$0xff]
    %v238 = vld [vmem:[%s2 + $0x250] sm:$0xff]
    %v239 = vld [vmem:[%s2 + $0x258] sm:$0xff]
    %v240 = vld [vmem:[%s2 + $0x260] sm:$0xff]
    %v241 = vld [vmem:[%s2 + $0x268] sm:$0xff]
    %v242 = vld [vmem:[%s2 + $0x270] sm:$0xff]
    %v243 = vld [vmem:[%s2 + $0x278] sm:$0xff]
    %v244 = vld [vmem:[%s2 + $0x280] sm:$0xff]
    %v245 = vld [vmem:[%s2 + $0x288] sm:$0xff]
    %v246 = vld [vmem:[%s2 + $0x290] sm:$0xff]
    %v247 = vld [vmem:[%s2 + $0x298] sm:$0xff]
    %v248 = vld [vmem:[%s2 + $0x2a0] sm:$0xff]
    %v249 = vld [vmem:[%s2 + $0x2a8] sm:$0xff]
    %v250 = vld [vmem:[%s2 + $0x2b0] sm:$0xff]
    %v251 = vld [vmem:[%s2 + $0x2b8] sm:$0xff]
    %v252 = vld [vmem:[%s2 + $0x2c0] sm:$0xff]
    %v253 = vld [vmem:[%s2 + $0x2c8] sm:$0xff]
    %v254 = vld [vmem:[%s2 + $0x2d0] sm:$0xff]
    %v255 = vld [vmem:[%s2 + $0x2d8] sm:$0xff]
    %v256 = vld [vmem:[%s2 + $0x2e0] sm:$0xff]
    %v257 = vld [vmem:[%s2 + $0x2e8] sm:$0xff]
    %v258 = vld [vmem:[%s2 + $0x2f0] sm:$0xff]
    %v259 = vld [vmem:[%s2 + $0x2f8] sm:$0xff]
    %v260 = vld [vmem:[%s2 + $0x300] sm:$0xff]
    %v261 = vld [vmem:[%s2 + $0x308] sm:$0xff]
    %vm262 = vcmask 130048
    %v264 = vsel %vm262, %v65, 0
    %266 = vmatprep.subr.mxu0 0.0
    %v267 = vand.u32 %v164, 4294901760
    %268 = vmatpush1.msra.mxu0 %v267
    %269 = vmatprep.subr.mxu0 0.0
    %v270 = vand.u32 %v165, 4294901760
    %271 = vmatpush1.msra.mxu0 %v270
    %272 = vmatprep.subr.mxu0 0.0
    %v273 = vand.u32 %v166, 4294901760
    %274 = vmatpush1.msra.mxu0 %v273
    %275 = vmatprep.subr.mxu0 0.0
    %v276 = vand.u32 %v167, 4294901760
    %277 = vmatpush1.msra.mxu0 %v276
    %278 = vmatprep.subr.mxu0 0.0
    %v279 = vand.u32 %v168, 4294901760
    %280 = vmatpush1.msra.mxu0 %v279
    %281 = vmatprep.subr.mxu0 0.0
    %v282 = vand.u32 %v169, 4294901760
    %283 = vmatpush1.msra.mxu0 %v282
    %284 = vmatprep.subr.mxu0 0.0
    %v285 = vand.u32 %v170, 4294901760
    %286 = vmatpush1.msra.mxu0 %v285
    %287 = vmatprep.subr.mxu0 0.0
    %v288 = vand.u32 %v171, 4294901760
    %289 = vmatpush1.msra.mxu0 %v288
    %290 = vmatprep.subr.mxu0 0.0
    %v291 = vand.u32 %v172, 4294901760
    %292 = vmatpush1.msra.mxu0 %v291
    %293 = vmatprep.subr.mxu0 0.0
    %v294 = vand.u32 %v173, 4294901760
    %295 = vmatpush1.msra.mxu0 %v294
    %296 = vmatprep.subr.mxu0 0.0
    %v297 = vand.u32 %v174, 4294901760
    %298 = vmatpush1.msra.mxu0 %v297
    %299 = vmatprep.subr.mxu0 0.0
    %v300 = vand.u32 %v175, 4294901760
    %301 = vmatpush1.msra.mxu0 %v300
    %302 = vmatprep.subr.mxu0 0.0
    %v303 = vand.u32 %v176, 4294901760
    %304 = vmatpush1.msra.mxu0 %v303
    %305 = vmatprep.subr.mxu0 0.0
    %v306 = vand.u32 %v177, 4294901760
    %307 = vmatpush1.msra.mxu0 %v306
    %308 = vmatprep.subr.mxu0 0.0
    %v309 = vand.u32 %v178, 4294901760
    %310 = vmatpush1.msra.mxu0 %v309
    %311 = vmatprep.subr.mxu0 0.0
    %v312 = vand.u32 %v179, 4294901760
    %313 = vmatpush1.msra.mxu0 %v312
    %314 = vmatprep.subr.mxu0 0.0
    %v315 = vand.u32 %v180, 4294901760
    %316 = vmatpush1.msra.mxu0 %v315
    %317 = vmatprep.subr.mxu0 0.0
    %v318 = vand.u32 %v181, 4294901760
    %319 = vmatpush1.msra.mxu0 %v318
    %320 = vmatprep.subr.mxu0 0.0
    %v321 = vand.u32 %v182, 4294901760
    %322 = vmatpush1.msra.mxu0 %v321
    %323 = vmatprep.subr.mxu0 0.0
    %v324 = vand.u32 %v183, 4294901760
    %325 = vmatpush1.msra.mxu0 %v324
    %326 = vmatprep.subr.mxu0 0.0
    %v327 = vand.u32 %v184, 4294901760
    %328 = vmatpush1.msra.mxu0 %v327
    %329 = vmatprep.subr.mxu0 0.0
    %v330 = vand.u32 %v185, 4294901760
    %331 = vmatpush1.msra.mxu0 %v330
    %332 = vmatprep.subr.mxu0 0.0
    %v333 = vand.u32 %v186, 4294901760
    %334 = vmatpush1.msra.mxu0 %v333
    %335 = vmatprep.subr.mxu0 0.0
    %v336 = vand.u32 %v187, 4294901760
    %337 = vmatpush1.msra.mxu0 %v336
    %338 = vmatprep.subr.mxu0 0.0
    %v339 = vand.u32 %v188, 4294901760
    %340 = vmatpush1.msra.mxu0 %v339
    %341 = vmatprep.subr.mxu0 0.0
    %v342 = vand.u32 %v189, 4294901760
    %343 = vmatpush1.msra.mxu0 %v342
    %344 = vmatprep.subr.mxu0 0.0
    %v345 = vand.u32 %v190, 4294901760
    %346 = vmatpush1.msra.mxu0 %v345
    %347 = vmatprep.subr.mxu0 0.0
    %v348 = vand.u32 %v191, 4294901760
    %349 = vmatpush1.msra.mxu0 %v348
    %350 = vmatprep.subr.mxu0 0.0
    %v351 = vand.u32 %v192, 4294901760
    %352 = vmatpush1.msra.mxu0 %v351
    %353 = vmatprep.subr.mxu0 0.0
    %v354 = vand.u32 %v193, 4294901760
    %355 = vmatpush1.msra.mxu0 %v354
    %356 = vmatprep.subr.mxu0 0.0
    %v357 = vand.u32 %v194, 4294901760
    %358 = vmatpush1.msra.mxu0 %v357
    %359 = vmatprep.subr.mxu0 0.0
    %v360 = vand.u32 %v195, 4294901760
    %361 = vmatpush1.msra.mxu0 %v360
    %v362 = vand.u32 %v60, 4294901760
    %v363 = vsub.f32 %v60, %v362
    %v364 = vand.u32 %v363, 4294901760
    %v365 = vsub.f32 %v363, %v364
    %v366 = vand.u32 %v365, 4294901760
    %367 = vmatprep.mubr.f32.mxu0 %v366
    %v368 = vand.u32 %v59, 4294901760
    %v369 = vsub.f32 %v59, %v368
    %v370 = vand.u32 %v369, 4294901760
    %v371 = vsub.f32 %v369, %v370
    %v372 = vand.u32 %v371, 4294901760
    %373 = vmatmul.mubr.f32.gmra.mrb[0].mxu0 %v372
    %v374 = vpop.f32.mrb[0].mxu0
    %v375 = vadd.f32 0.0, %v374
    %v376 = vpop.f32.mrb[0].mxu0
    %377 = vdwg.mxu0
    %378 = vmatprep.subr.mxu0 0.0
    %v379 = vand.u32 %v164, 4294901760
    %v380 = vsub.f32 %v164, %v379
    %v381 = vand.u32 %v380, 4294901760
    %v382 = vsub.f32 %v380, %v381
    %v383 = vand.u32 %v382, 4294901760
    %384 = vmatpush1.msra.mxu0 %v383
    %385 = vmatprep.subr.mxu0 0.0
    %v386 = vand.u32 %v165, 4294901760
    %v387 = vsub.f32 %v165, %v386
    %v388 = vand.u32 %v387, 4294901760
    %v389 = vsub.f32 %v387, %v388
    %v390 = vand.u32 %v389, 4294901760
    %391 = vmatpush1.msra.mxu0 %v390
    %392 = vmatprep.subr.mxu0 0.0
    %v393 = vand.u32 %v166, 4294901760
    %v394 = vsub.f32 %v166, %v393
    %v395 = vand.u32 %v394, 4294901760
    %v396 = vsub.f32 %v394, %v395
    %v397 = vand.u32 %v396, 4294901760
    %398 = vmatpush1.msra.mxu0 %v397
    %399 = vmatprep.subr.mxu0 0.0
    %v400 = vand.u32 %v167, 4294901760
    %v401 = vsub.f32 %v167, %v400
    %v402 = vand.u32 %v401, 4294901760
    %v403 = vsub.f32 %v401, %v402
    %v404 = vand.u32 %v403, 4294901760
    %405 = vmatpush1.msra.mxu0 %v404
    %406 = vmatprep.subr.mxu0 0.0
    %v407 = vand.u32 %v168, 4294901760
    %v408 = vsub.f32 %v168, %v407
    %v409 = vand.u32 %v408, 4294901760
    %v410 = vsub.f32 %v408, %v409
    %v411 = vand.u32 %v410, 4294901760
    %412 = vmatpush1.msra.mxu0 %v411
    %413 = vmatprep.subr.mxu0 0.0
    %v414 = vand.u32 %v169, 4294901760
    %v415 = vsub.f32 %v169, %v414
    %v416 = vand.u32 %v415, 4294901760
    %v417 = vsub.f32 %v415, %v416
    %v418 = vand.u32 %v417, 4294901760
    %419 = vmatpush1.msra.mxu0 %v418
    %420 = vmatprep.subr.mxu0 0.0
    %v421 = vand.u32 %v170, 4294901760
    %v422 = vsub.f32 %v170, %v421
    %v423 = vand.u32 %v422, 4294901760
    %v424 = vsub.f32 %v422, %v423
    %v425 = vand.u32 %v424, 4294901760
    %426 = vmatpush1.msra.mxu0 %v425
    %427 = vmatprep.subr.mxu0 0.0
    %v428 = vand.u32 %v171, 4294901760
    %v429 = vsub.f32 %v171, %v428
    %v430 = vand.u32 %v429, 4294901760
    %v431 = vsub.f32 %v429, %v430
    %v432 = vand.u32 %v431, 4294901760
    %433 = vmatpush1.msra.mxu0 %v432
    %434 = vmatprep.subr.mxu0 0.0
    %v435 = vand.u32 %v172, 4294901760
    %v436 = vsub.f32 %v172, %v435
    %v437 = vand.u32 %v436, 4294901760
    %v438 = vsub.f32 %v436, %v437
    %v439 = vand.u32 %v438, 4294901760
    %440 = vmatpush1.msra.mxu0 %v439
    %441 = vmatprep.subr.mxu0 0.0
    %v442 = vand.u32 %v173, 4294901760
    %v443 = vsub.f32 %v173, %v442
    %v444 = vand.u32 %v443, 4294901760
    %v445 = vsub.f32 %v443, %v444
    %v446 = vand.u32 %v445, 4294901760
    %447 = vmatpush1.msra.mxu0 %v446
    %448 = vmatprep.subr.mxu0 0.0
    %v449 = vand.u32 %v174, 4294901760
    %v450 = vsub.f32 %v174, %v449
    %v451 = vand.u32 %v450, 4294901760
    %v452 = vsub.f32 %v450, %v451
    %v453 = vand.u32 %v452, 4294901760
    %454 = vmatpush1.msra.mxu0 %v453
    %455 = vmatprep.subr.mxu0 0.0
    %v456 = vand.u32 %v175, 4294901760
    %v457 = vsub.f32 %v175, %v456
    %v458 = vand.u32 %v457, 4294901760
    %v459 = vsub.f32 %v457, %v458
    %v460 = vand.u32 %v459, 4294901760
    %461 = vmatpush1.msra.mxu0 %v460
    %462 = vmatprep.subr.mxu0 0.0
    %v463 = vand.u32 %v176, 4294901760
    %v464 = vsub.f32 %v176, %v463
    %v465 = vand.u32 %v464, 4294901760
    %v466 = vsub.f32 %v464, %v465
    %v467 = vand.u32 %v466, 4294901760
    %468 = vmatpush1.msra.mxu0 %v467
    %469 = vmatprep.subr.mxu0 0.0
    %v470 = vand.u32 %v177, 4294901760
    %v471 = vsub.f32 %v177, %v470
    %v472 = vand.u32 %v471, 4294901760
    %v473 = vsub.f32 %v471, %v472
    %v474 = vand.u32 %v473, 4294901760
    %475 = vmatpush1.msra.mxu0 %v474
    %476 = vmatprep.subr.mxu0 0.0
    %v477 = vand.u32 %v178, 4294901760
    %v478 = vsub.f32 %v178, %v477
    %v479 = vand.u32 %v478, 4294901760
    %v480 = vsub.f32 %v478, %v479
    %v481 = vand.u32 %v480, 4294901760
    %482 = vmatpush1.msra.mxu0 %v481
    %483 = vmatprep.subr.mxu0 0.0
    %v484 = vand.u32 %v179, 4294901760
    %v485 = vsub.f32 %v179, %v484
    %v486 = vand.u32 %v485, 4294901760
    %v487 = vsub.f32 %v485, %v486
    %v488 = vand.u32 %v487, 4294901760
    %489 = vmatpush1.msra.mxu0 %v488
    %490 = vmatprep.subr.mxu0 0.0
    %v491 = vand.u32 %v180, 4294901760
    %v492 = vsub.f32 %v180, %v491
    %v493 = vand.u32 %v492, 4294901760
    %v494 = vsub.f32 %v492, %v493
    %v495 = vand.u32 %v494, 4294901760
    %496 = vmatpush1.msra.mxu0 %v495
    %497 = vmatprep.subr.mxu0 0.0
    %v498 = vand.u32 %v181, 4294901760
    %v499 = vsub.f32 %v181, %v498
    %v500 = vand.u32 %v499, 4294901760
    %v501 = vsub.f32 %v499, %v500
    %v502 = vand.u32 %v501, 4294901760
    %503 = vmatpush1.msra.mxu0 %v502
    %504 = vmatprep.subr.mxu0 0.0
    %v505 = vand.u32 %v182, 4294901760
    %v506 = vsub.f32 %v182, %v505
    %v507 = vand.u32 %v506, 4294901760
    %v508 = vsub.f32 %v506, %v507
    %v509 = vand.u32 %v508, 4294901760
    %510 = vmatpush1.msra.mxu0 %v509
    %511 = vmatprep.subr.mxu0 0.0
    %v512 = vand.u32 %v183, 4294901760
    %v513 = vsub.f32 %v183, %v512
    %v514 = vand.u32 %v513, 4294901760
    %v515 = vsub.f32 %v513, %v514
    %v516 = vand.u32 %v515, 4294901760
    %517 = vmatpush1.msra.mxu0 %v516
    %518 = vmatprep.subr.mxu0 0.0
    %v519 = vand.u32 %v184, 4294901760
    %v520 = vsub.f32 %v184, %v519
    %v521 = vand.u32 %v520, 4294901760
    %v522 = vsub.f32 %v520, %v521
    %v523 = vand.u32 %v522, 4294901760
    %524 = vmatpush1.msra.mxu0 %v523
    %525 = vmatprep.subr.mxu0 0.0
    %v526 = vand.u32 %v185, 4294901760
    %v527 = vsub.f32 %v185, %v526
    %v528 = vand.u32 %v527, 4294901760
    %v529 = vsub.f32 %v527, %v528
    %v530 = vand.u32 %v529, 4294901760
    %531 = vmatpush1.msra.mxu0 %v530
    %532 = vmatprep.subr.mxu0 0.0
    %v533 = vand.u32 %v186, 4294901760
    %v534 = vsub.f32 %v186, %v533
    %v535 = vand.u32 %v534, 4294901760
    %v536 = vsub.f32 %v534, %v535
    %v537 = vand.u32 %v536, 4294901760
    %538 = vmatpush1.msra.mxu0 %v537
    %539 = vmatprep.subr.mxu0 0.0
    %v540 = vand.u32 %v187, 4294901760
    %v541 = vsub.f32 %v187, %v540
    %v542 = vand.u32 %v541, 4294901760
    %v543 = vsub.f32 %v541, %v542
    %v544 = vand.u32 %v543, 4294901760
    %545 = vmatpush1.msra.mxu0 %v544
    %546 = vmatprep.subr.mxu0 0.0
    %v547 = vand.u32 %v188, 4294901760
    %v548 = vsub.f32 %v188, %v547
    %v549 = vand.u32 %v548, 4294901760
    %v550 = vsub.f32 %v548, %v549
    %v551 = vand.u32 %v550, 4294901760
    %552 = vmatpush1.msra.mxu0 %v551
    %553 = vmatprep.subr.mxu0 0.0
    %v554 = vand.u32 %v189, 4294901760
    %v555 = vsub.f32 %v189, %v554
    %v556 = vand.u32 %v555, 4294901760
    %v557 = vsub.f32 %v555, %v556
    %v558 = vand.u32 %v557, 4294901760
    %559 = vmatpush1.msra.mxu0 %v558
    %560 = vmatprep.subr.mxu0 0.0
    %v561 = vand.u32 %v190, 4294901760
    %v562 = vsub.f32 %v190, %v561
    %v563 = vand.u32 %v562, 4294901760
    %v564 = vsub.f32 %v562, %v563
    %v565 = vand.u32 %v564, 4294901760
    %566 = vmatpush1.msra.mxu0 %v565
    %567 = vmatprep.subr.mxu0 0.0
    %v568 = vand.u32 %v191, 4294901760
    %v569 = vsub.f32 %v191, %v568
    %v570 = vand.u32 %v569, 4294901760
    %v571 = vsub.f32 %v569, %v570
    %v572 = vand.u32 %v571, 4294901760
    %573 = vmatpush1.msra.mxu0 %v572
    %574 = vmatprep.subr.mxu0 0.0
    %v575 = vand.u32 %v192, 4294901760
    %v576 = vsub.f32 %v192, %v575
    %v577 = vand.u32 %v576, 4294901760
    %v578 = vsub.f32 %v576, %v577
    %v579 = vand.u32 %v578, 4294901760
    %580 = vmatpush1.msra.mxu0 %v579
    %581 = vmatprep.subr.mxu0 0.0
    %v582 = vand.u32 %v193, 4294901760
    %v583 = vsub.f32 %v193, %v582
    %v584 = vand.u32 %v583, 4294901760
    %v585 = vsub.f32 %v583, %v584
    %v586 = vand.u32 %v585, 4294901760
    %587 = vmatpush1.msra.mxu0 %v586
    %588 = vmatprep.subr.mxu0 0.0
    %v589 = vand.u32 %v194, 4294901760
    %v590 = vsub.f32 %v194, %v589
    %v591 = vand.u32 %v590, 4294901760
    %v592 = vsub.f32 %v590, %v591
    %v593 = vand.u32 %v592, 4294901760
    %594 = vmatpush1.msra.mxu0 %v593
    %595 = vmatprep.subr.mxu0 0.0
    %v596 = vand.u32 %v195, 4294901760
    %v597 = vsub.f32 %v195, %v596
    %v598 = vand.u32 %v597, 4294901760
    %v599 = vsub.f32 %v597, %v598
    %v600 = vand.u32 %v599, 4294901760
    %601 = vmatpush1.msra.mxu0 %v600
    %v602 = vand.u32 %v60, 4294901760
    %603 = vmatprep.mubr.f32.mxu0 %v602
    %v604 = vand.u32 %v59, 4294901760
    %605 = vmatmul.mubr.f32.gmra.mrb[0].mxu0 %v604
    %v606 = vpop.f32.mrb[0].mxu0
    %v607 = vadd.f32 %v375, %v606
    %v608 = vpop.f32.mrb[0].mxu0
    %609 = vdwg.mxu0
    %610 = vmatprep.subr.mxu0 0.0
    %v611 = vand.u32 %v164, 4294901760
    %v612 = vsub.f32 %v164, %v611
    %613 = vmatpush1.msra.mxu0 %v612
    %614 = vmatprep.subr.mxu0 0.0
    %v615 = vand.u32 %v165, 4294901760
    %v616 = vsub.f32 %v165, %v615
    %617 = vmatpush1.msra.mxu0 %v616
    %618 = vmatprep.subr.mxu0 0.0
    %v619 = vand.u32 %v166, 4294901760
    %v620 = vsub.f32 %v166, %v619
    %621 = vmatpush1.msra.mxu0 %v620
    %622 = vmatprep.subr.mxu0 0.0
    %v623 = vand.u32 %v167, 4294901760
    %v624 = vsub.f32 %v167, %v623
    %625 = vmatpush1.msra.mxu0 %v624
    %626 = vmatprep.subr.mxu0 0.0
    %v627 = vand.u32 %v168, 4294901760
    %v628 = vsub.f32 %v168, %v627
    %629 = vmatpush1.msra.mxu0 %v628
    %630 = vmatprep.subr.mxu0 0.0
    %v631 = vand.u32 %v169, 4294901760
    %v632 = vsub.f32 %v169, %v631
    %633 = vmatpush1.msra.mxu0 %v632
    %634 = vmatprep.subr.mxu0 0.0
    %v635 = vand.u32 %v170, 4294901760
    %v636 = vsub.f32 %v170, %v635
    %637 = vmatpush1.msra.mxu0 %v636
    %638 = vmatprep.subr.mxu0 0.0
    %v639 = vand.u32 %v171, 4294901760
    %v640 = vsub.f32 %v171, %v639
    %641 = vmatpush1.msra.mxu0 %v640
    %642 = vmatprep.subr.mxu0 0.0
    %v643 = vand.u32 %v172, 4294901760
    %v644 = vsub.f32 %v172, %v643
    %645 = vmatpush1.msra.mxu0 %v644
    %646 = vmatprep.subr.mxu0 0.0
    %v647 = vand.u32 %v173, 4294901760
    %v648 = vsub.f32 %v173, %v647
    %649 = vmatpush1.msra.mxu0 %v648
    %650 = vmatprep.subr.mxu0 0.0
    %v651 = vand.u32 %v174, 4294901760
    %v652 = vsub.f32 %v174, %v651
    %653 = vmatpush1.msra.mxu0 %v652
    %654 = vmatprep.subr.mxu0 0.0
    %v655 = vand.u32 %v175, 4294901760
    %v656 = vsub.f32 %v175, %v655
    %657 = vmatpush1.msra.mxu0 %v656
    %658 = vmatprep.subr.mxu0 0.0
    %v659 = vand.u32 %v176, 4294901760
    %v660 = vsub.f32 %v176, %v659
    %661 = vmatpush1.msra.mxu0 %v660
    %662 = vmatprep.subr.mxu0 0.0
    %v663 = vand.u32 %v177, 4294901760
    %v664 = vsub.f32 %v177, %v663
    %665 = vmatpush1.msra.mxu0 %v664
    %666 = vmatprep.subr.mxu0 0.0
    %v667 = vand.u32 %v178, 4294901760
    %v668 = vsub.f32 %v178, %v667
    %669 = vmatpush1.msra.mxu0 %v668
    %670 = vmatprep.subr.mxu0 0.0
    %v671 = vand.u32 %v179, 4294901760
    %v672 = vsub.f32 %v179, %v671
    %673 = vmatpush1.msra.mxu0 %v672
    %674 = vmatprep.subr.mxu0 0.0
    %v675 = vand.u32 %v180, 4294901760
    %v676 = vsub.f32 %v180, %v675
    %677 = vmatpush1.msra.mxu0 %v676
    %678 = vmatprep.subr.mxu0 0.0
    %v679 = vand.u32 %v181, 4294901760
    %v680 = vsub.f32 %v181, %v679
    %681 = vmatpush1.msra.mxu0 %v680
    %682 = vmatprep.subr.mxu0 0.0
    %v683 = vand.u32 %v182, 4294901760
    %v684 = vsub.f32 %v182, %v683
    %685 = vmatpush1.msra.mxu0 %v684
    %686 = vmatprep.subr.mxu0 0.0
    %v687 = vand.u32 %v183, 4294901760
    %v688 = vsub.f32 %v183, %v687
    %689 = vmatpush1.msra.mxu0 %v688
    %690 = vmatprep.subr.mxu0 0.0
    %v691 = vand.u32 %v184, 4294901760
    %v692 = vsub.f32 %v184, %v691
    %693 = vmatpush1.msra.mxu0 %v692
    %694 = vmatprep.subr.mxu0 0.0
    %v695 = vand.u32 %v185, 4294901760
    %v696 = vsub.f32 %v185, %v695
    %697 = vmatpush1.msra.mxu0 %v696
    %698 = vmatprep.subr.mxu0 0.0
    %v699 = vand.u32 %v186, 4294901760
    %v700 = vsub.f32 %v186, %v699
    %701 = vmatpush1.msra.mxu0 %v700
    %702 = vmatprep.subr.mxu0 0.0
    %v703 = vand.u32 %v187, 4294901760
    %v704 = vsub.f32 %v187, %v703
    %705 = vmatpush1.msra.mxu0 %v704
    %706 = vmatprep.subr.mxu0 0.0
    %v707 = vand.u32 %v188, 4294901760
    %v708 = vsub.f32 %v188, %v707
    %709 = vmatpush1.msra.mxu0 %v708
    %710 = vmatprep.subr.mxu0 0.0
    %v711 = vand.u32 %v189, 4294901760
    %v712 = vsub.f32 %v189, %v711
    %713 = vmatpush1.msra.mxu0 %v712
    %714 = vmatprep.subr.mxu0 0.0
    %v715 = vand.u32 %v190, 4294901760
    %v716 = vsub.f32 %v190, %v715
    %717 = vmatpush1.msra.mxu0 %v716
    %718 = vmatprep.subr.mxu0 0.0
    %v719 = vand.u32 %v191, 4294901760
    %v720 = vsub.f32 %v191, %v719
    %721 = vmatpush1.msra.mxu0 %v720
    %722 = vmatprep.subr.mxu0 0.0
    %v723 = vand.u32 %v192, 4294901760
    %v724 = vsub.f32 %v192, %v723
    %725 = vmatpush1.msra.mxu0 %v724
    %726 = vmatprep.subr.mxu0 0.0
    %v727 = vand.u32 %v193, 4294901760
    %v728 = vsub.f32 %v193, %v727
    %729 = vmatpush1.msra.mxu0 %v728
    %730 = vmatprep.subr.mxu0 0.0
    %v731 = vand.u32 %v194, 4294901760
    %v732 = vsub.f32 %v194, %v731
    %733 = vmatpush1.msra.mxu0 %v732
    %734 = vmatprep.subr.mxu0 0.0
    %v735 = vand.u32 %v195, 4294901760
    %v736 = vsub.f32 %v195, %v735
    %737 = vmatpush1.msra.mxu0 %v736
    %v738 = vand.u32 %v60, 4294901760
    %v739 = vsub.f32 %v60, %v738
    %740 = vmatprep.mubr.f32.mxu0 %v739
    %v741 = vand.u32 %v59, 4294901760
    %v742 = vsub.f32 %v59, %v741
    %743 = vmatmul.mubr.f32.gmra.mrb[0].mxu0 %v742
    %v744 = vpop.f32.mrb[0].mxu0
    %v745 = vadd.f32 %v607, %v744
    %v746 = vpop.f32.mrb[0].mxu0
    %747 = vdwg.mxu0
    %748 = vmatprep.subr.mxu0 0.0
    %v749 = vand.u32 %v164, 4294901760
    %750 = vmatpush1.msra.mxu0 %v749
    %751 = vmatprep.subr.mxu0 0.0
    %v752 = vand.u32 %v165, 4294901760
    %753 = vmatpush1.msra.mxu0 %v752
    %754 = vmatprep.subr.mxu0 0.0
    %v755 = vand.u32 %v166, 4294901760
    %756 = vmatpush1.msra.mxu0 %v755
    %757 = vmatprep.subr.mxu0 0.0
    %v758 = vand.u32 %v167, 4294901760
    %759 = vmatpush1.msra.mxu0 %v758
    %760 = vmatprep.subr.mxu0 0.0
    %v761 = vand.u32 %v168, 4294901760
    %762 = vmatpush1.msra.mxu0 %v761
    %763 = vmatprep.subr.mxu0 0.0
    %v764 = vand.u32 %v169, 4294901760
    %765 = vmatpush1.msra.mxu0 %v764
    %766 = vmatprep.subr.mxu0 0.0
    %v767 = vand.u32 %v170, 4294901760
    %768 = vmatpush1.msra.mxu0 %v767
    %769 = vmatprep.subr.mxu0 0.0
    %v770 = vand.u32 %v171, 4294901760
    %771 = vmatpush1.msra.mxu0 %v770
    %772 = vmatprep.subr.mxu0 0.0
    %v773 = vand.u32 %v172, 4294901760
    %774 = vmatpush1.msra.mxu0 %v773
    %775 = vmatprep.subr.mxu0 0.0
    %v776 = vand.u32 %v173, 4294901760
    %777 = vmatpush1.msra.mxu0 %v776
    %778 = vmatprep.subr.mxu0 0.0
    %v779 = vand.u32 %v174, 4294901760
    %780 = vmatpush1.msra.mxu0 %v779
    %781 = vmatprep.subr.mxu0 0.0
    %v782 = vand.u32 %v175, 4294901760
    %783 = vmatpush1.msra.mxu0 %v782
    %784 = vmatprep.subr.mxu0 0.0
    %v785 = vand.u32 %v176, 4294901760
    %786 = vmatpush1.msra.mxu0 %v785
    %787 = vmatprep.subr.mxu0 0.0
    %v788 = vand.u32 %v177, 4294901760
    %789 = vmatpush1.msra.mxu0 %v788
    %790 = vmatprep.subr.mxu0 0.0
    %v791 = vand.u32 %v178, 4294901760
    %792 = vmatpush1.msra.mxu0 %v791
    %793 = vmatprep.subr.mxu0 0.0
    %v794 = vand.u32 %v179, 4294901760
    %795 = vmatpush1.msra.mxu0 %v794
    %796 = vmatprep.subr.mxu0 0.0
    %v797 = vand.u32 %v180, 4294901760
    %798 = vmatpush1.msra.mxu0 %v797
    %799 = vmatprep.subr.mxu0 0.0
    %v800 = vand.u32 %v181, 4294901760
    %801 = vmatpush1.msra.mxu0 %v800
    %802 = vmatprep.subr.mxu0 0.0
    %v803 = vand.u32 %v182, 4294901760
    %804 = vmatpush1.msra.mxu0 %v803
    %805 = vmatprep.subr.mxu0 0.0
    %v806 = vand.u32 %v183, 4294901760
    %807 = vmatpush1.msra.mxu0 %v806
    %808 = vmatprep.subr.mxu0 0.0
    %v809 = vand.u32 %v184, 4294901760
    %810 = vmatpush1.msra.mxu0 %v809
    %811 = vmatprep.subr.mxu0 0.0
    %v812 = vand.u32 %v185, 4294901760
    %813 = vmatpush1.msra.mxu0 %v812
    %814 = vmatprep.subr.mxu0 0.0
    %v815 = vand.u32 %v186, 4294901760
    %816 = vmatpush1.msra.mxu0 %v815
    %817 = vmatprep.subr.mxu0 0.0
    %v818 = vand.u32 %v187, 4294901760
    %819 = vmatpush1.msra.mxu0 %v818
    %820 = vmatprep.subr.mxu0 0.0
    %v821 = vand.u32 %v188, 4294901760
    %822 = vmatpush1.msra.mxu0 %v821
    %823 = vmatprep.subr.mxu0 0.0
    %v824 = vand.u32 %v189, 4294901760
    %825 = vmatpush1.msra.mxu0 %v824
    %826 = vmatprep.subr.mxu0 0.0
    %v827 = vand.u32 %v190, 4294901760
    %828 = vmatpush1.msra.mxu0 %v827
    %829 = vmatprep.subr.mxu0 0.0
    %v830 = vand.u32 %v191, 4294901760
    %831 = vmatpush1.msra.mxu0 %v830
    %832 = vmatprep.subr.mxu0 0.0
    %v833 = vand.u32 %v192, 4294901760
    %834 = vmatpush1.msra.mxu0 %v833
    %835 = vmatprep.subr.mxu0 0.0
    %v836 = vand.u32 %v193, 4294901760
    %837 = vmatpush1.msra.mxu0 %v836
    %838 = vmatprep.subr.mxu0 0.0
    %v839 = vand.u32 %v194, 4294901760
    %840 = vmatpush1.msra.mxu0 %v839
    %841 = vmatprep.subr.mxu0 0.0
    %v842 = vand.u32 %v195, 4294901760
    %843 = vmatpush1.msra.mxu0 %v842
    %v844 = vand.u32 %v60, 4294901760
    %v845 = vsub.f32 %v60, %v844
    %v846 = vand.u32 %v845, 4294901760
    %847 = vmatprep.mubr.f32.mxu0 %v846
    %v848 = vand.u32 %v59, 4294901760
    %v849 = vsub.f32 %v59, %v848
    %v850 = vand.u32 %v849, 4294901760
    %851 = vmatmul.mubr.f32.gmra.mrb[0].mxu0 %v850
    %v852 = vpop.f32.mrb[0].mxu0
    %v853 = vadd.f32 %v745, %v852
    %v854 = vpop.f32.mrb[0].mxu0
    %855 = vdwg.mxu0
    %856 = vmatprep.subr.mxu0 0.0
    %v857 = vand.u32 %v164, 4294901760
    %v858 = vsub.f32 %v164, %v857
    %v859 = vand.u32 %v858, 4294901760
    %860 = vmatpush1.msra.mxu0 %v859
    %861 = vmatprep.subr.mxu0 0.0
    %v862 = vand.u32 %v165, 4294901760
    %v863 = vsub.f32 %v165, %v862
    %v864 = vand.u32 %v863, 4294901760
    %865 = vmatpush1.msra.mxu0 %v864
    %866 = vmatprep.subr.mxu0 0.0
    %v867 = vand.u32 %v166, 4294901760
    %v868 = vsub.f32 %v166, %v867
    %v869 = vand.u32 %v868, 4294901760
    %870 = vmatpush1.msra.mxu0 %v869
    %871 = vmatprep.subr.mxu0 0.0
    %v872 = vand.u32 %v167, 4294901760
    %v873 = vsub.f32 %v167, %v872
    %v874 = vand.u32 %v873, 4294901760
    %875 = vmatpush1.msra.mxu0 %v874
    %876 = vmatprep.subr.mxu0 0.0
    %v877 = vand.u32 %v168, 4294901760
    %v878 = vsub.f32 %v168, %v877
    %v879 = vand.u32 %v878, 4294901760
    %880 = vmatpush1.msra.mxu0 %v879
    %881 = vmatprep.subr.mxu0 0.0
    %v882 = vand.u32 %v169, 4294901760
    %v883 = vsub.f32 %v169, %v882
    %v884 = vand.u32 %v883, 4294901760
    %885 = vmatpush1.msra.mxu0 %v884
    %886 = vmatprep.subr.mxu0 0.0
    %v887 = vand.u32 %v170, 4294901760
    %v888 = vsub.f32 %v170, %v887
    %v889 = vand.u32 %v888, 4294901760
    %890 = vmatpush1.msra.mxu0 %v889
    %891 = vmatprep.subr.mxu0 0.0
    %v892 = vand.u32 %v171, 4294901760
    %v893 = vsub.f32 %v171, %v892
    %v894 = vand.u32 %v893, 4294901760
    %895 = vmatpush1.msra.mxu0 %v894
    %896 = vmatprep.subr.mxu0 0.0
    %v897 = vand.u32 %v172, 4294901760
    %v898 = vsub.f32 %v172, %v897
    %v899 = vand.u32 %v898, 4294901760
    %900 = vmatpush1.msra.mxu0 %v899
    %901 = vmatprep.subr.mxu0 0.0
    %v902 = vand.u32 %v173, 4294901760
    %v903 = vsub.f32 %v173, %v902
    %v904 = vand.u32 %v903, 4294901760
    %905 = vmatpush1.msra.mxu0 %v904
    %906 = vmatprep.subr.mxu0 0.0
    %v907 = vand.u32 %v174, 4294901760
    %v908 = vsub.f32 %v174, %v907
    %v909 = vand.u32 %v908, 4294901760
    %910 = vmatpush1.msra.mxu0 %v909
    %911 = vmatprep.subr.mxu0 0.0
    %v912 = vand.u32 %v175, 4294901760
    %v913 = vsub.f32 %v175, %v912
    %v914 = vand.u32 %v913, 4294901760
    %915 = vmatpush1.msra.mxu0 %v914
    %916 = vmatprep.subr.mxu0 0.0
    %v917 = vand.u32 %v176, 4294901760
    %v918 = vsub.f32 %v176, %v917
    %v919 = vand.u32 %v918, 4294901760
    %920 = vmatpush1.msra.mxu0 %v919
    %921 = vmatprep.subr.mxu0 0.0
    %v922 = vand.u32 %v177, 4294901760
    %v923 = vsub.f32 %v177, %v922
    %v924 = vand.u32 %v923, 4294901760
    %925 = vmatpush1.msra.mxu0 %v924
    %926 = vmatprep.subr.mxu0 0.0
    %v927 = vand.u32 %v178, 4294901760
    %v928 = vsub.f32 %v178, %v927
    %v929 = vand.u32 %v928, 4294901760
    %930 = vmatpush1.msra.mxu0 %v929
    %931 = vmatprep.subr.mxu0 0.0
    %v932 = vand.u32 %v179, 4294901760
    %v933 = vsub.f32 %v179, %v932
    %v934 = vand.u32 %v933, 4294901760
    %935 = vmatpush1.msra.mxu0 %v934
    %936 = vmatprep.subr.mxu0 0.0
    %v937 = vand.u32 %v180, 4294901760
    %v938 = vsub.f32 %v180, %v937
    %v939 = vand.u32 %v938, 4294901760
    %940 = vmatpush1.msra.mxu0 %v939
    %941 = vmatprep.subr.mxu0 0.0
    %v942 = vand.u32 %v181, 4294901760
    %v943 = vsub.f32 %v181, %v942
    %v944 = vand.u32 %v943, 4294901760
    %945 = vmatpush1.msra.mxu0 %v944
    %946 = vmatprep.subr.mxu0 0.0
    %v947 = vand.u32 %v182, 4294901760
    %v948 = vsub.f32 %v182, %v947
    %v949 = vand.u32 %v948, 4294901760
    %950 = vmatpush1.msra.mxu0 %v949
    %951 = vmatprep.subr.mxu0 0.0
    %v952 = vand.u32 %v183, 4294901760
    %v953 = vsub.f32 %v183, %v952
    %v954 = vand.u32 %v953, 4294901760
    %955 = vmatpush1.msra.mxu0 %v954
    %956 = vmatprep.subr.mxu0 0.0
    %v957 = vand.u32 %v184, 4294901760
    %v958 = vsub.f32 %v184, %v957
    %v959 = vand.u32 %v958, 4294901760
    %960 = vmatpush1.msra.mxu0 %v959
    %961 = vmatprep.subr.mxu0 0.0
    %v962 = vand.u32 %v185, 4294901760
    %v963 = vsub.f32 %v185, %v962
    %v964 = vand.u32 %v963, 4294901760
    %965 = vmatpush1.msra.mxu0 %v964
    %966 = vmatprep.subr.mxu0 0.0
    %v967 = vand.u32 %v186, 4294901760
    %v968 = vsub.f32 %v186, %v967
    %v969 = vand.u32 %v968, 4294901760
    %970 = vmatpush1.msra.mxu0 %v969
    %971 = vmatprep.subr.mxu0 0.0
    %v972 = vand.u32 %v187, 4294901760
    %v973 = vsub.f32 %v187, %v972
    %v974 = vand.u32 %v973, 4294901760
    %975 = vmatpush1.msra.mxu0 %v974
    %976 = vmatprep.subr.mxu0 0.0
    %v977 = vand.u32 %v188, 4294901760
    %v978 = vsub.f32 %v188, %v977
    %v979 = vand.u32 %v978, 4294901760
    %980 = vmatpush1.msra.mxu0 %v979
    %981 = vmatprep.subr.mxu0 0.0
    %v982 = vand.u32 %v189, 4294901760
    %v983 = vsub.f32 %v189, %v982
    %v984 = vand.u32 %v983, 4294901760
    %985 = vmatpush1.msra.mxu0 %v984
    %986 = vmatprep.subr.mxu0 0.0
    %v987 = vand.u32 %v190, 4294901760
    %v988 = vsub.f32 %v190, %v987
    %v989 = vand.u32 %v988, 4294901760
    %990 = vmatpush1.msra.mxu0 %v989
    %991 = vmatprep.subr.mxu0 0.0
    %v992 = vand.u32 %v191, 4294901760
    %v993 = vsub.f32 %v191, %v992
    %v994 = vand.u32 %v993, 4294901760
    %995 = vmatpush1.msra.mxu0 %v994
    %996 = vmatprep.subr.mxu0 0.0
    %v997 = vand.u32 %v192, 4294901760
    %v998 = vsub.f32 %v192, %v997
    %v999 = vand.u32 %v998, 4294901760
    %1000 = vmatpush1.msra.mxu0 %v999
    %1001 = vmatprep.subr.mxu0 0.0
    %v1002 = vand.u32 %v193, 4294901760
    %v1003 = vsub.f32 %v193, %v1002
    %v1004 = vand.u32 %v1003, 4294901760
    %1005 = vmatpush1.msra.mxu0 %v1004
    %1006 = vmatprep.subr.mxu0 0.0
    %v1007 = vand.u32 %v194, 4294901760
    %v1008 = vsub.f32 %v194, %v1007
    %v1009 = vand.u32 %v1008, 4294901760
    %1010 = vmatpush1.msra.mxu0 %v1009
    %1011 = vmatprep.subr.mxu0 0.0
    %v1012 = vand.u32 %v195, 4294901760
    %v1013 = vsub.f32 %v195, %v1012
    %v1014 = vand.u32 %v1013, 4294901760
    %1015 = vmatpush1.msra.mxu0 %v1014
    %v1016 = vand.u32 %v60, 4294901760
    %1017 = vmatprep.mubr.f32.mxu0 %v1016
    %v1018 = vand.u32 %v59, 4294901760
    %1019 = vmatmul.mubr.f32.gmra.mrb[0].mxu0 %v1018
    %v1020 = vpop.f32.mrb[0].mxu0
    %v1021 = vadd.f32 %v853, %v1020
    %v1022 = vpop.f32.mrb[0].mxu0
    %1023 = vdwg.mxu0
    %1024 = vmatprep.subr.mxu0 0.0
    %v1025 = vand.u32 %v164, 4294901760
    %1026 = vmatpush1.msra.mxu0 %v1025
    %1027 = vmatprep.subr.mxu0 0.0
    %v1028 = vand.u32 %v165, 4294901760
    %1029 = vmatpush1.msra.mxu0 %v1028
    %1030 = vmatprep.subr.mxu0 0.0
    %v1031 = vand.u32 %v166, 4294901760
    %1032 = vmatpush1.msra.mxu0 %v1031
    %1033 = vmatprep.subr.mxu0 0.0
    %v1034 = vand.u32 %v167, 4294901760
    %1035 = vmatpush1.msra.mxu0 %v1034
    %1036 = vmatprep.subr.mxu0 0.0
    %v1037 = vand.u32 %v168, 4294901760
    %1038 = vmatpush1.msra.mxu0 %v1037
    %1039 = vmatprep.subr.mxu0 0.0
    %v1040 = vand.u32 %v169, 4294901760
    %1041 = vmatpush1.msra.mxu0 %v1040
    %1042 = vmatprep.subr.mxu0 0.0
    %v1043 = vand.u32 %v170, 4294901760
    %1044 = vmatpush1.msra.mxu0 %v1043
    %1045 = vmatprep.subr.mxu0 0.0
    %v1046 = vand.u32 %v171, 4294901760
    %1047 = vmatpush1.msra.mxu0 %v1046
    %1048 = vmatprep.subr.mxu0 0.0
    %v1049 = vand.u32 %v172, 4294901760
    %1050 = vmatpush1.msra.mxu0 %v1049
    %1051 = vmatprep.subr.mxu0 0.0
    %v1052 = vand.u32 %v173, 4294901760
    %1053 = vmatpush1.msra.mxu0 %v1052
    %1054 = vmatprep.subr.mxu0 0.0
    %v1055 = vand.u32 %v174, 4294901760
    %1056 = vmatpush1.msra.mxu0 %v1055
    %1057 = vmatprep.subr.mxu0 0.0
    %v1058 = vand.u32 %v175, 4294901760
    %1059 = vmatpush1.msra.mxu0 %v1058
    %1060 = vmatprep.subr.mxu0 0.0
    %v1061 = vand.u32 %v176, 4294901760
    %1062 = vmatpush1.msra.mxu0 %v1061
    %1063 = vmatprep.subr.mxu0 0.0
    %v1064 = vand.u32 %v177, 4294901760
    %1065 = vmatpush1.msra.mxu0 %v1064
    %1066 = vmatprep.subr.mxu0 0.0
    %v1067 = vand.u32 %v178, 4294901760
    %1068 = vmatpush1.msra.mxu0 %v1067
    %1069 = vmatprep.subr.mxu0 0.0
    %v1070 = vand.u32 %v179, 4294901760
    %1071 = vmatpush1.msra.mxu0 %v1070
    %1072 = vmatprep.subr.mxu0 0.0
    %v1073 = vand.u32 %v180, 4294901760
    %1074 = vmatpush1.msra.mxu0 %v1073
    %1075 = vmatprep.subr.mxu0 0.0
    %v1076 = vand.u32 %v181, 4294901760
    %1077 = vmatpush1.msra.mxu0 %v1076
    %1078 = vmatprep.subr.mxu0 0.0
    %v1079 = vand.u32 %v182, 4294901760
    %1080 = vmatpush1.msra.mxu0 %v1079
    %1081 = vmatprep.subr.mxu0 0.0
    %v1082 = vand.u32 %v183, 4294901760
    %1083 = vmatpush1.msra.mxu0 %v1082
    %1084 = vmatprep.subr.mxu0 0.0
    %v1085 = vand.u32 %v184, 4294901760
    %1086 = vmatpush1.msra.mxu0 %v1085
    %1087 = vmatprep.subr.mxu0 0.0
    %v1088 = vand.u32 %v185, 4294901760
    %1089 = vmatpush1.msra.mxu0 %v1088
    %1090 = vmatprep.subr.mxu0 0.0
    %v1091 = vand.u32 %v186, 4294901760
    %1092 = vmatpush1.msra.mxu0 %v1091
    %1093 = vmatprep.subr.mxu0 0.0
    %v1094 = vand.u32 %v187, 4294901760
    %1095 = vmatpush1.msra.mxu0 %v1094
    %1096 = vmatprep.subr.mxu0 0.0
    %v1097 = vand.u32 %v188, 4294901760
    %1098 = vmatpush1.msra.mxu0 %v1097
    %1099 = vmatprep.subr.mxu0 0.0
    %v1100 = vand.u32 %v189, 4294901760
    %1101 = vmatpush1.msra.mxu0 %v1100
    %1102 = vmatprep.subr.mxu0 0.0
    %v1103 = vand.u32 %v190, 4294901760
    %1104 = vmatpush1.msra.mxu0 %v1103
    %1105 = vmatprep.subr.mxu0 0.0
    %v1106 = vand.u32 %v191, 4294901760
    %1107 = vmatpush1.msra.mxu0 %v1106
    %1108 = vmatprep.subr.mxu0 0.0
    %v1109 = vand.u32 %v192, 4294901760
    %1110 = vmatpush1.msra.mxu0 %v1109
    %1111 = vmatprep.subr.mxu0 0.0
    %v1112 = vand.u32 %v193, 4294901760
    %1113 = vmatpush1.msra.mxu0 %v1112
    %1114 = vmatprep.subr.mxu0 0.0
    %v1115 = vand.u32 %v194, 4294901760
    %1116 = vmatpush1.msra.mxu0 %v1115
    %1117 = vmatprep.subr.mxu0 0.0
    %v1118 = vand.u32 %v195, 4294901760
    %1119 = vmatpush1.msra.mxu0 %v1118
    %v1120 = vand.u32 %v60, 4294901760
    %1121 = vmatprep.mubr.f32.mxu0 %v1120
    %v1122 = vand.u32 %v59, 4294901760
    %1123 = vmatmul.mubr.f32.gmra.mrb[0].mxu0 %v1122
    %v1124 = vpop.f32.mrb[0].mxu0
    %v1125 = vadd.f32 %v1021, %v1124
    %v1126 = vpop.f32.mrb[0].mxu0
    %1127 = vdwg.mxu0
    %1128 = vmatprep.subr.mxu0 0.0
    %v1129 = vand.u32 %v196, 4294901760
    %1130 = vmatpush1.msra.mxu0 %v1129
    %1131 = vmatprep.subr.mxu0 0.0
    %v1132 = vand.u32 %v197, 4294901760
    %1133 = vmatpush1.msra.mxu0 %v1132
    %1134 = vmatprep.subr.mxu0 0.0
    %v1135 = vand.u32 %v198, 4294901760
    %1136 = vmatpush1.msra.mxu0 %v1135
    %1137 = vmatprep.subr.mxu0 0.0
    %v1138 = vand.u32 %v199, 4294901760
    %1139 = vmatpush1.msra.mxu0 %v1138
    %1140 = vmatprep.subr.mxu0 0.0
    %v1141 = vand.u32 %v200, 4294901760
    %1142 = vmatpush1.msra.mxu0 %v1141
    %1143 = vmatprep.subr.mxu0 0.0
    %v1144 = vand.u32 %v201, 4294901760
    %1145 = vmatpush1.msra.mxu0 %v1144
    %1146 = vmatprep.subr.mxu0 0.0
    %v1147 = vand.u32 %v202, 4294901760
    %1148 = vmatpush1.msra.mxu0 %v1147
    %1149 = vmatprep.subr.mxu0 0.0
    %v1150 = vand.u32 %v203, 4294901760
    %1151 = vmatpush1.msra.mxu0 %v1150
    %1152 = vmatprep.subr.mxu0 0.0
    %v1153 = vand.u32 %v204, 4294901760
    %1154 = vmatpush1.msra.mxu0 %v1153
    %1155 = vmatprep.subr.mxu0 0.0
    %v1156 = vand.u32 %v205, 4294901760
    %1157 = vmatpush1.msra.mxu0 %v1156
    %1158 = vmatprep.subr.mxu0 0.0
    %v1159 = vand.u32 %v206, 4294901760
    %1160 = vmatpush1.msra.mxu0 %v1159
    %1161 = vmatprep.subr.mxu0 0.0
    %v1162 = vand.u32 %v207, 4294901760
    %1163 = vmatpush1.msra.mxu0 %v1162
    %1164 = vmatprep.subr.mxu0 0.0
    %v1165 = vand.u32 %v208, 4294901760
    %1166 = vmatpush1.msra.mxu0 %v1165
    %1167 = vmatprep.subr.mxu0 0.0
    %v1168 = vand.u32 %v209, 4294901760
    %1169 = vmatpush1.msra.mxu0 %v1168
    %1170 = vmatprep.subr.mxu0 0.0
    %v1171 = vand.u32 %v210, 4294901760
    %1172 = vmatpush1.msra.mxu0 %v1171
    %1173 = vmatprep.subr.mxu0 0.0
    %v1174 = vand.u32 %v211, 4294901760
    %1175 = vmatpush1.msra.mxu0 %v1174
    %1176 = vmatprep.subr.mxu0 0.0
    %v1177 = vand.u32 %v212, 4294901760
    %1178 = vmatpush1.msra.mxu0 %v1177
    %1179 = vmatprep.subr.mxu0 0.0
    %v1180 = vand.u32 %v213, 4294901760
    %1181 = vmatpush1.msra.mxu0 %v1180
    %1182 = vmatprep.subr.mxu0 0.0
    %v1183 = vand.u32 %v214, 4294901760
    %1184 = vmatpush1.msra.mxu0 %v1183
    %1185 = vmatprep.subr.mxu0 0.0
    %v1186 = vand.u32 %v215, 4294901760
    %1187 = vmatpush1.msra.mxu0 %v1186
    %1188 = vmatprep.subr.mxu0 0.0
    %v1189 = vand.u32 %v216, 4294901760
    %1190 = vmatpush1.msra.mxu0 %v1189
    %1191 = vmatprep.subr.mxu0 0.0
    %v1192 = vand.u32 %v217, 4294901760
    %1193 = vmatpush1.msra.mxu0 %v1192
    %1194 = vmatprep.subr.mxu0 0.0
    %v1195 = vand.u32 %v218, 4294901760
    %1196 = vmatpush1.msra.mxu0 %v1195
    %1197 = vmatprep.subr.mxu0 0.0
    %v1198 = vand.u32 %v219, 4294901760
    %1199 = vmatpush1.msra.mxu0 %v1198
    %1200 = vmatprep.subr.mxu0 0.0
    %v1201 = vand.u32 %v220, 4294901760
    %1202 = vmatpush1.msra.mxu0 %v1201
    %1203 = vmatprep.subr.mxu0 0.0
    %v1204 = vand.u32 %v221, 4294901760
    %1205 = vmatpush1.msra.mxu0 %v1204
    %1206 = vmatprep.subr.mxu0 0.0
    %v1207 = vand.u32 %v222, 4294901760
    %1208 = vmatpush1.msra.mxu0 %v1207
    %1209 = vmatprep.subr.mxu0 0.0
    %v1210 = vand.u32 %v223, 4294901760
    %1211 = vmatpush1.msra.mxu0 %v1210
    %1212 = vmatprep.subr.mxu0 0.0
    %v1213 = vand.u32 %v224, 4294901760
    %1214 = vmatpush1.msra.mxu0 %v1213
    %1215 = vmatprep.subr.mxu0 0.0
    %v1216 = vand.u32 %v225, 4294901760
    %1217 = vmatpush1.msra.mxu0 %v1216
    %1218 = vmatprep.subr.mxu0 0.0
    %v1219 = vand.u32 %v226, 4294901760
    %1220 = vmatpush1.msra.mxu0 %v1219
    %1221 = vmatprep.subr.mxu0 0.0
    %v1222 = vand.u32 %v227, 4294901760
    %1223 = vmatpush1.msra.mxu0 %v1222
    %v1224 = vand.u32 %v62, 4294901760
    %v1225 = vsub.f32 %v62, %v1224
    %v1226 = vand.u32 %v1225, 4294901760
    %v1227 = vsub.f32 %v1225, %v1226
    %v1228 = vand.u32 %v1227, 4294901760
    %1229 = vmatprep.mubr.f32.mxu0 %v1228
    %v1230 = vand.u32 %v61, 4294901760
    %v1231 = vsub.f32 %v61, %v1230
    %v1232 = vand.u32 %v1231, 4294901760
    %v1233 = vsub.f32 %v1231, %v1232
    %v1234 = vand.u32 %v1233, 4294901760
    %1235 = vmatmul.mubr.f32.gmra.mrb[0].mxu0 %v1234
    %v1236 = vpop.f32.mrb[0].mxu0
    %v1237 = vadd.f32 %v1125, %v1236
    %v1238 = vpop.f32.mrb[0].mxu0
    %1239 = vdwg.mxu0
    %1240 = vmatprep.subr.mxu0 0.0
    %v1241 = vand.u32 %v196, 4294901760
    %v1242 = vsub.f32 %v196, %v1241
    %v1243 = vand.u32 %v1242, 4294901760
    %v1244 = vsub.f32 %v1242, %v1243
    %v1245 = vand.u32 %v1244, 4294901760
    %1246 = vmatpush1.msra.mxu0 %v1245
    %1247 = vmatprep.subr.mxu0 0.0
    %v1248 = vand.u32 %v197, 4294901760
    %v1249 = vsub.f32 %v197, %v1248
    %v1250 = vand.u32 %v1249, 4294901760
    %v1251 = vsub.f32 %v1249, %v1250
    %v1252 = vand.u32 %v1251, 4294901760
    %1253 = vmatpush1.msra.mxu0 %v1252
    %1254 = vmatprep.subr.mxu0 0.0
    %v1255 = vand.u32 %v198, 4294901760
    %v1256 = vsub.f32 %v198, %v1255
    %v1257 = vand.u32 %v1256, 4294901760
    %v1258 = vsub.f32 %v1256, %v1257
    %v1259 = vand.u32 %v1258, 4294901760
    %1260 = vmatpush1.msra.mxu0 %v1259
    %1261 = vmatprep.subr.mxu0 0.0
    %v1262 = vand.u32 %v199, 4294901760
    %v1263 = vsub.f32 %v199, %v1262
    %v1264 = vand.u32 %v1263, 4294901760
    %v1265 = vsub.f32 %v1263, %v1264
    %v1266 = vand.u32 %v1265, 4294901760
    %1267 = vmatpush1.msra.mxu0 %v1266
    %1268 = vmatprep.subr.mxu0 0.0
    %v1269 = vand.u32 %v200, 4294901760
    %v1270 = vsub.f32 %v200, %v1269
    %v1271 = vand.u32 %v1270, 4294901760
    %v1272 = vsub.f32 %v1270, %v1271
    %v1273 = vand.u32 %v1272, 4294901760
    %1274 = vmatpush1.msra.mxu0 %v1273
    %1275 = vmatprep.subr.mxu0 0.0
    %v1276 = vand.u32 %v201, 4294901760
    %v1277 = vsub.f32 %v201, %v1276
    %v1278 = vand.u32 %v1277, 4294901760
    %v1279 = vsub.f32 %v1277, %v1278
    %v1280 = vand.u32 %v1279, 4294901760
    %1281 = vmatpush1.msra.mxu0 %v1280
    %1282 = vmatprep.subr.mxu0 0.0
    %v1283 = vand.u32 %v202, 4294901760
    %v1284 = vsub.f32 %v202, %v1283
    %v1285 = vand.u32 %v1284, 4294901760
    %v1286 = vsub.f32 %v1284, %v1285
    %v1287 = vand.u32 %v1286, 4294901760
    %1288 = vmatpush1.msra.mxu0 %v1287
    %1289 = vmatprep.subr.mxu0 0.0
    %v1290 = vand.u32 %v203, 4294901760
    %v1291 = vsub.f32 %v203, %v1290
    %v1292 = vand.u32 %v1291, 4294901760
    %v1293 = vsub.f32 %v1291, %v1292
    %v1294 = vand.u32 %v1293, 4294901760
    %1295 = vmatpush1.msra.mxu0 %v1294
    %1296 = vmatprep.subr.mxu0 0.0
    %v1297 = vand.u32 %v204, 4294901760
    %v1298 = vsub.f32 %v204, %v1297
    %v1299 = vand.u32 %v1298, 4294901760
    %v1300 = vsub.f32 %v1298, %v1299
    %v1301 = vand.u32 %v1300, 4294901760
    %1302 = vmatpush1.msra.mxu0 %v1301
    %1303 = vmatprep.subr.mxu0 0.0
    %v1304 = vand.u32 %v205, 4294901760
    %v1305 = vsub.f32 %v205, %v1304
    %v1306 = vand.u32 %v1305, 4294901760
    %v1307 = vsub.f32 %v1305, %v1306
    %v1308 = vand.u32 %v1307, 4294901760
    %1309 = vmatpush1.msra.mxu0 %v1308
    %1310 = vmatprep.subr.mxu0 0.0
    %v1311 = vand.u32 %v206, 4294901760
    %v1312 = vsub.f32 %v206, %v1311
    %v1313 = vand.u32 %v1312, 4294901760
    %v1314 = vsub.f32 %v1312, %v1313
    %v1315 = vand.u32 %v1314, 4294901760
    %1316 = vmatpush1.msra.mxu0 %v1315
    %1317 = vmatprep.subr.mxu0 0.0
    %v1318 = vand.u32 %v207, 4294901760
    %v1319 = vsub.f32 %v207, %v1318
    %v1320 = vand.u32 %v1319, 4294901760
    %v1321 = vsub.f32 %v1319, %v1320
    %v1322 = vand.u32 %v1321, 4294901760
    %1323 = vmatpush1.msra.mxu0 %v1322
    %1324 = vmatprep.subr.mxu0 0.0
    %v1325 = vand.u32 %v208, 4294901760
    %v1326 = vsub.f32 %v208, %v1325
    %v1327 = vand.u32 %v1326, 4294901760
    %v1328 = vsub.f32 %v1326, %v1327
    %v1329 = vand.u32 %v1328, 4294901760
    %1330 = vmatpush1.msra.mxu0 %v1329
    %1331 = vmatprep.subr.mxu0 0.0
    %v1332 = vand.u32 %v209, 4294901760
    %v1333 = vsub.f32 %v209, %v1332
    %v1334 = vand.u32 %v1333, 4294901760
    %v1335 = vsub.f32 %v1333, %v1334
    %v1336 = vand.u32 %v1335, 4294901760
    %1337 = vmatpush1.msra.mxu0 %v1336
    %1338 = vmatprep.subr.mxu0 0.0
    %v1339 = vand.u32 %v210, 4294901760
    %v1340 = vsub.f32 %v210, %v1339
    %v1341 = vand.u32 %v1340, 4294901760
    %v1342 = vsub.f32 %v1340, %v1341
    %v1343 = vand.u32 %v1342, 4294901760
    %1344 = vmatpush1.msra.mxu0 %v1343
    %1345 = vmatprep.subr.mxu0 0.0
    %v1346 = vand.u32 %v211, 4294901760
    %v1347 = vsub.f32 %v211, %v1346
    %v1348 = vand.u32 %v1347, 4294901760
    %v1349 = vsub.f32 %v1347, %v1348
    %v1350 = vand.u32 %v1349, 4294901760
    %1351 = vmatpush1.msra.mxu0 %v1350
    %1352 = vmatprep.subr.mxu0 0.0
    %v1353 = vand.u32 %v212, 4294901760
    %v1354 = vsub.f32 %v212, %v1353
    %v1355 = vand.u32 %v1354, 4294901760
    %v1356 = vsub.f32 %v1354, %v1355
    %v1357 = vand.u32 %v1356, 4294901760
    %1358 = vmatpush1.msra.mxu0 %v1357
    %1359 = vmatprep.subr.mxu0 0.0
    %v1360 = vand.u32 %v213, 4294901760
    %v1361 = vsub.f32 %v213, %v1360
    %v1362 = vand.u32 %v1361, 4294901760
    %v1363 = vsub.f32 %v1361, %v1362
    %v1364 = vand.u32 %v1363, 4294901760
    %1365 = vmatpush1.msra.mxu0 %v1364
    %1366 = vmatprep.subr.mxu0 0.0
    %v1367 = vand.u32 %v214, 4294901760
    %v1368 = vsub.f32 %v214, %v1367
    %v1369 = vand.u32 %v1368, 4294901760
    %v1370 = vsub.f32 %v1368, %v1369
    %v1371 = vand.u32 %v1370, 4294901760
    %1372 = vmatpush1.msra.mxu0 %v1371
    %1373 = vmatprep.subr.mxu0 0.0
    %v1374 = vand.u32 %v215, 4294901760
    %v1375 = vsub.f32 %v215, %v1374
    %v1376 = vand.u32 %v1375, 4294901760
    %v1377 = vsub.f32 %v1375, %v1376
    %v1378 = vand.u32 %v1377, 4294901760
    %1379 = vmatpush1.msra.mxu0 %v1378
    %1380 = vmatprep.subr.mxu0 0.0
    %v1381 = vand.u32 %v216, 4294901760
    %v1382 = vsub.f32 %v216, %v1381
    %v1383 = vand.u32 %v1382, 4294901760
    %v1384 = vsub.f32 %v1382, %v1383
    %v1385 = vand.u32 %v1384, 4294901760
    %1386 = vmatpush1.msra.mxu0 %v1385
    %1387 = vmatprep.subr.mxu0 0.0
    %v1388 = vand.u32 %v217, 4294901760
    %v1389 = vsub.f32 %v217, %v1388
    %v1390 = vand.u32 %v1389, 4294901760
    %v1391 = vsub.f32 %v1389, %v1390
    %v1392 = vand.u32 %v1391, 4294901760
    %1393 = vmatpush1.msra.mxu0 %v1392
    %1394 = vmatprep.subr.mxu0 0.0
    %v1395 = vand.u32 %v218, 4294901760
    %v1396 = vsub.f32 %v218, %v1395
    %v1397 = vand.u32 %v1396, 4294901760
    %v1398 = vsub.f32 %v1396, %v1397
    %v1399 = vand.u32 %v1398, 4294901760
    %1400 = vmatpush1.msra.mxu0 %v1399
    %1401 = vmatprep.subr.mxu0 0.0
    %v1402 = vand.u32 %v219, 4294901760
    %v1403 = vsub.f32 %v219, %v1402
    %v1404 = vand.u32 %v1403, 4294901760
    %v1405 = vsub.f32 %v1403, %v1404
    %v1406 = vand.u32 %v1405, 4294901760
    %1407 = vmatpush1.msra.mxu0 %v1406
    %1408 = vmatprep.subr.mxu0 0.0
    %v1409 = vand.u32 %v220, 4294901760
    %v1410 = vsub.f32 %v220, %v1409
    %v1411 = vand.u32 %v1410, 4294901760
    %v1412 = vsub.f32 %v1410, %v1411
    %v1413 = vand.u32 %v1412, 4294901760
    %1414 = vmatpush1.msra.mxu0 %v1413
    %1415 = vmatprep.subr.mxu0 0.0
    %v1416 = vand.u32 %v221, 4294901760
    %v1417 = vsub.f32 %v221, %v1416
    %v1418 = vand.u32 %v1417, 4294901760
    %v1419 = vsub.f32 %v1417, %v1418
    %v1420 = vand.u32 %v1419, 4294901760
    %1421 = vmatpush1.msra.mxu0 %v1420
    %1422 = vmatprep.subr.mxu0 0.0
    %v1423 = vand.u32 %v222, 4294901760
    %v1424 = vsub.f32 %v222, %v1423
    %v1425 = vand.u32 %v1424, 4294901760
    %v1426 = vsub.f32 %v1424, %v1425
    %v1427 = vand.u32 %v1426, 4294901760
    %1428 = vmatpush1.msra.mxu0 %v1427
    %1429 = vmatprep.subr.mxu0 0.0
    %v1430 = vand.u32 %v223, 4294901760
    %v1431 = vsub.f32 %v223, %v1430
    %v1432 = vand.u32 %v1431, 4294901760
    %v1433 = vsub.f32 %v1431, %v1432
    %v1434 = vand.u32 %v1433, 4294901760
    %1435 = vmatpush1.msra.mxu0 %v1434
    %1436 = vmatprep.subr.mxu0 0.0
    %v1437 = vand.u32 %v224, 4294901760
    %v1438 = vsub.f32 %v224, %v1437
    %v1439 = vand.u32 %v1438, 4294901760
    %v1440 = vsub.f32 %v1438, %v1439
    %v1441 = vand.u32 %v1440, 4294901760
    %1442 = vmatpush1.msra.mxu0 %v1441
    %1443 = vmatprep.subr.mxu0 0.0
    %v1444 = vand.u32 %v225, 4294901760
    %v1445 = vsub.f32 %v225, %v1444
    %v1446 = vand.u32 %v1445, 4294901760
    %v1447 = vsub.f32 %v1445, %v1446
    %v1448 = vand.u32 %v1447, 4294901760
    %1449 = vmatpush1.msra.mxu0 %v1448
    %1450 = vmatprep.subr.mxu0 0.0
    %v1451 = vand.u32 %v226, 4294901760
    %v1452 = vsub.f32 %v226, %v1451
    %v1453 = vand.u32 %v1452, 4294901760
    %v1454 = vsub.f32 %v1452, %v1453
    %v1455 = vand.u32 %v1454, 4294901760
    %1456 = vmatpush1.msra.mxu0 %v1455
    %1457 = vmatprep.subr.mxu0 0.0
    %v1458 = vand.u32 %v227, 4294901760
    %v1459 = vsub.f32 %v227, %v1458
    %v1460 = vand.u32 %v1459, 4294901760
    %v1461 = vsub.f32 %v1459, %v1460
    %v1462 = vand.u32 %v1461, 4294901760
    %1463 = vmatpush1.msra.mxu0 %v1462
    %v1464 = vand.u32 %v62, 4294901760
    %1465 = vmatprep.mubr.f32.mxu0 %v1464
    %v1466 = vand.u32 %v61, 4294901760
    %1467 = vmatmul.mubr.f32.gmra.mrb[0].mxu0 %v1466
    %v1468 = vpop.f32.mrb[0].mxu0
    %v1469 = vadd.f32 %v1237, %v1468
    %v1470 = vpop.f32.mrb[0].mxu0
    %1471 = vdwg.mxu0
    %1472 = vmatprep.subr.mxu0 0.0
    %v1473 = vand.u32 %v196, 4294901760
    %v1474 = vsub.f32 %v196, %v1473
    %1475 = vmatpush1.msra.mxu0 %v1474
    %1476 = vmatprep.subr.mxu0 0.0
    %v1477 = vand.u32 %v197, 4294901760
    %v1478 = vsub.f32 %v197, %v1477
    %1479 = vmatpush1.msra.mxu0 %v1478
    %1480 = vmatprep.subr.mxu0 0.0
    %v1481 = vand.u32 %v198, 4294901760
    %v1482 = vsub.f32 %v198, %v1481
    %1483 = vmatpush1.msra.mxu0 %v1482
    %1484 = vmatprep.subr.mxu0 0.0
    %v1485 = vand.u32 %v199, 4294901760
    %v1486 = vsub.f32 %v199, %v1485
    %1487 = vmatpush1.msra.mxu0 %v1486
    %1488 = vmatprep.subr.mxu0 0.0
    %v1489 = vand.u32 %v200, 4294901760
    %v1490 = vsub.f32 %v200, %v1489
    %1491 = vmatpush1.msra.mxu0 %v1490
    %1492 = vmatprep.subr.mxu0 0.0
    %v1493 = vand.u32 %v201, 4294901760
    %v1494 = vsub.f32 %v201, %v1493
    %1495 = vmatpush1.msra.mxu0 %v1494
    %1496 = vmatprep.subr.mxu0 0.0
    %v1497 = vand.u32 %v202, 4294901760
    %v1498 = vsub.f32 %v202, %v1497
    %1499 = vmatpush1.msra.mxu0 %v1498
    %1500 = vmatprep.subr.mxu0 0.0
    %v1501 = vand.u32 %v203, 4294901760
    %v1502 = vsub.f32 %v203, %v1501
    %1503 = vmatpush1.msra.mxu0 %v1502
    %1504 = vmatprep.subr.mxu0 0.0
    %v1505 = vand.u32 %v204, 4294901760
    %v1506 = vsub.f32 %v204, %v1505
    %1507 = vmatpush1.msra.mxu0 %v1506
    %1508 = vmatprep.subr.mxu0 0.0
    %v1509 = vand.u32 %v205, 4294901760
    %v1510 = vsub.f32 %v205, %v1509
    %1511 = vmatpush1.msra.mxu0 %v1510
    %1512 = vmatprep.subr.mxu0 0.0
    %v1513 = vand.u32 %v206, 4294901760
    %v1514 = vsub.f32 %v206, %v1513
    %1515 = vmatpush1.msra.mxu0 %v1514
    %1516 = vmatprep.subr.mxu0 0.0
    %v1517 = vand.u32 %v207, 4294901760
    %v1518 = vsub.f32 %v207, %v1517
    %1519 = vmatpush1.msra.mxu0 %v1518
    %1520 = vmatprep.subr.mxu0 0.0
    %v1521 = vand.u32 %v208, 4294901760
    %v1522 = vsub.f32 %v208, %v1521
    %1523 = vmatpush1.msra.mxu0 %v1522
    %1524 = vmatprep.subr.mxu0 0.0
    %v1525 = vand.u32 %v209, 4294901760
    %v1526 = vsub.f32 %v209, %v1525
    %1527 = vmatpush1.msra.mxu0 %v1526
    %1528 = vmatprep.subr.mxu0 0.0
    %v1529 = vand.u32 %v210, 4294901760
    %v1530 = vsub.f32 %v210, %v1529
    %1531 = vmatpush1.msra.mxu0 %v1530
    %1532 = vmatprep.subr.mxu0 0.0
    %v1533 = vand.u32 %v211, 4294901760
    %v1534 = vsub.f32 %v211, %v1533
    %1535 = vmatpush1.msra.mxu0 %v1534
    %1536 = vmatprep.subr.mxu0 0.0
    %v1537 = vand.u32 %v212, 4294901760
    %v1538 = vsub.f32 %v212, %v1537
    %1539 = vmatpush1.msra.mxu0 %v1538
    %1540 = vmatprep.subr.mxu0 0.0
    %v1541 = vand.u32 %v213, 4294901760
    %v1542 = vsub.f32 %v213, %v1541
    %1543 = vmatpush1.msra.mxu0 %v1542
    %1544 = vmatprep.subr.mxu0 0.0
    %v1545 = vand.u32 %v214, 4294901760
    %v1546 = vsub.f32 %v214, %v1545
    %1547 = vmatpush1.msra.mxu0 %v1546
    %1548 = vmatprep.subr.mxu0 0.0
    %v1549 = vand.u32 %v215, 4294901760
    %v1550 = vsub.f32 %v215, %v1549
    %1551 = vmatpush1.msra.mxu0 %v1550
    %1552 = vmatprep.subr.mxu0 0.0
    %v1553 = vand.u32 %v216, 4294901760
    %v1554 = vsub.f32 %v216, %v1553
    %1555 = vmatpush1.msra.mxu0 %v1554
    %1556 = vmatprep.subr.mxu0 0.0
    %v1557 = vand.u32 %v217, 4294901760
    %v1558 = vsub.f32 %v217, %v1557
    %1559 = vmatpush1.msra.mxu0 %v1558
    %1560 = vmatprep.subr.mxu0 0.0
    %v1561 = vand.u32 %v218, 4294901760
    %v1562 = vsub.f32 %v218, %v1561
    %1563 = vmatpush1.msra.mxu0 %v1562
    %1564 = vmatprep.subr.mxu0 0.0
    %v1565 = vand.u32 %v219, 4294901760
    %v1566 = vsub.f32 %v219, %v1565
    %1567 = vmatpush1.msra.mxu0 %v1566
    %1568 = vmatprep.subr.mxu0 0.0
    %v1569 = vand.u32 %v220, 4294901760
    %v1570 = vsub.f32 %v220, %v1569
    %1571 = vmatpush1.msra.mxu0 %v1570
    %1572 = vmatprep.subr.mxu0 0.0
    %v1573 = vand.u32 %v221, 4294901760
    %v1574 = vsub.f32 %v221, %v1573
    %1575 = vmatpush1.msra.mxu0 %v1574
    %1576 = vmatprep.subr.mxu0 0.0
    %v1577 = vand.u32 %v222, 4294901760
    %v1578 = vsub.f32 %v222, %v1577
    %1579 = vmatpush1.msra.mxu0 %v1578
    %1580 = vmatprep.subr.mxu0 0.0
    %v1581 = vand.u32 %v223, 4294901760
    %v1582 = vsub.f32 %v223, %v1581
    %1583 = vmatpush1.msra.mxu0 %v1582
    %1584 = vmatprep.subr.mxu0 0.0
    %v1585 = vand.u32 %v224, 4294901760
    %v1586 = vsub.f32 %v224, %v1585
    %1587 = vmatpush1.msra.mxu0 %v1586
    %1588 = vmatprep.subr.mxu0 0.0
    %v1589 = vand.u32 %v225, 4294901760
    %v1590 = vsub.f32 %v225, %v1589
    %1591 = vmatpush1.msra.mxu0 %v1590
    %1592 = vmatprep.subr.mxu0 0.0
    %v1593 = vand.u32 %v226, 4294901760
    %v1594 = vsub.f32 %v226, %v1593
    %1595 = vmatpush1.msra.mxu0 %v1594
    %1596 = vmatprep.subr.mxu0 0.0
    %v1597 = vand.u32 %v227, 4294901760
    %v1598 = vsub.f32 %v227, %v1597
    %1599 = vmatpush1.msra.mxu0 %v1598
    %v1600 = vand.u32 %v62, 4294901760
    %v1601 = vsub.f32 %v62, %v1600
    %1602 = vmatprep.mubr.f32.mxu0 %v1601
    %v1603 = vand.u32 %v61, 4294901760
    %v1604 = vsub.f32 %v61, %v1603
    %1605 = vmatmul.mubr.f32.gmra.mrb[0].mxu0 %v1604
    %v1606 = vpop.f32.mrb[0].mxu0
    %v1607 = vadd.f32 %v1469, %v1606
    %v1608 = vpop.f32.mrb[0].mxu0
    %1609 = vdwg.mxu0
    %1610 = vmatprep.subr.mxu0 0.0
    %v1611 = vand.u32 %v196, 4294901760
    %1612 = vmatpush1.msra.mxu0 %v1611
    %1613 = vmatprep.subr.mxu0 0.0
    %v1614 = vand.u32 %v197, 4294901760
    %1615 = vmatpush1.msra.mxu0 %v1614
    %1616 = vmatprep.subr.mxu0 0.0
    %v1617 = vand.u32 %v198, 4294901760
    %1618 = vmatpush1.msra.mxu0 %v1617
    %1619 = vmatprep.subr.mxu0 0.0
    %v1620 = vand.u32 %v199, 4294901760
    %1621 = vmatpush1.msra.mxu0 %v1620
    %1622 = vmatprep.subr.mxu0 0.0
    %v1623 = vand.u32 %v200, 4294901760
    %1624 = vmatpush1.msra.mxu0 %v1623
    %1625 = vmatprep.subr.mxu0 0.0
    %v1626 = vand.u32 %v201, 4294901760
    %1627 = vmatpush1.msra.mxu0 %v1626
    %1628 = vmatprep.subr.mxu0 0.0
    %v1629 = vand.u32 %v202, 4294901760
    %1630 = vmatpush1.msra.mxu0 %v1629
    %1631 = vmatprep.subr.mxu0 0.0
    %v1632 = vand.u32 %v203, 4294901760
    %1633 = vmatpush1.msra.mxu0 %v1632
    %1634 = vmatprep.subr.mxu0 0.0
    %v1635 = vand.u32 %v204, 4294901760
    %1636 = vmatpush1.msra.mxu0 %v1635
    %1637 = vmatprep.subr.mxu0 0.0
    %v1638 = vand.u32 %v205, 4294901760
    %1639 = vmatpush1.msra.mxu0 %v1638
    %1640 = vmatprep.subr.mxu0 0.0
    %v1641 = vand.u32 %v206, 4294901760
    %1642 = vmatpush1.msra.mxu0 %v1641
    %1643 = vmatprep.subr.mxu0 0.0
    %v1644 = vand.u32 %v207, 4294901760
    %1645 = vmatpush1.msra.mxu0 %v1644
    %1646 = vmatprep.subr.mxu0 0.0
    %v1647 = vand.u32 %v208, 4294901760
    %1648 = vmatpush1.msra.mxu0 %v1647
    %1649 = vmatprep.subr.mxu0 0.0
    %v1650 = vand.u32 %v209, 4294901760
    %1651 = vmatpush1.msra.mxu0 %v1650
    %1652 = vmatprep.subr.mxu0 0.0
    %v1653 = vand.u32 %v210, 4294901760
    %1654 = vmatpush1.msra.mxu0 %v1653
    %1655 = vmatprep.subr.mxu0 0.0
    %v1656 = vand.u32 %v211, 4294901760
    %1657 = vmatpush1.msra.mxu0 %v1656
    %1658 = vmatprep.subr.mxu0 0.0
    %v1659 = vand.u32 %v212, 4294901760
    %1660 = vmatpush1.msra.mxu0 %v1659
    %1661 = vmatprep.subr.mxu0 0.0
    %v1662 = vand.u32 %v213, 4294901760
    %1663 = vmatpush1.msra.mxu0 %v1662
    %1664 = vmatprep.subr.mxu0 0.0
    %v1665 = vand.u32 %v214, 4294901760
    %1666 = vmatpush1.msra.mxu0 %v1665
    %1667 = vmatprep.subr.mxu0 0.0
    %v1668 = vand.u32 %v215, 4294901760
    %1669 = vmatpush1.msra.mxu0 %v1668
    %1670 = vmatprep.subr.mxu0 0.0
    %v1671 = vand.u32 %v216, 4294901760
    %1672 = vmatpush1.msra.mxu0 %v1671
    %1673 = vmatprep.subr.mxu0 0.0
    %v1674 = vand.u32 %v217, 4294901760
    %1675 = vmatpush1.msra.mxu0 %v1674
    %1676 = vmatprep.subr.mxu0 0.0
    %v1677 = vand.u32 %v218, 4294901760
    %1678 = vmatpush1.msra.mxu0 %v1677
    %1679 = vmatprep.subr.mxu0 0.0
    %v1680 = vand.u32 %v219, 4294901760
    %1681 = vmatpush1.msra.mxu0 %v1680
    %1682 = vmatprep.subr.mxu0 0.0
    %v1683 = vand.u32 %v220, 4294901760
    %1684 = vmatpush1.msra.mxu0 %v1683
    %1685 = vmatprep.subr.mxu0 0.0
    %v1686 = vand.u32 %v221, 4294901760
    %1687 = vmatpush1.msra.mxu0 %v1686
    %1688 = vmatprep.subr.mxu0 0.0
    %v1689 = vand.u32 %v222, 4294901760
    %1690 = vmatpush1.msra.mxu0 %v1689
    %1691 = vmatprep.subr.mxu0 0.0
    %v1692 = vand.u32 %v223, 4294901760
    %1693 = vmatpush1.msra.mxu0 %v1692
    %1694 = vmatprep.subr.mxu0 0.0
    %v1695 = vand.u32 %v224, 4294901760
    %1696 = vmatpush1.msra.mxu0 %v1695
    %1697 = vmatprep.subr.mxu0 0.0
    %v1698 = vand.u32 %v225, 4294901760
    %1699 = vmatpush1.msra.mxu0 %v1698
    %1700 = vmatprep.subr.mxu0 0.0
    %v1701 = vand.u32 %v226, 4294901760
    %1702 = vmatpush1.msra.mxu0 %v1701
    %1703 = vmatprep.subr.mxu0 0.0
    %v1704 = vand.u32 %v227, 4294901760
    %1705 = vmatpush1.msra.mxu0 %v1704
    %v1706 = vand.u32 %v62, 4294901760
    %v1707 = vsub.f32 %v62, %v1706
    %v1708 = vand.u32 %v1707, 4294901760
    %1709 = vmatprep.mubr.f32.mxu0 %v1708
    %v1710 = vand.u32 %v61, 4294901760
    %v1711 = vsub.f32 %v61, %v1710
    %v1712 = vand.u32 %v1711, 4294901760
    %1713 = vmatmul.mubr.f32.gmra.mrb[0].mxu0 %v1712
    %v1714 = vpop.f32.mrb[0].mxu0
    %v1715 = vadd.f32 %v1607, %v1714
    %v1716 = vpop.f32.mrb[0].mxu0
    %1717 = vdwg.mxu0
    %1718 = vmatprep.subr.mxu0 0.0
    %v1719 = vand.u32 %v196, 4294901760
    %v1720 = vsub.f32 %v196, %v1719
    %v1721 = vand.u32 %v1720, 4294901760
    %1722 = vmatpush1.msra.mxu0 %v1721
    %1723 = vmatprep.subr.mxu0 0.0
    %v1724 = vand.u32 %v197, 4294901760
    %v1725 = vsub.f32 %v197, %v1724
    %v1726 = vand.u32 %v1725, 4294901760
    %1727 = vmatpush1.msra.mxu0 %v1726
    %1728 = vmatprep.subr.mxu0 0.0
    %v1729 = vand.u32 %v198, 4294901760
    %v1730 = vsub.f32 %v198, %v1729
    %v1731 = vand.u32 %v1730, 4294901760
    %1732 = vmatpush1.msra.mxu0 %v1731
    %1733 = vmatprep.subr.mxu0 0.0
    %v1734 = vand.u32 %v199, 4294901760
    %v1735 = vsub.f32 %v199, %v1734
    %v1736 = vand.u32 %v1735, 4294901760
    %1737 = vmatpush1.msra.mxu0 %v1736
    %1738 = vmatprep.subr.mxu0 0.0
    %v1739 = vand.u32 %v200, 4294901760
    %v1740 = vsub.f32 %v200, %v1739
    %v1741 = vand.u32 %v1740, 4294901760
    %1742 = vmatpush1.msra.mxu0 %v1741
    %1743 = vmatprep.subr.mxu0 0.0
    %v1744 = vand.u32 %v201, 4294901760
    %v1745 = vsub.f32 %v201, %v1744
    %v1746 = vand.u32 %v1745, 4294901760
    %1747 = vmatpush1.msra.mxu0 %v1746
    %1748 = vmatprep.subr.mxu0 0.0
    %v1749 = vand.u32 %v202, 4294901760
    %v1750 = vsub.f32 %v202, %v1749
    %v1751 = vand.u32 %v1750, 4294901760
    %1752 = vmatpush1.msra.mxu0 %v1751
    %1753 = vmatprep.subr.mxu0 0.0
    %v1754 = vand.u32 %v203, 4294901760
    %v1755 = vsub.f32 %v203, %v1754
    %v1756 = vand.u32 %v1755, 4294901760
    %1757 = vmatpush1.msra.mxu0 %v1756
    %1758 = vmatprep.subr.mxu0 0.0
    %v1759 = vand.u32 %v204, 4294901760
    %v1760 = vsub.f32 %v204, %v1759
    %v1761 = vand.u32 %v1760, 4294901760
    %1762 = vmatpush1.msra.mxu0 %v1761
    %1763 = vmatprep.subr.mxu0 0.0
    %v1764 = vand.u32 %v205, 4294901760
    %v1765 = vsub.f32 %v205, %v1764
    %v1766 = vand.u32 %v1765, 4294901760
    %1767 = vmatpush1.msra.mxu0 %v1766
    %1768 = vmatprep.subr.mxu0 0.0
    %v1769 = vand.u32 %v206, 4294901760
    %v1770 = vsub.f32 %v206, %v1769
    %v1771 = vand.u32 %v1770, 4294901760
    %1772 = vmatpush1.msra.mxu0 %v1771
    %1773 = vmatprep.subr.mxu0 0.0
    %v1774 = vand.u32 %v207, 4294901760
    %v1775 = vsub.f32 %v207, %v1774
    %v1776 = vand.u32 %v1775, 4294901760
    %1777 = vmatpush1.msra.mxu0 %v1776
    %1778 = vmatprep.subr.mxu0 0.0
    %v1779 = vand.u32 %v208, 4294901760
    %v1780 = vsub.f32 %v208, %v1779
    %v1781 = vand.u32 %v1780, 4294901760
    %1782 = vmatpush1.msra.mxu0 %v1781
    %1783 = vmatprep.subr.mxu0 0.0
    %v1784 = vand.u32 %v209, 4294901760
    %v1785 = vsub.f32 %v209, %v1784
    %v1786 = vand.u32 %v1785, 4294901760
    %1787 = vmatpush1.msra.mxu0 %v1786
    %1788 = vmatprep.subr.mxu0 0.0
    %v1789 = vand.u32 %v210, 4294901760
    %v1790 = vsub.f32 %v210, %v1789
    %v1791 = vand.u32 %v1790, 4294901760
    %1792 = vmatpush1.msra.mxu0 %v1791
    %1793 = vmatprep.subr.mxu0 0.0
    %v1794 = vand.u32 %v211, 4294901760
    %v1795 = vsub.f32 %v211, %v1794
    %v1796 = vand.u32 %v1795, 4294901760
    %1797 = vmatpush1.msra.mxu0 %v1796
    %1798 = vmatprep.subr.mxu0 0.0
    %v1799 = vand.u32 %v212, 4294901760
    %v1800 = vsub.f32 %v212, %v1799
    %v1801 = vand.u32 %v1800, 4294901760
    %1802 = vmatpush1.msra.mxu0 %v1801
    %1803 = vmatprep.subr.mxu0 0.0
    %v1804 = vand.u32 %v213, 4294901760
    %v1805 = vsub.f32 %v213, %v1804
    %v1806 = vand.u32 %v1805, 4294901760
    %1807 = vmatpush1.msra.mxu0 %v1806
    %1808 = vmatprep.subr.mxu0 0.0
    %v1809 = vand.u32 %v214, 4294901760
    %v1810 = vsub.f32 %v214, %v1809
    %v1811 = vand.u32 %v1810, 4294901760
    %1812 = vmatpush1.msra.mxu0 %v1811
    %1813 = vmatprep.subr.mxu0 0.0
    %v1814 = vand.u32 %v215, 4294901760
    %v1815 = vsub.f32 %v215, %v1814
    %v1816 = vand.u32 %v1815, 4294901760
    %1817 = vmatpush1.msra.mxu0 %v1816
    %1818 = vmatprep.subr.mxu0 0.0
    %v1819 = vand.u32 %v216, 4294901760
    %v1820 = vsub.f32 %v216, %v1819
    %v1821 = vand.u32 %v1820, 4294901760
    %1822 = vmatpush1.msra.mxu0 %v1821
    %1823 = vmatprep.subr.mxu0 0.0
    %v1824 = vand.u32 %v217, 4294901760
    %v1825 = vsub.f32 %v217, %v1824
    %v1826 = vand.u32 %v1825, 4294901760
    %1827 = vmatpush1.msra.mxu0 %v1826
    %1828 = vmatprep.subr.mxu0 0.0
    %v1829 = vand.u32 %v218, 4294901760
    %v1830 = vsub.f32 %v218, %v1829
    %v1831 = vand.u32 %v1830, 4294901760
    %1832 = vmatpush1.msra.mxu0 %v1831
    %1833 = vmatprep.subr.mxu0 0.0
    %v1834 = vand.u32 %v219, 4294901760
    %v1835 = vsub.f32 %v219, %v1834
    %v1836 = vand.u32 %v1835, 4294901760
    %1837 = vmatpush1.msra.mxu0 %v1836
    %1838 = vmatprep.subr.mxu0 0.0
    %v1839 = vand.u32 %v220, 4294901760
    %v1840 = vsub.f32 %v220, %v1839
    %v1841 = vand.u32 %v1840, 4294901760
    %1842 = vmatpush1.msra.mxu0 %v1841
    %1843 = vmatprep.subr.mxu0 0.0
    %v1844 = vand.u32 %v221, 4294901760
    %v1845 = vsub.f32 %v221, %v1844
    %v1846 = vand.u32 %v1845, 4294901760
    %1847 = vmatpush1.msra.mxu0 %v1846
    %1848 = vmatprep.subr.mxu0 0.0
    %v1849 = vand.u32 %v222, 4294901760
    %v1850 = vsub.f32 %v222, %v1849
    %v1851 = vand.u32 %v1850, 4294901760
    %1852 = vmatpush1.msra.mxu0 %v1851
    %1853 = vmatprep.subr.mxu0 0.0
    %v1854 = vand.u32 %v223, 4294901760
    %v1855 = vsub.f32 %v223, %v1854
    %v1856 = vand.u32 %v1855, 4294901760
    %1857 = vmatpush1.msra.mxu0 %v1856
    %1858 = vmatprep.subr.mxu0 0.0
    %v1859 = vand.u32 %v224, 4294901760
    %v1860 = vsub.f32 %v224, %v1859
    %v1861 = vand.u32 %v1860, 4294901760
    %1862 = vmatpush1.msra.mxu0 %v1861
    %1863 = vmatprep.subr.mxu0 0.0
    %v1864 = vand.u32 %v225, 4294901760
    %v1865 = vsub.f32 %v225, %v1864
    %v1866 = vand.u32 %v1865, 4294901760
    %1867 = vmatpush1.msra.mxu0 %v1866
    %1868 = vmatprep.subr.mxu0 0.0
    %v1869 = vand.u32 %v226, 4294901760
    %v1870 = vsub.f32 %v226, %v1869
    %v1871 = vand.u32 %v1870, 4294901760
    %1872 = vmatpush1.msra.mxu0 %v1871
    %1873 = vmatprep.subr.mxu0 0.0
    %v1874 = vand.u32 %v227, 4294901760
    %v1875 = vsub.f32 %v227, %v1874
    %v1876 = vand.u32 %v1875, 4294901760
    %1877 = vmatpush1.msra.mxu0 %v1876
    %v1878 = vand.u32 %v62, 4294901760
    %1879 = vmatprep.mubr.f32.mxu0 %v1878
    %v1880 = vand.u32 %v61, 4294901760
    %1881 = vmatmul.mubr.f32.gmra.mrb[0].mxu0 %v1880
    %v1882 = vpop.f32.mrb[0].mxu0
    %v1883 = vadd.f32 %v1715, %v1882
    %v1884 = vpop.f32.mrb[0].mxu0
    %1885 = vdwg.mxu0
    %1886 = vmatprep.subr.mxu0 0.0
    %v1887 = vand.u32 %v196, 4294901760
    %1888 = vmatpush1.msra.mxu0 %v1887
    %1889 = vmatprep.subr.mxu0 0.0
    %v1890 = vand.u32 %v197, 4294901760
    %1891 = vmatpush1.msra.mxu0 %v1890
    %1892 = vmatprep.subr.mxu0 0.0
    %v1893 = vand.u32 %v198, 4294901760
    %1894 = vmatpush1.msra.mxu0 %v1893
    %1895 = vmatprep.subr.mxu0 0.0
    %v1896 = vand.u32 %v199, 4294901760
    %1897 = vmatpush1.msra.mxu0 %v1896
    %1898 = vmatprep.subr.mxu0 0.0
    %v1899 = vand.u32 %v200, 4294901760
    %1900 = vmatpush1.msra.mxu0 %v1899
    %1901 = vmatprep.subr.mxu0 0.0
    %v1902 = vand.u32 %v201, 4294901760
    %1903 = vmatpush1.msra.mxu0 %v1902
    %1904 = vmatprep.subr.mxu0 0.0
    %v1905 = vand.u32 %v202, 4294901760
    %1906 = vmatpush1.msra.mxu0 %v1905
    %1907 = vmatprep.subr.mxu0 0.0
    %v1908 = vand.u32 %v203, 4294901760
    %1909 = vmatpush1.msra.mxu0 %v1908
    %1910 = vmatprep.subr.mxu0 0.0
    %v1911 = vand.u32 %v204, 4294901760
    %1912 = vmatpush1.msra.mxu0 %v1911
    %1913 = vmatprep.subr.mxu0 0.0
    %v1914 = vand.u32 %v205, 4294901760
    %1915 = vmatpush1.msra.mxu0 %v1914
    %1916 = vmatprep.subr.mxu0 0.0
    %v1917 = vand.u32 %v206, 4294901760
    %1918 = vmatpush1.msra.mxu0 %v1917
    %1919 = vmatprep.subr.mxu0 0.0
    %v1920 = vand.u32 %v207, 4294901760
    %1921 = vmatpush1.msra.mxu0 %v1920
    %1922 = vmatprep.subr.mxu0 0.0
    %v1923 = vand.u32 %v208, 4294901760
    %1924 = vmatpush1.msra.mxu0 %v1923
    %1925 = vmatprep.subr.mxu0 0.0
    %v1926 = vand.u32 %v209, 4294901760
    %1927 = vmatpush1.msra.mxu0 %v1926
    %1928 = vmatprep.subr.mxu0 0.0
    %v1929 = vand.u32 %v210, 4294901760
    %1930 = vmatpush1.msra.mxu0 %v1929
    %1931 = vmatprep.subr.mxu0 0.0
    %v1932 = vand.u32 %v211, 4294901760
    %1933 = vmatpush1.msra.mxu0 %v1932
    %1934 = vmatprep.subr.mxu0 0.0
    %v1935 = vand.u32 %v212, 4294901760
    %1936 = vmatpush1.msra.mxu0 %v1935
    %1937 = vmatprep.subr.mxu0 0.0
    %v1938 = vand.u32 %v213, 4294901760
    %1939 = vmatpush1.msra.mxu0 %v1938
    %1940 = vmatprep.subr.mxu0 0.0
    %v1941 = vand.u32 %v214, 4294901760
    %1942 = vmatpush1.msra.mxu0 %v1941
    %1943 = vmatprep.subr.mxu0 0.0
    %v1944 = vand.u32 %v215, 4294901760
    %1945 = vmatpush1.msra.mxu0 %v1944
    %1946 = vmatprep.subr.mxu0 0.0
    %v1947 = vand.u32 %v216, 4294901760
    %1948 = vmatpush1.msra.mxu0 %v1947
    %1949 = vmatprep.subr.mxu0 0.0
    %v1950 = vand.u32 %v217, 4294901760
    %1951 = vmatpush1.msra.mxu0 %v1950
    %1952 = vmatprep.subr.mxu0 0.0
    %v1953 = vand.u32 %v218, 4294901760
    %1954 = vmatpush1.msra.mxu0 %v1953
    %1955 = vmatprep.subr.mxu0 0.0
    %v1956 = vand.u32 %v219, 4294901760
    %1957 = vmatpush1.msra.mxu0 %v1956
    %1958 = vmatprep.subr.mxu0 0.0
    %v1959 = vand.u32 %v220, 4294901760
    %1960 = vmatpush1.msra.mxu0 %v1959
    %1961 = vmatprep.subr.mxu0 0.0
    %v1962 = vand.u32 %v221, 4294901760
    %1963 = vmatpush1.msra.mxu0 %v1962
    %1964 = vmatprep.subr.mxu0 0.0
    %v1965 = vand.u32 %v222, 4294901760
    %1966 = vmatpush1.msra.mxu0 %v1965
    %1967 = vmatprep.subr.mxu0 0.0
    %v1968 = vand.u32 %v223, 4294901760
    %1969 = vmatpush1.msra.mxu0 %v1968
    %1970 = vmatprep.subr.mxu0 0.0
    %v1971 = vand.u32 %v224, 4294901760
    %1972 = vmatpush1.msra.mxu0 %v1971
    %1973 = vmatprep.subr.mxu0 0.0
    %v1974 = vand.u32 %v225, 4294901760
    %1975 = vmatpush1.msra.mxu0 %v1974
    %1976 = vmatprep.subr.mxu0 0.0
    %v1977 = vand.u32 %v226, 4294901760
    %1978 = vmatpush1.msra.mxu0 %v1977
    %1979 = vmatprep.subr.mxu0 0.0
    %v1980 = vand.u32 %v227, 4294901760
    %1981 = vmatpush1.msra.mxu0 %v1980
    %v1982 = vand.u32 %v62, 4294901760
    %1983 = vmatprep.mubr.f32.mxu0 %v1982
    %v1984 = vand.u32 %v61, 4294901760
    %1985 = vmatmul.mubr.f32.gmra.mrb[0].mxu0 %v1984
    %v1986 = vpop.f32.mrb[0].mxu0
    %v1987 = vadd.f32 %v1883, %v1986
    %v1988 = vpop.f32.mrb[0].mxu0
    %1989 = vdwg.mxu0
    %1990 = vmatprep.subr.mxu0 0.0
    %v1991 = vand.u32 %v228, 4294901760
    %1992 = vmatpush1.msra.mxu0 %v1991
    %1993 = vmatprep.subr.mxu0 0.0
    %v1994 = vand.u32 %v229, 4294901760
    %1995 = vmatpush1.msra.mxu0 %v1994
    %1996 = vmatprep.subr.mxu0 0.0
    %v1997 = vand.u32 %v230, 4294901760
    %1998 = vmatpush1.msra.mxu0 %v1997
    %1999 = vmatprep.subr.mxu0 0.0
    %v2000 = vand.u32 %v231, 4294901760
    %2001 = vmatpush1.msra.mxu0 %v2000
    %2002 = vmatprep.subr.mxu0 0.0
    %v2003 = vand.u32 %v232, 4294901760
    %2004 = vmatpush1.msra.mxu0 %v2003
    %2005 = vmatprep.subr.mxu0 0.0
    %v2006 = vand.u32 %v233, 4294901760
    %2007 = vmatpush1.msra.mxu0 %v2006
    %2008 = vmatprep.subr.mxu0 0.0
    %v2009 = vand.u32 %v234, 4294901760
    %2010 = vmatpush1.msra.mxu0 %v2009
    %2011 = vmatprep.subr.mxu0 0.0
    %v2012 = vand.u32 %v235, 4294901760
    %2013 = vmatpush1.msra.mxu0 %v2012
    %2014 = vmatprep.subr.mxu0 0.0
    %v2015 = vand.u32 %v236, 4294901760
    %2016 = vmatpush1.msra.mxu0 %v2015
    %2017 = vmatprep.subr.mxu0 0.0
    %v2018 = vand.u32 %v237, 4294901760
    %2019 = vmatpush1.msra.mxu0 %v2018
    %2020 = vmatprep.subr.mxu0 0.0
    %v2021 = vand.u32 %v238, 4294901760
    %2022 = vmatpush1.msra.mxu0 %v2021
    %2023 = vmatprep.subr.mxu0 0.0
    %v2024 = vand.u32 %v239, 4294901760
    %2025 = vmatpush1.msra.mxu0 %v2024
    %2026 = vmatprep.subr.mxu0 0.0
    %v2027 = vand.u32 %v240, 4294901760
    %2028 = vmatpush1.msra.mxu0 %v2027
    %2029 = vmatprep.subr.mxu0 0.0
    %v2030 = vand.u32 %v241, 4294901760
    %2031 = vmatpush1.msra.mxu0 %v2030
    %2032 = vmatprep.subr.mxu0 0.0
    %v2033 = vand.u32 %v242, 4294901760
    %2034 = vmatpush1.msra.mxu0 %v2033
    %2035 = vmatprep.subr.mxu0 0.0
    %v2036 = vand.u32 %v243, 4294901760
    %2037 = vmatpush1.msra.mxu0 %v2036
    %2038 = vmatprep.subr.mxu0 0.0
    %v2039 = vand.u32 %v244, 4294901760
    %2040 = vmatpush1.msra.mxu0 %v2039
    %2041 = vmatprep.subr.mxu0 0.0
    %v2042 = vand.u32 %v245, 4294901760
    %2043 = vmatpush1.msra.mxu0 %v2042
    %2044 = vmatprep.subr.mxu0 0.0
    %v2045 = vand.u32 %v246, 4294901760
    %2046 = vmatpush1.msra.mxu0 %v2045
    %2047 = vmatprep.subr.mxu0 0.0
    %v2048 = vand.u32 %v247, 4294901760
    %2049 = vmatpush1.msra.mxu0 %v2048
    %2050 = vmatprep.subr.mxu0 0.0
    %v2051 = vand.u32 %v248, 4294901760
    %2052 = vmatpush1.msra.mxu0 %v2051
    %2053 = vmatprep.subr.mxu0 0.0
    %v2054 = vand.u32 %v249, 4294901760
    %2055 = vmatpush1.msra.mxu0 %v2054
    %2056 = vmatprep.subr.mxu0 0.0
    %v2057 = vand.u32 %v250, 4294901760
    %2058 = vmatpush1.msra.mxu0 %v2057
    %2059 = vmatprep.subr.mxu0 0.0
    %v2060 = vand.u32 %v251, 4294901760
    %2061 = vmatpush1.msra.mxu0 %v2060
    %2062 = vmatprep.subr.mxu0 0.0
    %v2063 = vand.u32 %v252, 4294901760
    %2064 = vmatpush1.msra.mxu0 %v2063
    %2065 = vmatprep.subr.mxu0 0.0
    %v2066 = vand.u32 %v253, 4294901760
    %2067 = vmatpush1.msra.mxu0 %v2066
    %2068 = vmatprep.subr.mxu0 0.0
    %v2069 = vand.u32 %v254, 4294901760
    %2070 = vmatpush1.msra.mxu0 %v2069
    %2071 = vmatprep.subr.mxu0 0.0
    %v2072 = vand.u32 %v255, 4294901760
    %2073 = vmatpush1.msra.mxu0 %v2072
    %2074 = vmatprep.subr.mxu0 0.0
    %v2075 = vand.u32 %v256, 4294901760
    %2076 = vmatpush1.msra.mxu0 %v2075
    %2077 = vmatprep.subr.mxu0 0.0
    %v2078 = vand.u32 %v257, 4294901760
    %2079 = vmatpush1.msra.mxu0 %v2078
    %2080 = vmatprep.subr.mxu0 0.0
    %v2081 = vand.u32 %v258, 4294901760
    %2082 = vmatpush1.msra.mxu0 %v2081
    %2083 = vmatprep.subr.mxu0 0.0
    %v2084 = vand.u32 %v259, 4294901760
    %2085 = vmatpush1.msra.mxu0 %v2084
    %v2086 = vand.u32 %v64, 4294901760
    %v2087 = vsub.f32 %v64, %v2086
    %v2088 = vand.u32 %v2087, 4294901760
    %v2089 = vsub.f32 %v2087, %v2088
    %v2090 = vand.u32 %v2089, 4294901760
    %2091 = vmatprep.mubr.f32.mxu0 %v2090
    %v2092 = vand.u32 %v63, 4294901760
    %v2093 = vsub.f32 %v63, %v2092
    %v2094 = vand.u32 %v2093, 4294901760
    %v2095 = vsub.f32 %v2093, %v2094
    %v2096 = vand.u32 %v2095, 4294901760
    %2097 = vmatmul.mubr.f32.gmra.mrb[0].mxu0 %v2096
    %v2098 = vpop.f32.mrb[0].mxu0
    %v2099 = vadd.f32 %v1987, %v2098
    %v2100 = vpop.f32.mrb[0].mxu0
    %2101 = vdwg.mxu0
    %2102 = vmatprep.subr.mxu0 0.0
    %v2103 = vand.u32 %v228, 4294901760
    %v2104 = vsub.f32 %v228, %v2103
    %v2105 = vand.u32 %v2104, 4294901760
    %v2106 = vsub.f32 %v2104, %v2105
    %v2107 = vand.u32 %v2106, 4294901760
    %2108 = vmatpush1.msra.mxu0 %v2107
    %2109 = vmatprep.subr.mxu0 0.0
    %v2110 = vand.u32 %v229, 4294901760
    %v2111 = vsub.f32 %v229, %v2110
    %v2112 = vand.u32 %v2111, 4294901760
    %v2113 = vsub.f32 %v2111, %v2112
    %v2114 = vand.u32 %v2113, 4294901760
    %2115 = vmatpush1.msra.mxu0 %v2114
    %2116 = vmatprep.subr.mxu0 0.0
    %v2117 = vand.u32 %v230, 4294901760
    %v2118 = vsub.f32 %v230, %v2117
    %v2119 = vand.u32 %v2118, 4294901760
    %v2120 = vsub.f32 %v2118, %v2119
    %v2121 = vand.u32 %v2120, 4294901760
    %2122 = vmatpush1.msra.mxu0 %v2121
    %2123 = vmatprep.subr.mxu0 0.0
    %v2124 = vand.u32 %v231, 4294901760
    %v2125 = vsub.f32 %v231, %v2124
    %v2126 = vand.u32 %v2125, 4294901760
    %v2127 = vsub.f32 %v2125, %v2126
    %v2128 = vand.u32 %v2127, 4294901760
    %2129 = vmatpush1.msra.mxu0 %v2128
    %2130 = vmatprep.subr.mxu0 0.0
    %v2131 = vand.u32 %v232, 4294901760
    %v2132 = vsub.f32 %v232, %v2131
    %v2133 = vand.u32 %v2132, 4294901760
    %v2134 = vsub.f32 %v2132, %v2133
    %v2135 = vand.u32 %v2134, 4294901760
    %2136 = vmatpush1.msra.mxu0 %v2135
    %2137 = vmatprep.subr.mxu0 0.0
    %v2138 = vand.u32 %v233, 4294901760
    %v2139 = vsub.f32 %v233, %v2138
    %v2140 = vand.u32 %v2139, 4294901760
    %v2141 = vsub.f32 %v2139, %v2140
    %v2142 = vand.u32 %v2141, 4294901760
    %2143 = vmatpush1.msra.mxu0 %v2142
    %2144 = vmatprep.subr.mxu0 0.0
    %v2145 = vand.u32 %v234, 4294901760
    %v2146 = vsub.f32 %v234, %v2145
    %v2147 = vand.u32 %v2146, 4294901760
    %v2148 = vsub.f32 %v2146, %v2147
    %v2149 = vand.u32 %v2148, 4294901760
    %2150 = vmatpush1.msra.mxu0 %v2149
    %2151 = vmatprep.subr.mxu0 0.0
    %v2152 = vand.u32 %v235, 4294901760
    %v2153 = vsub.f32 %v235, %v2152
    %v2154 = vand.u32 %v2153, 4294901760
    %v2155 = vsub.f32 %v2153, %v2154
    %v2156 = vand.u32 %v2155, 4294901760
    %2157 = vmatpush1.msra.mxu0 %v2156
    %2158 = vmatprep.subr.mxu0 0.0
    %v2159 = vand.u32 %v236, 4294901760
    %v2160 = vsub.f32 %v236, %v2159
    %v2161 = vand.u32 %v2160, 4294901760
    %v2162 = vsub.f32 %v2160, %v2161
    %v2163 = vand.u32 %v2162, 4294901760
    %2164 = vmatpush1.msra.mxu0 %v2163
    %2165 = vmatprep.subr.mxu0 0.0
    %v2166 = vand.u32 %v237, 4294901760
    %v2167 = vsub.f32 %v237, %v2166
    %v2168 = vand.u32 %v2167, 4294901760
    %v2169 = vsub.f32 %v2167, %v2168
    %v2170 = vand.u32 %v2169, 4294901760
    %2171 = vmatpush1.msra.mxu0 %v2170
    %2172 = vmatprep.subr.mxu0 0.0
    %v2173 = vand.u32 %v238, 4294901760
    %v2174 = vsub.f32 %v238, %v2173
    %v2175 = vand.u32 %v2174, 4294901760
    %v2176 = vsub.f32 %v2174, %v2175
    %v2177 = vand.u32 %v2176, 4294901760
    %2178 = vmatpush1.msra.mxu0 %v2177
    %2179 = vmatprep.subr.mxu0 0.0
    %v2180 = vand.u32 %v239, 4294901760
    %v2181 = vsub.f32 %v239, %v2180
    %v2182 = vand.u32 %v2181, 4294901760
    %v2183 = vsub.f32 %v2181, %v2182
    %v2184 = vand.u32 %v2183, 4294901760
    %2185 = vmatpush1.msra.mxu0 %v2184
    %2186 = vmatprep.subr.mxu0 0.0
    %v2187 = vand.u32 %v240, 4294901760
    %v2188 = vsub.f32 %v240, %v2187
    %v2189 = vand.u32 %v2188, 4294901760
    %v2190 = vsub.f32 %v2188, %v2189
    %v2191 = vand.u32 %v2190, 4294901760
    %2192 = vmatpush1.msra.mxu0 %v2191
    %2193 = vmatprep.subr.mxu0 0.0
    %v2194 = vand.u32 %v241, 4294901760
    %v2195 = vsub.f32 %v241, %v2194
    %v2196 = vand.u32 %v2195, 4294901760
    %v2197 = vsub.f32 %v2195, %v2196
    %v2198 = vand.u32 %v2197, 4294901760
    %2199 = vmatpush1.msra.mxu0 %v2198
    %2200 = vmatprep.subr.mxu0 0.0
    %v2201 = vand.u32 %v242, 4294901760
    %v2202 = vsub.f32 %v242, %v2201
    %v2203 = vand.u32 %v2202, 4294901760
    %v2204 = vsub.f32 %v2202, %v2203
    %v2205 = vand.u32 %v2204, 4294901760
    %2206 = vmatpush1.msra.mxu0 %v2205
    %2207 = vmatprep.subr.mxu0 0.0
    %v2208 = vand.u32 %v243, 4294901760
    %v2209 = vsub.f32 %v243, %v2208
    %v2210 = vand.u32 %v2209, 4294901760
    %v2211 = vsub.f32 %v2209, %v2210
    %v2212 = vand.u32 %v2211, 4294901760
    %2213 = vmatpush1.msra.mxu0 %v2212
    %2214 = vmatprep.subr.mxu0 0.0
    %v2215 = vand.u32 %v244, 4294901760
    %v2216 = vsub.f32 %v244, %v2215
    %v2217 = vand.u32 %v2216, 4294901760
    %v2218 = vsub.f32 %v2216, %v2217
    %v2219 = vand.u32 %v2218, 4294901760
    %2220 = vmatpush1.msra.mxu0 %v2219
    %2221 = vmatprep.subr.mxu0 0.0
    %v2222 = vand.u32 %v245, 4294901760
    %v2223 = vsub.f32 %v245, %v2222
    %v2224 = vand.u32 %v2223, 4294901760
    %v2225 = vsub.f32 %v2223, %v2224
    %v2226 = vand.u32 %v2225, 4294901760
    %2227 = vmatpush1.msra.mxu0 %v2226
    %2228 = vmatprep.subr.mxu0 0.0
    %v2229 = vand.u32 %v246, 4294901760
    %v2230 = vsub.f32 %v246, %v2229
    %v2231 = vand.u32 %v2230, 4294901760
    %v2232 = vsub.f32 %v2230, %v2231
    %v2233 = vand.u32 %v2232, 4294901760
    %2234 = vmatpush1.msra.mxu0 %v2233
    %2235 = vmatprep.subr.mxu0 0.0
    %v2236 = vand.u32 %v247, 4294901760
    %v2237 = vsub.f32 %v247, %v2236
    %v2238 = vand.u32 %v2237, 4294901760
    %v2239 = vsub.f32 %v2237, %v2238
    %v2240 = vand.u32 %v2239, 4294901760
    %2241 = vmatpush1.msra.mxu0 %v2240
    %2242 = vmatprep.subr.mxu0 0.0
    %v2243 = vand.u32 %v248, 4294901760
    %v2244 = vsub.f32 %v248, %v2243
    %v2245 = vand.u32 %v2244, 4294901760
    %v2246 = vsub.f32 %v2244, %v2245
    %v2247 = vand.u32 %v2246, 4294901760
    %2248 = vmatpush1.msra.mxu0 %v2247
    %2249 = vmatprep.subr.mxu0 0.0
    %v2250 = vand.u32 %v249, 4294901760
    %v2251 = vsub.f32 %v249, %v2250
    %v2252 = vand.u32 %v2251, 4294901760
    %v2253 = vsub.f32 %v2251, %v2252
    %v2254 = vand.u32 %v2253, 4294901760
    %2255 = vmatpush1.msra.mxu0 %v2254
    %2256 = vmatprep.subr.mxu0 0.0
    %v2257 = vand.u32 %v250, 4294901760
    %v2258 = vsub.f32 %v250, %v2257
    %v2259 = vand.u32 %v2258, 4294901760
    %v2260 = vsub.f32 %v2258, %v2259
    %v2261 = vand.u32 %v2260, 4294901760
    %2262 = vmatpush1.msra.mxu0 %v2261
    %2263 = vmatprep.subr.mxu0 0.0
    %v2264 = vand.u32 %v251, 4294901760
    %v2265 = vsub.f32 %v251, %v2264
    %v2266 = vand.u32 %v2265, 4294901760
    %v2267 = vsub.f32 %v2265, %v2266
    %v2268 = vand.u32 %v2267, 4294901760
    %2269 = vmatpush1.msra.mxu0 %v2268
    %2270 = vmatprep.subr.mxu0 0.0
    %v2271 = vand.u32 %v252, 4294901760
    %v2272 = vsub.f32 %v252, %v2271
    %v2273 = vand.u32 %v2272, 4294901760
    %v2274 = vsub.f32 %v2272, %v2273
    %v2275 = vand.u32 %v2274, 4294901760
    %2276 = vmatpush1.msra.mxu0 %v2275
    %2277 = vmatprep.subr.mxu0 0.0
    %v2278 = vand.u32 %v253, 4294901760
    %v2279 = vsub.f32 %v253, %v2278
    %v2280 = vand.u32 %v2279, 4294901760
    %v2281 = vsub.f32 %v2279, %v2280
    %v2282 = vand.u32 %v2281, 4294901760
    %2283 = vmatpush1.msra.mxu0 %v2282
    %2284 = vmatprep.subr.mxu0 0.0
    %v2285 = vand.u32 %v254, 4294901760
    %v2286 = vsub.f32 %v254, %v2285
    %v2287 = vand.u32 %v2286, 4294901760
    %v2288 = vsub.f32 %v2286, %v2287
    %v2289 = vand.u32 %v2288, 4294901760
    %2290 = vmatpush1.msra.mxu0 %v2289
    %2291 = vmatprep.subr.mxu0 0.0
    %v2292 = vand.u32 %v255, 4294901760
    %v2293 = vsub.f32 %v255, %v2292
    %v2294 = vand.u32 %v2293, 4294901760
    %v2295 = vsub.f32 %v2293, %v2294
    %v2296 = vand.u32 %v2295, 4294901760
    %2297 = vmatpush1.msra.mxu0 %v2296
    %2298 = vmatprep.subr.mxu0 0.0
    %v2299 = vand.u32 %v256, 4294901760
    %v2300 = vsub.f32 %v256, %v2299
    %v2301 = vand.u32 %v2300, 4294901760
    %v2302 = vsub.f32 %v2300, %v2301
    %v2303 = vand.u32 %v2302, 4294901760
    %2304 = vmatpush1.msra.mxu0 %v2303
    %2305 = vmatprep.subr.mxu0 0.0
    %v2306 = vand.u32 %v257, 4294901760
    %v2307 = vsub.f32 %v257, %v2306
    %v2308 = vand.u32 %v2307, 4294901760
    %v2309 = vsub.f32 %v2307, %v2308
    %v2310 = vand.u32 %v2309, 4294901760
    %2311 = vmatpush1.msra.mxu0 %v2310
    %2312 = vmatprep.subr.mxu0 0.0
    %v2313 = vand.u32 %v258, 4294901760
    %v2314 = vsub.f32 %v258, %v2313
    %v2315 = vand.u32 %v2314, 4294901760
    %v2316 = vsub.f32 %v2314, %v2315
    %v2317 = vand.u32 %v2316, 4294901760
    %2318 = vmatpush1.msra.mxu0 %v2317
    %2319 = vmatprep.subr.mxu0 0.0
    %v2320 = vand.u32 %v259, 4294901760
    %v2321 = vsub.f32 %v259, %v2320
    %v2322 = vand.u32 %v2321, 4294901760
    %v2323 = vsub.f32 %v2321, %v2322
    %v2324 = vand.u32 %v2323, 4294901760
    %2325 = vmatpush1.msra.mxu0 %v2324
    %v2326 = vand.u32 %v64, 4294901760
    %2327 = vmatprep.mubr.f32.mxu0 %v2326
    %v2328 = vand.u32 %v63, 4294901760
    %2329 = vmatmul.mubr.f32.gmra.mrb[0].mxu0 %v2328
    %v2330 = vpop.f32.mrb[0].mxu0
    %v2331 = vadd.f32 %v2099, %v2330
    %v2332 = vpop.f32.mrb[0].mxu0
    %2333 = vdwg.mxu0
    %2334 = vmatprep.subr.mxu0 0.0
    %v2335 = vand.u32 %v228, 4294901760
    %v2336 = vsub.f32 %v228, %v2335
    %2337 = vmatpush1.msra.mxu0 %v2336
    %2338 = vmatprep.subr.mxu0 0.0
    %v2339 = vand.u32 %v229, 4294901760
    %v2340 = vsub.f32 %v229, %v2339
    %2341 = vmatpush1.msra.mxu0 %v2340
    %2342 = vmatprep.subr.mxu0 0.0
    %v2343 = vand.u32 %v230, 4294901760
    %v2344 = vsub.f32 %v230, %v2343
    %2345 = vmatpush1.msra.mxu0 %v2344
    %2346 = vmatprep.subr.mxu0 0.0
    %v2347 = vand.u32 %v231, 4294901760
    %v2348 = vsub.f32 %v231, %v2347
    %2349 = vmatpush1.msra.mxu0 %v2348
    %2350 = vmatprep.subr.mxu0 0.0
    %v2351 = vand.u32 %v232, 4294901760
    %v2352 = vsub.f32 %v232, %v2351
    %2353 = vmatpush1.msra.mxu0 %v2352
    %2354 = vmatprep.subr.mxu0 0.0
    %v2355 = vand.u32 %v233, 4294901760
    %v2356 = vsub.f32 %v233, %v2355
    %2357 = vmatpush1.msra.mxu0 %v2356
    %2358 = vmatprep.subr.mxu0 0.0
    %v2359 = vand.u32 %v234, 4294901760
    %v2360 = vsub.f32 %v234, %v2359
    %2361 = vmatpush1.msra.mxu0 %v2360
    %2362 = vmatprep.subr.mxu0 0.0
    %v2363 = vand.u32 %v235, 4294901760
    %v2364 = vsub.f32 %v235, %v2363
    %2365 = vmatpush1.msra.mxu0 %v2364
    %2366 = vmatprep.subr.mxu0 0.0
    %v2367 = vand.u32 %v236, 4294901760
    %v2368 = vsub.f32 %v236, %v2367
    %2369 = vmatpush1.msra.mxu0 %v2368
    %2370 = vmatprep.subr.mxu0 0.0
    %v2371 = vand.u32 %v237, 4294901760
    %v2372 = vsub.f32 %v237, %v2371
    %2373 = vmatpush1.msra.mxu0 %v2372
    %2374 = vmatprep.subr.mxu0 0.0
    %v2375 = vand.u32 %v238, 4294901760
    %v2376 = vsub.f32 %v238, %v2375
    %2377 = vmatpush1.msra.mxu0 %v2376
    %2378 = vmatprep.subr.mxu0 0.0
    %v2379 = vand.u32 %v239, 4294901760
    %v2380 = vsub.f32 %v239, %v2379
    %2381 = vmatpush1.msra.mxu0 %v2380
    %2382 = vmatprep.subr.mxu0 0.0
    %v2383 = vand.u32 %v240, 4294901760
    %v2384 = vsub.f32 %v240, %v2383
    %2385 = vmatpush1.msra.mxu0 %v2384
    %2386 = vmatprep.subr.mxu0 0.0
    %v2387 = vand.u32 %v241, 4294901760
    %v2388 = vsub.f32 %v241, %v2387
    %2389 = vmatpush1.msra.mxu0 %v2388
    %2390 = vmatprep.subr.mxu0 0.0
    %v2391 = vand.u32 %v242, 4294901760
    %v2392 = vsub.f32 %v242, %v2391
    %2393 = vmatpush1.msra.mxu0 %v2392
    %2394 = vmatprep.subr.mxu0 0.0
    %v2395 = vand.u32 %v243, 4294901760
    %v2396 = vsub.f32 %v243, %v2395
    %2397 = vmatpush1.msra.mxu0 %v2396
    %2398 = vmatprep.subr.mxu0 0.0
    %v2399 = vand.u32 %v244, 4294901760
    %v2400 = vsub.f32 %v244, %v2399
    %2401 = vmatpush1.msra.mxu0 %v2400
    %2402 = vmatprep.subr.mxu0 0.0
    %v2403 = vand.u32 %v245, 4294901760
    %v2404 = vsub.f32 %v245, %v2403
    %2405 = vmatpush1.msra.mxu0 %v2404
    %2406 = vmatprep.subr.mxu0 0.0
    %v2407 = vand.u32 %v246, 4294901760
    %v2408 = vsub.f32 %v246, %v2407
    %2409 = vmatpush1.msra.mxu0 %v2408
    %2410 = vmatprep.subr.mxu0 0.0
    %v2411 = vand.u32 %v247, 4294901760
    %v2412 = vsub.f32 %v247, %v2411
    %2413 = vmatpush1.msra.mxu0 %v2412
    %2414 = vmatprep.subr.mxu0 0.0
    %v2415 = vand.u32 %v248, 4294901760
    %v2416 = vsub.f32 %v248, %v2415
    %2417 = vmatpush1.msra.mxu0 %v2416
    %2418 = vmatprep.subr.mxu0 0.0
    %v2419 = vand.u32 %v249, 4294901760
    %v2420 = vsub.f32 %v249, %v2419
    %2421 = vmatpush1.msra.mxu0 %v2420
    %2422 = vmatprep.subr.mxu0 0.0
    %v2423 = vand.u32 %v250, 4294901760
    %v2424 = vsub.f32 %v250, %v2423
    %2425 = vmatpush1.msra.mxu0 %v2424
    %2426 = vmatprep.subr.mxu0 0.0
    %v2427 = vand.u32 %v251, 4294901760
    %v2428 = vsub.f32 %v251, %v2427
    %2429 = vmatpush1.msra.mxu0 %v2428
    %2430 = vmatprep.subr.mxu0 0.0
    %v2431 = vand.u32 %v252, 4294901760
    %v2432 = vsub.f32 %v252, %v2431
    %2433 = vmatpush1.msra.mxu0 %v2432
    %2434 = vmatprep.subr.mxu0 0.0
    %v2435 = vand.u32 %v253, 4294901760
    %v2436 = vsub.f32 %v253, %v2435
    %2437 = vmatpush1.msra.mxu0 %v2436
    %2438 = vmatprep.subr.mxu0 0.0
    %v2439 = vand.u32 %v254, 4294901760
    %v2440 = vsub.f32 %v254, %v2439
    %2441 = vmatpush1.msra.mxu0 %v2440
    %2442 = vmatprep.subr.mxu0 0.0
    %v2443 = vand.u32 %v255, 4294901760
    %v2444 = vsub.f32 %v255, %v2443
    %2445 = vmatpush1.msra.mxu0 %v2444
    %2446 = vmatprep.subr.mxu0 0.0
    %v2447 = vand.u32 %v256, 4294901760
    %v2448 = vsub.f32 %v256, %v2447
    %2449 = vmatpush1.msra.mxu0 %v2448
    %2450 = vmatprep.subr.mxu0 0.0
    %v2451 = vand.u32 %v257, 4294901760
    %v2452 = vsub.f32 %v257, %v2451
    %2453 = vmatpush1.msra.mxu0 %v2452
    %2454 = vmatprep.subr.mxu0 0.0
    %v2455 = vand.u32 %v258, 4294901760
    %v2456 = vsub.f32 %v258, %v2455
    %2457 = vmatpush1.msra.mxu0 %v2456
    %2458 = vmatprep.subr.mxu0 0.0
    %v2459 = vand.u32 %v259, 4294901760
    %v2460 = vsub.f32 %v259, %v2459
    %2461 = vmatpush1.msra.mxu0 %v2460
    %v2462 = vand.u32 %v64, 4294901760
    %v2463 = vsub.f32 %v64, %v2462
    %2464 = vmatprep.mubr.f32.mxu0 %v2463
    %v2465 = vand.u32 %v63, 4294901760
    %v2466 = vsub.f32 %v63, %v2465
    %2467 = vmatmul.mubr.f32.gmra.mrb[0].mxu0 %v2466
    %v2468 = vpop.f32.mrb[0].mxu0
    %v2469 = vadd.f32 %v2331, %v2468
    %v2470 = vpop.f32.mrb[0].mxu0
    %2471 = vdwg.mxu0
    %2472 = vmatprep.subr.mxu0 0.0
    %v2473 = vand.u32 %v228, 4294901760
    %2474 = vmatpush1.msra.mxu0 %v2473
    %2475 = vmatprep.subr.mxu0 0.0
    %v2476 = vand.u32 %v229, 4294901760
    %2477 = vmatpush1.msra.mxu0 %v2476
    %2478 = vmatprep.subr.mxu0 0.0
    %v2479 = vand.u32 %v230, 4294901760
    %2480 = vmatpush1.msra.mxu0 %v2479
    %2481 = vmatprep.subr.mxu0 0.0
    %v2482 = vand.u32 %v231, 4294901760
    %2483 = vmatpush1.msra.mxu0 %v2482
    %2484 = vmatprep.subr.mxu0 0.0
    %v2485 = vand.u32 %v232, 4294901760
    %2486 = vmatpush1.msra.mxu0 %v2485
    %2487 = vmatprep.subr.mxu0 0.0
    %v2488 = vand.u32 %v233, 4294901760
    %2489 = vmatpush1.msra.mxu0 %v2488
    %2490 = vmatprep.subr.mxu0 0.0
    %v2491 = vand.u32 %v234, 4294901760
    %2492 = vmatpush1.msra.mxu0 %v2491
    %2493 = vmatprep.subr.mxu0 0.0
    %v2494 = vand.u32 %v235, 4294901760
    %2495 = vmatpush1.msra.mxu0 %v2494
    %2496 = vmatprep.subr.mxu0 0.0
    %v2497 = vand.u32 %v236, 4294901760
    %2498 = vmatpush1.msra.mxu0 %v2497
    %2499 = vmatprep.subr.mxu0 0.0
    %v2500 = vand.u32 %v237, 4294901760
    %2501 = vmatpush1.msra.mxu0 %v2500
    %2502 = vmatprep.subr.mxu0 0.0
    %v2503 = vand.u32 %v238, 4294901760
    %2504 = vmatpush1.msra.mxu0 %v2503
    %2505 = vmatprep.subr.mxu0 0.0
    %v2506 = vand.u32 %v239, 4294901760
    %2507 = vmatpush1.msra.mxu0 %v2506
    %2508 = vmatprep.subr.mxu0 0.0
    %v2509 = vand.u32 %v240, 4294901760
    %2510 = vmatpush1.msra.mxu0 %v2509
    %2511 = vmatprep.subr.mxu0 0.0
    %v2512 = vand.u32 %v241, 4294901760
    %2513 = vmatpush1.msra.mxu0 %v2512
    %2514 = vmatprep.subr.mxu0 0.0
    %v2515 = vand.u32 %v242, 4294901760
    %2516 = vmatpush1.msra.mxu0 %v2515
    %2517 = vmatprep.subr.mxu0 0.0
    %v2518 = vand.u32 %v243, 4294901760
    %2519 = vmatpush1.msra.mxu0 %v2518
    %2520 = vmatprep.subr.mxu0 0.0
    %v2521 = vand.u32 %v244, 4294901760
    %2522 = vmatpush1.msra.mxu0 %v2521
    %2523 = vmatprep.subr.mxu0 0.0
    %v2524 = vand.u32 %v245, 4294901760
    %2525 = vmatpush1.msra.mxu0 %v2524
    %2526 = vmatprep.subr.mxu0 0.0
    %v2527 = vand.u32 %v246, 4294901760
    %2528 = vmatpush1.msra.mxu0 %v2527
    %2529 = vmatprep.subr.mxu0 0.0
    %v2530 = vand.u32 %v247, 4294901760
    %2531 = vmatpush1.msra.mxu0 %v2530
    %2532 = vmatprep.subr.mxu0 0.0
    %v2533 = vand.u32 %v248, 4294901760
    %2534 = vmatpush1.msra.mxu0 %v2533
    %2535 = vmatprep.subr.mxu0 0.0
    %v2536 = vand.u32 %v249, 4294901760
    %2537 = vmatpush1.msra.mxu0 %v2536
    %2538 = vmatprep.subr.mxu0 0.0
    %v2539 = vand.u32 %v250, 4294901760
    %2540 = vmatpush1.msra.mxu0 %v2539
    %2541 = vmatprep.subr.mxu0 0.0
    %v2542 = vand.u32 %v251, 4294901760
    %2543 = vmatpush1.msra.mxu0 %v2542
    %2544 = vmatprep.subr.mxu0 0.0
    %v2545 = vand.u32 %v252, 4294901760
    %2546 = vmatpush1.msra.mxu0 %v2545
    %2547 = vmatprep.subr.mxu0 0.0
    %v2548 = vand.u32 %v253, 4294901760
    %2549 = vmatpush1.msra.mxu0 %v2548
    %2550 = vmatprep.subr.mxu0 0.0
    %v2551 = vand.u32 %v254, 4294901760
    %2552 = vmatpush1.msra.mxu0 %v2551
    %2553 = vmatprep.subr.mxu0 0.0
    %v2554 = vand.u32 %v255, 4294901760
    %2555 = vmatpush1.msra.mxu0 %v2554
    %2556 = vmatprep.subr.mxu0 0.0
    %v2557 = vand.u32 %v256, 4294901760
    %2558 = vmatpush1.msra.mxu0 %v2557
    %2559 = vmatprep.subr.mxu0 0.0
    %v2560 = vand.u32 %v257, 4294901760
    %2561 = vmatpush1.msra.mxu0 %v2560
    %2562 = vmatprep.subr.mxu0 0.0
    %v2563 = vand.u32 %v258, 4294901760
    %2564 = vmatpush1.msra.mxu0 %v2563
    %2565 = vmatprep.subr.mxu0 0.0
    %v2566 = vand.u32 %v259, 4294901760
    %2567 = vmatpush1.msra.mxu0 %v2566
    %v2568 = vand.u32 %v64, 4294901760
    %v2569 = vsub.f32 %v64, %v2568
    %v2570 = vand.u32 %v2569, 4294901760
    %2571 = vmatprep.mubr.f32.mxu0 %v2570
    %v2572 = vand.u32 %v63, 4294901760
    %v2573 = vsub.f32 %v63, %v2572
    %v2574 = vand.u32 %v2573, 4294901760
    %2575 = vmatmul.mubr.f32.gmra.mrb[0].mxu0 %v2574
    %v2576 = vpop.f32.mrb[0].mxu0
    %v2577 = vadd.f32 %v2469, %v2576
    %v2578 = vpop.f32.mrb[0].mxu0
    %2579 = vdwg.mxu0
    %2580 = vmatprep.subr.mxu0 0.0
    %v2581 = vand.u32 %v228, 4294901760
    %v2582 = vsub.f32 %v228, %v2581
    %v2583 = vand.u32 %v2582, 4294901760
    %2584 = vmatpush1.msra.mxu0 %v2583
    %2585 = vmatprep.subr.mxu0 0.0
    %v2586 = vand.u32 %v229, 4294901760
    %v2587 = vsub.f32 %v229, %v2586
    %v2588 = vand.u32 %v2587, 4294901760
    %2589 = vmatpush1.msra.mxu0 %v2588
    %2590 = vmatprep.subr.mxu0 0.0
    %v2591 = vand.u32 %v230, 4294901760
    %v2592 = vsub.f32 %v230, %v2591
    %v2593 = vand.u32 %v2592, 4294901760
    %2594 = vmatpush1.msra.mxu0 %v2593
    %2595 = vmatprep.subr.mxu0 0.0
    %v2596 = vand.u32 %v231, 4294901760
    %v2597 = vsub.f32 %v231, %v2596
    %v2598 = vand.u32 %v2597, 4294901760
    %2599 = vmatpush1.msra.mxu0 %v2598
    %2600 = vmatprep.subr.mxu0 0.0
    %v2601 = vand.u32 %v232, 4294901760
    %v2602 = vsub.f32 %v232, %v2601
    %v2603 = vand.u32 %v2602, 4294901760
    %2604 = vmatpush1.msra.mxu0 %v2603
    %2605 = vmatprep.subr.mxu0 0.0
    %v2606 = vand.u32 %v233, 4294901760
    %v2607 = vsub.f32 %v233, %v2606
    %v2608 = vand.u32 %v2607, 4294901760
    %2609 = vmatpush1.msra.mxu0 %v2608
    %2610 = vmatprep.subr.mxu0 0.0
    %v2611 = vand.u32 %v234, 4294901760
    %v2612 = vsub.f32 %v234, %v2611
    %v2613 = vand.u32 %v2612, 4294901760
    %2614 = vmatpush1.msra.mxu0 %v2613
    %2615 = vmatprep.subr.mxu0 0.0
    %v2616 = vand.u32 %v235, 4294901760
    %v2617 = vsub.f32 %v235, %v2616
    %v2618 = vand.u32 %v2617, 4294901760
    %2619 = vmatpush1.msra.mxu0 %v2618
    %2620 = vmatprep.subr.mxu0 0.0
    %v2621 = vand.u32 %v236, 4294901760
    %v2622 = vsub.f32 %v236, %v2621
    %v2623 = vand.u32 %v2622, 4294901760
    %2624 = vmatpush1.msra.mxu0 %v2623
    %2625 = vmatprep.subr.mxu0 0.0
    %v2626 = vand.u32 %v237, 4294901760
    %v2627 = vsub.f32 %v237, %v2626
    %v2628 = vand.u32 %v2627, 4294901760
    %2629 = vmatpush1.msra.mxu0 %v2628
    %2630 = vmatprep.subr.mxu0 0.0
    %v2631 = vand.u32 %v238, 4294901760
    %v2632 = vsub.f32 %v238, %v2631
    %v2633 = vand.u32 %v2632, 4294901760
    %2634 = vmatpush1.msra.mxu0 %v2633
    %2635 = vmatprep.subr.mxu0 0.0
    %v2636 = vand.u32 %v239, 4294901760
    %v2637 = vsub.f32 %v239, %v2636
    %v2638 = vand.u32 %v2637, 4294901760
    %2639 = vmatpush1.msra.mxu0 %v2638
    %2640 = vmatprep.subr.mxu0 0.0
    %v2641 = vand.u32 %v240, 4294901760
    %v2642 = vsub.f32 %v240, %v2641
    %v2643 = vand.u32 %v2642, 4294901760
    %2644 = vmatpush1.msra.mxu0 %v2643
    %2645 = vmatprep.subr.mxu0 0.0
    %v2646 = vand.u32 %v241, 4294901760
    %v2647 = vsub.f32 %v241, %v2646
    %v2648 = vand.u32 %v2647, 4294901760
    %2649 = vmatpush1.msra.mxu0 %v2648
    %2650 = vmatprep.subr.mxu0 0.0
    %v2651 = vand.u32 %v242, 4294901760
    %v2652 = vsub.f32 %v242, %v2651
    %v2653 = vand.u32 %v2652, 4294901760
    %2654 = vmatpush1.msra.mxu0 %v2653
    %2655 = vmatprep.subr.mxu0 0.0
    %v2656 = vand.u32 %v243, 4294901760
    %v2657 = vsub.f32 %v243, %v2656
    %v2658 = vand.u32 %v2657, 4294901760
    %2659 = vmatpush1.msra.mxu0 %v2658
    %2660 = vmatprep.subr.mxu0 0.0
    %v2661 = vand.u32 %v244, 4294901760
    %v2662 = vsub.f32 %v244, %v2661
    %v2663 = vand.u32 %v2662, 4294901760
    %2664 = vmatpush1.msra.mxu0 %v2663
    %2665 = vmatprep.subr.mxu0 0.0
    %v2666 = vand.u32 %v245, 4294901760
    %v2667 = vsub.f32 %v245, %v2666
    %v2668 = vand.u32 %v2667, 4294901760
    %2669 = vmatpush1.msra.mxu0 %v2668
    %2670 = vmatprep.subr.mxu0 0.0
    %v2671 = vand.u32 %v246, 4294901760
    %v2672 = vsub.f32 %v246, %v2671
    %v2673 = vand.u32 %v2672, 4294901760
    %2674 = vmatpush1.msra.mxu0 %v2673
    %2675 = vmatprep.subr.mxu0 0.0
    %v2676 = vand.u32 %v247, 4294901760
    %v2677 = vsub.f32 %v247, %v2676
    %v2678 = vand.u32 %v2677, 4294901760
    %2679 = vmatpush1.msra.mxu0 %v2678
    %2680 = vmatprep.subr.mxu0 0.0
    %v2681 = vand.u32 %v248, 4294901760
    %v2682 = vsub.f32 %v248, %v2681
    %v2683 = vand.u32 %v2682, 4294901760
    %2684 = vmatpush1.msra.mxu0 %v2683
    %2685 = vmatprep.subr.mxu0 0.0
    %v2686 = vand.u32 %v249, 4294901760
    %v2687 = vsub.f32 %v249, %v2686
    %v2688 = vand.u32 %v2687, 4294901760
    %2689 = vmatpush1.msra.mxu0 %v2688
    %2690 = vmatprep.subr.mxu0 0.0
    %v2691 = vand.u32 %v250, 4294901760
    %v2692 = vsub.f32 %v250, %v2691
    %v2693 = vand.u32 %v2692, 4294901760
    %2694 = vmatpush1.msra.mxu0 %v2693
    %2695 = vmatprep.subr.mxu0 0.0
    %v2696 = vand.u32 %v251, 4294901760
    %v2697 = vsub.f32 %v251, %v2696
    %v2698 = vand.u32 %v2697, 4294901760
    %2699 = vmatpush1.msra.mxu0 %v2698
    %2700 = vmatprep.subr.mxu0 0.0
    %v2701 = vand.u32 %v252, 4294901760
    %v2702 = vsub.f32 %v252, %v2701
    %v2703 = vand.u32 %v2702, 4294901760
    %2704 = vmatpush1.msra.mxu0 %v2703
    %2705 = vmatprep.subr.mxu0 0.0
    %v2706 = vand.u32 %v253, 4294901760
    %v2707 = vsub.f32 %v253, %v2706
    %v2708 = vand.u32 %v2707, 4294901760
    %2709 = vmatpush1.msra.mxu0 %v2708
    %2710 = vmatprep.subr.mxu0 0.0
    %v2711 = vand.u32 %v254, 4294901760
    %v2712 = vsub.f32 %v254, %v2711
    %v2713 = vand.u32 %v2712, 4294901760
    %2714 = vmatpush1.msra.mxu0 %v2713
    %2715 = vmatprep.subr.mxu0 0.0
    %v2716 = vand.u32 %v255, 4294901760
    %v2717 = vsub.f32 %v255, %v2716
    %v2718 = vand.u32 %v2717, 4294901760
    %2719 = vmatpush1.msra.mxu0 %v2718
    %2720 = vmatprep.subr.mxu0 0.0
    %v2721 = vand.u32 %v256, 4294901760
    %v2722 = vsub.f32 %v256, %v2721
    %v2723 = vand.u32 %v2722, 4294901760
    %2724 = vmatpush1.msra.mxu0 %v2723
    %2725 = vmatprep.subr.mxu0 0.0
    %v2726 = vand.u32 %v257, 4294901760
    %v2727 = vsub.f32 %v257, %v2726
    %v2728 = vand.u32 %v2727, 4294901760
    %2729 = vmatpush1.msra.mxu0 %v2728
    %2730 = vmatprep.subr.mxu0 0.0
    %v2731 = vand.u32 %v258, 4294901760
    %v2732 = vsub.f32 %v258, %v2731
    %v2733 = vand.u32 %v2732, 4294901760
    %2734 = vmatpush1.msra.mxu0 %v2733
    %2735 = vmatprep.subr.mxu0 0.0
    %v2736 = vand.u32 %v259, 4294901760
    %v2737 = vsub.f32 %v259, %v2736
    %v2738 = vand.u32 %v2737, 4294901760
    %2739 = vmatpush1.msra.mxu0 %v2738
    %v2740 = vand.u32 %v64, 4294901760
    %2741 = vmatprep.mubr.f32.mxu0 %v2740
    %v2742 = vand.u32 %v63, 4294901760
    %2743 = vmatmul.mubr.f32.gmra.mrb[0].mxu0 %v2742
    %v2744 = vpop.f32.mrb[0].mxu0
    %v2745 = vadd.f32 %v2577, %v2744
    %v2746 = vpop.f32.mrb[0].mxu0
    %2747 = vdwg.mxu0
    %2748 = vmatprep.subr.mxu0 0.0
    %v2749 = vand.u32 %v228, 4294901760
    %2750 = vmatpush1.msra.mxu0 %v2749
    %2751 = vmatprep.subr.mxu0 0.0
    %v2752 = vand.u32 %v229, 4294901760
    %2753 = vmatpush1.msra.mxu0 %v2752
    %2754 = vmatprep.subr.mxu0 0.0
    %v2755 = vand.u32 %v230, 4294901760
    %2756 = vmatpush1.msra.mxu0 %v2755
    %2757 = vmatprep.subr.mxu0 0.0
    %v2758 = vand.u32 %v231, 4294901760
    %2759 = vmatpush1.msra.mxu0 %v2758
    %2760 = vmatprep.subr.mxu0 0.0
    %v2761 = vand.u32 %v232, 4294901760
    %2762 = vmatpush1.msra.mxu0 %v2761
    %2763 = vmatprep.subr.mxu0 0.0
    %v2764 = vand.u32 %v233, 4294901760
    %2765 = vmatpush1.msra.mxu0 %v2764
    %2766 = vmatprep.subr.mxu0 0.0
    %v2767 = vand.u32 %v234, 4294901760
    %2768 = vmatpush1.msra.mxu0 %v2767
    %2769 = vmatprep.subr.mxu0 0.0
    %v2770 = vand.u32 %v235, 4294901760
    %2771 = vmatpush1.msra.mxu0 %v2770
    %2772 = vmatprep.subr.mxu0 0.0
    %v2773 = vand.u32 %v236, 4294901760
    %2774 = vmatpush1.msra.mxu0 %v2773
    %2775 = vmatprep.subr.mxu0 0.0
    %v2776 = vand.u32 %v237, 4294901760
    %2777 = vmatpush1.msra.mxu0 %v2776
    %2778 = vmatprep.subr.mxu0 0.0
    %v2779 = vand.u32 %v238, 4294901760
    %2780 = vmatpush1.msra.mxu0 %v2779
    %2781 = vmatprep.subr.mxu0 0.0
    %v2782 = vand.u32 %v239, 4294901760
    %2783 = vmatpush1.msra.mxu0 %v2782
    %2784 = vmatprep.subr.mxu0 0.0
    %v2785 = vand.u32 %v240, 4294901760
    %2786 = vmatpush1.msra.mxu0 %v2785
    %2787 = vmatprep.subr.mxu0 0.0
    %v2788 = vand.u32 %v241, 4294901760
    %2789 = vmatpush1.msra.mxu0 %v2788
    %2790 = vmatprep.subr.mxu0 0.0
    %v2791 = vand.u32 %v242, 4294901760
    %2792 = vmatpush1.msra.mxu0 %v2791
    %2793 = vmatprep.subr.mxu0 0.0
    %v2794 = vand.u32 %v243, 4294901760
    %2795 = vmatpush1.msra.mxu0 %v2794
    %2796 = vmatprep.subr.mxu0 0.0
    %v2797 = vand.u32 %v244, 4294901760
    %2798 = vmatpush1.msra.mxu0 %v2797
    %2799 = vmatprep.subr.mxu0 0.0
    %v2800 = vand.u32 %v245, 4294901760
    %2801 = vmatpush1.msra.mxu0 %v2800
    %2802 = vmatprep.subr.mxu0 0.0
    %v2803 = vand.u32 %v246, 4294901760
    %2804 = vmatpush1.msra.mxu0 %v2803
    %2805 = vmatprep.subr.mxu0 0.0
    %v2806 = vand.u32 %v247, 4294901760
    %2807 = vmatpush1.msra.mxu0 %v2806
    %2808 = vmatprep.subr.mxu0 0.0
    %v2809 = vand.u32 %v248, 4294901760
    %2810 = vmatpush1.msra.mxu0 %v2809
    %2811 = vmatprep.subr.mxu0 0.0
    %v2812 = vand.u32 %v249, 4294901760
    %2813 = vmatpush1.msra.mxu0 %v2812
    %2814 = vmatprep.subr.mxu0 0.0
    %v2815 = vand.u32 %v250, 4294901760
    %2816 = vmatpush1.msra.mxu0 %v2815
    %2817 = vmatprep.subr.mxu0 0.0
    %v2818 = vand.u32 %v251, 4294901760
    %2819 = vmatpush1.msra.mxu0 %v2818
    %2820 = vmatprep.subr.mxu0 0.0
    %v2821 = vand.u32 %v252, 4294901760
    %2822 = vmatpush1.msra.mxu0 %v2821
    %2823 = vmatprep.subr.mxu0 0.0
    %v2824 = vand.u32 %v253, 4294901760
    %2825 = vmatpush1.msra.mxu0 %v2824
    %2826 = vmatprep.subr.mxu0 0.0
    %v2827 = vand.u32 %v254, 4294901760
    %2828 = vmatpush1.msra.mxu0 %v2827
    %2829 = vmatprep.subr.mxu0 0.0
    %v2830 = vand.u32 %v255, 4294901760
    %2831 = vmatpush1.msra.mxu0 %v2830
    %2832 = vmatprep.subr.mxu0 0.0
    %v2833 = vand.u32 %v256, 4294901760
    %2834 = vmatpush1.msra.mxu0 %v2833
    %2835 = vmatprep.subr.mxu0 0.0
    %v2836 = vand.u32 %v257, 4294901760
    %2837 = vmatpush1.msra.mxu0 %v2836
    %2838 = vmatprep.subr.mxu0 0.0
    %v2839 = vand.u32 %v258, 4294901760
    %2840 = vmatpush1.msra.mxu0 %v2839
    %2841 = vmatprep.subr.mxu0 0.0
    %v2842 = vand.u32 %v259, 4294901760
    %2843 = vmatpush1.msra.mxu0 %v2842
    %v2844 = vand.u32 %v64, 4294901760
    %2845 = vmatprep.mubr.f32.mxu0 %v2844
    %v2846 = vand.u32 %v63, 4294901760
    %2847 = vmatmul.mubr.f32.gmra.mrb[0].mxu0 %v2846
    %v2848 = vpop.f32.mrb[0].mxu0
    %v2849 = vadd.f32 %v2745, %v2848
    %v2850 = vpop.f32.mrb[0].mxu0
    %2851 = vdwg.mxu0
    %2852 = vmatprep.subr.mxu0 0.0
    %v2853 = vand.u32 %v260, 4294901760
    %2854 = vmatpush1.msra.mxu0 %v2853
    %2855 = vmatprep.subr.mxu0 0.0
    %v2856 = vand.u32 %v261, 4294901760
    %2857 = vmatpush1.msra.mxu0 %v2856
    %2858 = vmatprep.subr.mxu0 0.0
    %2859 = vmatpush1.msra.mxu0 0.0
    %2860 = vmatprep.subr.mxu0 0.0
    %2861 = vmatpush1.msra.mxu0 0.0
    %2862 = vmatprep.subr.mxu0 0.0
    %2863 = vmatpush1.msra.mxu0 0.0
    %2864 = vmatprep.subr.mxu0 0.0
    %2865 = vmatpush1.msra.mxu0 0.0
    %2866 = vmatprep.subr.mxu0 0.0
    %2867 = vmatpush1.msra.mxu0 0.0
    %2868 = vmatprep.subr.mxu0 0.0
    %2869 = vmatpush1.msra.mxu0 0.0
    %2870 = vmatprep.subr.mxu0 0.0
    %2871 = vmatpush1.msra.mxu0 0.0
    %2872 = vmatprep.subr.mxu0 0.0
    %2873 = vmatpush1.msra.mxu0 0.0
    %2874 = vmatprep.subr.mxu0 0.0
    %2875 = vmatpush1.msra.mxu0 0.0
    %2876 = vmatprep.subr.mxu0 0.0
    %2877 = vmatpush1.msra.mxu0 0.0
    %2878 = vmatprep.subr.mxu0 0.0
    %2879 = vmatpush1.msra.mxu0 0.0
    %2880 = vmatprep.subr.mxu0 0.0
    %2881 = vmatpush1.msra.mxu0 0.0
    %2882 = vmatprep.subr.mxu0 0.0
    %2883 = vmatpush1.msra.mxu0 0.0
    %2884 = vmatprep.subr.mxu0 0.0
    %2885 = vmatpush1.msra.mxu0 0.0
    %2886 = vmatprep.subr.mxu0 0.0
    %2887 = vmatpush1.msra.mxu0 0.0
    %2888 = vmatprep.subr.mxu0 0.0
    %2889 = vmatpush1.msra.mxu0 0.0
    %2890 = vmatprep.subr.mxu0 0.0
    %2891 = vmatpush1.msra.mxu0 0.0
    %2892 = vmatprep.subr.mxu0 0.0
    %2893 = vmatpush1.msra.mxu0 0.0
    %2894 = vmatprep.subr.mxu0 0.0
    %2895 = vmatpush1.msra.mxu0 0.0
    %2896 = vmatprep.subr.mxu0 0.0
    %2897 = vmatpush1.msra.mxu0 0.0
    %2898 = vmatprep.subr.mxu0 0.0
    %2899 = vmatpush1.msra.mxu0 0.0
    %2900 = vmatprep.subr.mxu0 0.0
    %2901 = vmatpush1.msra.mxu0 0.0
    %2902 = vmatprep.subr.mxu0 0.0
    %2903 = vmatpush1.msra.mxu0 0.0
    %2904 = vmatprep.subr.mxu0 0.0
    %2905 = vmatpush1.msra.mxu0 0.0
    %2906 = vmatprep.subr.mxu0 0.0
    %2907 = vmatpush1.msra.mxu0 0.0
    %2908 = vmatprep.subr.mxu0 0.0
    %2909 = vmatpush1.msra.mxu0 0.0
    %2910 = vmatprep.subr.mxu0 0.0
    %2911 = vmatpush1.msra.mxu0 0.0
    %2912 = vmatprep.subr.mxu0 0.0
    %2913 = vmatpush1.msra.mxu0 0.0
    %2914 = vmatprep.subr.mxu0 0.0
    %2915 = vmatpush1.msra.mxu0 0.0
    %2916 = vmatprep.subr.mxu0 0.0
    %2917 = vmatpush1.msra.mxu0 0.0
    %2918 = vmatprep.mubr.f32.mxu0 0.0
    %v2919 = vand.u32 %v264, 4294901760
    %v2920 = vsub.f32 %v264, %v2919
    %v2921 = vand.u32 %v2920, 4294901760
    %v2922 = vsub.f32 %v2920, %v2921
    %v2923 = vand.u32 %v2922, 4294901760
    %2924 = vmatmul.mubr.f32.gmra.mrb[0].mxu0 %v2923
    %v2925 = vpop.f32.mrb[0].mxu0
    %v2926 = vadd.f32 %v2849, %v2925
    %v2927 = vpop.f32.mrb[0].mxu0
    %2928 = vdwg.mxu0
    %2929 = vmatprep.subr.mxu0 0.0
    %v2930 = vand.u32 %v260, 4294901760
    %v2931 = vsub.f32 %v260, %v2930
    %v2932 = vand.u32 %v2931, 4294901760
    %v2933 = vsub.f32 %v2931, %v2932
    %v2934 = vand.u32 %v2933, 4294901760
    %2935 = vmatpush1.msra.mxu0 %v2934
    %2936 = vmatprep.subr.mxu0 0.0
    %v2937 = vand.u32 %v261, 4294901760
    %v2938 = vsub.f32 %v261, %v2937
    %v2939 = vand.u32 %v2938, 4294901760
    %v2940 = vsub.f32 %v2938, %v2939
    %v2941 = vand.u32 %v2940, 4294901760
    %2942 = vmatpush1.msra.mxu0 %v2941
    %2943 = vmatprep.subr.mxu0 0.0
    %2944 = vmatpush1.msra.mxu0 0.0
    %2945 = vmatprep.subr.mxu0 0.0
    %2946 = vmatpush1.msra.mxu0 0.0
    %2947 = vmatprep.subr.mxu0 0.0
    %2948 = vmatpush1.msra.mxu0 0.0
    %2949 = vmatprep.subr.mxu0 0.0
    %2950 = vmatpush1.msra.mxu0 0.0
    %2951 = vmatprep.subr.mxu0 0.0
    %2952 = vmatpush1.msra.mxu0 0.0
    %2953 = vmatprep.subr.mxu0 0.0
    %2954 = vmatpush1.msra.mxu0 0.0
    %2955 = vmatprep.subr.mxu0 0.0
    %2956 = vmatpush1.msra.mxu0 0.0
    %2957 = vmatprep.subr.mxu0 0.0
    %2958 = vmatpush1.msra.mxu0 0.0
    %2959 = vmatprep.subr.mxu0 0.0
    %2960 = vmatpush1.msra.mxu0 0.0
    %2961 = vmatprep.subr.mxu0 0.0
    %2962 = vmatpush1.msra.mxu0 0.0
    %2963 = vmatprep.subr.mxu0 0.0
    %2964 = vmatpush1.msra.mxu0 0.0
    %2965 = vmatprep.subr.mxu0 0.0
    %2966 = vmatpush1.msra.mxu0 0.0
    %2967 = vmatprep.subr.mxu0 0.0
    %2968 = vmatpush1.msra.mxu0 0.0
    %2969 = vmatprep.subr.mxu0 0.0
    %2970 = vmatpush1.msra.mxu0 0.0
    %2971 = vmatprep.subr.mxu0 0.0
    %2972 = vmatpush1.msra.mxu0 0.0
    %2973 = vmatprep.subr.mxu0 0.0
    %2974 = vmatpush1.msra.mxu0 0.0
    %2975 = vmatprep.subr.mxu0 0.0
    %2976 = vmatpush1.msra.mxu0 0.0
    %2977 = vmatprep.subr.mxu0 0.0
    %2978 = vmatpush1.msra.mxu0 0.0
    %2979 = vmatprep.subr.mxu0 0.0
    %2980 = vmatpush1.msra.mxu0 0.0
    %2981 = vmatprep.subr.mxu0 0.0
    %2982 = vmatpush1.msra.mxu0 0.0
    %2983 = vmatprep.subr.mxu0 0.0
    %2984 = vmatpush1.msra.mxu0 0.0
    %2985 = vmatprep.subr.mxu0 0.0
    %2986 = vmatpush1.msra.mxu0 0.0
    %2987 = vmatprep.subr.mxu0 0.0
    %2988 = vmatpush1.msra.mxu0 0.0
    %2989 = vmatprep.subr.mxu0 0.0
    %2990 = vmatpush1.msra.mxu0 0.0
    %2991 = vmatprep.subr.mxu0 0.0
    %2992 = vmatpush1.msra.mxu0 0.0
    %2993 = vmatprep.subr.mxu0 0.0
    %2994 = vmatpush1.msra.mxu0 0.0
    %2995 = vmatprep.subr.mxu0 0.0
    %2996 = vmatpush1.msra.mxu0 0.0
    %2997 = vmatprep.subr.mxu0 0.0
    %2998 = vmatpush1.msra.mxu0 0.0
    %2999 = vmatprep.subr.mxu0 0.0
    %3000 = vmatpush1.msra.mxu0 0.0
    %3001 = vmatprep.subr.mxu0 0.0
    %3002 = vmatpush1.msra.mxu0 0.0
    %3003 = vmatprep.mubr.f32.mxu0 0.0
    %v3004 = vand.u32 %v264, 4294901760
    %3005 = vmatmul.mubr.f32.gmra.mrb[0].mxu0 %v3004
    %v3006 = vpop.f32.mrb[0].mxu0
    %v3007 = vadd.f32 %v2926, %v3006
    %v3008 = vpop.f32.mrb[0].mxu0
    %3009 = vdwg.mxu0
    %3010 = vmatprep.subr.mxu0 0.0
    %v3011 = vand.u32 %v260, 4294901760
    %v3012 = vsub.f32 %v260, %v3011
    %3013 = vmatpush1.msra.mxu0 %v3012
    %3014 = vmatprep.subr.mxu0 0.0
    %v3015 = vand.u32 %v261, 4294901760
    %v3016 = vsub.f32 %v261, %v3015
    %3017 = vmatpush1.msra.mxu0 %v3016
    %3018 = vmatprep.subr.mxu0 0.0
    %3019 = vmatpush1.msra.mxu0 0.0
    %3020 = vmatprep.subr.mxu0 0.0
    %3021 = vmatpush1.msra.mxu0 0.0
    %3022 = vmatprep.subr.mxu0 0.0
    %3023 = vmatpush1.msra.mxu0 0.0
    %3024 = vmatprep.subr.mxu0 0.0
    %3025 = vmatpush1.msra.mxu0 0.0
    %3026 = vmatprep.subr.mxu0 0.0
    %3027 = vmatpush1.msra.mxu0 0.0
    %3028 = vmatprep.subr.mxu0 0.0
    %3029 = vmatpush1.msra.mxu0 0.0
    %3030 = vmatprep.subr.mxu0 0.0
    %3031 = vmatpush1.msra.mxu0 0.0
    %3032 = vmatprep.subr.mxu0 0.0
    %3033 = vmatpush1.msra.mxu0 0.0
    %3034 = vmatprep.subr.mxu0 0.0
    %3035 = vmatpush1.msra.mxu0 0.0
    %3036 = vmatprep.subr.mxu0 0.0
    %3037 = vmatpush1.msra.mxu0 0.0
    %3038 = vmatprep.subr.mxu0 0.0
    %3039 = vmatpush1.msra.mxu0 0.0
    %3040 = vmatprep.subr.mxu0 0.0
    %3041 = vmatpush1.msra.mxu0 0.0
    %3042 = vmatprep.subr.mxu0 0.0
    %3043 = vmatpush1.msra.mxu0 0.0
    %3044 = vmatprep.subr.mxu0 0.0
    %3045 = vmatpush1.msra.mxu0 0.0
    %3046 = vmatprep.subr.mxu0 0.0
    %3047 = vmatpush1.msra.mxu0 0.0
    %3048 = vmatprep.subr.mxu0 0.0
    %3049 = vmatpush1.msra.mxu0 0.0
    %3050 = vmatprep.subr.mxu0 0.0
    %3051 = vmatpush1.msra.mxu0 0.0
    %3052 = vmatprep.subr.mxu0 0.0
    %3053 = vmatpush1.msra.mxu0 0.0
    %3054 = vmatprep.subr.mxu0 0.0
    %3055 = vmatpush1.msra.mxu0 0.0
    %3056 = vmatprep.subr.mxu0 0.0
    %3057 = vmatpush1.msra.mxu0 0.0
    %3058 = vmatprep.subr.mxu0 0.0
    %3059 = vmatpush1.msra.mxu0 0.0
    %3060 = vmatprep.subr.mxu0 0.0
    %3061 = vmatpush1.msra.mxu0 0.0
    %3062 = vmatprep.subr.mxu0 0.0
    %3063 = vmatpush1.msra.mxu0 0.0
    %3064 = vmatprep.subr.mxu0 0.0
    %3065 = vmatpush1.msra.mxu0 0.0
    %3066 = vmatprep.subr.mxu0 0.0
    %3067 = vmatpush1.msra.mxu0 0.0
    %3068 = vmatprep.subr.mxu0 0.0
    %3069 = vmatpush1.msra.mxu0 0.0
    %3070 = vmatprep.subr.mxu0 0.0
    %3071 = vmatpush1.msra.mxu0 0.0
    %3072 = vmatprep.subr.mxu0 0.0
    %3073 = vmatpush1.msra.mxu0 0.0
    %3074 = vmatprep.subr.mxu0 0.0
    %3075 = vmatpush1.msra.mxu0 0.0
    %3076 = vmatprep.subr.mxu0 0.0
    %3077 = vmatpush1.msra.mxu0 0.0
    %3078 = vmatprep.mubr.f32.mxu0 0.0
    %v3079 = vand.u32 %v264, 4294901760
    %v3080 = vsub.f32 %v264, %v3079
    %3081 = vmatmul.mubr.f32.gmra.mrb[0].mxu0 %v3080
    %v3082 = vpop.f32.mrb[0].mxu0
    %v3083 = vadd.f32 %v3007, %v3082
    %v3084 = vpop.f32.mrb[0].mxu0
    %3085 = vdwg.mxu0
    %3086 = vmatprep.subr.mxu0 0.0
    %v3087 = vand.u32 %v260, 4294901760
    %3088 = vmatpush1.msra.mxu0 %v3087
    %3089 = vmatprep.subr.mxu0 0.0
    %v3090 = vand.u32 %v261, 4294901760
    %3091 = vmatpush1.msra.mxu0 %v3090
    %3092 = vmatprep.subr.mxu0 0.0
    %3093 = vmatpush1.msra.mxu0 0.0
    %3094 = vmatprep.subr.mxu0 0.0
    %3095 = vmatpush1.msra.mxu0 0.0
    %3096 = vmatprep.subr.mxu0 0.0
    %3097 = vmatpush1.msra.mxu0 0.0
    %3098 = vmatprep.subr.mxu0 0.0
    %3099 = vmatpush1.msra.mxu0 0.0
    %3100 = vmatprep.subr.mxu0 0.0
    %3101 = vmatpush1.msra.mxu0 0.0
    %3102 = vmatprep.subr.mxu0 0.0
    %3103 = vmatpush1.msra.mxu0 0.0
    %3104 = vmatprep.subr.mxu0 0.0
    %3105 = vmatpush1.msra.mxu0 0.0
    %3106 = vmatprep.subr.mxu0 0.0
    %3107 = vmatpush1.msra.mxu0 0.0
    %3108 = vmatprep.subr.mxu0 0.0
    %3109 = vmatpush1.msra.mxu0 0.0
    %3110 = vmatprep.subr.mxu0 0.0
    %3111 = vmatpush1.msra.mxu0 0.0
    %3112 = vmatprep.subr.mxu0 0.0
    %3113 = vmatpush1.msra.mxu0 0.0
    %3114 = vmatprep.subr.mxu0 0.0
    %3115 = vmatpush1.msra.mxu0 0.0
    %3116 = vmatprep.subr.mxu0 0.0
    %3117 = vmatpush1.msra.mxu0 0.0
    %3118 = vmatprep.subr.mxu0 0.0
    %3119 = vmatpush1.msra.mxu0 0.0
    %3120 = vmatprep.subr.mxu0 0.0
    %3121 = vmatpush1.msra.mxu0 0.0
    %3122 = vmatprep.subr.mxu0 0.0
    %3123 = vmatpush1.msra.mxu0 0.0
    %3124 = vmatprep.subr.mxu0 0.0
    %3125 = vmatpush1.msra.mxu0 0.0
    %3126 = vmatprep.subr.mxu0 0.0
    %3127 = vmatpush1.msra.mxu0 0.0
    %3128 = vmatprep.subr.mxu0 0.0
    %3129 = vmatpush1.msra.mxu0 0.0
    %3130 = vmatprep.subr.mxu0 0.0
    %3131 = vmatpush1.msra.mxu0 0.0
    %3132 = vmatprep.subr.mxu0 0.0
    %3133 = vmatpush1.msra.mxu0 0.0
    %3134 = vmatprep.subr.mxu0 0.0
    %3135 = vmatpush1.msra.mxu0 0.0
    %3136 = vmatprep.subr.mxu0 0.0
    %3137 = vmatpush1.msra.mxu0 0.0
    %3138 = vmatprep.subr.mxu0 0.0
    %3139 = vmatpush1.msra.mxu0 0.0
    %3140 = vmatprep.subr.mxu0 0.0
    %3141 = vmatpush1.msra.mxu0 0.0
    %3142 = vmatprep.subr.mxu0 0.0
    %3143 = vmatpush1.msra.mxu0 0.0
    %3144 = vmatprep.subr.mxu0 0.0
    %3145 = vmatpush1.msra.mxu0 0.0
    %3146 = vmatprep.subr.mxu0 0.0
    %3147 = vmatpush1.msra.mxu0 0.0
    %3148 = vmatprep.subr.mxu0 0.0
    %3149 = vmatpush1.msra.mxu0 0.0
    %3150 = vmatprep.subr.mxu0 0.0
    %3151 = vmatpush1.msra.mxu0 0.0
    %3152 = vmatprep.mubr.f32.mxu0 0.0
    %v3153 = vand.u32 %v264, 4294901760
    %v3154 = vsub.f32 %v264, %v3153
    %v3155 = vand.u32 %v3154, 4294901760
    %3156 = vmatmul.mubr.f32.gmra.mrb[0].mxu0 %v3155
    %v3157 = vpop.f32.mrb[0].mxu0
    %v3158 = vadd.f32 %v3083, %v3157
    %v3159 = vpop.f32.mrb[0].mxu0
    %3160 = vdwg.mxu0
    %3161 = vmatprep.subr.mxu0 0.0
    %v3162 = vand.u32 %v260, 4294901760
    %v3163 = vsub.f32 %v260, %v3162
    %v3164 = vand.u32 %v3163, 4294901760
    %3165 = vmatpush1.msra.mxu0 %v3164
    %3166 = vmatprep.subr.mxu0 0.0
    %v3167 = vand.u32 %v261, 4294901760
    %v3168 = vsub.f32 %v261, %v3167
    %v3169 = vand.u32 %v3168, 4294901760
    %3170 = vmatpush1.msra.mxu0 %v3169
    %3171 = vmatprep.subr.mxu0 0.0
    %3172 = vmatpush1.msra.mxu0 0.0
    %3173 = vmatprep.subr.mxu0 0.0
    %3174 = vmatpush1.msra.mxu0 0.0
    %3175 = vmatprep.subr.mxu0 0.0
    %3176 = vmatpush1.msra.mxu0 0.0
    %3177 = vmatprep.subr.mxu0 0.0
    %3178 = vmatpush1.msra.mxu0 0.0
    %3179 = vmatprep.subr.mxu0 0.0
    %3180 = vmatpush1.msra.mxu0 0.0
    %3181 = vmatprep.subr.mxu0 0.0
    %3182 = vmatpush1.msra.mxu0 0.0
    %3183 = vmatprep.subr.mxu0 0.0
    %3184 = vmatpush1.msra.mxu0 0.0
    %3185 = vmatprep.subr.mxu0 0.0
    %3186 = vmatpush1.msra.mxu0 0.0
    %3187 = vmatprep.subr.mxu0 0.0
    %3188 = vmatpush1.msra.mxu0 0.0
    %3189 = vmatprep.subr.mxu0 0.0
    %3190 = vmatpush1.msra.mxu0 0.0
    %3191 = vmatprep.subr.mxu0 0.0
    %3192 = vmatpush1.msra.mxu0 0.0
    %3193 = vmatprep.subr.mxu0 0.0
    %3194 = vmatpush1.msra.mxu0 0.0
    %3195 = vmatprep.subr.mxu0 0.0
    %3196 = vmatpush1.msra.mxu0 0.0
    %3197 = vmatprep.subr.mxu0 0.0
    %3198 = vmatpush1.msra.mxu0 0.0
    %3199 = vmatprep.subr.mxu0 0.0
    %3200 = vmatpush1.msra.mxu0 0.0
    %3201 = vmatprep.subr.mxu0 0.0
    %3202 = vmatpush1.msra.mxu0 0.0
    %3203 = vmatprep.subr.mxu0 0.0
    %3204 = vmatpush1.msra.mxu0 0.0
    %3205 = vmatprep.subr.mxu0 0.0
    %3206 = vmatpush1.msra.mxu0 0.0
    %3207 = vmatprep.subr.mxu0 0.0
    %3208 = vmatpush1.msra.mxu0 0.0
    %3209 = vmatprep.subr.mxu0 0.0
    %3210 = vmatpush1.msra.mxu0 0.0
    %3211 = vmatprep.subr.mxu0 0.0
    %3212 = vmatpush1.msra.mxu0 0.0
    %3213 = vmatprep.subr.mxu0 0.0
    %3214 = vmatpush1.msra.mxu0 0.0
    %3215 = vmatprep.subr.mxu0 0.0
    %3216 = vmatpush1.msra.mxu0 0.0
    %3217 = vmatprep.subr.mxu0 0.0
    %3218 = vmatpush1.msra.mxu0 0.0
    %3219 = vmatprep.subr.mxu0 0.0
    %3220 = vmatpush1.msra.mxu0 0.0
    %3221 = vmatprep.subr.mxu0 0.0
    %3222 = vmatpush1.msra.mxu0 0.0
    %3223 = vmatprep.subr.mxu0 0.0
    %3224 = vmatpush1.msra.mxu0 0.0
    %3225 = vmatprep.subr.mxu0 0.0
    %3226 = vmatpush1.msra.mxu0 0.0
    %3227 = vmatprep.subr.mxu0 0.0
    %3228 = vmatpush1.msra.mxu0 0.0
    %3229 = vmatprep.subr.mxu0 0.0
    %3230 = vmatpush1.msra.mxu0 0.0
    %3231 = vmatprep.mubr.f32.mxu0 0.0
    %v3232 = vand.u32 %v264, 4294901760
    %3233 = vmatmul.mubr.f32.gmra.mrb[0].mxu0 %v3232
    %v3234 = vpop.f32.mrb[0].mxu0
    %v3235 = vadd.f32 %v3158, %v3234
    %v3236 = vpop.f32.mrb[0].mxu0
    %3237 = vdwg.mxu0
    %3238 = vmatprep.subr.mxu0 0.0
    %v3239 = vand.u32 %v260, 4294901760
    %3240 = vmatpush1.msra.mxu0 %v3239
    %3241 = vmatprep.subr.mxu0 0.0
    %v3242 = vand.u32 %v261, 4294901760
    %3243 = vmatpush1.msra.mxu0 %v3242
    %3244 = vmatprep.subr.mxu0 0.0
    %3245 = vmatpush1.msra.mxu0 0.0
    %3246 = vmatprep.subr.mxu0 0.0
    %3247 = vmatpush1.msra.mxu0 0.0
    %3248 = vmatprep.subr.mxu0 0.0
    %3249 = vmatpush1.msra.mxu0 0.0
    %3250 = vmatprep.subr.mxu0 0.0
    %3251 = vmatpush1.msra.mxu0 0.0
    %3252 = vmatprep.subr.mxu0 0.0
    %3253 = vmatpush1.msra.mxu0 0.0
    %3254 = vmatprep.subr.mxu0 0.0
    %3255 = vmatpush1.msra.mxu0 0.0
    %3256 = vmatprep.subr.mxu0 0.0
    %3257 = vmatpush1.msra.mxu0 0.0
    %3258 = vmatprep.subr.mxu0 0.0
    %3259 = vmatpush1.msra.mxu0 0.0
    %3260 = vmatprep.subr.mxu0 0.0
    %3261 = vmatpush1.msra.mxu0 0.0
    %3262 = vmatprep.subr.mxu0 0.0
    %3263 = vmatpush1.msra.mxu0 0.0
    %3264 = vmatprep.subr.mxu0 0.0
    %3265 = vmatpush1.msra.mxu0 0.0
    %3266 = vmatprep.subr.mxu0 0.0
    %3267 = vmatpush1.msra.mxu0 0.0
    %3268 = vmatprep.subr.mxu0 0.0
    %3269 = vmatpush1.msra.mxu0 0.0
    %3270 = vmatprep.subr.mxu0 0.0
    %3271 = vmatpush1.msra.mxu0 0.0
    %3272 = vmatprep.subr.mxu0 0.0
    %3273 = vmatpush1.msra.mxu0 0.0
    %3274 = vmatprep.subr.mxu0 0.0
    %3275 = vmatpush1.msra.mxu0 0.0
    %3276 = vmatprep.subr.mxu0 0.0
    %3277 = vmatpush1.msra.mxu0 0.0
    %3278 = vmatprep.subr.mxu0 0.0
    %3279 = vmatpush1.msra.mxu0 0.0
    %3280 = vmatprep.subr.mxu0 0.0
    %3281 = vmatpush1.msra.mxu0 0.0
    %3282 = vmatprep.subr.mxu0 0.0
    %3283 = vmatpush1.msra.mxu0 0.0
    %3284 = vmatprep.subr.mxu0 0.0
    %3285 = vmatpush1.msra.mxu0 0.0
    %3286 = vmatprep.subr.mxu0 0.0
    %3287 = vmatpush1.msra.mxu0 0.0
    %3288 = vmatprep.subr.mxu0 0.0
    %3289 = vmatpush1.msra.mxu0 0.0
    %3290 = vmatprep.subr.mxu0 0.0
    %3291 = vmatpush1.msra.mxu0 0.0
    %3292 = vmatprep.subr.mxu0 0.0
    %3293 = vmatpush1.msra.mxu0 0.0
    %3294 = vmatprep.subr.mxu0 0.0
    %3295 = vmatpush1.msra.mxu0 0.0
    %3296 = vmatprep.subr.mxu0 0.0
    %3297 = vmatpush1.msra.mxu0 0.0
    %3298 = vmatprep.subr.mxu0 0.0
    %3299 = vmatpush1.msra.mxu0 0.0
    %3300 = vmatprep.subr.mxu0 0.0
    %3301 = vmatpush1.msra.mxu0 0.0
    %3302 = vmatprep.subr.mxu0 0.0
    %3303 = vmatpush1.msra.mxu0 0.0
    %3304 = vmatprep.mubr.f32.mxu0 0.0
    %v3305 = vand.u32 %v264, 4294901760
    %3306 = vmatmul.mubr.f32.gmra.mrb[0].mxu0 %v3305
    %v3307 = vpop.f32.mrb[0].mxu0
    %v3308 = vadd.f32 %v3235, %v3307
    %v3309 = vpop.f32.mrb[0].mxu0
    %3310 = vdwg.mxu0
    %v3312 = vsel %vm262, %v51, 0
    %3314 = vmatprep.subr.mxu0 0.0
    %v3315 = vand.u32 %v66, 4294901760
    %3316 = vmatpush1.msra.mxu0 %v3315
    %3317 = vmatprep.subr.mxu0 0.0
    %v3318 = vand.u32 %v67, 4294901760
    %3319 = vmatpush1.msra.mxu0 %v3318
    %3320 = vmatprep.subr.mxu0 0.0
    %v3321 = vand.u32 %v68, 4294901760
    %3322 = vmatpush1.msra.mxu0 %v3321
    %3323 = vmatprep.subr.mxu0 0.0
    %v3324 = vand.u32 %v69, 4294901760
    %3325 = vmatpush1.msra.mxu0 %v3324
    %3326 = vmatprep.subr.mxu0 0.0
    %v3327 = vand.u32 %v70, 4294901760
    %3328 = vmatpush1.msra.mxu0 %v3327
    %3329 = vmatprep.subr.mxu0 0.0
    %v3330 = vand.u32 %v71, 4294901760
    %3331 = vmatpush1.msra.mxu0 %v3330
    %3332 = vmatprep.subr.mxu0 0.0
    %v3333 = vand.u32 %v72, 4294901760
    %3334 = vmatpush1.msra.mxu0 %v3333
    %3335 = vmatprep.subr.mxu0 0.0
    %v3336 = vand.u32 %v73, 4294901760
    %3337 = vmatpush1.msra.mxu0 %v3336
    %3338 = vmatprep.subr.mxu0 0.0
    %v3339 = vand.u32 %v74, 4294901760
    %3340 = vmatpush1.msra.mxu0 %v3339
    %3341 = vmatprep.subr.mxu0 0.0
    %v3342 = vand.u32 %v75, 4294901760
    %3343 = vmatpush1.msra.mxu0 %v3342
    %3344 = vmatprep.subr.mxu0 0.0
    %v3345 = vand.u32 %v76, 4294901760
    %3346 = vmatpush1.msra.mxu0 %v3345
    %3347 = vmatprep.subr.mxu0 0.0
    %v3348 = vand.u32 %v77, 4294901760
    %3349 = vmatpush1.msra.mxu0 %v3348
    %3350 = vmatprep.subr.mxu0 0.0
    %v3351 = vand.u32 %v78, 4294901760
    %3352 = vmatpush1.msra.mxu0 %v3351
    %3353 = vmatprep.subr.mxu0 0.0
    %v3354 = vand.u32 %v79, 4294901760
    %3355 = vmatpush1.msra.mxu0 %v3354
    %3356 = vmatprep.subr.mxu0 0.0
    %v3357 = vand.u32 %v80, 4294901760
    %3358 = vmatpush1.msra.mxu0 %v3357
    %3359 = vmatprep.subr.mxu0 0.0
    %v3360 = vand.u32 %v81, 4294901760
    %3361 = vmatpush1.msra.mxu0 %v3360
    %3362 = vmatprep.subr.mxu0 0.0
    %v3363 = vand.u32 %v82, 4294901760
    %3364 = vmatpush1.msra.mxu0 %v3363
    %3365 = vmatprep.subr.mxu0 0.0
    %v3366 = vand.u32 %v83, 4294901760
    %3367 = vmatpush1.msra.mxu0 %v3366
    %3368 = vmatprep.subr.mxu0 0.0
    %v3369 = vand.u32 %v84, 4294901760
    %3370 = vmatpush1.msra.mxu0 %v3369
    %3371 = vmatprep.subr.mxu0 0.0
    %v3372 = vand.u32 %v85, 4294901760
    %3373 = vmatpush1.msra.mxu0 %v3372
    %3374 = vmatprep.subr.mxu0 0.0
    %v3375 = vand.u32 %v86, 4294901760
    %3376 = vmatpush1.msra.mxu0 %v3375
    %3377 = vmatprep.subr.mxu0 0.0
    %v3378 = vand.u32 %v87, 4294901760
    %3379 = vmatpush1.msra.mxu0 %v3378
    %3380 = vmatprep.subr.mxu0 0.0
    %v3381 = vand.u32 %v88, 4294901760
    %3382 = vmatpush1.msra.mxu0 %v3381
    %3383 = vmatprep.subr.mxu0 0.0
    %v3384 = vand.u32 %v89, 4294901760
    %3385 = vmatpush1.msra.mxu0 %v3384
    %3386 = vmatprep.subr.mxu0 0.0
    %v3387 = vand.u32 %v90, 4294901760
    %3388 = vmatpush1.msra.mxu0 %v3387
    %3389 = vmatprep.subr.mxu0 0.0
    %v3390 = vand.u32 %v91, 4294901760
    %3391 = vmatpush1.msra.mxu0 %v3390
    %3392 = vmatprep.subr.mxu0 0.0
    %v3393 = vand.u32 %v92, 4294901760
    %3394 = vmatpush1.msra.mxu0 %v3393
    %3395 = vmatprep.subr.mxu0 0.0
    %v3396 = vand.u32 %v93, 4294901760
    %3397 = vmatpush1.msra.mxu0 %v3396
    %3398 = vmatprep.subr.mxu0 0.0
    %v3399 = vand.u32 %v94, 4294901760
    %3400 = vmatpush1.msra.mxu0 %v3399
    %3401 = vmatprep.subr.mxu0 0.0
    %v3402 = vand.u32 %v95, 4294901760
    %3403 = vmatpush1.msra.mxu0 %v3402
    %3404 = vmatprep.subr.mxu0 0.0
    %v3405 = vand.u32 %v96, 4294901760
    %3406 = vmatpush1.msra.mxu0 %v3405
    %3407 = vmatprep.subr.mxu0 0.0
    %v3408 = vand.u32 %v97, 4294901760
    %3409 = vmatpush1.msra.mxu0 %v3408
    %v3410 = vand.u32 %v46, 4294901760
    %v3411 = vsub.f32 %v46, %v3410
    %v3412 = vand.u32 %v3411, 4294901760
    %v3413 = vsub.f32 %v3411, %v3412
    %v3414 = vand.u32 %v3413, 4294901760
    %3415 = vmatprep.mubr.f32.mxu0 %v3414
    %v3416 = vand.u32 %v45, 4294901760
    %v3417 = vsub.f32 %v45, %v3416
    %v3418 = vand.u32 %v3417, 4294901760
    %v3419 = vsub.f32 %v3417, %v3418
    %v3420 = vand.u32 %v3419, 4294901760
    %3421 = vmatmul.mubr.f32.gmra.mrb[0].mxu0 %v3420
    %v3422 = vpop.f32.mrb[0].mxu0
    %v3423 = vadd.f32 %v3308, %v3422
    %v3424 = vpop.f32.mrb[0].mxu0
    %3425 = vdwg.mxu0
    %3426 = vmatprep.subr.mxu0 0.0
    %v3427 = vand.u32 %v66, 4294901760
    %v3428 = vsub.f32 %v66, %v3427
    %v3429 = vand.u32 %v3428, 4294901760
    %v3430 = vsub.f32 %v3428, %v3429
    %v3431 = vand.u32 %v3430, 4294901760
    %3432 = vmatpush1.msra.mxu0 %v3431
    %3433 = vmatprep.subr.mxu0 0.0
    %v3434 = vand.u32 %v67, 4294901760
    %v3435 = vsub.f32 %v67, %v3434
    %v3436 = vand.u32 %v3435, 4294901760
    %v3437 = vsub.f32 %v3435, %v3436
    %v3438 = vand.u32 %v3437, 4294901760
    %3439 = vmatpush1.msra.mxu0 %v3438
    %3440 = vmatprep.subr.mxu0 0.0
    %v3441 = vand.u32 %v68, 4294901760
    %v3442 = vsub.f32 %v68, %v3441
    %v3443 = vand.u32 %v3442, 4294901760
    %v3444 = vsub.f32 %v3442, %v3443
    %v3445 = vand.u32 %v3444, 4294901760
    %3446 = vmatpush1.msra.mxu0 %v3445
    %3447 = vmatprep.subr.mxu0 0.0
    %v3448 = vand.u32 %v69, 4294901760
    %v3449 = vsub.f32 %v69, %v3448
    %v3450 = vand.u32 %v3449, 4294901760
    %v3451 = vsub.f32 %v3449, %v3450
    %v3452 = vand.u32 %v3451, 4294901760
    %3453 = vmatpush1.msra.mxu0 %v3452
    %3454 = vmatprep.subr.mxu0 0.0
    %v3455 = vand.u32 %v70, 4294901760
    %v3456 = vsub.f32 %v70, %v3455
    %v3457 = vand.u32 %v3456, 4294901760
    %v3458 = vsub.f32 %v3456, %v3457
    %v3459 = vand.u32 %v3458, 4294901760
    %3460 = vmatpush1.msra.mxu0 %v3459
    %3461 = vmatprep.subr.mxu0 0.0
    %v3462 = vand.u32 %v71, 4294901760
    %v3463 = vsub.f32 %v71, %v3462
    %v3464 = vand.u32 %v3463, 4294901760
    %v3465 = vsub.f32 %v3463, %v3464
    %v3466 = vand.u32 %v3465, 4294901760
    %3467 = vmatpush1.msra.mxu0 %v3466
    %3468 = vmatprep.subr.mxu0 0.0
    %v3469 = vand.u32 %v72, 4294901760
    %v3470 = vsub.f32 %v72, %v3469
    %v3471 = vand.u32 %v3470, 4294901760
    %v3472 = vsub.f32 %v3470, %v3471
    %v3473 = vand.u32 %v3472, 4294901760
    %3474 = vmatpush1.msra.mxu0 %v3473
    %3475 = vmatprep.subr.mxu0 0.0
    %v3476 = vand.u32 %v73, 4294901760
    %v3477 = vsub.f32 %v73, %v3476
    %v3478 = vand.u32 %v3477, 4294901760
    %v3479 = vsub.f32 %v3477, %v3478
    %v3480 = vand.u32 %v3479, 4294901760
    %3481 = vmatpush1.msra.mxu0 %v3480
    %3482 = vmatprep.subr.mxu0 0.0
    %v3483 = vand.u32 %v74, 4294901760
    %v3484 = vsub.f32 %v74, %v3483
    %v3485 = vand.u32 %v3484, 4294901760
    %v3486 = vsub.f32 %v3484, %v3485
    %v3487 = vand.u32 %v3486, 4294901760
    %3488 = vmatpush1.msra.mxu0 %v3487
    %3489 = vmatprep.subr.mxu0 0.0
    %v3490 = vand.u32 %v75, 4294901760
    %v3491 = vsub.f32 %v75, %v3490
    %v3492 = vand.u32 %v3491, 4294901760
    %v3493 = vsub.f32 %v3491, %v3492
    %v3494 = vand.u32 %v3493, 4294901760
    %3495 = vmatpush1.msra.mxu0 %v3494
    %3496 = vmatprep.subr.mxu0 0.0
    %v3497 = vand.u32 %v76, 4294901760
    %v3498 = vsub.f32 %v76, %v3497
    %v3499 = vand.u32 %v3498, 4294901760
    %v3500 = vsub.f32 %v3498, %v3499
    %v3501 = vand.u32 %v3500, 4294901760
    %3502 = vmatpush1.msra.mxu0 %v3501
    %3503 = vmatprep.subr.mxu0 0.0
    %v3504 = vand.u32 %v77, 4294901760
    %v3505 = vsub.f32 %v77, %v3504
    %v3506 = vand.u32 %v3505, 4294901760
    %v3507 = vsub.f32 %v3505, %v3506
    %v3508 = vand.u32 %v3507, 4294901760
    %3509 = vmatpush1.msra.mxu0 %v3508
    %3510 = vmatprep.subr.mxu0 0.0
    %v3511 = vand.u32 %v78, 4294901760
    %v3512 = vsub.f32 %v78, %v3511
    %v3513 = vand.u32 %v3512, 4294901760
    %v3514 = vsub.f32 %v3512, %v3513
    %v3515 = vand.u32 %v3514, 4294901760
    %3516 = vmatpush1.msra.mxu0 %v3515
    %3517 = vmatprep.subr.mxu0 0.0
    %v3518 = vand.u32 %v79, 4294901760
    %v3519 = vsub.f32 %v79, %v3518
    %v3520 = vand.u32 %v3519, 4294901760
    %v3521 = vsub.f32 %v3519, %v3520
    %v3522 = vand.u32 %v3521, 4294901760
    %3523 = vmatpush1.msra.mxu0 %v3522
    %3524 = vmatprep.subr.mxu0 0.0
    %v3525 = vand.u32 %v80, 4294901760
    %v3526 = vsub.f32 %v80, %v3525
    %v3527 = vand.u32 %v3526, 4294901760
    %v3528 = vsub.f32 %v3526, %v3527
    %v3529 = vand.u32 %v3528, 4294901760
    %3530 = vmatpush1.msra.mxu0 %v3529
    %3531 = vmatprep.subr.mxu0 0.0
    %v3532 = vand.u32 %v81, 4294901760
    %v3533 = vsub.f32 %v81, %v3532
    %v3534 = vand.u32 %v3533, 4294901760
    %v3535 = vsub.f32 %v3533, %v3534
    %v3536 = vand.u32 %v3535, 4294901760
    %3537 = vmatpush1.msra.mxu0 %v3536
    %3538 = vmatprep.subr.mxu0 0.0
    %v3539 = vand.u32 %v82, 4294901760
    %v3540 = vsub.f32 %v82, %v3539
    %v3541 = vand.u32 %v3540, 4294901760
    %v3542 = vsub.f32 %v3540, %v3541
    %v3543 = vand.u32 %v3542, 4294901760
    %3544 = vmatpush1.msra.mxu0 %v3543
    %3545 = vmatprep.subr.mxu0 0.0
    %v3546 = vand.u32 %v83, 4294901760
    %v3547 = vsub.f32 %v83, %v3546
    %v3548 = vand.u32 %v3547, 4294901760
    %v3549 = vsub.f32 %v3547, %v3548
    %v3550 = vand.u32 %v3549, 4294901760
    %3551 = vmatpush1.msra.mxu0 %v3550
    %3552 = vmatprep.subr.mxu0 0.0
    %v3553 = vand.u32 %v84, 4294901760
    %v3554 = vsub.f32 %v84, %v3553
    %v3555 = vand.u32 %v3554, 4294901760
    %v3556 = vsub.f32 %v3554, %v3555
    %v3557 = vand.u32 %v3556, 4294901760
    %3558 = vmatpush1.msra.mxu0 %v3557
    %3559 = vmatprep.subr.mxu0 0.0
    %v3560 = vand.u32 %v85, 4294901760
    %v3561 = vsub.f32 %v85, %v3560
    %v3562 = vand.u32 %v3561, 4294901760
    %v3563 = vsub.f32 %v3561, %v3562
    %v3564 = vand.u32 %v3563, 4294901760
    %3565 = vmatpush1.msra.mxu0 %v3564
    %3566 = vmatprep.subr.mxu0 0.0
    %v3567 = vand.u32 %v86, 4294901760
    %v3568 = vsub.f32 %v86, %v3567
    %v3569 = vand.u32 %v3568, 4294901760
    %v3570 = vsub.f32 %v3568, %v3569
    %v3571 = vand.u32 %v3570, 4294901760
    %3572 = vmatpush1.msra.mxu0 %v3571
    %3573 = vmatprep.subr.mxu0 0.0
    %v3574 = vand.u32 %v87, 4294901760
    %v3575 = vsub.f32 %v87, %v3574
    %v3576 = vand.u32 %v3575, 4294901760
    %v3577 = vsub.f32 %v3575, %v3576
    %v3578 = vand.u32 %v3577, 4294901760
    %3579 = vmatpush1.msra.mxu0 %v3578
    %3580 = vmatprep.subr.mxu0 0.0
    %v3581 = vand.u32 %v88, 4294901760
    %v3582 = vsub.f32 %v88, %v3581
    %v3583 = vand.u32 %v3582, 4294901760
    %v3584 = vsub.f32 %v3582, %v3583
    %v3585 = vand.u32 %v3584, 4294901760
    %3586 = vmatpush1.msra.mxu0 %v3585
    %3587 = vmatprep.subr.mxu0 0.0
    %v3588 = vand.u32 %v89, 4294901760
    %v3589 = vsub.f32 %v89, %v3588
    %v3590 = vand.u32 %v3589, 4294901760
    %v3591 = vsub.f32 %v3589, %v3590
    %v3592 = vand.u32 %v3591, 4294901760
    %3593 = vmatpush1.msra.mxu0 %v3592
    %3594 = vmatprep.subr.mxu0 0.0
    %v3595 = vand.u32 %v90, 4294901760
    %v3596 = vsub.f32 %v90, %v3595
    %v3597 = vand.u32 %v3596, 4294901760
    %v3598 = vsub.f32 %v3596, %v3597
    %v3599 = vand.u32 %v3598, 4294901760
    %3600 = vmatpush1.msra.mxu0 %v3599
    %3601 = vmatprep.subr.mxu0 0.0
    %v3602 = vand.u32 %v91, 4294901760
    %v3603 = vsub.f32 %v91, %v3602
    %v3604 = vand.u32 %v3603, 4294901760
    %v3605 = vsub.f32 %v3603, %v3604
    %v3606 = vand.u32 %v3605, 4294901760
    %3607 = vmatpush1.msra.mxu0 %v3606
    %3608 = vmatprep.subr.mxu0 0.0
    %v3609 = vand.u32 %v92, 4294901760
    %v3610 = vsub.f32 %v92, %v3609
    %v3611 = vand.u32 %v3610, 4294901760
    %v3612 = vsub.f32 %v3610, %v3611
    %v3613 = vand.u32 %v3612, 4294901760
    %3614 = vmatpush1.msra.mxu0 %v3613
    %3615 = vmatprep.subr.mxu0 0.0
    %v3616 = vand.u32 %v93, 4294901760
    %v3617 = vsub.f32 %v93, %v3616
    %v3618 = vand.u32 %v3617, 4294901760
    %v3619 = vsub.f32 %v3617, %v3618
    %v3620 = vand.u32 %v3619, 4294901760
    %3621 = vmatpush1.msra.mxu0 %v3620
    %3622 = vmatprep.subr.mxu0 0.0
    %v3623 = vand.u32 %v94, 4294901760
    %v3624 = vsub.f32 %v94, %v3623
    %v3625 = vand.u32 %v3624, 4294901760
    %v3626 = vsub.f32 %v3624, %v3625
    %v3627 = vand.u32 %v3626, 4294901760
    %3628 = vmatpush1.msra.mxu0 %v3627
    %3629 = vmatprep.subr.mxu0 0.0
    %v3630 = vand.u32 %v95, 4294901760
    %v3631 = vsub.f32 %v95, %v3630
    %v3632 = vand.u32 %v3631, 4294901760
    %v3633 = vsub.f32 %v3631, %v3632
    %v3634 = vand.u32 %v3633, 4294901760
    %3635 = vmatpush1.msra.mxu0 %v3634
    %3636 = vmatprep.subr.mxu0 0.0
    %v3637 = vand.u32 %v96, 4294901760
    %v3638 = vsub.f32 %v96, %v3637
    %v3639 = vand.u32 %v3638, 4294901760
    %v3640 = vsub.f32 %v3638, %v3639
    %v3641 = vand.u32 %v3640, 4294901760
    %3642 = vmatpush1.msra.mxu0 %v3641
    %3643 = vmatprep.subr.mxu0 0.0
    %v3644 = vand.u32 %v97, 4294901760
    %v3645 = vsub.f32 %v97, %v3644
    %v3646 = vand.u32 %v3645, 4294901760
    %v3647 = vsub.f32 %v3645, %v3646
    %v3648 = vand.u32 %v3647, 4294901760
    %3649 = vmatpush1.msra.mxu0 %v3648
    %v3650 = vand.u32 %v46, 4294901760
    %3651 = vmatprep.mubr.f32.mxu0 %v3650
    %v3652 = vand.u32 %v45, 4294901760
    %3653 = vmatmul.mubr.f32.gmra.mrb[0].mxu0 %v3652
    %v3654 = vpop.f32.mrb[0].mxu0
    %v3655 = vadd.f32 %v3423, %v3654
    %v3656 = vpop.f32.mrb[0].mxu0
    %3657 = vdwg.mxu0
    %3658 = vmatprep.subr.mxu0 0.0
    %v3659 = vand.u32 %v66, 4294901760
    %v3660 = vsub.f32 %v66, %v3659
    %3661 = vmatpush1.msra.mxu0 %v3660
    %3662 = vmatprep.subr.mxu0 0.0
    %v3663 = vand.u32 %v67, 4294901760
    %v3664 = vsub.f32 %v67, %v3663
    %3665 = vmatpush1.msra.mxu0 %v3664
    %3666 = vmatprep.subr.mxu0 0.0
    %v3667 = vand.u32 %v68, 4294901760
    %v3668 = vsub.f32 %v68, %v3667
    %3669 = vmatpush1.msra.mxu0 %v3668
    %3670 = vmatprep.subr.mxu0 0.0
    %v3671 = vand.u32 %v69, 4294901760
    %v3672 = vsub.f32 %v69, %v3671
    %3673 = vmatpush1.msra.mxu0 %v3672
    %3674 = vmatprep.subr.mxu0 0.0
    %v3675 = vand.u32 %v70, 4294901760
    %v3676 = vsub.f32 %v70, %v3675
    %3677 = vmatpush1.msra.mxu0 %v3676
    %3678 = vmatprep.subr.mxu0 0.0
    %v3679 = vand.u32 %v71, 4294901760
    %v3680 = vsub.f32 %v71, %v3679
    %3681 = vmatpush1.msra.mxu0 %v3680
    %3682 = vmatprep.subr.mxu0 0.0
    %v3683 = vand.u32 %v72, 4294901760
    %v3684 = vsub.f32 %v72, %v3683
    %3685 = vmatpush1.msra.mxu0 %v3684
    %3686 = vmatprep.subr.mxu0 0.0
    %v3687 = vand.u32 %v73, 4294901760
    %v3688 = vsub.f32 %v73, %v3687
    %3689 = vmatpush1.msra.mxu0 %v3688
    %3690 = vmatprep.subr.mxu0 0.0
    %v3691 = vand.u32 %v74, 4294901760
    %v3692 = vsub.f32 %v74, %v3691
    %3693 = vmatpush1.msra.mxu0 %v3692
    %3694 = vmatprep.subr.mxu0 0.0
    %v3695 = vand.u32 %v75, 4294901760
    %v3696 = vsub.f32 %v75, %v3695
    %3697 = vmatpush1.msra.mxu0 %v3696
    %3698 = vmatprep.subr.mxu0 0.0
    %v3699 = vand.u32 %v76, 4294901760
    %v3700 = vsub.f32 %v76, %v3699
    %3701 = vmatpush1.msra.mxu0 %v3700
    %3702 = vmatprep.subr.mxu0 0.0
    %v3703 = vand.u32 %v77, 4294901760
    %v3704 = vsub.f32 %v77, %v3703
    %3705 = vmatpush1.msra.mxu0 %v3704
    %3706 = vmatprep.subr.mxu0 0.0
    %v3707 = vand.u32 %v78, 4294901760
    %v3708 = vsub.f32 %v78, %v3707
    %3709 = vmatpush1.msra.mxu0 %v3708
    %3710 = vmatprep.subr.mxu0 0.0
    %v3711 = vand.u32 %v79, 4294901760
    %v3712 = vsub.f32 %v79, %v3711
    %3713 = vmatpush1.msra.mxu0 %v3712
    %3714 = vmatprep.subr.mxu0 0.0
    %v3715 = vand.u32 %v80, 4294901760
    %v3716 = vsub.f32 %v80, %v3715
    %3717 = vmatpush1.msra.mxu0 %v3716
    %3718 = vmatprep.subr.mxu0 0.0
    %v3719 = vand.u32 %v81, 4294901760
    %v3720 = vsub.f32 %v81, %v3719
    %3721 = vmatpush1.msra.mxu0 %v3720
    %3722 = vmatprep.subr.mxu0 0.0
    %v3723 = vand.u32 %v82, 4294901760
    %v3724 = vsub.f32 %v82, %v3723
    %3725 = vmatpush1.msra.mxu0 %v3724
    %3726 = vmatprep.subr.mxu0 0.0
    %v3727 = vand.u32 %v83, 4294901760
    %v3728 = vsub.f32 %v83, %v3727
    %3729 = vmatpush1.msra.mxu0 %v3728
    %3730 = vmatprep.subr.mxu0 0.0
    %v3731 = vand.u32 %v84, 4294901760
    %v3732 = vsub.f32 %v84, %v3731
    %3733 = vmatpush1.msra.mxu0 %v3732
    %3734 = vmatprep.subr.mxu0 0.0
    %v3735 = vand.u32 %v85, 4294901760
    %v3736 = vsub.f32 %v85, %v3735
    %3737 = vmatpush1.msra.mxu0 %v3736
    %3738 = vmatprep.subr.mxu0 0.0
    %v3739 = vand.u32 %v86, 4294901760
    %v3740 = vsub.f32 %v86, %v3739
    %3741 = vmatpush1.msra.mxu0 %v3740
    %3742 = vmatprep.subr.mxu0 0.0
    %v3743 = vand.u32 %v87, 4294901760
    %v3744 = vsub.f32 %v87, %v3743
    %3745 = vmatpush1.msra.mxu0 %v3744
    %3746 = vmatprep.subr.mxu0 0.0
    %v3747 = vand.u32 %v88, 4294901760
    %v3748 = vsub.f32 %v88, %v3747
    %3749 = vmatpush1.msra.mxu0 %v3748
    %3750 = vmatprep.subr.mxu0 0.0
    %v3751 = vand.u32 %v89, 4294901760
    %v3752 = vsub.f32 %v89, %v3751
    %3753 = vmatpush1.msra.mxu0 %v3752
    %3754 = vmatprep.subr.mxu0 0.0
    %v3755 = vand.u32 %v90, 4294901760
    %v3756 = vsub.f32 %v90, %v3755
    %3757 = vmatpush1.msra.mxu0 %v3756
    %3758 = vmatprep.subr.mxu0 0.0
    %v3759 = vand.u32 %v91, 4294901760
    %v3760 = vsub.f32 %v91, %v3759
    %3761 = vmatpush1.msra.mxu0 %v3760
    %3762 = vmatprep.subr.mxu0 0.0
    %v3763 = vand.u32 %v92, 4294901760
    %v3764 = vsub.f32 %v92, %v3763
    %3765 = vmatpush1.msra.mxu0 %v3764
    %3766 = vmatprep.subr.mxu0 0.0
    %v3767 = vand.u32 %v93, 4294901760
    %v3768 = vsub.f32 %v93, %v3767
    %3769 = vmatpush1.msra.mxu0 %v3768
    %3770 = vmatprep.subr.mxu0 0.0
    %v3771 = vand.u32 %v94, 4294901760
    %v3772 = vsub.f32 %v94, %v3771
    %3773 = vmatpush1.msra.mxu0 %v3772
    %3774 = vmatprep.subr.mxu0 0.0
    %v3775 = vand.u32 %v95, 4294901760
    %v3776 = vsub.f32 %v95, %v3775
    %3777 = vmatpush1.msra.mxu0 %v3776
    %3778 = vmatprep.subr.mxu0 0.0
    %v3779 = vand.u32 %v96, 4294901760
    %v3780 = vsub.f32 %v96, %v3779
    %3781 = vmatpush1.msra.mxu0 %v3780
    %3782 = vmatprep.subr.mxu0 0.0
    %v3783 = vand.u32 %v97, 4294901760
    %v3784 = vsub.f32 %v97, %v3783
    %3785 = vmatpush1.msra.mxu0 %v3784
    %v3786 = vand.u32 %v46, 4294901760
    %v3787 = vsub.f32 %v46, %v3786
    %3788 = vmatprep.mubr.f32.mxu0 %v3787
    %v3789 = vand.u32 %v45, 4294901760
    %v3790 = vsub.f32 %v45, %v3789
    %3791 = vmatmul.mubr.f32.gmra.mrb[0].mxu0 %v3790
    %v3792 = vpop.f32.mrb[0].mxu0
    %v3793 = vadd.f32 %v3655, %v3792
    %v3794 = vpop.f32.mrb[0].mxu0
    %3795 = vdwg.mxu0
    %3796 = vmatprep.subr.mxu0 0.0
    %v3797 = vand.u32 %v66, 4294901760
    %3798 = vmatpush1.msra.mxu0 %v3797
    %3799 = vmatprep.subr.mxu0 0.0
    %v3800 = vand.u32 %v67, 4294901760
    %3801 = vmatpush1.msra.mxu0 %v3800
    %3802 = vmatprep.subr.mxu0 0.0
    %v3803 = vand.u32 %v68, 4294901760
    %3804 = vmatpush1.msra.mxu0 %v3803
    %3805 = vmatprep.subr.mxu0 0.0
    %v3806 = vand.u32 %v69, 4294901760
    %3807 = vmatpush1.msra.mxu0 %v3806
    %3808 = vmatprep.subr.mxu0 0.0
    %v3809 = vand.u32 %v70, 4294901760
    %3810 = vmatpush1.msra.mxu0 %v3809
    %3811 = vmatprep.subr.mxu0 0.0
    %v3812 = vand.u32 %v71, 4294901760
    %3813 = vmatpush1.msra.mxu0 %v3812
    %3814 = vmatprep.subr.mxu0 0.0
    %v3815 = vand.u32 %v72, 4294901760
    %3816 = vmatpush1.msra.mxu0 %v3815
    %3817 = vmatprep.subr.mxu0 0.0
    %v3818 = vand.u32 %v73, 4294901760
    %3819 = vmatpush1.msra.mxu0 %v3818
    %3820 = vmatprep.subr.mxu0 0.0
    %v3821 = vand.u32 %v74, 4294901760
    %3822 = vmatpush1.msra.mxu0 %v3821
    %3823 = vmatprep.subr.mxu0 0.0
    %v3824 = vand.u32 %v75, 4294901760
    %3825 = vmatpush1.msra.mxu0 %v3824
    %3826 = vmatprep.subr.mxu0 0.0
    %v3827 = vand.u32 %v76, 4294901760
    %3828 = vmatpush1.msra.mxu0 %v3827
    %3829 = vmatprep.subr.mxu0 0.0
    %v3830 = vand.u32 %v77, 4294901760
    %3831 = vmatpush1.msra.mxu0 %v3830
    %3832 = vmatprep.subr.mxu0 0.0
    %v3833 = vand.u32 %v78, 4294901760
    %3834 = vmatpush1.msra.mxu0 %v3833
    %3835 = vmatprep.subr.mxu0 0.0
    %v3836 = vand.u32 %v79, 4294901760
    %3837 = vmatpush1.msra.mxu0 %v3836
    %3838 = vmatprep.subr.mxu0 0.0
    %v3839 = vand.u32 %v80, 4294901760
    %3840 = vmatpush1.msra.mxu0 %v3839
    %3841 = vmatprep.subr.mxu0 0.0
    %v3842 = vand.u32 %v81, 4294901760
    %3843 = vmatpush1.msra.mxu0 %v3842
    %3844 = vmatprep.subr.mxu0 0.0
    %v3845 = vand.u32 %v82, 4294901760
    %3846 = vmatpush1.msra.mxu0 %v3845
    %3847 = vmatprep.subr.mxu0 0.0
    %v3848 = vand.u32 %v83, 4294901760
    %3849 = vmatpush1.msra.mxu0 %v3848
    %3850 = vmatprep.subr.mxu0 0.0
    %v3851 = vand.u32 %v84, 4294901760
    %3852 = vmatpush1.msra.mxu0 %v3851
    %3853 = vmatprep.subr.mxu0 0.0
    %v3854 = vand.u32 %v85, 4294901760
    %3855 = vmatpush1.msra.mxu0 %v3854
    %3856 = vmatprep.subr.mxu0 0.0
    %v3857 = vand.u32 %v86, 4294901760
    %3858 = vmatpush1.msra.mxu0 %v3857
    %3859 = vmatprep.subr.mxu0 0.0
    %v3860 = vand.u32 %v87, 4294901760
    %3861 = vmatpush1.msra.mxu0 %v3860
    %3862 = vmatprep.subr.mxu0 0.0
    %v3863 = vand.u32 %v88, 4294901760
    %3864 = vmatpush1.msra.mxu0 %v3863
    %3865 = vmatprep.subr.mxu0 0.0
    %v3866 = vand.u32 %v89, 4294901760
    %3867 = vmatpush1.msra.mxu0 %v3866
    %3868 = vmatprep.subr.mxu0 0.0
    %v3869 = vand.u32 %v90, 4294901760
    %3870 = vmatpush1.msra.mxu0 %v3869
    %3871 = vmatprep.subr.mxu0 0.0
    %v3872 = vand.u32 %v91, 4294901760
    %3873 = vmatpush1.msra.mxu0 %v3872
    %3874 = vmatprep.subr.mxu0 0.0
    %v3875 = vand.u32 %v92, 4294901760
    %3876 = vmatpush1.msra.mxu0 %v3875
    %3877 = vmatprep.subr.mxu0 0.0
    %v3878 = vand.u32 %v93, 4294901760
    %3879 = vmatpush1.msra.mxu0 %v3878
    %3880 = vmatprep.subr.mxu0 0.0
    %v3881 = vand.u32 %v94, 4294901760
    %3882 = vmatpush1.msra.mxu0 %v3881
    %3883 = vmatprep.subr.mxu0 0.0
    %v3884 = vand.u32 %v95, 4294901760
    %3885 = vmatpush1.msra.mxu0 %v3884
    %3886 = vmatprep.subr.mxu0 0.0
    %v3887 = vand.u32 %v96, 4294901760
    %3888 = vmatpush1.msra.mxu0 %v3887
    %3889 = vmatprep.subr.mxu0 0.0
    %v3890 = vand.u32 %v97, 4294901760
    %3891 = vmatpush1.msra.mxu0 %v3890
    %v3892 = vand.u32 %v46, 4294901760
    %v3893 = vsub.f32 %v46, %v3892
    %v3894 = vand.u32 %v3893, 4294901760
    %3895 = vmatprep.mubr.f32.mxu0 %v3894
    %v3896 = vand.u32 %v45, 4294901760
    %v3897 = vsub.f32 %v45, %v3896
    %v3898 = vand.u32 %v3897, 4294901760
    %3899 = vmatmul.mubr.f32.gmra.mrb[0].mxu0 %v3898
    %v3900 = vpop.f32.mrb[0].mxu0
    %v3901 = vadd.f32 %v3793, %v3900
    %v3902 = vpop.f32.mrb[0].mxu0
    %3903 = vdwg.mxu0
    %3904 = vmatprep.subr.mxu0 0.0
    %v3905 = vand.u32 %v66, 4294901760
    %v3906 = vsub.f32 %v66, %v3905
    %v3907 = vand.u32 %v3906, 4294901760
    %3908 = vmatpush1.msra.mxu0 %v3907
    %3909 = vmatprep.subr.mxu0 0.0
    %v3910 = vand.u32 %v67, 4294901760
    %v3911 = vsub.f32 %v67, %v3910
    %v3912 = vand.u32 %v3911, 4294901760
    %3913 = vmatpush1.msra.mxu0 %v3912
    %3914 = vmatprep.subr.mxu0 0.0
    %v3915 = vand.u32 %v68, 4294901760
    %v3916 = vsub.f32 %v68, %v3915
    %v3917 = vand.u32 %v3916, 4294901760
    %3918 = vmatpush1.msra.mxu0 %v3917
    %3919 = vmatprep.subr.mxu0 0.0
    %v3920 = vand.u32 %v69, 4294901760
    %v3921 = vsub.f32 %v69, %v3920
    %v3922 = vand.u32 %v3921, 4294901760
    %3923 = vmatpush1.msra.mxu0 %v3922
    %3924 = vmatprep.subr.mxu0 0.0
    %v3925 = vand.u32 %v70, 4294901760
    %v3926 = vsub.f32 %v70, %v3925
    %v3927 = vand.u32 %v3926, 4294901760
    %3928 = vmatpush1.msra.mxu0 %v3927
    %3929 = vmatprep.subr.mxu0 0.0
    %v3930 = vand.u32 %v71, 4294901760
    %v3931 = vsub.f32 %v71, %v3930
    %v3932 = vand.u32 %v3931, 4294901760
    %3933 = vmatpush1.msra.mxu0 %v3932
    %3934 = vmatprep.subr.mxu0 0.0
    %v3935 = vand.u32 %v72, 4294901760
    %v3936 = vsub.f32 %v72, %v3935
    %v3937 = vand.u32 %v3936, 4294901760
    %3938 = vmatpush1.msra.mxu0 %v3937
    %3939 = vmatprep.subr.mxu0 0.0
    %v3940 = vand.u32 %v73, 4294901760
    %v3941 = vsub.f32 %v73, %v3940
    %v3942 = vand.u32 %v3941, 4294901760
    %3943 = vmatpush1.msra.mxu0 %v3942
    %3944 = vmatprep.subr.mxu0 0.0
    %v3945 = vand.u32 %v74, 4294901760
    %v3946 = vsub.f32 %v74, %v3945
    %v3947 = vand.u32 %v3946, 4294901760
    %3948 = vmatpush1.msra.mxu0 %v3947
    %3949 = vmatprep.subr.mxu0 0.0
    %v3950 = vand.u32 %v75, 4294901760
    %v3951 = vsub.f32 %v75, %v3950
    %v3952 = vand.u32 %v3951, 4294901760
    %3953 = vmatpush1.msra.mxu0 %v3952
    %3954 = vmatprep.subr.mxu0 0.0
    %v3955 = vand.u32 %v76, 4294901760
    %v3956 = vsub.f32 %v76, %v3955
    %v3957 = vand.u32 %v3956, 4294901760
    %3958 = vmatpush1.msra.mxu0 %v3957
    %3959 = vmatprep.subr.mxu0 0.0
    %v3960 = vand.u32 %v77, 4294901760
    %v3961 = vsub.f32 %v77, %v3960
    %v3962 = vand.u32 %v3961, 4294901760
    %3963 = vmatpush1.msra.mxu0 %v3962
    %3964 = vmatprep.subr.mxu0 0.0
    %v3965 = vand.u32 %v78, 4294901760
    %v3966 = vsub.f32 %v78, %v3965
    %v3967 = vand.u32 %v3966, 4294901760
    %3968 = vmatpush1.msra.mxu0 %v3967
    %3969 = vmatprep.subr.mxu0 0.0
    %v3970 = vand.u32 %v79, 4294901760
    %v3971 = vsub.f32 %v79, %v3970
    %v3972 = vand.u32 %v3971, 4294901760
    %3973 = vmatpush1.msra.mxu0 %v3972
    %3974 = vmatprep.subr.mxu0 0.0
    %v3975 = vand.u32 %v80, 4294901760
    %v3976 = vsub.f32 %v80, %v3975
    %v3977 = vand.u32 %v3976, 4294901760
    %3978 = vmatpush1.msra.mxu0 %v3977
    %3979 = vmatprep.subr.mxu0 0.0
    %v3980 = vand.u32 %v81, 4294901760
    %v3981 = vsub.f32 %v81, %v3980
    %v3982 = vand.u32 %v3981, 4294901760
    %3983 = vmatpush1.msra.mxu0 %v3982
    %3984 = vmatprep.subr.mxu0 0.0
    %v3985 = vand.u32 %v82, 4294901760
    %v3986 = vsub.f32 %v82, %v3985
    %v3987 = vand.u32 %v3986, 4294901760
    %3988 = vmatpush1.msra.mxu0 %v3987
    %3989 = vmatprep.subr.mxu0 0.0
    %v3990 = vand.u32 %v83, 4294901760
    %v3991 = vsub.f32 %v83, %v3990
    %v3992 = vand.u32 %v3991, 4294901760
    %3993 = vmatpush1.msra.mxu0 %v3992
    %3994 = vmatprep.subr.mxu0 0.0
    %v3995 = vand.u32 %v84, 4294901760
    %v3996 = vsub.f32 %v84, %v3995
    %v3997 = vand.u32 %v3996, 4294901760
    %3998 = vmatpush1.msra.mxu0 %v3997
    %3999 = vmatprep.subr.mxu0 0.0
    %v4000 = vand.u32 %v85, 4294901760
    %v4001 = vsub.f32 %v85, %v4000
    %v4002 = vand.u32 %v4001, 4294901760
    %4003 = vmatpush1.msra.mxu0 %v4002
    %4004 = vmatprep.subr.mxu0 0.0
    %v4005 = vand.u32 %v86, 4294901760
    %v4006 = vsub.f32 %v86, %v4005
    %v4007 = vand.u32 %v4006, 4294901760
    %4008 = vmatpush1.msra.mxu0 %v4007
    %4009 = vmatprep.subr.mxu0 0.0
    %v4010 = vand.u32 %v87, 4294901760
    %v4011 = vsub.f32 %v87, %v4010
    %v4012 = vand.u32 %v4011, 4294901760
    %4013 = vmatpush1.msra.mxu0 %v4012
    %4014 = vmatprep.subr.mxu0 0.0
    %v4015 = vand.u32 %v88, 4294901760
    %v4016 = vsub.f32 %v88, %v4015
    %v4017 = vand.u32 %v4016, 4294901760
    %4018 = vmatpush1.msra.mxu0 %v4017
    %4019 = vmatprep.subr.mxu0 0.0
    %v4020 = vand.u32 %v89, 4294901760
    %v4021 = vsub.f32 %v89, %v4020
    %v4022 = vand.u32 %v4021, 4294901760
    %4023 = vmatpush1.msra.mxu0 %v4022
    %4024 = vmatprep.subr.mxu0 0.0
    %v4025 = vand.u32 %v90, 4294901760
    %v4026 = vsub.f32 %v90, %v4025
    %v4027 = vand.u32 %v4026, 4294901760
    %4028 = vmatpush1.msra.mxu0 %v4027
    %4029 = vmatprep.subr.mxu0 0.0
    %v4030 = vand.u32 %v91, 4294901760
    %v4031 = vsub.f32 %v91, %v4030
    %v4032 = vand.u32 %v4031, 4294901760
    %4033 = vmatpush1.msra.mxu0 %v4032
    %4034 = vmatprep.subr.mxu0 0.0
    %v4035 = vand.u32 %v92, 4294901760
    %v4036 = vsub.f32 %v92, %v4035
    %v4037 = vand.u32 %v4036, 4294901760
    %4038 = vmatpush1.msra.mxu0 %v4037
    %4039 = vmatprep.subr.mxu0 0.0
    %v4040 = vand.u32 %v93, 4294901760
    %v4041 = vsub.f32 %v93, %v4040
    %v4042 = vand.u32 %v4041, 4294901760
    %4043 = vmatpush1.msra.mxu0 %v4042
    %4044 = vmatprep.subr.mxu0 0.0
    %v4045 = vand.u32 %v94, 4294901760
    %v4046 = vsub.f32 %v94, %v4045
    %v4047 = vand.u32 %v4046, 4294901760
    %4048 = vmatpush1.msra.mxu0 %v4047
    %4049 = vmatprep.subr.mxu0 0.0
    %v4050 = vand.u32 %v95, 4294901760
    %v4051 = vsub.f32 %v95, %v4050
    %v4052 = vand.u32 %v4051, 4294901760
    %4053 = vmatpush1.msra.mxu0 %v4052
    %4054 = vmatprep.subr.mxu0 0.0
    %v4055 = vand.u32 %v96, 4294901760
    %v4056 = vsub.f32 %v96, %v4055
    %v4057 = vand.u32 %v4056, 4294901760
    %4058 = vmatpush1.msra.mxu0 %v4057
    %4059 = vmatprep.subr.mxu0 0.0
    %v4060 = vand.u32 %v97, 4294901760
    %v4061 = vsub.f32 %v97, %v4060
    %v4062 = vand.u32 %v4061, 4294901760
    %4063 = vmatpush1.msra.mxu0 %v4062
    %v4064 = vand.u32 %v46, 4294901760
    %4065 = vmatprep.mubr.f32.mxu0 %v4064
    %v4066 = vand.u32 %v45, 4294901760
    %4067 = vmatmul.mubr.f32.gmra.mrb[0].mxu0 %v4066
    %v4068 = vpop.f32.mrb[0].mxu0
    %v4069 = vadd.f32 %v3901, %v4068
    %v4070 = vpop.f32.mrb[0].mxu0
    %4071 = vdwg.mxu0
    %4072 = vmatprep.subr.mxu0 0.0
    %v4073 = vand.u32 %v66, 4294901760
    %4074 = vmatpush1.msra.mxu0 %v4073
    %4075 = vmatprep.subr.mxu0 0.0
    %v4076 = vand.u32 %v67, 4294901760
    %4077 = vmatpush1.msra.mxu0 %v4076
    %4078 = vmatprep.subr.mxu0 0.0
    %v4079 = vand.u32 %v68, 4294901760
    %4080 = vmatpush1.msra.mxu0 %v4079
    %4081 = vmatprep.subr.mxu0 0.0
    %v4082 = vand.u32 %v69, 4294901760
    %4083 = vmatpush1.msra.mxu0 %v4082
    %4084 = vmatprep.subr.mxu0 0.0
    %v4085 = vand.u32 %v70, 4294901760
    %4086 = vmatpush1.msra.mxu0 %v4085
    %4087 = vmatprep.subr.mxu0 0.0
    %v4088 = vand.u32 %v71, 4294901760
    %4089 = vmatpush1.msra.mxu0 %v4088
    %4090 = vmatprep.subr.mxu0 0.0
    %v4091 = vand.u32 %v72, 4294901760
    %4092 = vmatpush1.msra.mxu0 %v4091
    %4093 = vmatprep.subr.mxu0 0.0
    %v4094 = vand.u32 %v73, 4294901760
    %4095 = vmatpush1.msra.mxu0 %v4094
    %4096 = vmatprep.subr.mxu0 0.0
    %v4097 = vand.u32 %v74, 4294901760
    %4098 = vmatpush1.msra.mxu0 %v4097
    %4099 = vmatprep.subr.mxu0 0.0
    %v4100 = vand.u32 %v75, 4294901760
    %4101 = vmatpush1.msra.mxu0 %v4100
    %4102 = vmatprep.subr.mxu0 0.0
    %v4103 = vand.u32 %v76, 4294901760
    %4104 = vmatpush1.msra.mxu0 %v4103
    %4105 = vmatprep.subr.mxu0 0.0
    %v4106 = vand.u32 %v77, 4294901760
    %4107 = vmatpush1.msra.mxu0 %v4106
    %4108 = vmatprep.subr.mxu0 0.0
    %v4109 = vand.u32 %v78, 4294901760
    %4110 = vmatpush1.msra.mxu0 %v4109
    %4111 = vmatprep.subr.mxu0 0.0
    %v4112 = vand.u32 %v79, 4294901760
    %4113 = vmatpush1.msra.mxu0 %v4112
    %4114 = vmatprep.subr.mxu0 0.0
    %v4115 = vand.u32 %v80, 4294901760
    %4116 = vmatpush1.msra.mxu0 %v4115
    %4117 = vmatprep.subr.mxu0 0.0
    %v4118 = vand.u32 %v81, 4294901760
    %4119 = vmatpush1.msra.mxu0 %v4118
    %4120 = vmatprep.subr.mxu0 0.0
    %v4121 = vand.u32 %v82, 4294901760
    %4122 = vmatpush1.msra.mxu0 %v4121
    %4123 = vmatprep.subr.mxu0 0.0
    %v4124 = vand.u32 %v83, 4294901760
    %4125 = vmatpush1.msra.mxu0 %v4124
    %4126 = vmatprep.subr.mxu0 0.0
    %v4127 = vand.u32 %v84, 4294901760
    %4128 = vmatpush1.msra.mxu0 %v4127
    %4129 = vmatprep.subr.mxu0 0.0
    %v4130 = vand.u32 %v85, 4294901760
    %4131 = vmatpush1.msra.mxu0 %v4130
    %4132 = vmatprep.subr.mxu0 0.0
    %v4133 = vand.u32 %v86, 4294901760
    %4134 = vmatpush1.msra.mxu0 %v4133
    %4135 = vmatprep.subr.mxu0 0.0
    %v4136 = vand.u32 %v87, 4294901760
    %4137 = vmatpush1.msra.mxu0 %v4136
    %4138 = vmatprep.subr.mxu0 0.0
    %v4139 = vand.u32 %v88, 4294901760
    %4140 = vmatpush1.msra.mxu0 %v4139
    %4141 = vmatprep.subr.mxu0 0.0
    %v4142 = vand.u32 %v89, 4294901760
    %4143 = vmatpush1.msra.mxu0 %v4142
    %4144 = vmatprep.subr.mxu0 0.0
    %v4145 = vand.u32 %v90, 4294901760
    %4146 = vmatpush1.msra.mxu0 %v4145
    %4147 = vmatprep.subr.mxu0 0.0
    %v4148 = vand.u32 %v91, 4294901760
    %4149 = vmatpush1.msra.mxu0 %v4148
    %4150 = vmatprep.subr.mxu0 0.0
    %v4151 = vand.u32 %v92, 4294901760
    %4152 = vmatpush1.msra.mxu0 %v4151
    %4153 = vmatprep.subr.mxu0 0.0
    %v4154 = vand.u32 %v93, 4294901760
    %4155 = vmatpush1.msra.mxu0 %v4154
    %4156 = vmatprep.subr.mxu0 0.0
    %v4157 = vand.u32 %v94, 4294901760
    %4158 = vmatpush1.msra.mxu0 %v4157
    %4159 = vmatprep.subr.mxu0 0.0
    %v4160 = vand.u32 %v95, 4294901760
    %4161 = vmatpush1.msra.mxu0 %v4160
    %4162 = vmatprep.subr.mxu0 0.0
    %v4163 = vand.u32 %v96, 4294901760
    %4164 = vmatpush1.msra.mxu0 %v4163
    %4165 = vmatprep.subr.mxu0 0.0
    %v4166 = vand.u32 %v97, 4294901760
    %4167 = vmatpush1.msra.mxu0 %v4166
    %v4168 = vand.u32 %v46, 4294901760
    %4169 = vmatprep.mubr.f32.mxu0 %v4168
    %v4170 = vand.u32 %v45, 4294901760
    %4171 = vmatmul.mubr.f32.gmra.mrb[0].mxu0 %v4170
    %v4172 = vpop.f32.mrb[0].mxu0
    %v4173 = vadd.f32 %v4069, %v4172
    %v4174 = vpop.f32.mrb[0].mxu0
    %4175 = vdwg.mxu0
    %4176 = vmatprep.subr.mxu0 0.0
    %v4177 = vand.u32 %v98, 4294901760
    %4178 = vmatpush1.msra.mxu0 %v4177
    %4179 = vmatprep.subr.mxu0 0.0
    %v4180 = vand.u32 %v99, 4294901760
    %4181 = vmatpush1.msra.mxu0 %v4180
    %4182 = vmatprep.subr.mxu0 0.0
    %v4183 = vand.u32 %v100, 4294901760
    %4184 = vmatpush1.msra.mxu0 %v4183
    %4185 = vmatprep.subr.mxu0 0.0
    %v4186 = vand.u32 %v101, 4294901760
    %4187 = vmatpush1.msra.mxu0 %v4186
    %4188 = vmatprep.subr.mxu0 0.0
    %v4189 = vand.u32 %v102, 4294901760
    %4190 = vmatpush1.msra.mxu0 %v4189
    %4191 = vmatprep.subr.mxu0 0.0
    %v4192 = vand.u32 %v103, 4294901760
    %4193 = vmatpush1.msra.mxu0 %v4192
    %4194 = vmatprep.subr.mxu0 0.0
    %v4195 = vand.u32 %v104, 4294901760
    %4196 = vmatpush1.msra.mxu0 %v4195
    %4197 = vmatprep.subr.mxu0 0.0
    %v4198 = vand.u32 %v105, 4294901760
    %4199 = vmatpush1.msra.mxu0 %v4198
    %4200 = vmatprep.subr.mxu0 0.0
    %v4201 = vand.u32 %v106, 4294901760
    %4202 = vmatpush1.msra.mxu0 %v4201
    %4203 = vmatprep.subr.mxu0 0.0
    %v4204 = vand.u32 %v107, 4294901760
    %4205 = vmatpush1.msra.mxu0 %v4204
    %4206 = vmatprep.subr.mxu0 0.0
    %v4207 = vand.u32 %v108, 4294901760
    %4208 = vmatpush1.msra.mxu0 %v4207
    %4209 = vmatprep.subr.mxu0 0.0
    %v4210 = vand.u32 %v109, 4294901760
    %4211 = vmatpush1.msra.mxu0 %v4210
    %4212 = vmatprep.subr.mxu0 0.0
    %v4213 = vand.u32 %v110, 4294901760
    %4214 = vmatpush1.msra.mxu0 %v4213
    %4215 = vmatprep.subr.mxu0 0.0
    %v4216 = vand.u32 %v111, 4294901760
    %4217 = vmatpush1.msra.mxu0 %v4216
    %4218 = vmatprep.subr.mxu0 0.0
    %v4219 = vand.u32 %v112, 4294901760
    %4220 = vmatpush1.msra.mxu0 %v4219
    %4221 = vmatprep.subr.mxu0 0.0
    %v4222 = vand.u32 %v113, 4294901760
    %4223 = vmatpush1.msra.mxu0 %v4222
    %4224 = vmatprep.subr.mxu0 0.0
    %v4225 = vand.u32 %v114, 4294901760
    %4226 = vmatpush1.msra.mxu0 %v4225
    %4227 = vmatprep.subr.mxu0 0.0
    %v4228 = vand.u32 %v115, 4294901760
    %4229 = vmatpush1.msra.mxu0 %v4228
    %4230 = vmatprep.subr.mxu0 0.0
    %v4231 = vand.u32 %v116, 4294901760
    %4232 = vmatpush1.msra.mxu0 %v4231
    %4233 = vmatprep.subr.mxu0 0.0
    %v4234 = vand.u32 %v117, 4294901760
    %4235 = vmatpush1.msra.mxu0 %v4234
    %4236 = vmatprep.subr.mxu0 0.0
    %v4237 = vand.u32 %v118, 4294901760
    %4238 = vmatpush1.msra.mxu0 %v4237
    %4239 = vmatprep.subr.mxu0 0.0
    %v4240 = vand.u32 %v119, 4294901760
    %4241 = vmatpush1.msra.mxu0 %v4240
    %4242 = vmatprep.subr.mxu0 0.0
    %v4243 = vand.u32 %v120, 4294901760
    %4244 = vmatpush1.msra.mxu0 %v4243
    %4245 = vmatprep.subr.mxu0 0.0
    %v4246 = vand.u32 %v121, 4294901760
    %4247 = vmatpush1.msra.mxu0 %v4246
    %4248 = vmatprep.subr.mxu0 0.0
    %v4249 = vand.u32 %v122, 4294901760
    %4250 = vmatpush1.msra.mxu0 %v4249
    %4251 = vmatprep.subr.mxu0 0.0
    %v4252 = vand.u32 %v123, 4294901760
    %4253 = vmatpush1.msra.mxu0 %v4252
    %4254 = vmatprep.subr.mxu0 0.0
    %v4255 = vand.u32 %v124, 4294901760
    %4256 = vmatpush1.msra.mxu0 %v4255
    %4257 = vmatprep.subr.mxu0 0.0
    %v4258 = vand.u32 %v125, 4294901760
    %4259 = vmatpush1.msra.mxu0 %v4258
    %4260 = vmatprep.subr.mxu0 0.0
    %v4261 = vand.u32 %v126, 4294901760
    %4262 = vmatpush1.msra.mxu0 %v4261
    %4263 = vmatprep.subr.mxu0 0.0
    %v4264 = vand.u32 %v127, 4294901760
    %4265 = vmatpush1.msra.mxu0 %v4264
    %4266 = vmatprep.subr.mxu0 0.0
    %v4267 = vand.u32 %v128, 4294901760
    %4268 = vmatpush1.msra.mxu0 %v4267
    %4269 = vmatprep.subr.mxu0 0.0
    %v4270 = vand.u32 %v129, 4294901760
    %4271 = vmatpush1.msra.mxu0 %v4270
    %v4272 = vand.u32 %v48, 4294901760
    %v4273 = vsub.f32 %v48, %v4272
    %v4274 = vand.u32 %v4273, 4294901760
    %v4275 = vsub.f32 %v4273, %v4274
    %v4276 = vand.u32 %v4275, 4294901760
    %4277 = vmatprep.mubr.f32.mxu0 %v4276
    %v4278 = vand.u32 %v47, 4294901760
    %v4279 = vsub.f32 %v47, %v4278
    %v4280 = vand.u32 %v4279, 4294901760
    %v4281 = vsub.f32 %v4279, %v4280
    %v4282 = vand.u32 %v4281, 4294901760
    %4283 = vmatmul.mubr.f32.gmra.mrb[0].mxu0 %v4282
    %v4284 = vpop.f32.mrb[0].mxu0
    %v4285 = vadd.f32 %v4173, %v4284
    %v4286 = vpop.f32.mrb[0].mxu0
    %4287 = vdwg.mxu0
    %4288 = vmatprep.subr.mxu0 0.0
    %v4289 = vand.u32 %v98, 4294901760
    %v4290 = vsub.f32 %v98, %v4289
    %v4291 = vand.u32 %v4290, 4294901760
    %v4292 = vsub.f32 %v4290, %v4291
    %v4293 = vand.u32 %v4292, 4294901760
    %4294 = vmatpush1.msra.mxu0 %v4293
    %4295 = vmatprep.subr.mxu0 0.0
    %v4296 = vand.u32 %v99, 4294901760
    %v4297 = vsub.f32 %v99, %v4296
    %v4298 = vand.u32 %v4297, 4294901760
    %v4299 = vsub.f32 %v4297, %v4298
    %v4300 = vand.u32 %v4299, 4294901760
    %4301 = vmatpush1.msra.mxu0 %v4300
    %4302 = vmatprep.subr.mxu0 0.0
    %v4303 = vand.u32 %v100, 4294901760
    %v4304 = vsub.f32 %v100, %v4303
    %v4305 = vand.u32 %v4304, 4294901760
    %v4306 = vsub.f32 %v4304, %v4305
    %v4307 = vand.u32 %v4306, 4294901760
    %4308 = vmatpush1.msra.mxu0 %v4307
    %4309 = vmatprep.subr.mxu0 0.0
    %v4310 = vand.u32 %v101, 4294901760
    %v4311 = vsub.f32 %v101, %v4310
    %v4312 = vand.u32 %v4311, 4294901760
    %v4313 = vsub.f32 %v4311, %v4312
    %v4314 = vand.u32 %v4313, 4294901760
    %4315 = vmatpush1.msra.mxu0 %v4314
    %4316 = vmatprep.subr.mxu0 0.0
    %v4317 = vand.u32 %v102, 4294901760
    %v4318 = vsub.f32 %v102, %v4317
    %v4319 = vand.u32 %v4318, 4294901760
    %v4320 = vsub.f32 %v4318, %v4319
    %v4321 = vand.u32 %v4320, 4294901760
    %4322 = vmatpush1.msra.mxu0 %v4321
    %4323 = vmatprep.subr.mxu0 0.0
    %v4324 = vand.u32 %v103, 4294901760
    %v4325 = vsub.f32 %v103, %v4324
    %v4326 = vand.u32 %v4325, 4294901760
    %v4327 = vsub.f32 %v4325, %v4326
    %v4328 = vand.u32 %v4327, 4294901760
    %4329 = vmatpush1.msra.mxu0 %v4328
    %4330 = vmatprep.subr.mxu0 0.0
    %v4331 = vand.u32 %v104, 4294901760
    %v4332 = vsub.f32 %v104, %v4331
    %v4333 = vand.u32 %v4332, 4294901760
    %v4334 = vsub.f32 %v4332, %v4333
    %v4335 = vand.u32 %v4334, 4294901760
    %4336 = vmatpush1.msra.mxu0 %v4335
    %4337 = vmatprep.subr.mxu0 0.0
    %v4338 = vand.u32 %v105, 4294901760
    %v4339 = vsub.f32 %v105, %v4338
    %v4340 = vand.u32 %v4339, 4294901760
    %v4341 = vsub.f32 %v4339, %v4340
    %v4342 = vand.u32 %v4341, 4294901760
    %4343 = vmatpush1.msra.mxu0 %v4342
    %4344 = vmatprep.subr.mxu0 0.0
    %v4345 = vand.u32 %v106, 4294901760
    %v4346 = vsub.f32 %v106, %v4345
    %v4347 = vand.u32 %v4346, 4294901760
    %v4348 = vsub.f32 %v4346, %v4347
    %v4349 = vand.u32 %v4348, 4294901760
    %4350 = vmatpush1.msra.mxu0 %v4349
    %4351 = vmatprep.subr.mxu0 0.0
    %v4352 = vand.u32 %v107, 4294901760
    %v4353 = vsub.f32 %v107, %v4352
    %v4354 = vand.u32 %v4353, 4294901760
    %v4355 = vsub.f32 %v4353, %v4354
    %v4356 = vand.u32 %v4355, 4294901760
    %4357 = vmatpush1.msra.mxu0 %v4356
    %4358 = vmatprep.subr.mxu0 0.0
    %v4359 = vand.u32 %v108, 4294901760
    %v4360 = vsub.f32 %v108, %v4359
    %v4361 = vand.u32 %v4360, 4294901760
    %v4362 = vsub.f32 %v4360, %v4361
    %v4363 = vand.u32 %v4362, 4294901760
    %4364 = vmatpush1.msra.mxu0 %v4363
    %4365 = vmatprep.subr.mxu0 0.0
    %v4366 = vand.u32 %v109, 4294901760
    %v4367 = vsub.f32 %v109, %v4366
    %v4368 = vand.u32 %v4367, 4294901760
    %v4369 = vsub.f32 %v4367, %v4368
    %v4370 = vand.u32 %v4369, 4294901760
    %4371 = vmatpush1.msra.mxu0 %v4370
    %4372 = vmatprep.subr.mxu0 0.0
    %v4373 = vand.u32 %v110, 4294901760
    %v4374 = vsub.f32 %v110, %v4373
    %v4375 = vand.u32 %v4374, 4294901760
    %v4376 = vsub.f32 %v4374, %v4375
    %v4377 = vand.u32 %v4376, 4294901760
    %4378 = vmatpush1.msra.mxu0 %v4377
    %4379 = vmatprep.subr.mxu0 0.0
    %v4380 = vand.u32 %v111, 4294901760
    %v4381 = vsub.f32 %v111, %v4380
    %v4382 = vand.u32 %v4381, 4294901760
    %v4383 = vsub.f32 %v4381, %v4382
    %v4384 = vand.u32 %v4383, 4294901760
    %4385 = vmatpush1.msra.mxu0 %v4384
    %4386 = vmatprep.subr.mxu0 0.0
    %v4387 = vand.u32 %v112, 4294901760
    %v4388 = vsub.f32 %v112, %v4387
    %v4389 = vand.u32 %v4388, 4294901760
    %v4390 = vsub.f32 %v4388, %v4389
    %v4391 = vand.u32 %v4390, 4294901760
    %4392 = vmatpush1.msra.mxu0 %v4391
    %4393 = vmatprep.subr.mxu0 0.0
    %v4394 = vand.u32 %v113, 4294901760
    %v4395 = vsub.f32 %v113, %v4394
    %v4396 = vand.u32 %v4395, 4294901760
    %v4397 = vsub.f32 %v4395, %v4396
    %v4398 = vand.u32 %v4397, 4294901760
    %4399 = vmatpush1.msra.mxu0 %v4398
    %4400 = vmatprep.subr.mxu0 0.0
    %v4401 = vand.u32 %v114, 4294901760
    %v4402 = vsub.f32 %v114, %v4401
    %v4403 = vand.u32 %v4402, 4294901760
    %v4404 = vsub.f32 %v4402, %v4403
    %v4405 = vand.u32 %v4404, 4294901760
    %4406 = vmatpush1.msra.mxu0 %v4405
    %4407 = vmatprep.subr.mxu0 0.0
    %v4408 = vand.u32 %v115, 4294901760
    %v4409 = vsub.f32 %v115, %v4408
    %v4410 = vand.u32 %v4409, 4294901760
    %v4411 = vsub.f32 %v4409, %v4410
    %v4412 = vand.u32 %v4411, 4294901760
    %4413 = vmatpush1.msra.mxu0 %v4412
    %4414 = vmatprep.subr.mxu0 0.0
    %v4415 = vand.u32 %v116, 4294901760
    %v4416 = vsub.f32 %v116, %v4415
    %v4417 = vand.u32 %v4416, 4294901760
    %v4418 = vsub.f32 %v4416, %v4417
    %v4419 = vand.u32 %v4418, 4294901760
    %4420 = vmatpush1.msra.mxu0 %v4419
    %4421 = vmatprep.subr.mxu0 0.0
    %v4422 = vand.u32 %v117, 4294901760
    %v4423 = vsub.f32 %v117, %v4422
    %v4424 = vand.u32 %v4423, 4294901760
    %v4425 = vsub.f32 %v4423, %v4424
    %v4426 = vand.u32 %v4425, 4294901760
    %4427 = vmatpush1.msra.mxu0 %v4426
    %4428 = vmatprep.subr.mxu0 0.0
    %v4429 = vand.u32 %v118, 4294901760
    %v4430 = vsub.f32 %v118, %v4429
    %v4431 = vand.u32 %v4430, 4294901760
    %v4432 = vsub.f32 %v4430, %v4431
    %v4433 = vand.u32 %v4432, 4294901760
    %4434 = vmatpush1.msra.mxu0 %v4433
    %4435 = vmatprep.subr.mxu0 0.0
    %v4436 = vand.u32 %v119, 4294901760
    %v4437 = vsub.f32 %v119, %v4436
    %v4438 = vand.u32 %v4437, 4294901760
    %v4439 = vsub.f32 %v4437, %v4438
    %v4440 = vand.u32 %v4439, 4294901760
    %4441 = vmatpush1.msra.mxu0 %v4440
    %4442 = vmatprep.subr.mxu0 0.0
    %v4443 = vand.u32 %v120, 4294901760
    %v4444 = vsub.f32 %v120, %v4443
    %v4445 = vand.u32 %v4444, 4294901760
    %v4446 = vsub.f32 %v4444, %v4445
    %v4447 = vand.u32 %v4446, 4294901760
    %4448 = vmatpush1.msra.mxu0 %v4447
    %4449 = vmatprep.subr.mxu0 0.0
    %v4450 = vand.u32 %v121, 4294901760
    %v4451 = vsub.f32 %v121, %v4450
    %v4452 = vand.u32 %v4451, 4294901760
    %v4453 = vsub.f32 %v4451, %v4452
    %v4454 = vand.u32 %v4453, 4294901760
    %4455 = vmatpush1.msra.mxu0 %v4454
    %4456 = vmatprep.subr.mxu0 0.0
    %v4457 = vand.u32 %v122, 4294901760
    %v4458 = vsub.f32 %v122, %v4457
    %v4459 = vand.u32 %v4458, 4294901760
    %v4460 = vsub.f32 %v4458, %v4459
    %v4461 = vand.u32 %v4460, 4294901760
    %4462 = vmatpush1.msra.mxu0 %v4461
    %4463 = vmatprep.subr.mxu0 0.0
    %v4464 = vand.u32 %v123, 4294901760
    %v4465 = vsub.f32 %v123, %v4464
    %v4466 = vand.u32 %v4465, 4294901760
    %v4467 = vsub.f32 %v4465, %v4466
    %v4468 = vand.u32 %v4467, 4294901760
    %4469 = vmatpush1.msra.mxu0 %v4468
    %4470 = vmatprep.subr.mxu0 0.0
    %v4471 = vand.u32 %v124, 4294901760
    %v4472 = vsub.f32 %v124, %v4471
    %v4473 = vand.u32 %v4472, 4294901760
    %v4474 = vsub.f32 %v4472, %v4473
    %v4475 = vand.u32 %v4474, 4294901760
    %4476 = vmatpush1.msra.mxu0 %v4475
    %4477 = vmatprep.subr.mxu0 0.0
    %v4478 = vand.u32 %v125, 4294901760
    %v4479 = vsub.f32 %v125, %v4478
    %v4480 = vand.u32 %v4479, 4294901760
    %v4481 = vsub.f32 %v4479, %v4480
    %v4482 = vand.u32 %v4481, 4294901760
    %4483 = vmatpush1.msra.mxu0 %v4482
    %4484 = vmatprep.subr.mxu0 0.0
    %v4485 = vand.u32 %v126, 4294901760
    %v4486 = vsub.f32 %v126, %v4485
    %v4487 = vand.u32 %v4486, 4294901760
    %v4488 = vsub.f32 %v4486, %v4487
    %v4489 = vand.u32 %v4488, 4294901760
    %4490 = vmatpush1.msra.mxu0 %v4489
    %4491 = vmatprep.subr.mxu0 0.0
    %v4492 = vand.u32 %v127, 4294901760
    %v4493 = vsub.f32 %v127, %v4492
    %v4494 = vand.u32 %v4493, 4294901760
    %v4495 = vsub.f32 %v4493, %v4494
    %v4496 = vand.u32 %v4495, 4294901760
    %4497 = vmatpush1.msra.mxu0 %v4496
    %4498 = vmatprep.subr.mxu0 0.0
    %v4499 = vand.u32 %v128, 4294901760
    %v4500 = vsub.f32 %v128, %v4499
    %v4501 = vand.u32 %v4500, 4294901760
    %v4502 = vsub.f32 %v4500, %v4501
    %v4503 = vand.u32 %v4502, 4294901760
    %4504 = vmatpush1.msra.mxu0 %v4503
    %4505 = vmatprep.subr.mxu0 0.0
    %v4506 = vand.u32 %v129, 4294901760
    %v4507 = vsub.f32 %v129, %v4506
    %v4508 = vand.u32 %v4507, 4294901760
    %v4509 = vsub.f32 %v4507, %v4508
    %v4510 = vand.u32 %v4509, 4294901760
    %4511 = vmatpush1.msra.mxu0 %v4510
    %v4512 = vand.u32 %v48, 4294901760
    %4513 = vmatprep.mubr.f32.mxu0 %v4512
    %v4514 = vand.u32 %v47, 4294901760
    %4515 = vmatmul.mubr.f32.gmra.mrb[0].mxu0 %v4514
    %v4516 = vpop.f32.mrb[0].mxu0
    %v4517 = vadd.f32 %v4285, %v4516
    %v4518 = vpop.f32.mrb[0].mxu0
    %4519 = vdwg.mxu0
    %4520 = vmatprep.subr.mxu0 0.0
    %v4521 = vand.u32 %v98, 4294901760
    %v4522 = vsub.f32 %v98, %v4521
    %4523 = vmatpush1.msra.mxu0 %v4522
    %4524 = vmatprep.subr.mxu0 0.0
    %v4525 = vand.u32 %v99, 4294901760
    %v4526 = vsub.f32 %v99, %v4525
    %4527 = vmatpush1.msra.mxu0 %v4526
    %4528 = vmatprep.subr.mxu0 0.0
    %v4529 = vand.u32 %v100, 4294901760
    %v4530 = vsub.f32 %v100, %v4529
    %4531 = vmatpush1.msra.mxu0 %v4530
    %4532 = vmatprep.subr.mxu0 0.0
    %v4533 = vand.u32 %v101, 4294901760
    %v4534 = vsub.f32 %v101, %v4533
    %4535 = vmatpush1.msra.mxu0 %v4534
    %4536 = vmatprep.subr.mxu0 0.0
    %v4537 = vand.u32 %v102, 4294901760
    %v4538 = vsub.f32 %v102, %v4537
    %4539 = vmatpush1.msra.mxu0 %v4538
    %4540 = vmatprep.subr.mxu0 0.0
    %v4541 = vand.u32 %v103, 4294901760
    %v4542 = vsub.f32 %v103, %v4541
    %4543 = vmatpush1.msra.mxu0 %v4542
    %4544 = vmatprep.subr.mxu0 0.0
    %v4545 = vand.u32 %v104, 4294901760
    %v4546 = vsub.f32 %v104, %v4545
    %4547 = vmatpush1.msra.mxu0 %v4546
    %4548 = vmatprep.subr.mxu0 0.0
    %v4549 = vand.u32 %v105, 4294901760
    %v4550 = vsub.f32 %v105, %v4549
    %4551 = vmatpush1.msra.mxu0 %v4550
    %4552 = vmatprep.subr.mxu0 0.0
    %v4553 = vand.u32 %v106, 4294901760
    %v4554 = vsub.f32 %v106, %v4553
    %4555 = vmatpush1.msra.mxu0 %v4554
    %4556 = vmatprep.subr.mxu0 0.0
    %v4557 = vand.u32 %v107, 4294901760
    %v4558 = vsub.f32 %v107, %v4557
    %4559 = vmatpush1.msra.mxu0 %v4558
    %4560 = vmatprep.subr.mxu0 0.0
    %v4561 = vand.u32 %v108, 4294901760
    %v4562 = vsub.f32 %v108, %v4561
    %4563 = vmatpush1.msra.mxu0 %v4562
    %4564 = vmatprep.subr.mxu0 0.0
    %v4565 = vand.u32 %v109, 4294901760
    %v4566 = vsub.f32 %v109, %v4565
    %4567 = vmatpush1.msra.mxu0 %v4566
    %4568 = vmatprep.subr.mxu0 0.0
    %v4569 = vand.u32 %v110, 4294901760
    %v4570 = vsub.f32 %v110, %v4569
    %4571 = vmatpush1.msra.mxu0 %v4570
    %4572 = vmatprep.subr.mxu0 0.0
    %v4573 = vand.u32 %v111, 4294901760
    %v4574 = vsub.f32 %v111, %v4573
    %4575 = vmatpush1.msra.mxu0 %v4574
    %4576 = vmatprep.subr.mxu0 0.0
    %v4577 = vand.u32 %v112, 4294901760
    %v4578 = vsub.f32 %v112, %v4577
    %4579 = vmatpush1.msra.mxu0 %v4578
    %4580 = vmatprep.subr.mxu0 0.0
    %v4581 = vand.u32 %v113, 4294901760
    %v4582 = vsub.f32 %v113, %v4581
    %4583 = vmatpush1.msra.mxu0 %v4582
    %4584 = vmatprep.subr.mxu0 0.0
    %v4585 = vand.u32 %v114, 4294901760
    %v4586 = vsub.f32 %v114, %v4585
    %4587 = vmatpush1.msra.mxu0 %v4586
    %4588 = vmatprep.subr.mxu0 0.0
    %v4589 = vand.u32 %v115, 4294901760
    %v4590 = vsub.f32 %v115, %v4589
    %4591 = vmatpush1.msra.mxu0 %v4590
    %4592 = vmatprep.subr.mxu0 0.0
    %v4593 = vand.u32 %v116, 4294901760
    %v4594 = vsub.f32 %v116, %v4593
    %4595 = vmatpush1.msra.mxu0 %v4594
    %4596 = vmatprep.subr.mxu0 0.0
    %v4597 = vand.u32 %v117, 4294901760
    %v4598 = vsub.f32 %v117, %v4597
    %4599 = vmatpush1.msra.mxu0 %v4598
    %4600 = vmatprep.subr.mxu0 0.0
    %v4601 = vand.u32 %v118, 4294901760
    %v4602 = vsub.f32 %v118, %v4601
    %4603 = vmatpush1.msra.mxu0 %v4602
    %4604 = vmatprep.subr.mxu0 0.0
    %v4605 = vand.u32 %v119, 4294901760
    %v4606 = vsub.f32 %v119, %v4605
    %4607 = vmatpush1.msra.mxu0 %v4606
    %4608 = vmatprep.subr.mxu0 0.0
    %v4609 = vand.u32 %v120, 4294901760
    %v4610 = vsub.f32 %v120, %v4609
    %4611 = vmatpush1.msra.mxu0 %v4610
    %4612 = vmatprep.subr.mxu0 0.0
    %v4613 = vand.u32 %v121, 4294901760
    %v4614 = vsub.f32 %v121, %v4613
    %4615 = vmatpush1.msra.mxu0 %v4614
    %4616 = vmatprep.subr.mxu0 0.0
    %v4617 = vand.u32 %v122, 4294901760
    %v4618 = vsub.f32 %v122, %v4617
    %4619 = vmatpush1.msra.mxu0 %v4618
    %4620 = vmatprep.subr.mxu0 0.0
    %v4621 = vand.u32 %v123, 4294901760
    %v4622 = vsub.f32 %v123, %v4621
    %4623 = vmatpush1.msra.mxu0 %v4622
    %4624 = vmatprep.subr.mxu0 0.0
    %v4625 = vand.u32 %v124, 4294901760
    %v4626 = vsub.f32 %v124, %v4625
    %4627 = vmatpush1.msra.mxu0 %v4626
    %4628 = vmatprep.subr.mxu0 0.0
    %v4629 = vand.u32 %v125, 4294901760
    %v4630 = vsub.f32 %v125, %v4629
    %4631 = vmatpush1.msra.mxu0 %v4630
    %4632 = vmatprep.subr.mxu0 0.0
    %v4633 = vand.u32 %v126, 4294901760
    %v4634 = vsub.f32 %v126, %v4633
    %4635 = vmatpush1.msra.mxu0 %v4634
    %4636 = vmatprep.subr.mxu0 0.0
    %v4637 = vand.u32 %v127, 4294901760
    %v4638 = vsub.f32 %v127, %v4637
    %4639 = vmatpush1.msra.mxu0 %v4638
    %4640 = vmatprep.subr.mxu0 0.0
    %v4641 = vand.u32 %v128, 4294901760
    %v4642 = vsub.f32 %v128, %v4641
    %4643 = vmatpush1.msra.mxu0 %v4642
    %4644 = vmatprep.subr.mxu0 0.0
    %v4645 = vand.u32 %v129, 4294901760
    %v4646 = vsub.f32 %v129, %v4645
    %4647 = vmatpush1.msra.mxu0 %v4646
    %v4648 = vand.u32 %v48, 4294901760
    %v4649 = vsub.f32 %v48, %v4648
    %4650 = vmatprep.mubr.f32.mxu0 %v4649
    %v4651 = vand.u32 %v47, 4294901760
    %v4652 = vsub.f32 %v47, %v4651
    %4653 = vmatmul.mubr.f32.gmra.mrb[0].mxu0 %v4652
    %v4654 = vpop.f32.mrb[0].mxu0
    %v4655 = vadd.f32 %v4517, %v4654
    %v4656 = vpop.f32.mrb[0].mxu0
    %4657 = vdwg.mxu0
    %4658 = vmatprep.subr.mxu0 0.0
    %v4659 = vand.u32 %v98, 4294901760
    %4660 = vmatpush1.msra.mxu0 %v4659
    %4661 = vmatprep.subr.mxu0 0.0
    %v4662 = vand.u32 %v99, 4294901760
    %4663 = vmatpush1.msra.mxu0 %v4662
    %4664 = vmatprep.subr.mxu0 0.0
    %v4665 = vand.u32 %v100, 4294901760
    %4666 = vmatpush1.msra.mxu0 %v4665
    %4667 = vmatprep.subr.mxu0 0.0
    %v4668 = vand.u32 %v101, 4294901760
    %4669 = vmatpush1.msra.mxu0 %v4668
    %4670 = vmatprep.subr.mxu0 0.0
    %v4671 = vand.u32 %v102, 4294901760
    %4672 = vmatpush1.msra.mxu0 %v4671
    %4673 = vmatprep.subr.mxu0 0.0
    %v4674 = vand.u32 %v103, 4294901760
    %4675 = vmatpush1.msra.mxu0 %v4674
    %4676 = vmatprep.subr.mxu0 0.0
    %v4677 = vand.u32 %v104, 4294901760
    %4678 = vmatpush1.msra.mxu0 %v4677
    %4679 = vmatprep.subr.mxu0 0.0
    %v4680 = vand.u32 %v105, 4294901760
    %4681 = vmatpush1.msra.mxu0 %v4680
    %4682 = vmatprep.subr.mxu0 0.0
    %v4683 = vand.u32 %v106, 4294901760
    %4684 = vmatpush1.msra.mxu0 %v4683
    %4685 = vmatprep.subr.mxu0 0.0
    %v4686 = vand.u32 %v107, 4294901760
    %4687 = vmatpush1.msra.mxu0 %v4686
    %4688 = vmatprep.subr.mxu0 0.0
    %v4689 = vand.u32 %v108, 4294901760
    %4690 = vmatpush1.msra.mxu0 %v4689
    %4691 = vmatprep.subr.mxu0 0.0
    %v4692 = vand.u32 %v109, 4294901760
    %4693 = vmatpush1.msra.mxu0 %v4692
    %4694 = vmatprep.subr.mxu0 0.0
    %v4695 = vand.u32 %v110, 4294901760
    %4696 = vmatpush1.msra.mxu0 %v4695
    %4697 = vmatprep.subr.mxu0 0.0
    %v4698 = vand.u32 %v111, 4294901760
    %4699 = vmatpush1.msra.mxu0 %v4698
    %4700 = vmatprep.subr.mxu0 0.0
    %v4701 = vand.u32 %v112, 4294901760
    %4702 = vmatpush1.msra.mxu0 %v4701
    %4703 = vmatprep.subr.mxu0 0.0
    %v4704 = vand.u32 %v113, 4294901760
    %4705 = vmatpush1.msra.mxu0 %v4704
    %4706 = vmatprep.subr.mxu0 0.0
    %v4707 = vand.u32 %v114, 4294901760
    %4708 = vmatpush1.msra.mxu0 %v4707
    %4709 = vmatprep.subr.mxu0 0.0
    %v4710 = vand.u32 %v115, 4294901760
    %4711 = vmatpush1.msra.mxu0 %v4710
    %4712 = vmatprep.subr.mxu0 0.0
    %v4713 = vand.u32 %v116, 4294901760
    %4714 = vmatpush1.msra.mxu0 %v4713
    %4715 = vmatprep.subr.mxu0 0.0
    %v4716 = vand.u32 %v117, 4294901760
    %4717 = vmatpush1.msra.mxu0 %v4716
    %4718 = vmatprep.subr.mxu0 0.0
    %v4719 = vand.u32 %v118, 4294901760
    %4720 = vmatpush1.msra.mxu0 %v4719
    %4721 = vmatprep.subr.mxu0 0.0
    %v4722 = vand.u32 %v119, 4294901760
    %4723 = vmatpush1.msra.mxu0 %v4722
    %4724 = vmatprep.subr.mxu0 0.0
    %v4725 = vand.u32 %v120, 4294901760
    %4726 = vmatpush1.msra.mxu0 %v4725
    %4727 = vmatprep.subr.mxu0 0.0
    %v4728 = vand.u32 %v121, 4294901760
    %4729 = vmatpush1.msra.mxu0 %v4728
    %4730 = vmatprep.subr.mxu0 0.0
    %v4731 = vand.u32 %v122, 4294901760
    %4732 = vmatpush1.msra.mxu0 %v4731
    %4733 = vmatprep.subr.mxu0 0.0
    %v4734 = vand.u32 %v123, 4294901760
    %4735 = vmatpush1.msra.mxu0 %v4734
    %4736 = vmatprep.subr.mxu0 0.0
    %v4737 = vand.u32 %v124, 4294901760
    %4738 = vmatpush1.msra.mxu0 %v4737
    %4739 = vmatprep.subr.mxu0 0.0
    %v4740 = vand.u32 %v125, 4294901760
    %4741 = vmatpush1.msra.mxu0 %v4740
    %4742 = vmatprep.subr.mxu0 0.0
    %v4743 = vand.u32 %v126, 4294901760
    %4744 = vmatpush1.msra.mxu0 %v4743
    %4745 = vmatprep.subr.mxu0 0.0
    %v4746 = vand.u32 %v127, 4294901760
    %4747 = vmatpush1.msra.mxu0 %v4746
    %4748 = vmatprep.subr.mxu0 0.0
    %v4749 = vand.u32 %v128, 4294901760
    %4750 = vmatpush1.msra.mxu0 %v4749
    %4751 = vmatprep.subr.mxu0 0.0
    %v4752 = vand.u32 %v129, 4294901760
    %4753 = vmatpush1.msra.mxu0 %v4752
    %v4754 = vand.u32 %v48, 4294901760
    %v4755 = vsub.f32 %v48, %v4754
    %v4756 = vand.u32 %v4755, 4294901760
    %4757 = vmatprep.mubr.f32.mxu0 %v4756
    %v4758 = vand.u32 %v47, 4294901760
    %v4759 = vsub.f32 %v47, %v4758
    %v4760 = vand.u32 %v4759, 4294901760
    %4761 = vmatmul.mubr.f32.gmra.mrb[0].mxu0 %v4760
    %v4762 = vpop.f32.mrb[0].mxu0
    %v4763 = vadd.f32 %v4655, %v4762
    %v4764 = vpop.f32.mrb[0].mxu0
    %4765 = vdwg.mxu0
    %4766 = vmatprep.subr.mxu0 0.0
    %v4767 = vand.u32 %v98, 4294901760
    %v4768 = vsub.f32 %v98, %v4767
    %v4769 = vand.u32 %v4768, 4294901760
    %4770 = vmatpush1.msra.mxu0 %v4769
    %4771 = vmatprep.subr.mxu0 0.0
    %v4772 = vand.u32 %v99, 4294901760
    %v4773 = vsub.f32 %v99, %v4772
    %v4774 = vand.u32 %v4773, 4294901760
    %4775 = vmatpush1.msra.mxu0 %v4774
    %4776 = vmatprep.subr.mxu0 0.0
    %v4777 = vand.u32 %v100, 4294901760
    %v4778 = vsub.f32 %v100, %v4777
    %v4779 = vand.u32 %v4778, 4294901760
    %4780 = vmatpush1.msra.mxu0 %v4779
    %4781 = vmatprep.subr.mxu0 0.0
    %v4782 = vand.u32 %v101, 4294901760
    %v4783 = vsub.f32 %v101, %v4782
    %v4784 = vand.u32 %v4783, 4294901760
    %4785 = vmatpush1.msra.mxu0 %v4784
    %4786 = vmatprep.subr.mxu0 0.0
    %v4787 = vand.u32 %v102, 4294901760
    %v4788 = vsub.f32 %v102, %v4787
    %v4789 = vand.u32 %v4788, 4294901760
    %4790 = vmatpush1.msra.mxu0 %v4789
    %4791 = vmatprep.subr.mxu0 0.0
    %v4792 = vand.u32 %v103, 4294901760
    %v4793 = vsub.f32 %v103, %v4792
    %v4794 = vand.u32 %v4793, 4294901760
    %4795 = vmatpush1.msra.mxu0 %v4794
    %4796 = vmatprep.subr.mxu0 0.0
    %v4797 = vand.u32 %v104, 4294901760
    %v4798 = vsub.f32 %v104, %v4797
    %v4799 = vand.u32 %v4798, 4294901760
    %4800 = vmatpush1.msra.mxu0 %v4799
    %4801 = vmatprep.subr.mxu0 0.0
    %v4802 = vand.u32 %v105, 4294901760
    %v4803 = vsub.f32 %v105, %v4802
    %v4804 = vand.u32 %v4803, 4294901760
    %4805 = vmatpush1.msra.mxu0 %v4804
    %4806 = vmatprep.subr.mxu0 0.0
    %v4807 = vand.u32 %v106, 4294901760
    %v4808 = vsub.f32 %v106, %v4807
    %v4809 = vand.u32 %v4808, 4294901760
    %4810 = vmatpush1.msra.mxu0 %v4809
    %4811 = vmatprep.subr.mxu0 0.0
    %v4812 = vand.u32 %v107, 4294901760
    %v4813 = vsub.f32 %v107, %v4812
    %v4814 = vand.u32 %v4813, 4294901760
    %4815 = vmatpush1.msra.mxu0 %v4814
    %4816 = vmatprep.subr.mxu0 0.0
    %v4817 = vand.u32 %v108, 4294901760
    %v4818 = vsub.f32 %v108, %v4817
    %v4819 = vand.u32 %v4818, 4294901760
    %4820 = vmatpush1.msra.mxu0 %v4819
    %4821 = vmatprep.subr.mxu0 0.0
    %v4822 = vand.u32 %v109, 4294901760
    %v4823 = vsub.f32 %v109, %v4822
    %v4824 = vand.u32 %v4823, 4294901760
    %4825 = vmatpush1.msra.mxu0 %v4824
    %4826 = vmatprep.subr.mxu0 0.0
    %v4827 = vand.u32 %v110, 4294901760
    %v4828 = vsub.f32 %v110, %v4827
    %v4829 = vand.u32 %v4828, 4294901760
    %4830 = vmatpush1.msra.mxu0 %v4829
    %4831 = vmatprep.subr.mxu0 0.0
    %v4832 = vand.u32 %v111, 4294901760
    %v4833 = vsub.f32 %v111, %v4832
    %v4834 = vand.u32 %v4833, 4294901760
    %4835 = vmatpush1.msra.mxu0 %v4834
    %4836 = vmatprep.subr.mxu0 0.0
    %v4837 = vand.u32 %v112, 4294901760
    %v4838 = vsub.f32 %v112, %v4837
    %v4839 = vand.u32 %v4838, 4294901760
    %4840 = vmatpush1.msra.mxu0 %v4839
    %4841 = vmatprep.subr.mxu0 0.0
    %v4842 = vand.u32 %v113, 4294901760
    %v4843 = vsub.f32 %v113, %v4842
    %v4844 = vand.u32 %v4843, 4294901760
    %4845 = vmatpush1.msra.mxu0 %v4844
    %4846 = vmatprep.subr.mxu0 0.0
    %v4847 = vand.u32 %v114, 4294901760
    %v4848 = vsub.f32 %v114, %v4847
    %v4849 = vand.u32 %v4848, 4294901760
    %4850 = vmatpush1.msra.mxu0 %v4849
    %4851 = vmatprep.subr.mxu0 0.0
    %v4852 = vand.u32 %v115, 4294901760
    %v4853 = vsub.f32 %v115, %v4852
    %v4854 = vand.u32 %v4853, 4294901760
    %4855 = vmatpush1.msra.mxu0 %v4854
    %4856 = vmatprep.subr.mxu0 0.0
    %v4857 = vand.u32 %v116, 4294901760
    %v4858 = vsub.f32 %v116, %v4857
    %v4859 = vand.u32 %v4858, 4294901760
    %4860 = vmatpush1.msra.mxu0 %v4859
    %4861 = vmatprep.subr.mxu0 0.0
    %v4862 = vand.u32 %v117, 4294901760
    %v4863 = vsub.f32 %v117, %v4862
    %v4864 = vand.u32 %v4863, 4294901760
    %4865 = vmatpush1.msra.mxu0 %v4864
    %4866 = vmatprep.subr.mxu0 0.0
    %v4867 = vand.u32 %v118, 4294901760
    %v4868 = vsub.f32 %v118, %v4867
    %v4869 = vand.u32 %v4868, 4294901760
    %4870 = vmatpush1.msra.mxu0 %v4869
    %4871 = vmatprep.subr.mxu0 0.0
    %v4872 = vand.u32 %v119, 4294901760
    %v4873 = vsub.f32 %v119, %v4872
    %v4874 = vand.u32 %v4873, 4294901760
    %4875 = vmatpush1.msra.mxu0 %v4874
    %4876 = vmatprep.subr.mxu0 0.0
    %v4877 = vand.u32 %v120, 4294901760
    %v4878 = vsub.f32 %v120, %v4877
    %v4879 = vand.u32 %v4878, 4294901760
    %4880 = vmatpush1.msra.mxu0 %v4879
    %4881 = vmatprep.subr.mxu0 0.0
    %v4882 = vand.u32 %v121, 4294901760
    %v4883 = vsub.f32 %v121, %v4882
    %v4884 = vand.u32 %v4883, 4294901760
    %4885 = vmatpush1.msra.mxu0 %v4884
    %4886 = vmatprep.subr.mxu0 0.0
    %v4887 = vand.u32 %v122, 4294901760
    %v4888 = vsub.f32 %v122, %v4887
    %v4889 = vand.u32 %v4888, 4294901760
    %4890 = vmatpush1.msra.mxu0 %v4889
    %4891 = vmatprep.subr.mxu0 0.0
    %v4892 = vand.u32 %v123, 4294901760
    %v4893 = vsub.f32 %v123, %v4892
    %v4894 = vand.u32 %v4893, 4294901760
    %4895 = vmatpush1.msra.mxu0 %v4894
    %4896 = vmatprep.subr.mxu0 0.0
    %v4897 = vand.u32 %v124, 4294901760
    %v4898 = vsub.f32 %v124, %v4897
    %v4899 = vand.u32 %v4898, 4294901760
    %4900 = vmatpush1.msra.mxu0 %v4899
    %4901 = vmatprep.subr.mxu0 0.0
    %v4902 = vand.u32 %v125, 4294901760
    %v4903 = vsub.f32 %v125, %v4902
    %v4904 = vand.u32 %v4903, 4294901760
    %4905 = vmatpush1.msra.mxu0 %v4904
    %4906 = vmatprep.subr.mxu0 0.0
    %v4907 = vand.u32 %v126, 4294901760
    %v4908 = vsub.f32 %v126, %v4907
    %v4909 = vand.u32 %v4908, 4294901760
    %4910 = vmatpush1.msra.mxu0 %v4909
    %4911 = vmatprep.subr.mxu0 0.0
    %v4912 = vand.u32 %v127, 4294901760
    %v4913 = vsub.f32 %v127, %v4912
    %v4914 = vand.u32 %v4913, 4294901760
    %4915 = vmatpush1.msra.mxu0 %v4914
    %4916 = vmatprep.subr.mxu0 0.0
    %v4917 = vand.u32 %v128, 4294901760
    %v4918 = vsub.f32 %v128, %v4917
    %v4919 = vand.u32 %v4918, 4294901760
    %4920 = vmatpush1.msra.mxu0 %v4919
    %4921 = vmatprep.subr.mxu0 0.0
    %v4922 = vand.u32 %v129, 4294901760
    %v4923 = vsub.f32 %v129, %v4922
    %v4924 = vand.u32 %v4923, 4294901760
    %4925 = vmatpush1.msra.mxu0 %v4924
    %v4926 = vand.u32 %v48, 4294901760
    %4927 = vmatprep.mubr.f32.mxu0 %v4926
    %v4928 = vand.u32 %v47, 4294901760
    %4929 = vmatmul.mubr.f32.gmra.mrb[0].mxu0 %v4928
    %v4930 = vpop.f32.mrb[0].mxu0
    %v4931 = vadd.f32 %v4763, %v4930
    %v4932 = vpop.f32.mrb[0].mxu0
    %4933 = vdwg.mxu0
    %4934 = vmatprep.subr.mxu0 0.0
    %v4935 = vand.u32 %v98, 4294901760
    %4936 = vmatpush1.msra.mxu0 %v4935
    %4937 = vmatprep.subr.mxu0 0.0
    %v4938 = vand.u32 %v99, 4294901760
    %4939 = vmatpush1.msra.mxu0 %v4938
    %4940 = vmatprep.subr.mxu0 0.0
    %v4941 = vand.u32 %v100, 4294901760
    %4942 = vmatpush1.msra.mxu0 %v4941
    %4943 = vmatprep.subr.mxu0 0.0
    %v4944 = vand.u32 %v101, 4294901760
    %4945 = vmatpush1.msra.mxu0 %v4944
    %4946 = vmatprep.subr.mxu0 0.0
    %v4947 = vand.u32 %v102, 4294901760
    %4948 = vmatpush1.msra.mxu0 %v4947
    %4949 = vmatprep.subr.mxu0 0.0
    %v4950 = vand.u32 %v103, 4294901760
    %4951 = vmatpush1.msra.mxu0 %v4950
    %4952 = vmatprep.subr.mxu0 0.0
    %v4953 = vand.u32 %v104, 4294901760
    %4954 = vmatpush1.msra.mxu0 %v4953
    %4955 = vmatprep.subr.mxu0 0.0
    %v4956 = vand.u32 %v105, 4294901760
    %4957 = vmatpush1.msra.mxu0 %v4956
    %4958 = vmatprep.subr.mxu0 0.0
    %v4959 = vand.u32 %v106, 4294901760
    %4960 = vmatpush1.msra.mxu0 %v4959
    %4961 = vmatprep.subr.mxu0 0.0
    %v4962 = vand.u32 %v107, 4294901760
    %4963 = vmatpush1.msra.mxu0 %v4962
    %4964 = vmatprep.subr.mxu0 0.0
    %v4965 = vand.u32 %v108, 4294901760
    %4966 = vmatpush1.msra.mxu0 %v4965
    %4967 = vmatprep.subr.mxu0 0.0
    %v4968 = vand.u32 %v109, 4294901760
    %4969 = vmatpush1.msra.mxu0 %v4968
    %4970 = vmatprep.subr.mxu0 0.0
    %v4971 = vand.u32 %v110, 4294901760
    %4972 = vmatpush1.msra.mxu0 %v4971
    %4973 = vmatprep.subr.mxu0 0.0
    %v4974 = vand.u32 %v111, 4294901760
    %4975 = vmatpush1.msra.mxu0 %v4974
    %4976 = vmatprep.subr.mxu0 0.0
    %v4977 = vand.u32 %v112, 4294901760
    %4978 = vmatpush1.msra.mxu0 %v4977
    %4979 = vmatprep.subr.mxu0 0.0
    %v4980 = vand.u32 %v113, 4294901760
    %4981 = vmatpush1.msra.mxu0 %v4980
    %4982 = vmatprep.subr.mxu0 0.0
    %v4983 = vand.u32 %v114, 4294901760
    %4984 = vmatpush1.msra.mxu0 %v4983
    %4985 = vmatprep.subr.mxu0 0.0
    %v4986 = vand.u32 %v115, 4294901760
    %4987 = vmatpush1.msra.mxu0 %v4986
    %4988 = vmatprep.subr.mxu0 0.0
    %v4989 = vand.u32 %v116, 4294901760
    %4990 = vmatpush1.msra.mxu0 %v4989
    %4991 = vmatprep.subr.mxu0 0.0
    %v4992 = vand.u32 %v117, 4294901760
    %4993 = vmatpush1.msra.mxu0 %v4992
    %4994 = vmatprep.subr.mxu0 0.0
    %v4995 = vand.u32 %v118, 4294901760
    %4996 = vmatpush1.msra.mxu0 %v4995
    %4997 = vmatprep.subr.mxu0 0.0
    %v4998 = vand.u32 %v119, 4294901760
    %4999 = vmatpush1.msra.mxu0 %v4998
    %5000 = vmatprep.subr.mxu0 0.0
    %v5001 = vand.u32 %v120, 4294901760
    %5002 = vmatpush1.msra.mxu0 %v5001
    %5003 = vmatprep.subr.mxu0 0.0
    %v5004 = vand.u32 %v121, 4294901760
    %5005 = vmatpush1.msra.mxu0 %v5004
    %5006 = vmatprep.subr.mxu0 0.0
    %v5007 = vand.u32 %v122, 4294901760
    %5008 = vmatpush1.msra.mxu0 %v5007
    %5009 = vmatprep.subr.mxu0 0.0
    %v5010 = vand.u32 %v123, 4294901760
    %5011 = vmatpush1.msra.mxu0 %v5010
    %5012 = vmatprep.subr.mxu0 0.0
    %v5013 = vand.u32 %v124, 4294901760
    %5014 = vmatpush1.msra.mxu0 %v5013
    %5015 = vmatprep.subr.mxu0 0.0
    %v5016 = vand.u32 %v125, 4294901760
    %5017 = vmatpush1.msra.mxu0 %v5016
    %5018 = vmatprep.subr.mxu0 0.0
    %v5019 = vand.u32 %v126, 4294901760
    %5020 = vmatpush1.msra.mxu0 %v5019
    %5021 = vmatprep.subr.mxu0 0.0
    %v5022 = vand.u32 %v127, 4294901760
    %5023 = vmatpush1.msra.mxu0 %v5022
    %5024 = vmatprep.subr.mxu0 0.0
    %v5025 = vand.u32 %v128, 4294901760
    %5026 = vmatpush1.msra.mxu0 %v5025
    %5027 = vmatprep.subr.mxu0 0.0
    %v5028 = vand.u32 %v129, 4294901760
    %5029 = vmatpush1.msra.mxu0 %v5028
    %v5030 = vand.u32 %v48, 4294901760
    %5031 = vmatprep.mubr.f32.mxu0 %v5030
    %v5032 = vand.u32 %v47, 4294901760
    %5033 = vmatmul.mubr.f32.gmra.mrb[0].mxu0 %v5032
    %v5034 = vpop.f32.mrb[0].mxu0
    %v5035 = vadd.f32 %v4931, %v5034
    %v5036 = vpop.f32.mrb[0].mxu0
    %5037 = vdwg.mxu0
    %5038 = vmatprep.subr.mxu0 0.0
    %v5039 = vand.u32 %v130, 4294901760
    %5040 = vmatpush1.msra.mxu0 %v5039
    %5041 = vmatprep.subr.mxu0 0.0
    %v5042 = vand.u32 %v131, 4294901760
    %5043 = vmatpush1.msra.mxu0 %v5042
    %5044 = vmatprep.subr.mxu0 0.0
    %v5045 = vand.u32 %v132, 4294901760
    %5046 = vmatpush1.msra.mxu0 %v5045
    %5047 = vmatprep.subr.mxu0 0.0
    %v5048 = vand.u32 %v133, 4294901760
    %5049 = vmatpush1.msra.mxu0 %v5048
    %5050 = vmatprep.subr.mxu0 0.0
    %v5051 = vand.u32 %v134, 4294901760
    %5052 = vmatpush1.msra.mxu0 %v5051
    %5053 = vmatprep.subr.mxu0 0.0
    %v5054 = vand.u32 %v135, 4294901760
    %5055 = vmatpush1.msra.mxu0 %v5054
    %5056 = vmatprep.subr.mxu0 0.0
    %v5057 = vand.u32 %v136, 4294901760
    %5058 = vmatpush1.msra.mxu0 %v5057
    %5059 = vmatprep.subr.mxu0 0.0
    %v5060 = vand.u32 %v137, 4294901760
    %5061 = vmatpush1.msra.mxu0 %v5060
    %5062 = vmatprep.subr.mxu0 0.0
    %v5063 = vand.u32 %v138, 4294901760
    %5064 = vmatpush1.msra.mxu0 %v5063
    %5065 = vmatprep.subr.mxu0 0.0
    %v5066 = vand.u32 %v139, 4294901760
    %5067 = vmatpush1.msra.mxu0 %v5066
    %5068 = vmatprep.subr.mxu0 0.0
    %v5069 = vand.u32 %v140, 4294901760
    %5070 = vmatpush1.msra.mxu0 %v5069
    %5071 = vmatprep.subr.mxu0 0.0
    %v5072 = vand.u32 %v141, 4294901760
    %5073 = vmatpush1.msra.mxu0 %v5072
    %5074 = vmatprep.subr.mxu0 0.0
    %v5075 = vand.u32 %v142, 4294901760
    %5076 = vmatpush1.msra.mxu0 %v5075
    %5077 = vmatprep.subr.mxu0 0.0
    %v5078 = vand.u32 %v143, 4294901760
    %5079 = vmatpush1.msra.mxu0 %v5078
    %5080 = vmatprep.subr.mxu0 0.0
    %v5081 = vand.u32 %v144, 4294901760
    %5082 = vmatpush1.msra.mxu0 %v5081
    %5083 = vmatprep.subr.mxu0 0.0
    %v5084 = vand.u32 %v145, 4294901760
    %5085 = vmatpush1.msra.mxu0 %v5084
    %5086 = vmatprep.subr.mxu0 0.0
    %v5087 = vand.u32 %v146, 4294901760
    %5088 = vmatpush1.msra.mxu0 %v5087
    %5089 = vmatprep.subr.mxu0 0.0
    %v5090 = vand.u32 %v147, 4294901760
    %5091 = vmatpush1.msra.mxu0 %v5090
    %5092 = vmatprep.subr.mxu0 0.0
    %v5093 = vand.u32 %v148, 4294901760
    %5094 = vmatpush1.msra.mxu0 %v5093
    %5095 = vmatprep.subr.mxu0 0.0
    %v5096 = vand.u32 %v149, 4294901760
    %5097 = vmatpush1.msra.mxu0 %v5096
    %5098 = vmatprep.subr.mxu0 0.0
    %v5099 = vand.u32 %v150, 4294901760
    %5100 = vmatpush1.msra.mxu0 %v5099
    %5101 = vmatprep.subr.mxu0 0.0
    %v5102 = vand.u32 %v151, 4294901760
    %5103 = vmatpush1.msra.mxu0 %v5102
    %5104 = vmatprep.subr.mxu0 0.0
    %v5105 = vand.u32 %v152, 4294901760
    %5106 = vmatpush1.msra.mxu0 %v5105
    %5107 = vmatprep.subr.mxu0 0.0
    %v5108 = vand.u32 %v153, 4294901760
    %5109 = vmatpush1.msra.mxu0 %v5108
    %5110 = vmatprep.subr.mxu0 0.0
    %v5111 = vand.u32 %v154, 4294901760
    %5112 = vmatpush1.msra.mxu0 %v5111
    %5113 = vmatprep.subr.mxu0 0.0
    %v5114 = vand.u32 %v155, 4294901760
    %5115 = vmatpush1.msra.mxu0 %v5114
    %5116 = vmatprep.subr.mxu0 0.0
    %v5117 = vand.u32 %v156, 4294901760
    %5118 = vmatpush1.msra.mxu0 %v5117
    %5119 = vmatprep.subr.mxu0 0.0
    %v5120 = vand.u32 %v157, 4294901760
    %5121 = vmatpush1.msra.mxu0 %v5120
    %5122 = vmatprep.subr.mxu0 0.0
    %v5123 = vand.u32 %v158, 4294901760
    %5124 = vmatpush1.msra.mxu0 %v5123
    %5125 = vmatprep.subr.mxu0 0.0
    %v5126 = vand.u32 %v159, 4294901760
    %5127 = vmatpush1.msra.mxu0 %v5126
    %5128 = vmatprep.subr.mxu0 0.0
    %v5129 = vand.u32 %v160, 4294901760
    %5130 = vmatpush1.msra.mxu0 %v5129
    %5131 = vmatprep.subr.mxu0 0.0
    %v5132 = vand.u32 %v161, 4294901760
    %5133 = vmatpush1.msra.mxu0 %v5132
    %v5134 = vand.u32 %v50, 4294901760
    %v5135 = vsub.f32 %v50, %v5134
    %v5136 = vand.u32 %v5135, 4294901760
    %v5137 = vsub.f32 %v5135, %v5136
    %v5138 = vand.u32 %v5137, 4294901760
    %5139 = vmatprep.mubr.f32.mxu0 %v5138
    %v5140 = vand.u32 %v49, 4294901760
    %v5141 = vsub.f32 %v49, %v5140
    %v5142 = vand.u32 %v5141, 4294901760
    %v5143 = vsub.f32 %v5141, %v5142
    %v5144 = vand.u32 %v5143, 4294901760
    %5145 = vmatmul.mubr.f32.gmra.mrb[0].mxu0 %v5144
    %v5146 = vpop.f32.mrb[0].mxu0
    %v5147 = vadd.f32 %v5035, %v5146
    %v5148 = vpop.f32.mrb[0].mxu0
    %5149 = vdwg.mxu0
    %5150 = vmatprep.subr.mxu0 0.0
    %v5151 = vand.u32 %v130, 4294901760
    %v5152 = vsub.f32 %v130, %v5151
    %v5153 = vand.u32 %v5152, 4294901760
    %v5154 = vsub.f32 %v5152, %v5153
    %v5155 = vand.u32 %v5154, 4294901760
    %5156 = vmatpush1.msra.mxu0 %v5155
    %5157 = vmatprep.subr.mxu0 0.0
    %v5158 = vand.u32 %v131, 4294901760
    %v5159 = vsub.f32 %v131, %v5158
    %v5160 = vand.u32 %v5159, 4294901760
    %v5161 = vsub.f32 %v5159, %v5160
    %v5162 = vand.u32 %v5161, 4294901760
    %5163 = vmatpush1.msra.mxu0 %v5162
    %5164 = vmatprep.subr.mxu0 0.0
    %v5165 = vand.u32 %v132, 4294901760
    %v5166 = vsub.f32 %v132, %v5165
    %v5167 = vand.u32 %v5166, 4294901760
    %v5168 = vsub.f32 %v5166, %v5167
    %v5169 = vand.u32 %v5168, 4294901760
    %5170 = vmatpush1.msra.mxu0 %v5169
    %5171 = vmatprep.subr.mxu0 0.0
    %v5172 = vand.u32 %v133, 4294901760
    %v5173 = vsub.f32 %v133, %v5172
    %v5174 = vand.u32 %v5173, 4294901760
    %v5175 = vsub.f32 %v5173, %v5174
    %v5176 = vand.u32 %v5175, 4294901760
    %5177 = vmatpush1.msra.mxu0 %v5176
    %5178 = vmatprep.subr.mxu0 0.0
    %v5179 = vand.u32 %v134, 4294901760
    %v5180 = vsub.f32 %v134, %v5179
    %v5181 = vand.u32 %v5180, 4294901760
    %v5182 = vsub.f32 %v5180, %v5181
    %v5183 = vand.u32 %v5182, 4294901760
    %5184 = vmatpush1.msra.mxu0 %v5183
    %5185 = vmatprep.subr.mxu0 0.0
    %v5186 = vand.u32 %v135, 4294901760
    %v5187 = vsub.f32 %v135, %v5186
    %v5188 = vand.u32 %v5187, 4294901760
    %v5189 = vsub.f32 %v5187, %v5188
    %v5190 = vand.u32 %v5189, 4294901760
    %5191 = vmatpush1.msra.mxu0 %v5190
    %5192 = vmatprep.subr.mxu0 0.0
    %v5193 = vand.u32 %v136, 4294901760
    %v5194 = vsub.f32 %v136, %v5193
    %v5195 = vand.u32 %v5194, 4294901760
    %v5196 = vsub.f32 %v5194, %v5195
    %v5197 = vand.u32 %v5196, 4294901760
    %5198 = vmatpush1.msra.mxu0 %v5197
    %5199 = vmatprep.subr.mxu0 0.0
    %v5200 = vand.u32 %v137, 4294901760
    %v5201 = vsub.f32 %v137, %v5200
    %v5202 = vand.u32 %v5201, 4294901760
    %v5203 = vsub.f32 %v5201, %v5202
    %v5204 = vand.u32 %v5203, 4294901760
    %5205 = vmatpush1.msra.mxu0 %v5204
    %5206 = vmatprep.subr.mxu0 0.0
    %v5207 = vand.u32 %v138, 4294901760
    %v5208 = vsub.f32 %v138, %v5207
    %v5209 = vand.u32 %v5208, 4294901760
    %v5210 = vsub.f32 %v5208, %v5209
    %v5211 = vand.u32 %v5210, 4294901760
    %5212 = vmatpush1.msra.mxu0 %v5211
    %5213 = vmatprep.subr.mxu0 0.0
    %v5214 = vand.u32 %v139, 4294901760
    %v5215 = vsub.f32 %v139, %v5214
    %v5216 = vand.u32 %v5215, 4294901760
    %v5217 = vsub.f32 %v5215, %v5216
    %v5218 = vand.u32 %v5217, 4294901760
    %5219 = vmatpush1.msra.mxu0 %v5218
    %5220 = vmatprep.subr.mxu0 0.0
    %v5221 = vand.u32 %v140, 4294901760
    %v5222 = vsub.f32 %v140, %v5221
    %v5223 = vand.u32 %v5222, 4294901760
    %v5224 = vsub.f32 %v5222, %v5223
    %v5225 = vand.u32 %v5224, 4294901760
    %5226 = vmatpush1.msra.mxu0 %v5225
    %5227 = vmatprep.subr.mxu0 0.0
    %v5228 = vand.u32 %v141, 4294901760
    %v5229 = vsub.f32 %v141, %v5228
    %v5230 = vand.u32 %v5229, 4294901760
    %v5231 = vsub.f32 %v5229, %v5230
    %v5232 = vand.u32 %v5231, 4294901760
    %5233 = vmatpush1.msra.mxu0 %v5232
    %5234 = vmatprep.subr.mxu0 0.0
    %v5235 = vand.u32 %v142, 4294901760
    %v5236 = vsub.f32 %v142, %v5235
    %v5237 = vand.u32 %v5236, 4294901760
    %v5238 = vsub.f32 %v5236, %v5237
    %v5239 = vand.u32 %v5238, 4294901760
    %5240 = vmatpush1.msra.mxu0 %v5239
    %5241 = vmatprep.subr.mxu0 0.0
    %v5242 = vand.u32 %v143, 4294901760
    %v5243 = vsub.f32 %v143, %v5242
    %v5244 = vand.u32 %v5243, 4294901760
    %v5245 = vsub.f32 %v5243, %v5244
    %v5246 = vand.u32 %v5245, 4294901760
    %5247 = vmatpush1.msra.mxu0 %v5246
    %5248 = vmatprep.subr.mxu0 0.0
    %v5249 = vand.u32 %v144, 4294901760
    %v5250 = vsub.f32 %v144, %v5249
    %v5251 = vand.u32 %v5250, 4294901760
    %v5252 = vsub.f32 %v5250, %v5251
    %v5253 = vand.u32 %v5252, 4294901760
    %5254 = vmatpush1.msra.mxu0 %v5253
    %5255 = vmatprep.subr.mxu0 0.0
    %v5256 = vand.u32 %v145, 4294901760
    %v5257 = vsub.f32 %v145, %v5256
    %v5258 = vand.u32 %v5257, 4294901760
    %v5259 = vsub.f32 %v5257, %v5258
    %v5260 = vand.u32 %v5259, 4294901760
    %5261 = vmatpush1.msra.mxu0 %v5260
    %5262 = vmatprep.subr.mxu0 0.0
    %v5263 = vand.u32 %v146, 4294901760
    %v5264 = vsub.f32 %v146, %v5263
    %v5265 = vand.u32 %v5264, 4294901760
    %v5266 = vsub.f32 %v5264, %v5265
    %v5267 = vand.u32 %v5266, 4294901760
    %5268 = vmatpush1.msra.mxu0 %v5267
    %5269 = vmatprep.subr.mxu0 0.0
    %v5270 = vand.u32 %v147, 4294901760
    %v5271 = vsub.f32 %v147, %v5270
    %v5272 = vand.u32 %v5271, 4294901760
    %v5273 = vsub.f32 %v5271, %v5272
    %v5274 = vand.u32 %v5273, 4294901760
    %5275 = vmatpush1.msra.mxu0 %v5274
    %5276 = vmatprep.subr.mxu0 0.0
    %v5277 = vand.u32 %v148, 4294901760
    %v5278 = vsub.f32 %v148, %v5277
    %v5279 = vand.u32 %v5278, 4294901760
    %v5280 = vsub.f32 %v5278, %v5279
    %v5281 = vand.u32 %v5280, 4294901760
    %5282 = vmatpush1.msra.mxu0 %v5281
    %5283 = vmatprep.subr.mxu0 0.0
    %v5284 = vand.u32 %v149, 4294901760
    %v5285 = vsub.f32 %v149, %v5284
    %v5286 = vand.u32 %v5285, 4294901760
    %v5287 = vsub.f32 %v5285, %v5286
    %v5288 = vand.u32 %v5287, 4294901760
    %5289 = vmatpush1.msra.mxu0 %v5288
    %5290 = vmatprep.subr.mxu0 0.0
    %v5291 = vand.u32 %v150, 4294901760
    %v5292 = vsub.f32 %v150, %v5291
    %v5293 = vand.u32 %v5292, 4294901760
    %v5294 = vsub.f32 %v5292, %v5293
    %v5295 = vand.u32 %v5294, 4294901760
    %5296 = vmatpush1.msra.mxu0 %v5295
    %5297 = vmatprep.subr.mxu0 0.0
    %v5298 = vand.u32 %v151, 4294901760
    %v5299 = vsub.f32 %v151, %v5298
    %v5300 = vand.u32 %v5299, 4294901760
    %v5301 = vsub.f32 %v5299, %v5300
    %v5302 = vand.u32 %v5301, 4294901760
    %5303 = vmatpush1.msra.mxu0 %v5302
    %5304 = vmatprep.subr.mxu0 0.0
    %v5305 = vand.u32 %v152, 4294901760
    %v5306 = vsub.f32 %v152, %v5305
    %v5307 = vand.u32 %v5306, 4294901760
    %v5308 = vsub.f32 %v5306, %v5307
    %v5309 = vand.u32 %v5308, 4294901760
    %5310 = vmatpush1.msra.mxu0 %v5309
    %5311 = vmatprep.subr.mxu0 0.0
    %v5312 = vand.u32 %v153, 4294901760
    %v5313 = vsub.f32 %v153, %v5312
    %v5314 = vand.u32 %v5313, 4294901760
    %v5315 = vsub.f32 %v5313, %v5314
    %v5316 = vand.u32 %v5315, 4294901760
    %5317 = vmatpush1.msra.mxu0 %v5316
    %5318 = vmatprep.subr.mxu0 0.0
    %v5319 = vand.u32 %v154, 4294901760
    %v5320 = vsub.f32 %v154, %v5319
    %v5321 = vand.u32 %v5320, 4294901760
    %v5322 = vsub.f32 %v5320, %v5321
    %v5323 = vand.u32 %v5322, 4294901760
    %5324 = vmatpush1.msra.mxu0 %v5323
    %5325 = vmatprep.subr.mxu0 0.0
    %v5326 = vand.u32 %v155, 4294901760
    %v5327 = vsub.f32 %v155, %v5326
    %v5328 = vand.u32 %v5327, 4294901760
    %v5329 = vsub.f32 %v5327, %v5328
    %v5330 = vand.u32 %v5329, 4294901760
    %5331 = vmatpush1.msra.mxu0 %v5330
    %5332 = vmatprep.subr.mxu0 0.0
    %v5333 = vand.u32 %v156, 4294901760
    %v5334 = vsub.f32 %v156, %v5333
    %v5335 = vand.u32 %v5334, 4294901760
    %v5336 = vsub.f32 %v5334, %v5335
    %v5337 = vand.u32 %v5336, 4294901760
    %5338 = vmatpush1.msra.mxu0 %v5337
    %5339 = vmatprep.subr.mxu0 0.0
    %v5340 = vand.u32 %v157, 4294901760
    %v5341 = vsub.f32 %v157, %v5340
    %v5342 = vand.u32 %v5341, 4294901760
    %v5343 = vsub.f32 %v5341, %v5342
    %v5344 = vand.u32 %v5343, 4294901760
    %5345 = vmatpush1.msra.mxu0 %v5344
    %5346 = vmatprep.subr.mxu0 0.0
    %v5347 = vand.u32 %v158, 4294901760
    %v5348 = vsub.f32 %v158, %v5347
    %v5349 = vand.u32 %v5348, 4294901760
    %v5350 = vsub.f32 %v5348, %v5349
    %v5351 = vand.u32 %v5350, 4294901760
    %5352 = vmatpush1.msra.mxu0 %v5351
    %5353 = vmatprep.subr.mxu0 0.0
    %v5354 = vand.u32 %v159, 4294901760
    %v5355 = vsub.f32 %v159, %v5354
    %v5356 = vand.u32 %v5355, 4294901760
    %v5357 = vsub.f32 %v5355, %v5356
    %v5358 = vand.u32 %v5357, 4294901760
    %5359 = vmatpush1.msra.mxu0 %v5358
    %5360 = vmatprep.subr.mxu0 0.0
    %v5361 = vand.u32 %v160, 4294901760
    %v5362 = vsub.f32 %v160, %v5361
    %v5363 = vand.u32 %v5362, 4294901760
    %v5364 = vsub.f32 %v5362, %v5363
    %v5365 = vand.u32 %v5364, 4294901760
    %5366 = vmatpush1.msra.mxu0 %v5365
    %5367 = vmatprep.subr.mxu0 0.0
    %v5368 = vand.u32 %v161, 4294901760
    %v5369 = vsub.f32 %v161, %v5368
    %v5370 = vand.u32 %v5369, 4294901760
    %v5371 = vsub.f32 %v5369, %v5370
    %v5372 = vand.u32 %v5371, 4294901760
    %5373 = vmatpush1.msra.mxu0 %v5372
    %v5374 = vand.u32 %v50, 4294901760
    %5375 = vmatprep.mubr.f32.mxu0 %v5374
    %v5376 = vand.u32 %v49, 4294901760
    %5377 = vmatmul.mubr.f32.gmra.mrb[0].mxu0 %v5376
    %v5378 = vpop.f32.mrb[0].mxu0
    %v5379 = vadd.f32 %v5147, %v5378
    %v5380 = vpop.f32.mrb[0].mxu0
    %5381 = vdwg.mxu0
    %5382 = vmatprep.subr.mxu0 0.0
    %v5383 = vand.u32 %v130, 4294901760
    %v5384 = vsub.f32 %v130, %v5383
    %5385 = vmatpush1.msra.mxu0 %v5384
    %5386 = vmatprep.subr.mxu0 0.0
    %v5387 = vand.u32 %v131, 4294901760
    %v5388 = vsub.f32 %v131, %v5387
    %5389 = vmatpush1.msra.mxu0 %v5388
    %5390 = vmatprep.subr.mxu0 0.0
    %v5391 = vand.u32 %v132, 4294901760
    %v5392 = vsub.f32 %v132, %v5391
    %5393 = vmatpush1.msra.mxu0 %v5392
    %5394 = vmatprep.subr.mxu0 0.0
    %v5395 = vand.u32 %v133, 4294901760
    %v5396 = vsub.f32 %v133, %v5395
    %5397 = vmatpush1.msra.mxu0 %v5396
    %5398 = vmatprep.subr.mxu0 0.0
    %v5399 = vand.u32 %v134, 4294901760
    %v5400 = vsub.f32 %v134, %v5399
    %5401 = vmatpush1.msra.mxu0 %v5400
    %5402 = vmatprep.subr.mxu0 0.0
    %v5403 = vand.u32 %v135, 4294901760
    %v5404 = vsub.f32 %v135, %v5403
    %5405 = vmatpush1.msra.mxu0 %v5404
    %5406 = vmatprep.subr.mxu0 0.0
    %v5407 = vand.u32 %v136, 4294901760
    %v5408 = vsub.f32 %v136, %v5407
    %5409 = vmatpush1.msra.mxu0 %v5408
    %5410 = vmatprep.subr.mxu0 0.0
    %v5411 = vand.u32 %v137, 4294901760
    %v5412 = vsub.f32 %v137, %v5411
    %5413 = vmatpush1.msra.mxu0 %v5412
    %5414 = vmatprep.subr.mxu0 0.0
    %v5415 = vand.u32 %v138, 4294901760
    %v5416 = vsub.f32 %v138, %v5415
    %5417 = vmatpush1.msra.mxu0 %v5416
    %5418 = vmatprep.subr.mxu0 0.0
    %v5419 = vand.u32 %v139, 4294901760
    %v5420 = vsub.f32 %v139, %v5419
    %5421 = vmatpush1.msra.mxu0 %v5420
    %5422 = vmatprep.subr.mxu0 0.0
    %v5423 = vand.u32 %v140, 4294901760
    %v5424 = vsub.f32 %v140, %v5423
    %5425 = vmatpush1.msra.mxu0 %v5424
    %5426 = vmatprep.subr.mxu0 0.0
    %v5427 = vand.u32 %v141, 4294901760
    %v5428 = vsub.f32 %v141, %v5427
    %5429 = vmatpush1.msra.mxu0 %v5428
    %5430 = vmatprep.subr.mxu0 0.0
    %v5431 = vand.u32 %v142, 4294901760
    %v5432 = vsub.f32 %v142, %v5431
    %5433 = vmatpush1.msra.mxu0 %v5432
    %5434 = vmatprep.subr.mxu0 0.0
    %v5435 = vand.u32 %v143, 4294901760
    %v5436 = vsub.f32 %v143, %v5435
    %5437 = vmatpush1.msra.mxu0 %v5436
    %5438 = vmatprep.subr.mxu0 0.0
    %v5439 = vand.u32 %v144, 4294901760
    %v5440 = vsub.f32 %v144, %v5439
    %5441 = vmatpush1.msra.mxu0 %v5440
    %5442 = vmatprep.subr.mxu0 0.0
    %v5443 = vand.u32 %v145, 4294901760
    %v5444 = vsub.f32 %v145, %v5443
    %5445 = vmatpush1.msra.mxu0 %v5444
    %5446 = vmatprep.subr.mxu0 0.0
    %v5447 = vand.u32 %v146, 4294901760
    %v5448 = vsub.f32 %v146, %v5447
    %5449 = vmatpush1.msra.mxu0 %v5448
    %5450 = vmatprep.subr.mxu0 0.0
    %v5451 = vand.u32 %v147, 4294901760
    %v5452 = vsub.f32 %v147, %v5451
    %5453 = vmatpush1.msra.mxu0 %v5452
    %5454 = vmatprep.subr.mxu0 0.0
    %v5455 = vand.u32 %v148, 4294901760
    %v5456 = vsub.f32 %v148, %v5455
    %5457 = vmatpush1.msra.mxu0 %v5456
    %5458 = vmatprep.subr.mxu0 0.0
    %v5459 = vand.u32 %v149, 4294901760
    %v5460 = vsub.f32 %v149, %v5459
    %5461 = vmatpush1.msra.mxu0 %v5460
    %5462 = vmatprep.subr.mxu0 0.0
    %v5463 = vand.u32 %v150, 4294901760
    %v5464 = vsub.f32 %v150, %v5463
    %5465 = vmatpush1.msra.mxu0 %v5464
    %5466 = vmatprep.subr.mxu0 0.0
    %v5467 = vand.u32 %v151, 4294901760
    %v5468 = vsub.f32 %v151, %v5467
    %5469 = vmatpush1.msra.mxu0 %v5468
    %5470 = vmatprep.subr.mxu0 0.0
    %v5471 = vand.u32 %v152, 4294901760
    %v5472 = vsub.f32 %v152, %v5471
    %5473 = vmatpush1.msra.mxu0 %v5472
    %5474 = vmatprep.subr.mxu0 0.0
    %v5475 = vand.u32 %v153, 4294901760
    %v5476 = vsub.f32 %v153, %v5475
    %5477 = vmatpush1.msra.mxu0 %v5476
    %5478 = vmatprep.subr.mxu0 0.0
    %v5479 = vand.u32 %v154, 4294901760
    %v5480 = vsub.f32 %v154, %v5479
    %5481 = vmatpush1.msra.mxu0 %v5480
    %5482 = vmatprep.subr.mxu0 0.0
    %v5483 = vand.u32 %v155, 4294901760
    %v5484 = vsub.f32 %v155, %v5483
    %5485 = vmatpush1.msra.mxu0 %v5484
    %5486 = vmatprep.subr.mxu0 0.0
    %v5487 = vand.u32 %v156, 4294901760
    %v5488 = vsub.f32 %v156, %v5487
    %5489 = vmatpush1.msra.mxu0 %v5488
    %5490 = vmatprep.subr.mxu0 0.0
    %v5491 = vand.u32 %v157, 4294901760
    %v5492 = vsub.f32 %v157, %v5491
    %5493 = vmatpush1.msra.mxu0 %v5492
    %5494 = vmatprep.subr.mxu0 0.0
    %v5495 = vand.u32 %v158, 4294901760
    %v5496 = vsub.f32 %v158, %v5495
    %5497 = vmatpush1.msra.mxu0 %v5496
    %5498 = vmatprep.subr.mxu0 0.0
    %v5499 = vand.u32 %v159, 4294901760
    %v5500 = vsub.f32 %v159, %v5499
    %5501 = vmatpush1.msra.mxu0 %v5500
    %5502 = vmatprep.subr.mxu0 0.0
    %v5503 = vand.u32 %v160, 4294901760
    %v5504 = vsub.f32 %v160, %v5503
    %5505 = vmatpush1.msra.mxu0 %v5504
    %5506 = vmatprep.subr.mxu0 0.0
    %v5507 = vand.u32 %v161, 4294901760
    %v5508 = vsub.f32 %v161, %v5507
    %5509 = vmatpush1.msra.mxu0 %v5508
    %v5510 = vand.u32 %v50, 4294901760
    %v5511 = vsub.f32 %v50, %v5510
    %5512 = vmatprep.mubr.f32.mxu0 %v5511
    %v5513 = vand.u32 %v49, 4294901760
    %v5514 = vsub.f32 %v49, %v5513
    %5515 = vmatmul.mubr.f32.gmra.mrb[0].mxu0 %v5514
    %v5516 = vpop.f32.mrb[0].mxu0
    %v5517 = vadd.f32 %v5379, %v5516
    %v5518 = vpop.f32.mrb[0].mxu0
    %5519 = vdwg.mxu0
    %5520 = vmatprep.subr.mxu0 0.0
    %v5521 = vand.u32 %v130, 4294901760
    %5522 = vmatpush1.msra.mxu0 %v5521
    %5523 = vmatprep.subr.mxu0 0.0
    %v5524 = vand.u32 %v131, 4294901760
    %5525 = vmatpush1.msra.mxu0 %v5524
    %5526 = vmatprep.subr.mxu0 0.0
    %v5527 = vand.u32 %v132, 4294901760
    %5528 = vmatpush1.msra.mxu0 %v5527
    %5529 = vmatprep.subr.mxu0 0.0
    %v5530 = vand.u32 %v133, 4294901760
    %5531 = vmatpush1.msra.mxu0 %v5530
    %5532 = vmatprep.subr.mxu0 0.0
    %v5533 = vand.u32 %v134, 4294901760
    %5534 = vmatpush1.msra.mxu0 %v5533
    %5535 = vmatprep.subr.mxu0 0.0
    %v5536 = vand.u32 %v135, 4294901760
    %5537 = vmatpush1.msra.mxu0 %v5536
    %5538 = vmatprep.subr.mxu0 0.0
    %v5539 = vand.u32 %v136, 4294901760
    %5540 = vmatpush1.msra.mxu0 %v5539
    %5541 = vmatprep.subr.mxu0 0.0
    %v5542 = vand.u32 %v137, 4294901760
    %5543 = vmatpush1.msra.mxu0 %v5542
    %5544 = vmatprep.subr.mxu0 0.0
    %v5545 = vand.u32 %v138, 4294901760
    %5546 = vmatpush1.msra.mxu0 %v5545
    %5547 = vmatprep.subr.mxu0 0.0
    %v5548 = vand.u32 %v139, 4294901760
    %5549 = vmatpush1.msra.mxu0 %v5548
    %5550 = vmatprep.subr.mxu0 0.0
    %v5551 = vand.u32 %v140, 4294901760
    %5552 = vmatpush1.msra.mxu0 %v5551
    %5553 = vmatprep.subr.mxu0 0.0
    %v5554 = vand.u32 %v141, 4294901760
    %5555 = vmatpush1.msra.mxu0 %v5554
    %5556 = vmatprep.subr.mxu0 0.0
    %v5557 = vand.u32 %v142, 4294901760
    %5558 = vmatpush1.msra.mxu0 %v5557
    %5559 = vmatprep.subr.mxu0 0.0
    %v5560 = vand.u32 %v143, 4294901760
    %5561 = vmatpush1.msra.mxu0 %v5560
    %5562 = vmatprep.subr.mxu0 0.0
    %v5563 = vand.u32 %v144, 4294901760
    %5564 = vmatpush1.msra.mxu0 %v5563
    %5565 = vmatprep.subr.mxu0 0.0
    %v5566 = vand.u32 %v145, 4294901760
    %5567 = vmatpush1.msra.mxu0 %v5566
    %5568 = vmatprep.subr.mxu0 0.0
    %v5569 = vand.u32 %v146, 4294901760
    %5570 = vmatpush1.msra.mxu0 %v5569
    %5571 = vmatprep.subr.mxu0 0.0
    %v5572 = vand.u32 %v147, 4294901760
    %5573 = vmatpush1.msra.mxu0 %v5572
    %5574 = vmatprep.subr.mxu0 0.0
    %v5575 = vand.u32 %v148, 4294901760
    %5576 = vmatpush1.msra.mxu0 %v5575
    %5577 = vmatprep.subr.mxu0 0.0
    %v5578 = vand.u32 %v149, 4294901760
    %5579 = vmatpush1.msra.mxu0 %v5578
    %5580 = vmatprep.subr.mxu0 0.0
    %v5581 = vand.u32 %v150, 4294901760
    %5582 = vmatpush1.msra.mxu0 %v5581
    %5583 = vmatprep.subr.mxu0 0.0
    %v5584 = vand.u32 %v151, 4294901760
    %5585 = vmatpush1.msra.mxu0 %v5584
    %5586 = vmatprep.subr.mxu0 0.0
    %v5587 = vand.u32 %v152, 4294901760
    %5588 = vmatpush1.msra.mxu0 %v5587
    %5589 = vmatprep.subr.mxu0 0.0
    %v5590 = vand.u32 %v153, 4294901760
    %5591 = vmatpush1.msra.mxu0 %v5590
    %5592 = vmatprep.subr.mxu0 0.0
    %v5593 = vand.u32 %v154, 4294901760
    %5594 = vmatpush1.msra.mxu0 %v5593
    %5595 = vmatprep.subr.mxu0 0.0
    %v5596 = vand.u32 %v155, 4294901760
    %5597 = vmatpush1.msra.mxu0 %v5596
    %5598 = vmatprep.subr.mxu0 0.0
    %v5599 = vand.u32 %v156, 4294901760
    %5600 = vmatpush1.msra.mxu0 %v5599
    %5601 = vmatprep.subr.mxu0 0.0
    %v5602 = vand.u32 %v157, 4294901760
    %5603 = vmatpush1.msra.mxu0 %v5602
    %5604 = vmatprep.subr.mxu0 0.0
    %v5605 = vand.u32 %v158, 4294901760
    %5606 = vmatpush1.msra.mxu0 %v5605
    %5607 = vmatprep.subr.mxu0 0.0
    %v5608 = vand.u32 %v159, 4294901760
    %5609 = vmatpush1.msra.mxu0 %v5608
    %5610 = vmatprep.subr.mxu0 0.0
    %v5611 = vand.u32 %v160, 4294901760
    %5612 = vmatpush1.msra.mxu0 %v5611
    %5613 = vmatprep.subr.mxu0 0.0
    %v5614 = vand.u32 %v161, 4294901760
    %5615 = vmatpush1.msra.mxu0 %v5614
    %v5616 = vand.u32 %v50, 4294901760
    %v5617 = vsub.f32 %v50, %v5616
    %v5618 = vand.u32 %v5617, 4294901760
    %5619 = vmatprep.mubr.f32.mxu0 %v5618
    %v5620 = vand.u32 %v49, 4294901760
    %v5621 = vsub.f32 %v49, %v5620
    %v5622 = vand.u32 %v5621, 4294901760
    %5623 = vmatmul.mubr.f32.gmra.mrb[0].mxu0 %v5622
    %v5624 = vpop.f32.mrb[0].mxu0
    %v5625 = vadd.f32 %v5517, %v5624
    %v5626 = vpop.f32.mrb[0].mxu0
    %5627 = vdwg.mxu0
    %5628 = vmatprep.subr.mxu0 0.0
    %v5629 = vand.u32 %v130, 4294901760
    %v5630 = vsub.f32 %v130, %v5629
    %v5631 = vand.u32 %v5630, 4294901760
    %5632 = vmatpush1.msra.mxu0 %v5631
    %5633 = vmatprep.subr.mxu0 0.0
    %v5634 = vand.u32 %v131, 4294901760
    %v5635 = vsub.f32 %v131, %v5634
    %v5636 = vand.u32 %v5635, 4294901760
    %5637 = vmatpush1.msra.mxu0 %v5636
    %5638 = vmatprep.subr.mxu0 0.0
    %v5639 = vand.u32 %v132, 4294901760
    %v5640 = vsub.f32 %v132, %v5639
    %v5641 = vand.u32 %v5640, 4294901760
    %5642 = vmatpush1.msra.mxu0 %v5641
    %5643 = vmatprep.subr.mxu0 0.0
    %v5644 = vand.u32 %v133, 4294901760
    %v5645 = vsub.f32 %v133, %v5644
    %v5646 = vand.u32 %v5645, 4294901760
    %5647 = vmatpush1.msra.mxu0 %v5646
    %5648 = vmatprep.subr.mxu0 0.0
    %v5649 = vand.u32 %v134, 4294901760
    %v5650 = vsub.f32 %v134, %v5649
    %v5651 = vand.u32 %v5650, 4294901760
    %5652 = vmatpush1.msra.mxu0 %v5651
    %5653 = vmatprep.subr.mxu0 0.0
    %v5654 = vand.u32 %v135, 4294901760
    %v5655 = vsub.f32 %v135, %v5654
    %v5656 = vand.u32 %v5655, 4294901760
    %5657 = vmatpush1.msra.mxu0 %v5656
    %5658 = vmatprep.subr.mxu0 0.0
    %v5659 = vand.u32 %v136, 4294901760
    %v5660 = vsub.f32 %v136, %v5659
    %v5661 = vand.u32 %v5660, 4294901760
    %5662 = vmatpush1.msra.mxu0 %v5661
    %5663 = vmatprep.subr.mxu0 0.0
    %v5664 = vand.u32 %v137, 4294901760
    %v5665 = vsub.f32 %v137, %v5664
    %v5666 = vand.u32 %v5665, 4294901760
    %5667 = vmatpush1.msra.mxu0 %v5666
    %5668 = vmatprep.subr.mxu0 0.0
    %v5669 = vand.u32 %v138, 4294901760
    %v5670 = vsub.f32 %v138, %v5669
    %v5671 = vand.u32 %v5670, 4294901760
    %5672 = vmatpush1.msra.mxu0 %v5671
    %5673 = vmatprep.subr.mxu0 0.0
    %v5674 = vand.u32 %v139, 4294901760
    %v5675 = vsub.f32 %v139, %v5674
    %v5676 = vand.u32 %v5675, 4294901760
    %5677 = vmatpush1.msra.mxu0 %v5676
    %5678 = vmatprep.subr.mxu0 0.0
    %v5679 = vand.u32 %v140, 4294901760
    %v5680 = vsub.f32 %v140, %v5679
    %v5681 = vand.u32 %v5680, 4294901760
    %5682 = vmatpush1.msra.mxu0 %v5681
    %5683 = vmatprep.subr.mxu0 0.0
    %v5684 = vand.u32 %v141, 4294901760
    %v5685 = vsub.f32 %v141, %v5684
    %v5686 = vand.u32 %v5685, 4294901760
    %5687 = vmatpush1.msra.mxu0 %v5686
    %5688 = vmatprep.subr.mxu0 0.0
    %v5689 = vand.u32 %v142, 4294901760
    %v5690 = vsub.f32 %v142, %v5689
    %v5691 = vand.u32 %v5690, 4294901760
    %5692 = vmatpush1.msra.mxu0 %v5691
    %5693 = vmatprep.subr.mxu0 0.0
    %v5694 = vand.u32 %v143, 4294901760
    %v5695 = vsub.f32 %v143, %v5694
    %v5696 = vand.u32 %v5695, 4294901760
    %5697 = vmatpush1.msra.mxu0 %v5696
    %5698 = vmatprep.subr.mxu0 0.0
    %v5699 = vand.u32 %v144, 4294901760
    %v5700 = vsub.f32 %v144, %v5699
    %v5701 = vand.u32 %v5700, 4294901760
    %5702 = vmatpush1.msra.mxu0 %v5701
    %5703 = vmatprep.subr.mxu0 0.0
    %v5704 = vand.u32 %v145, 4294901760
    %v5705 = vsub.f32 %v145, %v5704
    %v5706 = vand.u32 %v5705, 4294901760
    %5707 = vmatpush1.msra.mxu0 %v5706
    %5708 = vmatprep.subr.mxu0 0.0
    %v5709 = vand.u32 %v146, 4294901760
    %v5710 = vsub.f32 %v146, %v5709
    %v5711 = vand.u32 %v5710, 4294901760
    %5712 = vmatpush1.msra.mxu0 %v5711
    %5713 = vmatprep.subr.mxu0 0.0
    %v5714 = vand.u32 %v147, 4294901760
    %v5715 = vsub.f32 %v147, %v5714
    %v5716 = vand.u32 %v5715, 4294901760
    %5717 = vmatpush1.msra.mxu0 %v5716
    %5718 = vmatprep.subr.mxu0 0.0
    %v5719 = vand.u32 %v148, 4294901760
    %v5720 = vsub.f32 %v148, %v5719
    %v5721 = vand.u32 %v5720, 4294901760
    %5722 = vmatpush1.msra.mxu0 %v5721
    %5723 = vmatprep.subr.mxu0 0.0
    %v5724 = vand.u32 %v149, 4294901760
    %v5725 = vsub.f32 %v149, %v5724
    %v5726 = vand.u32 %v5725, 4294901760
    %5727 = vmatpush1.msra.mxu0 %v5726
    %5728 = vmatprep.subr.mxu0 0.0
    %v5729 = vand.u32 %v150, 4294901760
    %v5730 = vsub.f32 %v150, %v5729
    %v5731 = vand.u32 %v5730, 4294901760
    %5732 = vmatpush1.msra.mxu0 %v5731
    %5733 = vmatprep.subr.mxu0 0.0
    %v5734 = vand.u32 %v151, 4294901760
    %v5735 = vsub.f32 %v151, %v5734
    %v5736 = vand.u32 %v5735, 4294901760
    %5737 = vmatpush1.msra.mxu0 %v5736
    %5738 = vmatprep.subr.mxu0 0.0
    %v5739 = vand.u32 %v152, 4294901760
    %v5740 = vsub.f32 %v152, %v5739
    %v5741 = vand.u32 %v5740, 4294901760
    %5742 = vmatpush1.msra.mxu0 %v5741
    %5743 = vmatprep.subr.mxu0 0.0
    %v5744 = vand.u32 %v153, 4294901760
    %v5745 = vsub.f32 %v153, %v5744
    %v5746 = vand.u32 %v5745, 4294901760
    %5747 = vmatpush1.msra.mxu0 %v5746
    %5748 = vmatprep.subr.mxu0 0.0
    %v5749 = vand.u32 %v154, 4294901760
    %v5750 = vsub.f32 %v154, %v5749
    %v5751 = vand.u32 %v5750, 4294901760
    %5752 = vmatpush1.msra.mxu0 %v5751
    %5753 = vmatprep.subr.mxu0 0.0
    %v5754 = vand.u32 %v155, 4294901760
    %v5755 = vsub.f32 %v155, %v5754
    %v5756 = vand.u32 %v5755, 4294901760
    %5757 = vmatpush1.msra.mxu0 %v5756
    %5758 = vmatprep.subr.mxu0 0.0
    %v5759 = vand.u32 %v156, 4294901760
    %v5760 = vsub.f32 %v156, %v5759
    %v5761 = vand.u32 %v5760, 4294901760
    %5762 = vmatpush1.msra.mxu0 %v5761
    %5763 = vmatprep.subr.mxu0 0.0
    %v5764 = vand.u32 %v157, 4294901760
    %v5765 = vsub.f32 %v157, %v5764
    %v5766 = vand.u32 %v5765, 4294901760
    %5767 = vmatpush1.msra.mxu0 %v5766
    %5768 = vmatprep.subr.mxu0 0.0
    %v5769 = vand.u32 %v158, 4294901760
    %v5770 = vsub.f32 %v158, %v5769
    %v5771 = vand.u32 %v5770, 4294901760
    %5772 = vmatpush1.msra.mxu0 %v5771
    %5773 = vmatprep.subr.mxu0 0.0
    %v5774 = vand.u32 %v159, 4294901760
    %v5775 = vsub.f32 %v159, %v5774
    %v5776 = vand.u32 %v5775, 4294901760
    %5777 = vmatpush1.msra.mxu0 %v5776
    %5778 = vmatprep.subr.mxu0 0.0
    %v5779 = vand.u32 %v160, 4294901760
    %v5780 = vsub.f32 %v160, %v5779
    %v5781 = vand.u32 %v5780, 4294901760
    %5782 = vmatpush1.msra.mxu0 %v5781
    %5783 = vmatprep.subr.mxu0 0.0
    %v5784 = vand.u32 %v161, 4294901760
    %v5785 = vsub.f32 %v161, %v5784
    %v5786 = vand.u32 %v5785, 4294901760
    %5787 = vmatpush1.msra.mxu0 %v5786
    %v5788 = vand.u32 %v50, 4294901760
    %5789 = vmatprep.mubr.f32.mxu0 %v5788
    %v5790 = vand.u32 %v49, 4294901760
    %5791 = vmatmul.mubr.f32.gmra.mrb[0].mxu0 %v5790
    %v5792 = vpop.f32.mrb[0].mxu0
    %v5793 = vadd.f32 %v5625, %v5792
    %v5794 = vpop.f32.mrb[0].mxu0
    %5795 = vdwg.mxu0
    %5796 = vmatprep.subr.mxu0 0.0
    %v5797 = vand.u32 %v130, 4294901760
    %5798 = vmatpush1.msra.mxu0 %v5797
    %5799 = vmatprep.subr.mxu0 0.0
    %v5800 = vand.u32 %v131, 4294901760
    %5801 = vmatpush1.msra.mxu0 %v5800
    %5802 = vmatprep.subr.mxu0 0.0
    %v5803 = vand.u32 %v132, 4294901760
    %5804 = vmatpush1.msra.mxu0 %v5803
    %5805 = vmatprep.subr.mxu0 0.0
    %v5806 = vand.u32 %v133, 4294901760
    %5807 = vmatpush1.msra.mxu0 %v5806
    %5808 = vmatprep.subr.mxu0 0.0
    %v5809 = vand.u32 %v134, 4294901760
    %5810 = vmatpush1.msra.mxu0 %v5809
    %5811 = vmatprep.subr.mxu0 0.0
    %v5812 = vand.u32 %v135, 4294901760
    %5813 = vmatpush1.msra.mxu0 %v5812
    %5814 = vmatprep.subr.mxu0 0.0
    %v5815 = vand.u32 %v136, 4294901760
    %5816 = vmatpush1.msra.mxu0 %v5815
    %5817 = vmatprep.subr.mxu0 0.0
    %v5818 = vand.u32 %v137, 4294901760
    %5819 = vmatpush1.msra.mxu0 %v5818
    %5820 = vmatprep.subr.mxu0 0.0
    %v5821 = vand.u32 %v138, 4294901760
    %5822 = vmatpush1.msra.mxu0 %v5821
    %5823 = vmatprep.subr.mxu0 0.0
    %v5824 = vand.u32 %v139, 4294901760
    %5825 = vmatpush1.msra.mxu0 %v5824
    %5826 = vmatprep.subr.mxu0 0.0
    %v5827 = vand.u32 %v140, 4294901760
    %5828 = vmatpush1.msra.mxu0 %v5827
    %5829 = vmatprep.subr.mxu0 0.0
    %v5830 = vand.u32 %v141, 4294901760
    %5831 = vmatpush1.msra.mxu0 %v5830
    %5832 = vmatprep.subr.mxu0 0.0
    %v5833 = vand.u32 %v142, 4294901760
    %5834 = vmatpush1.msra.mxu0 %v5833
    %5835 = vmatprep.subr.mxu0 0.0
    %v5836 = vand.u32 %v143, 4294901760
    %5837 = vmatpush1.msra.mxu0 %v5836
    %5838 = vmatprep.subr.mxu0 0.0
    %v5839 = vand.u32 %v144, 4294901760
    %5840 = vmatpush1.msra.mxu0 %v5839
    %5841 = vmatprep.subr.mxu0 0.0
    %v5842 = vand.u32 %v145, 4294901760
    %5843 = vmatpush1.msra.mxu0 %v5842
    %5844 = vmatprep.subr.mxu0 0.0
    %v5845 = vand.u32 %v146, 4294901760
    %5846 = vmatpush1.msra.mxu0 %v5845
    %5847 = vmatprep.subr.mxu0 0.0
    %v5848 = vand.u32 %v147, 4294901760
    %5849 = vmatpush1.msra.mxu0 %v5848
    %5850 = vmatprep.subr.mxu0 0.0
    %v5851 = vand.u32 %v148, 4294901760
    %5852 = vmatpush1.msra.mxu0 %v5851
    %5853 = vmatprep.subr.mxu0 0.0
    %v5854 = vand.u32 %v149, 4294901760
    %5855 = vmatpush1.msra.mxu0 %v5854
    %5856 = vmatprep.subr.mxu0 0.0
    %v5857 = vand.u32 %v150, 4294901760
    %5858 = vmatpush1.msra.mxu0 %v5857
    %5859 = vmatprep.subr.mxu0 0.0
    %v5860 = vand.u32 %v151, 4294901760
    %5861 = vmatpush1.msra.mxu0 %v5860
    %5862 = vmatprep.subr.mxu0 0.0
    %v5863 = vand.u32 %v152, 4294901760
    %5864 = vmatpush1.msra.mxu0 %v5863
    %5865 = vmatprep.subr.mxu0 0.0
    %v5866 = vand.u32 %v153, 4294901760
    %5867 = vmatpush1.msra.mxu0 %v5866
    %5868 = vmatprep.subr.mxu0 0.0
    %v5869 = vand.u32 %v154, 4294901760
    %5870 = vmatpush1.msra.mxu0 %v5869
    %5871 = vmatprep.subr.mxu0 0.0
    %v5872 = vand.u32 %v155, 4294901760
    %5873 = vmatpush1.msra.mxu0 %v5872
    %5874 = vmatprep.subr.mxu0 0.0
    %v5875 = vand.u32 %v156, 4294901760
    %5876 = vmatpush1.msra.mxu0 %v5875
    %5877 = vmatprep.subr.mxu0 0.0
    %v5878 = vand.u32 %v157, 4294901760
    %5879 = vmatpush1.msra.mxu0 %v5878
    %5880 = vmatprep.subr.mxu0 0.0
    %v5881 = vand.u32 %v158, 4294901760
    %5882 = vmatpush1.msra.mxu0 %v5881
    %5883 = vmatprep.subr.mxu0 0.0
    %v5884 = vand.u32 %v159, 4294901760
    %5885 = vmatpush1.msra.mxu0 %v5884
    %5886 = vmatprep.subr.mxu0 0.0
    %v5887 = vand.u32 %v160, 4294901760
    %5888 = vmatpush1.msra.mxu0 %v5887
    %5889 = vmatprep.subr.mxu0 0.0
    %v5890 = vand.u32 %v161, 4294901760
    %5891 = vmatpush1.msra.mxu0 %v5890
    %v5892 = vand.u32 %v50, 4294901760
    %5893 = vmatprep.mubr.f32.mxu0 %v5892
    %v5894 = vand.u32 %v49, 4294901760
    %5895 = vmatmul.mubr.f32.gmra.mrb[0].mxu0 %v5894
    %v5896 = vpop.f32.mrb[0].mxu0
    %v5897 = vadd.f32 %v5793, %v5896
    %v5898 = vpop.f32.mrb[0].mxu0
    %5899 = vdwg.mxu0
    %5900 = vmatprep.subr.mxu0 0.0
    %v5901 = vand.u32 %v162, 4294901760
    %5902 = vmatpush1.msra.mxu0 %v5901
    %5903 = vmatprep.subr.mxu0 0.0
    %v5904 = vand.u32 %v163, 4294901760
    %5905 = vmatpush1.msra.mxu0 %v5904
    %5906 = vmatprep.subr.mxu0 0.0
    %5907 = vmatpush1.msra.mxu0 0.0
    %5908 = vmatprep.subr.mxu0 0.0
    %5909 = vmatpush1.msra.mxu0 0.0
    %5910 = vmatprep.subr.mxu0 0.0
    %5911 = vmatpush1.msra.mxu0 0.0
    %5912 = vmatprep.subr.mxu0 0.0
    %5913 = vmatpush1.msra.mxu0 0.0
    %5914 = vmatprep.subr.mxu0 0.0
    %5915 = vmatpush1.msra.mxu0 0.0
    %5916 = vmatprep.subr.mxu0 0.0
    %5917 = vmatpush1.msra.mxu0 0.0
    %5918 = vmatprep.subr.mxu0 0.0
    %5919 = vmatpush1.msra.mxu0 0.0
    %5920 = vmatprep.subr.mxu0 0.0
    %5921 = vmatpush1.msra.mxu0 0.0
    %5922 = vmatprep.subr.mxu0 0.0
    %5923 = vmatpush1.msra.mxu0 0.0
    %5924 = vmatprep.subr.mxu0 0.0
    %5925 = vmatpush1.msra.mxu0 0.0
    %5926 = vmatprep.subr.mxu0 0.0
    %5927 = vmatpush1.msra.mxu0 0.0
    %5928 = vmatprep.subr.mxu0 0.0
    %5929 = vmatpush1.msra.mxu0 0.0
    %5930 = vmatprep.subr.mxu0 0.0
    %5931 = vmatpush1.msra.mxu0 0.0
    %5932 = vmatprep.subr.mxu0 0.0
    %5933 = vmatpush1.msra.mxu0 0.0
    %5934 = vmatprep.subr.mxu0 0.0
    %5935 = vmatpush1.msra.mxu0 0.0
    %5936 = vmatprep.subr.mxu0 0.0
    %5937 = vmatpush1.msra.mxu0 0.0
    %5938 = vmatprep.subr.mxu0 0.0
    %5939 = vmatpush1.msra.mxu0 0.0
    %5940 = vmatprep.subr.mxu0 0.0
    %5941 = vmatpush1.msra.mxu0 0.0
    %5942 = vmatprep.subr.mxu0 0.0
    %5943 = vmatpush1.msra.mxu0 0.0
    %5944 = vmatprep.subr.mxu0 0.0
    %5945 = vmatpush1.msra.mxu0 0.0
    %5946 = vmatprep.subr.mxu0 0.0
    %5947 = vmatpush1.msra.mxu0 0.0
    %5948 = vmatprep.subr.mxu0 0.0
    %5949 = vmatpush1.msra.mxu0 0.0
    %5950 = vmatprep.subr.mxu0 0.0
    %5951 = vmatpush1.msra.mxu0 0.0
    %5952 = vmatprep.subr.mxu0 0.0
    %5953 = vmatpush1.msra.mxu0 0.0
    %5954 = vmatprep.subr.mxu0 0.0
    %5955 = vmatpush1.msra.mxu0 0.0
    %5956 = vmatprep.subr.mxu0 0.0
    %5957 = vmatpush1.msra.mxu0 0.0
    %5958 = vmatprep.subr.mxu0 0.0
    %5959 = vmatpush1.msra.mxu0 0.0
    %5960 = vmatprep.subr.mxu0 0.0
    %5961 = vmatpush1.msra.mxu0 0.0
    %5962 = vmatprep.subr.mxu0 0.0
    %5963 = vmatpush1.msra.mxu0 0.0
    %5964 = vmatprep.subr.mxu0 0.0
    %5965 = vmatpush1.msra.mxu0 0.0
    %5966 = vmatprep.mubr.f32.mxu0 0.0
    %v5967 = vand.u32 %v3312, 4294901760
    %v5968 = vsub.f32 %v3312, %v5967
    %v5969 = vand.u32 %v5968, 4294901760
    %v5970 = vsub.f32 %v5968, %v5969
    %v5971 = vand.u32 %v5970, 4294901760
    %5972 = vmatmul.mubr.f32.gmra.mrb[0].mxu0 %v5971
    %v5973 = vpop.f32.mrb[0].mxu0
    %v5974 = vadd.f32 %v5897, %v5973
    %v5975 = vpop.f32.mrb[0].mxu0
    %5976 = vdwg.mxu0
    %5977 = vmatprep.subr.mxu0 0.0
    %v5978 = vand.u32 %v162, 4294901760
    %v5979 = vsub.f32 %v162, %v5978
    %v5980 = vand.u32 %v5979, 4294901760
    %v5981 = vsub.f32 %v5979, %v5980
    %v5982 = vand.u32 %v5981, 4294901760
    %5983 = vmatpush1.msra.mxu0 %v5982
    %5984 = vmatprep.subr.mxu0 0.0
    %v5985 = vand.u32 %v163, 4294901760
    %v5986 = vsub.f32 %v163, %v5985
    %v5987 = vand.u32 %v5986, 4294901760
    %v5988 = vsub.f32 %v5986, %v5987
    %v5989 = vand.u32 %v5988, 4294901760
    %5990 = vmatpush1.msra.mxu0 %v5989
    %5991 = vmatprep.subr.mxu0 0.0
    %5992 = vmatpush1.msra.mxu0 0.0
    %5993 = vmatprep.subr.mxu0 0.0
    %5994 = vmatpush1.msra.mxu0 0.0
    %5995 = vmatprep.subr.mxu0 0.0
    %5996 = vmatpush1.msra.mxu0 0.0
    %5997 = vmatprep.subr.mxu0 0.0
    %5998 = vmatpush1.msra.mxu0 0.0
    %5999 = vmatprep.subr.mxu0 0.0
    %6000 = vmatpush1.msra.mxu0 0.0
    %6001 = vmatprep.subr.mxu0 0.0
    %6002 = vmatpush1.msra.mxu0 0.0
    %6003 = vmatprep.subr.mxu0 0.0
    %6004 = vmatpush1.msra.mxu0 0.0
    %6005 = vmatprep.subr.mxu0 0.0
    %6006 = vmatpush1.msra.mxu0 0.0
    %6007 = vmatprep.subr.mxu0 0.0
    %6008 = vmatpush1.msra.mxu0 0.0
    %6009 = vmatprep.subr.mxu0 0.0
    %6010 = vmatpush1.msra.mxu0 0.0
    %6011 = vmatprep.subr.mxu0 0.0
    %6012 = vmatpush1.msra.mxu0 0.0
    %6013 = vmatprep.subr.mxu0 0.0
    %6014 = vmatpush1.msra.mxu0 0.0
    %6015 = vmatprep.subr.mxu0 0.0
    %6016 = vmatpush1.msra.mxu0 0.0
    %6017 = vmatprep.subr.mxu0 0.0
    %6018 = vmatpush1.msra.mxu0 0.0
    %6019 = vmatprep.subr.mxu0 0.0
    %6020 = vmatpush1.msra.mxu0 0.0
    %6021 = vmatprep.subr.mxu0 0.0
    %6022 = vmatpush1.msra.mxu0 0.0
    %6023 = vmatprep.subr.mxu0 0.0
    %6024 = vmatpush1.msra.mxu0 0.0
    %6025 = vmatprep.subr.mxu0 0.0
    %6026 = vmatpush1.msra.mxu0 0.0
    %6027 = vmatprep.subr.mxu0 0.0
    %6028 = vmatpush1.msra.mxu0 0.0
    %6029 = vmatprep.subr.mxu0 0.0
    %6030 = vmatpush1.msra.mxu0 0.0
    %6031 = vmatprep.subr.mxu0 0.0
    %6032 = vmatpush1.msra.mxu0 0.0
    %6033 = vmatprep.subr.mxu0 0.0
    %6034 = vmatpush1.msra.mxu0 0.0
    %6035 = vmatprep.subr.mxu0 0.0
    %6036 = vmatpush1.msra.mxu0 0.0
    %6037 = vmatprep.subr.mxu0 0.0
    %6038 = vmatpush1.msra.mxu0 0.0
    %6039 = vmatprep.subr.mxu0 0.0
    %6040 = vmatpush1.msra.mxu0 0.0
    %6041 = vmatprep.subr.mxu0 0.0
    %6042 = vmatpush1.msra.mxu0 0.0
    %6043 = vmatprep.subr.mxu0 0.0
    %6044 = vmatpush1.msra.mxu0 0.0
    %6045 = vmatprep.subr.mxu0 0.0
    %6046 = vmatpush1.msra.mxu0 0.0
    %6047 = vmatprep.subr.mxu0 0.0
    %6048 = vmatpush1.msra.mxu0 0.0
    %6049 = vmatprep.subr.mxu0 0.0
    %6050 = vmatpush1.msra.mxu0 0.0
    %6051 = vmatprep.mubr.f32.mxu0 0.0
    %v6052 = vand.u32 %v3312, 4294901760
    %6053 = vmatmul.mubr.f32.gmra.mrb[0].mxu0 %v6052
    %v6054 = vpop.f32.mrb[0].mxu0
    %v6055 = vadd.f32 %v5974, %v6054
    %v6056 = vpop.f32.mrb[0].mxu0
    %6057 = vdwg.mxu0
    %6058 = vmatprep.subr.mxu0 0.0
    %v6059 = vand.u32 %v162, 4294901760
    %v6060 = vsub.f32 %v162, %v6059
    %6061 = vmatpush1.msra.mxu0 %v6060
    %6062 = vmatprep.subr.mxu0 0.0
    %v6063 = vand.u32 %v163, 4294901760
    %v6064 = vsub.f32 %v163, %v6063
    %6065 = vmatpush1.msra.mxu0 %v6064
    %6066 = vmatprep.subr.mxu0 0.0
    %6067 = vmatpush1.msra.mxu0 0.0
    %6068 = vmatprep.subr.mxu0 0.0
    %6069 = vmatpush1.msra.mxu0 0.0
    %6070 = vmatprep.subr.mxu0 0.0
    %6071 = vmatpush1.msra.mxu0 0.0
    %6072 = vmatprep.subr.mxu0 0.0
    %6073 = vmatpush1.msra.mxu0 0.0
    %6074 = vmatprep.subr.mxu0 0.0
    %6075 = vmatpush1.msra.mxu0 0.0
    %6076 = vmatprep.subr.mxu0 0.0
    %6077 = vmatpush1.msra.mxu0 0.0
    %6078 = vmatprep.subr.mxu0 0.0
    %6079 = vmatpush1.msra.mxu0 0.0
    %6080 = vmatprep.subr.mxu0 0.0
    %6081 = vmatpush1.msra.mxu0 0.0
    %6082 = vmatprep.subr.mxu0 0.0
    %6083 = vmatpush1.msra.mxu0 0.0
    %6084 = vmatprep.subr.mxu0 0.0
    %6085 = vmatpush1.msra.mxu0 0.0
    %6086 = vmatprep.subr.mxu0 0.0
    %6087 = vmatpush1.msra.mxu0 0.0
    %6088 = vmatprep.subr.mxu0 0.0
    %6089 = vmatpush1.msra.mxu0 0.0
    %6090 = vmatprep.subr.mxu0 0.0
    %6091 = vmatpush1.msra.mxu0 0.0
    %6092 = vmatprep.subr.mxu0 0.0
    %6093 = vmatpush1.msra.mxu0 0.0
    %6094 = vmatprep.subr.mxu0 0.0
    %6095 = vmatpush1.msra.mxu0 0.0
    %6096 = vmatprep.subr.mxu0 0.0
    %6097 = vmatpush1.msra.mxu0 0.0
    %6098 = vmatprep.subr.mxu0 0.0
    %6099 = vmatpush1.msra.mxu0 0.0
    %6100 = vmatprep.subr.mxu0 0.0
    %6101 = vmatpush1.msra.mxu0 0.0
    %6102 = vmatprep.subr.mxu0 0.0
    %6103 = vmatpush1.msra.mxu0 0.0
    %6104 = vmatprep.subr.mxu0 0.0
    %6105 = vmatpush1.msra.mxu0 0.0
    %6106 = vmatprep.subr.mxu0 0.0
    %6107 = vmatpush1.msra.mxu0 0.0
    %6108 = vmatprep.subr.mxu0 0.0
    %6109 = vmatpush1.msra.mxu0 0.0
    %6110 = vmatprep.subr.mxu0 0.0
    %6111 = vmatpush1.msra.mxu0 0.0
    %6112 = vmatprep.subr.mxu0 0.0
    %6113 = vmatpush1.msra.mxu0 0.0
    %6114 = vmatprep.subr.mxu0 0.0
    %6115 = vmatpush1.msra.mxu0 0.0
    %6116 = vmatprep.subr.mxu0 0.0
    %6117 = vmatpush1.msra.mxu0 0.0
    %6118 = vmatprep.subr.mxu0 0.0
    %6119 = vmatpush1.msra.mxu0 0.0
    %6120 = vmatprep.subr.mxu0 0.0
    %6121 = vmatpush1.msra.mxu0 0.0
    %6122 = vmatprep.subr.mxu0 0.0
    %6123 = vmatpush1.msra.mxu0 0.0
    %6124 = vmatprep.subr.mxu0 0.0
    %6125 = vmatpush1.msra.mxu0 0.0
    %6126 = vmatprep.mubr.f32.mxu0 0.0
    %v6127 = vand.u32 %v3312, 4294901760
    %v6128 = vsub.f32 %v3312, %v6127
    %6129 = vmatmul.mubr.f32.gmra.mrb[0].mxu0 %v6128
    %v6130 = vpop.f32.mrb[0].mxu0
    %v6131 = vadd.f32 %v6055, %v6130
    %v6132 = vpop.f32.mrb[0].mxu0
    %6133 = vdwg.mxu0
    %6134 = vmatprep.subr.mxu0 0.0
    %v6135 = vand.u32 %v162, 4294901760
    %6136 = vmatpush1.msra.mxu0 %v6135
    %6137 = vmatprep.subr.mxu0 0.0
    %v6138 = vand.u32 %v163, 4294901760
    %6139 = vmatpush1.msra.mxu0 %v6138
    %6140 = vmatprep.subr.mxu0 0.0
    %6141 = vmatpush1.msra.mxu0 0.0
    %6142 = vmatprep.subr.mxu0 0.0
    %6143 = vmatpush1.msra.mxu0 0.0
    %6144 = vmatprep.subr.mxu0 0.0
    %6145 = vmatpush1.msra.mxu0 0.0
    %6146 = vmatprep.subr.mxu0 0.0
    %6147 = vmatpush1.msra.mxu0 0.0
    %6148 = vmatprep.subr.mxu0 0.0
    %6149 = vmatpush1.msra.mxu0 0.0
    %6150 = vmatprep.subr.mxu0 0.0
    %6151 = vmatpush1.msra.mxu0 0.0
    %6152 = vmatprep.subr.mxu0 0.0
    %6153 = vmatpush1.msra.mxu0 0.0
    %6154 = vmatprep.subr.mxu0 0.0
    %6155 = vmatpush1.msra.mxu0 0.0
    %6156 = vmatprep.subr.mxu0 0.0
    %6157 = vmatpush1.msra.mxu0 0.0
    %6158 = vmatprep.subr.mxu0 0.0
    %6159 = vmatpush1.msra.mxu0 0.0
    %6160 = vmatprep.subr.mxu0 0.0
    %6161 = vmatpush1.msra.mxu0 0.0
    %6162 = vmatprep.subr.mxu0 0.0
    %6163 = vmatpush1.msra.mxu0 0.0
    %6164 = vmatprep.subr.mxu0 0.0
    %6165 = vmatpush1.msra.mxu0 0.0
    %6166 = vmatprep.subr.mxu0 0.0
    %6167 = vmatpush1.msra.mxu0 0.0
    %6168 = vmatprep.subr.mxu0 0.0
    %6169 = vmatpush1.msra.mxu0 0.0
    %6170 = vmatprep.subr.mxu0 0.0
    %6171 = vmatpush1.msra.mxu0 0.0
    %6172 = vmatprep.subr.mxu0 0.0
    %6173 = vmatpush1.msra.mxu0 0.0
    %6174 = vmatprep.subr.mxu0 0.0
    %6175 = vmatpush1.msra.mxu0 0.0
    %6176 = vmatprep.subr.mxu0 0.0
    %6177 = vmatpush1.msra.mxu0 0.0
    %6178 = vmatprep.subr.mxu0 0.0
    %6179 = vmatpush1.msra.mxu0 0.0
    %6180 = vmatprep.subr.mxu0 0.0
    %6181 = vmatpush1.msra.mxu0 0.0
    %6182 = vmatprep.subr.mxu0 0.0
    %6183 = vmatpush1.msra.mxu0 0.0
    %6184 = vmatprep.subr.mxu0 0.0
    %6185 = vmatpush1.msra.mxu0 0.0
    %6186 = vmatprep.subr.mxu0 0.0
    %6187 = vmatpush1.msra.mxu0 0.0
    %6188 = vmatprep.subr.mxu0 0.0
    %6189 = vmatpush1.msra.mxu0 0.0
    %6190 = vmatprep.subr.mxu0 0.0
    %6191 = vmatpush1.msra.mxu0 0.0
    %6192 = vmatprep.subr.mxu0 0.0
    %6193 = vmatpush1.msra.mxu0 0.0
    %6194 = vmatprep.subr.mxu0 0.0
    %6195 = vmatpush1.msra.mxu0 0.0
    %6196 = vmatprep.subr.mxu0 0.0
    %6197 = vmatpush1.msra.mxu0 0.0
    %6198 = vmatprep.subr.mxu0 0.0
    %6199 = vmatpush1.msra.mxu0 0.0
    %6200 = vmatprep.mubr.f32.mxu0 0.0
    %v6201 = vand.u32 %v3312, 4294901760
    %v6202 = vsub.f32 %v3312, %v6201
    %v6203 = vand.u32 %v6202, 4294901760
    %6204 = vmatmul.mubr.f32.gmra.mrb[0].mxu0 %v6203
    %v6205 = vpop.f32.mrb[0].mxu0
    %v6206 = vadd.f32 %v6131, %v6205
    %v6207 = vpop.f32.mrb[0].mxu0
    %6208 = vdwg.mxu0
    %6209 = vmatprep.subr.mxu0 0.0
    %v6210 = vand.u32 %v162, 4294901760
    %v6211 = vsub.f32 %v162, %v6210
    %v6212 = vand.u32 %v6211, 4294901760
    %6213 = vmatpush1.msra.mxu0 %v6212
    %6214 = vmatprep.subr.mxu0 0.0
    %v6215 = vand.u32 %v163, 4294901760
    %v6216 = vsub.f32 %v163, %v6215
    %v6217 = vand.u32 %v6216, 4294901760
    %6218 = vmatpush1.msra.mxu0 %v6217
    %6219 = vmatprep.subr.mxu0 0.0
    %6220 = vmatpush1.msra.mxu0 0.0
    %6221 = vmatprep.subr.mxu0 0.0
    %6222 = vmatpush1.msra.mxu0 0.0
    %6223 = vmatprep.subr.mxu0 0.0
    %6224 = vmatpush1.msra.mxu0 0.0
    %6225 = vmatprep.subr.mxu0 0.0
    %6226 = vmatpush1.msra.mxu0 0.0
    %6227 = vmatprep.subr.mxu0 0.0
    %6228 = vmatpush1.msra.mxu0 0.0
    %6229 = vmatprep.subr.mxu0 0.0
    %6230 = vmatpush1.msra.mxu0 0.0
    %6231 = vmatprep.subr.mxu0 0.0
    %6232 = vmatpush1.msra.mxu0 0.0
    %6233 = vmatprep.subr.mxu0 0.0
    %6234 = vmatpush1.msra.mxu0 0.0
    %6235 = vmatprep.subr.mxu0 0.0
    %6236 = vmatpush1.msra.mxu0 0.0
    %6237 = vmatprep.subr.mxu0 0.0
    %6238 = vmatpush1.msra.mxu0 0.0
    %6239 = vmatprep.subr.mxu0 0.0
    %6240 = vmatpush1.msra.mxu0 0.0
    %6241 = vmatprep.subr.mxu0 0.0
    %6242 = vmatpush1.msra.mxu0 0.0
    %6243 = vmatprep.subr.mxu0 0.0
    %6244 = vmatpush1.msra.mxu0 0.0
    %6245 = vmatprep.subr.mxu0 0.0
    %6246 = vmatpush1.msra.mxu0 0.0
    %6247 = vmatprep.subr.mxu0 0.0
    %6248 = vmatpush1.msra.mxu0 0.0
    %6249 = vmatprep.subr.mxu0 0.0
    %6250 = vmatpush1.msra.mxu0 0.0
    %6251 = vmatprep.subr.mxu0 0.0
    %6252 = vmatpush1.msra.mxu0 0.0
    %6253 = vmatprep.subr.mxu0 0.0
    %6254 = vmatpush1.msra.mxu0 0.0
    %6255 = vmatprep.subr.mxu0 0.0
    %6256 = vmatpush1.msra.mxu0 0.0
    %6257 = vmatprep.subr.mxu0 0.0
    %6258 = vmatpush1.msra.mxu0 0.0
    %6259 = vmatprep.subr.mxu0 0.0
    %6260 = vmatpush1.msra.mxu0 0.0
    %6261 = vmatprep.subr.mxu0 0.0
    %6262 = vmatpush1.msra.mxu0 0.0
    %6263 = vmatprep.subr.mxu0 0.0
    %6264 = vmatpush1.msra.mxu0 0.0
    %6265 = vmatprep.subr.mxu0 0.0
    %6266 = vmatpush1.msra.mxu0 0.0
    %6267 = vmatprep.subr.mxu0 0.0
    %6268 = vmatpush1.msra.mxu0 0.0
    %6269 = vmatprep.subr.mxu0 0.0
    %6270 = vmatpush1.msra.mxu0 0.0
    %6271 = vmatprep.subr.mxu0 0.0
    %6272 = vmatpush1.msra.mxu0 0.0
    %6273 = vmatprep.subr.mxu0 0.0
    %6274 = vmatpush1.msra.mxu0 0.0
    %6275 = vmatprep.subr.mxu0 0.0
    %6276 = vmatpush1.msra.mxu0 0.0
    %6277 = vmatprep.subr.mxu0 0.0
    %6278 = vmatpush1.msra.mxu0 0.0
    %6279 = vmatprep.mubr.f32.mxu0 0.0
    %v6280 = vand.u32 %v3312, 4294901760
    %6281 = vmatmul.mubr.f32.gmra.mrb[0].mxu0 %v6280
    %v6282 = vpop.f32.mrb[0].mxu0
    %v6283 = vadd.f32 %v6206, %v6282
    %v6284 = vpop.f32.mrb[0].mxu0
    %6285 = vdwg.mxu0
    %6286 = vmatprep.subr.mxu0 0.0
    %v6287 = vand.u32 %v162, 4294901760
    %6288 = vmatpush1.msra.mxu0 %v6287
    %6289 = vmatprep.subr.mxu0 0.0
    %v6290 = vand.u32 %v163, 4294901760
    %6291 = vmatpush1.msra.mxu0 %v6290
    %6292 = vmatprep.subr.mxu0 0.0
    %6293 = vmatpush1.msra.mxu0 0.0
    %6294 = vmatprep.subr.mxu0 0.0
    %6295 = vmatpush1.msra.mxu0 0.0
    %6296 = vmatprep.subr.mxu0 0.0
    %6297 = vmatpush1.msra.mxu0 0.0
    %6298 = vmatprep.subr.mxu0 0.0
    %6299 = vmatpush1.msra.mxu0 0.0
    %6300 = vmatprep.subr.mxu0 0.0
    %6301 = vmatpush1.msra.mxu0 0.0
    %6302 = vmatprep.subr.mxu0 0.0
    %6303 = vmatpush1.msra.mxu0 0.0
    %6304 = vmatprep.subr.mxu0 0.0
    %6305 = vmatpush1.msra.mxu0 0.0
    %6306 = vmatprep.subr.mxu0 0.0
    %6307 = vmatpush1.msra.mxu0 0.0
    %6308 = vmatprep.subr.mxu0 0.0
    %6309 = vmatpush1.msra.mxu0 0.0
    %6310 = vmatprep.subr.mxu0 0.0
    %6311 = vmatpush1.msra.mxu0 0.0
    %6312 = vmatprep.subr.mxu0 0.0
    %6313 = vmatpush1.msra.mxu0 0.0
    %6314 = vmatprep.subr.mxu0 0.0
    %6315 = vmatpush1.msra.mxu0 0.0
    %6316 = vmatprep.subr.mxu0 0.0
    %6317 = vmatpush1.msra.mxu0 0.0
    %6318 = vmatprep.subr.mxu0 0.0
    %6319 = vmatpush1.msra.mxu0 0.0
    %6320 = vmatprep.subr.mxu0 0.0
    %6321 = vmatpush1.msra.mxu0 0.0
    %6322 = vmatprep.subr.mxu0 0.0
    %6323 = vmatpush1.msra.mxu0 0.0
    %6324 = vmatprep.subr.mxu0 0.0
    %6325 = vmatpush1.msra.mxu0 0.0
    %6326 = vmatprep.subr.mxu0 0.0
    %6327 = vmatpush1.msra.mxu0 0.0
    %6328 = vmatprep.subr.mxu0 0.0
    %6329 = vmatpush1.msra.mxu0 0.0
    %6330 = vmatprep.subr.mxu0 0.0
    %6331 = vmatpush1.msra.mxu0 0.0
    %6332 = vmatprep.subr.mxu0 0.0
    %6333 = vmatpush1.msra.mxu0 0.0
    %6334 = vmatprep.subr.mxu0 0.0
    %6335 = vmatpush1.msra.mxu0 0.0
    %6336 = vmatprep.subr.mxu0 0.0
    %6337 = vmatpush1.msra.mxu0 0.0
    %6338 = vmatprep.subr.mxu0 0.0
    %6339 = vmatpush1.msra.mxu0 0.0
    %6340 = vmatprep.subr.mxu0 0.0
    %6341 = vmatpush1.msra.mxu0 0.0
    %6342 = vmatprep.subr.mxu0 0.0
    %6343 = vmatpush1.msra.mxu0 0.0
    %6344 = vmatprep.subr.mxu0 0.0
    %6345 = vmatpush1.msra.mxu0 0.0
    %6346 = vmatprep.subr.mxu0 0.0
    %6347 = vmatpush1.msra.mxu0 0.0
    %6348 = vmatprep.subr.mxu0 0.0
    %6349 = vmatpush1.msra.mxu0 0.0
    %6350 = vmatprep.subr.mxu0 0.0
    %6351 = vmatpush1.msra.mxu0 0.0
    %6352 = vmatprep.mubr.f32.mxu0 0.0
    %v6353 = vand.u32 %v3312, 4294901760
    %6354 = vmatmul.mubr.f32.gmra.mrb[0].mxu0 %v6353
    %v6355 = vpop.f32.mrb[0].mxu0
    %v6356 = vadd.f32 %v6283, %v6355
    %v6357 = vpop.f32.mrb[0].mxu0
    %6358 = vdwg.mxu0
    %v6359 = vld [vmem:[%s3] sm:$0x1]
    %v6361 = vlaneseq
    %v6362 = vshrl.u32 %v6361, 7
    %v6363 = vsub.s32 0, %v6362
    %v6364 = vrot.slane %v6359, %v6363
    %v6366 = vadd.f32 %v6356, %v6364
    %v6367 = vld [vmem:[%s4] sm:$0xff]
    %v6368 = vld [vmem:[%s4 + $0x8] sm:$0xff]
    %v6369 = vld [vmem:[%s4 + $0x10] sm:$0xff]
    %v6370 = vld [vmem:[%s4 + $0x18] sm:$0xff]
    %v6371 = vld [vmem:[%s4 + $0x20] sm:$0xff]
    %v6372 = vld [vmem:[%s4 + $0x28] sm:$0xff]
    %v6373 = vld [vmem:[%s4 + $0x30] sm:$0xff]
    %v6374 = vld [vmem:[%s4 + $0x38] sm:$0xff]
    %v6375 = vld [vmem:[%s5] sm:$0x1]
    %v6377 = vlaneseq
    %v6378 = vshrl.u32 %v6377, 7
    %v6379 = vsub.s32 0, %v6378
    %v6380 = vrot.slane %v6375, %v6379
    %vm6382 = vcmask 523264
    %v6384 = vsel %vm6382, %v6366, 0
    %6386 = vmatprep.subr.mxu0 0.0
    %v6387 = vand.u32 %v6367, 4294901760
    %6388 = vmatpush1.msra.mxu0 %v6387
    %6389 = vmatprep.subr.mxu0 0.0
    %v6390 = vand.u32 %v6368, 4294901760
    %6391 = vmatpush1.msra.mxu0 %v6390
    %6392 = vmatprep.subr.mxu0 0.0
    %v6393 = vand.u32 %v6369, 4294901760
    %6394 = vmatpush1.msra.mxu0 %v6393
    %6395 = vmatprep.subr.mxu0 0.0
    %v6396 = vand.u32 %v6370, 4294901760
    %6397 = vmatpush1.msra.mxu0 %v6396
    %6398 = vmatprep.subr.mxu0 0.0
    %v6399 = vand.u32 %v6371, 4294901760
    %6400 = vmatpush1.msra.mxu0 %v6399
    %6401 = vmatprep.subr.mxu0 0.0
    %v6402 = vand.u32 %v6372, 4294901760
    %6403 = vmatpush1.msra.mxu0 %v6402
    %6404 = vmatprep.subr.mxu0 0.0
    %v6405 = vand.u32 %v6373, 4294901760
    %6406 = vmatpush1.msra.mxu0 %v6405
    %6407 = vmatprep.subr.mxu0 0.0
    %v6408 = vand.u32 %v6374, 4294901760
    %6409 = vmatpush1.msra.mxu0 %v6408
    %6410 = vmatprep.subr.mxu0 0.0
    %6411 = vmatpush1.msra.mxu0 0.0
    %6412 = vmatprep.subr.mxu0 0.0
    %6413 = vmatpush1.msra.mxu0 0.0
    %6414 = vmatprep.subr.mxu0 0.0
    %6415 = vmatpush1.msra.mxu0 0.0
    %6416 = vmatprep.subr.mxu0 0.0
    %6417 = vmatpush1.msra.mxu0 0.0
    %6418 = vmatprep.subr.mxu0 0.0
    %6419 = vmatpush1.msra.mxu0 0.0
    %6420 = vmatprep.subr.mxu0 0.0
    %6421 = vmatpush1.msra.mxu0 0.0
    %6422 = vmatprep.subr.mxu0 0.0
    %6423 = vmatpush1.msra.mxu0 0.0
    %6424 = vmatprep.subr.mxu0 0.0
    %6425 = vmatpush1.msra.mxu0 0.0
    %6426 = vmatprep.subr.mxu0 0.0
    %6427 = vmatpush1.msra.mxu0 0.0
    %6428 = vmatprep.subr.mxu0 0.0
    %6429 = vmatpush1.msra.mxu0 0.0
    %6430 = vmatprep.subr.mxu0 0.0
    %6431 = vmatpush1.msra.mxu0 0.0
    %6432 = vmatprep.subr.mxu0 0.0
    %6433 = vmatpush1.msra.mxu0 0.0
    %6434 = vmatprep.subr.mxu0 0.0
    %6435 = vmatpush1.msra.mxu0 0.0
    %6436 = vmatprep.subr.mxu0 0.0
    %6437 = vmatpush1.msra.mxu0 0.0
    %6438 = vmatprep.subr.mxu0 0.0
    %6439 = vmatpush1.msra.mxu0 0.0
    %6440 = vmatprep.subr.mxu0 0.0
    %6441 = vmatpush1.msra.mxu0 0.0
    %6442 = vmatprep.subr.mxu0 0.0
    %6443 = vmatpush1.msra.mxu0 0.0
    %6444 = vmatprep.subr.mxu0 0.0
    %6445 = vmatpush1.msra.mxu0 0.0
    %6446 = vmatprep.subr.mxu0 0.0
    %6447 = vmatpush1.msra.mxu0 0.0
    %6448 = vmatprep.subr.mxu0 0.0
    %6449 = vmatpush1.msra.mxu0 0.0
    %6450 = vmatprep.subr.mxu0 0.0
    %6451 = vmatpush1.msra.mxu0 0.0
    %6452 = vmatprep.subr.mxu0 0.0
    %6453 = vmatpush1.msra.mxu0 0.0
    %6454 = vmatprep.subr.mxu0 0.0
    %6455 = vmatpush1.msra.mxu0 0.0
    %6456 = vmatprep.subr.mxu0 0.0
    %6457 = vmatpush1.msra.mxu0 0.0
    %6458 = vmatprep.mubr.f32.mxu0 0.0
    %v6459 = vand.u32 %v6384, 4294901760
    %v6460 = vsub.f32 %v6384, %v6459
    %v6461 = vand.u32 %v6460, 4294901760
    %v6462 = vsub.f32 %v6460, %v6461
    %v6463 = vand.u32 %v6462, 4294901760
    %6464 = vmatmul.mubr.f32.gmra.mrb[0].mxu0 %v6463
    %v6465 = vpop.f32.mrb[0].mxu0
    %v6466 = vadd.f32 %v6380, %v6465
    %v6467 = vpop.f32.mrb[0].mxu0
    %6468 = vdwg.mxu0
    %6469 = vmatprep.subr.mxu0 0.0
    %v6470 = vand.u32 %v6367, 4294901760
    %v6471 = vsub.f32 %v6367, %v6470
    %v6472 = vand.u32 %v6471, 4294901760
    %v6473 = vsub.f32 %v6471, %v6472
    %v6474 = vand.u32 %v6473, 4294901760
    %6475 = vmatpush1.msra.mxu0 %v6474
    %6476 = vmatprep.subr.mxu0 0.0
    %v6477 = vand.u32 %v6368, 4294901760
    %v6478 = vsub.f32 %v6368, %v6477
    %v6479 = vand.u32 %v6478, 4294901760
    %v6480 = vsub.f32 %v6478, %v6479
    %v6481 = vand.u32 %v6480, 4294901760
    %6482 = vmatpush1.msra.mxu0 %v6481
    %6483 = vmatprep.subr.mxu0 0.0
    %v6484 = vand.u32 %v6369, 4294901760
    %v6485 = vsub.f32 %v6369, %v6484
    %v6486 = vand.u32 %v6485, 4294901760
    %v6487 = vsub.f32 %v6485, %v6486
    %v6488 = vand.u32 %v6487, 4294901760
    %6489 = vmatpush1.msra.mxu0 %v6488
    %6490 = vmatprep.subr.mxu0 0.0
    %v6491 = vand.u32 %v6370, 4294901760
    %v6492 = vsub.f32 %v6370, %v6491
    %v6493 = vand.u32 %v6492, 4294901760
    %v6494 = vsub.f32 %v6492, %v6493
    %v6495 = vand.u32 %v6494, 4294901760
    %6496 = vmatpush1.msra.mxu0 %v6495
    %6497 = vmatprep.subr.mxu0 0.0
    %v6498 = vand.u32 %v6371, 4294901760
    %v6499 = vsub.f32 %v6371, %v6498
    %v6500 = vand.u32 %v6499, 4294901760
    %v6501 = vsub.f32 %v6499, %v6500
    %v6502 = vand.u32 %v6501, 4294901760
    %6503 = vmatpush1.msra.mxu0 %v6502
    %6504 = vmatprep.subr.mxu0 0.0
    %v6505 = vand.u32 %v6372, 4294901760
    %v6506 = vsub.f32 %v6372, %v6505
    %v6507 = vand.u32 %v6506, 4294901760
    %v6508 = vsub.f32 %v6506, %v6507
    %v6509 = vand.u32 %v6508, 4294901760
    %6510 = vmatpush1.msra.mxu0 %v6509
    %6511 = vmatprep.subr.mxu0 0.0
    %v6512 = vand.u32 %v6373, 4294901760
    %v6513 = vsub.f32 %v6373, %v6512
    %v6514 = vand.u32 %v6513, 4294901760
    %v6515 = vsub.f32 %v6513, %v6514
    %v6516 = vand.u32 %v6515, 4294901760
    %6517 = vmatpush1.msra.mxu0 %v6516
    %6518 = vmatprep.subr.mxu0 0.0
    %v6519 = vand.u32 %v6374, 4294901760
    %v6520 = vsub.f32 %v6374, %v6519
    %v6521 = vand.u32 %v6520, 4294901760
    %v6522 = vsub.f32 %v6520, %v6521
    %v6523 = vand.u32 %v6522, 4294901760
    %6524 = vmatpush1.msra.mxu0 %v6523
    %6525 = vmatprep.subr.mxu0 0.0
    %6526 = vmatpush1.msra.mxu0 0.0
    %6527 = vmatprep.subr.mxu0 0.0
    %6528 = vmatpush1.msra.mxu0 0.0
    %6529 = vmatprep.subr.mxu0 0.0
    %6530 = vmatpush1.msra.mxu0 0.0
    %6531 = vmatprep.subr.mxu0 0.0
    %6532 = vmatpush1.msra.mxu0 0.0
    %6533 = vmatprep.subr.mxu0 0.0
    %6534 = vmatpush1.msra.mxu0 0.0
    %6535 = vmatprep.subr.mxu0 0.0
    %6536 = vmatpush1.msra.mxu0 0.0
    %6537 = vmatprep.subr.mxu0 0.0
    %6538 = vmatpush1.msra.mxu0 0.0
    %6539 = vmatprep.subr.mxu0 0.0
    %6540 = vmatpush1.msra.mxu0 0.0
    %6541 = vmatprep.subr.mxu0 0.0
    %6542 = vmatpush1.msra.mxu0 0.0
    %6543 = vmatprep.subr.mxu0 0.0
    %6544 = vmatpush1.msra.mxu0 0.0
    %6545 = vmatprep.subr.mxu0 0.0
    %6546 = vmatpush1.msra.mxu0 0.0
    %6547 = vmatprep.subr.mxu0 0.0
    %6548 = vmatpush1.msra.mxu0 0.0
    %6549 = vmatprep.subr.mxu0 0.0
    %6550 = vmatpush1.msra.mxu0 0.0
    %6551 = vmatprep.subr.mxu0 0.0
    %6552 = vmatpush1.msra.mxu0 0.0
    %6553 = vmatprep.subr.mxu0 0.0
    %6554 = vmatpush1.msra.mxu0 0.0
    %6555 = vmatprep.subr.mxu0 0.0
    %6556 = vmatpush1.msra.mxu0 0.0
    %6557 = vmatprep.subr.mxu0 0.0
    %6558 = vmatpush1.msra.mxu0 0.0
    %6559 = vmatprep.subr.mxu0 0.0
    %6560 = vmatpush1.msra.mxu0 0.0
    %6561 = vmatprep.subr.mxu0 0.0
    %6562 = vmatpush1.msra.mxu0 0.0
    %6563 = vmatprep.subr.mxu0 0.0
    %6564 = vmatpush1.msra.mxu0 0.0
    %6565 = vmatprep.subr.mxu0 0.0
    %6566 = vmatpush1.msra.mxu0 0.0
    %6567 = vmatprep.subr.mxu0 0.0
    %6568 = vmatpush1.msra.mxu0 0.0
    %6569 = vmatprep.subr.mxu0 0.0
    %6570 = vmatpush1.msra.mxu0 0.0
    %6571 = vmatprep.subr.mxu0 0.0
    %6572 = vmatpush1.msra.mxu0 0.0
    %6573 = vmatprep.mubr.f32.mxu0 0.0
    %v6574 = vand.u32 %v6384, 4294901760
    %6575 = vmatmul.mubr.f32.gmra.mrb[0].mxu0 %v6574
    %v6576 = vpop.f32.mrb[0].mxu0
    %v6577 = vadd.f32 %v6466, %v6576
    %v6578 = vpop.f32.mrb[0].mxu0
    %6579 = vdwg.mxu0
    %6580 = vmatprep.subr.mxu0 0.0
    %v6581 = vand.u32 %v6367, 4294901760
    %v6582 = vsub.f32 %v6367, %v6581
    %6583 = vmatpush1.msra.mxu0 %v6582
    %6584 = vmatprep.subr.mxu0 0.0
    %v6585 = vand.u32 %v6368, 4294901760
    %v6586 = vsub.f32 %v6368, %v6585
    %6587 = vmatpush1.msra.mxu0 %v6586
    %6588 = vmatprep.subr.mxu0 0.0
    %v6589 = vand.u32 %v6369, 4294901760
    %v6590 = vsub.f32 %v6369, %v6589
    %6591 = vmatpush1.msra.mxu0 %v6590
    %6592 = vmatprep.subr.mxu0 0.0
    %v6593 = vand.u32 %v6370, 4294901760
    %v6594 = vsub.f32 %v6370, %v6593
    %6595 = vmatpush1.msra.mxu0 %v6594
    %6596 = vmatprep.subr.mxu0 0.0
    %v6597 = vand.u32 %v6371, 4294901760
    %v6598 = vsub.f32 %v6371, %v6597
    %6599 = vmatpush1.msra.mxu0 %v6598
    %6600 = vmatprep.subr.mxu0 0.0
    %v6601 = vand.u32 %v6372, 4294901760
    %v6602 = vsub.f32 %v6372, %v6601
    %6603 = vmatpush1.msra.mxu0 %v6602
    %6604 = vmatprep.subr.mxu0 0.0
    %v6605 = vand.u32 %v6373, 4294901760
    %v6606 = vsub.f32 %v6373, %v6605
    %6607 = vmatpush1.msra.mxu0 %v6606
    %6608 = vmatprep.subr.mxu0 0.0
    %v6609 = vand.u32 %v6374, 4294901760
    %v6610 = vsub.f32 %v6374, %v6609
    %6611 = vmatpush1.msra.mxu0 %v6610
    %6612 = vmatprep.subr.mxu0 0.0
    %6613 = vmatpush1.msra.mxu0 0.0
    %6614 = vmatprep.subr.mxu0 0.0
    %6615 = vmatpush1.msra.mxu0 0.0
    %6616 = vmatprep.subr.mxu0 0.0
    %6617 = vmatpush1.msra.mxu0 0.0
    %6618 = vmatprep.subr.mxu0 0.0
    %6619 = vmatpush1.msra.mxu0 0.0
    %6620 = vmatprep.subr.mxu0 0.0
    %6621 = vmatpush1.msra.mxu0 0.0
    %6622 = vmatprep.subr.mxu0 0.0
    %6623 = vmatpush1.msra.mxu0 0.0
    %6624 = vmatprep.subr.mxu0 0.0
    %6625 = vmatpush1.msra.mxu0 0.0
    %6626 = vmatprep.subr.mxu0 0.0
    %6627 = vmatpush1.msra.mxu0 0.0
    %6628 = vmatprep.subr.mxu0 0.0
    %6629 = vmatpush1.msra.mxu0 0.0
    %6630 = vmatprep.subr.mxu0 0.0
    %6631 = vmatpush1.msra.mxu0 0.0
    %6632 = vmatprep.subr.mxu0 0.0
    %6633 = vmatpush1.msra.mxu0 0.0
    %6634 = vmatprep.subr.mxu0 0.0
    %6635 = vmatpush1.msra.mxu0 0.0
    %6636 = vmatprep.subr.mxu0 0.0
    %6637 = vmatpush1.msra.mxu0 0.0
    %6638 = vmatprep.subr.mxu0 0.0
    %6639 = vmatpush1.msra.mxu0 0.0
    %6640 = vmatprep.subr.mxu0 0.0
    %6641 = vmatpush1.msra.mxu0 0.0
    %6642 = vmatprep.subr.mxu0 0.0
    %6643 = vmatpush1.msra.mxu0 0.0
    %6644 = vmatprep.subr.mxu0 0.0
    %6645 = vmatpush1.msra.mxu0 0.0
    %6646 = vmatprep.subr.mxu0 0.0
    %6647 = vmatpush1.msra.mxu0 0.0
    %6648 = vmatprep.subr.mxu0 0.0
    %6649 = vmatpush1.msra.mxu0 0.0
    %6650 = vmatprep.subr.mxu0 0.0
    %6651 = vmatpush1.msra.mxu0 0.0
    %6652 = vmatprep.subr.mxu0 0.0
    %6653 = vmatpush1.msra.mxu0 0.0
    %6654 = vmatprep.subr.mxu0 0.0
    %6655 = vmatpush1.msra.mxu0 0.0
    %6656 = vmatprep.subr.mxu0 0.0
    %6657 = vmatpush1.msra.mxu0 0.0
    %6658 = vmatprep.subr.mxu0 0.0
    %6659 = vmatpush1.msra.mxu0 0.0
    %6660 = vmatprep.mubr.f32.mxu0 0.0
    %v6661 = vand.u32 %v6384, 4294901760
    %v6662 = vsub.f32 %v6384, %v6661
    %6663 = vmatmul.mubr.f32.gmra.mrb[0].mxu0 %v6662
    %v6664 = vpop.f32.mrb[0].mxu0
    %v6665 = vadd.f32 %v6577, %v6664
    %v6666 = vpop.f32.mrb[0].mxu0
    %6667 = vdwg.mxu0
    %6668 = vmatprep.subr.mxu0 0.0
    %v6669 = vand.u32 %v6367, 4294901760
    %6670 = vmatpush1.msra.mxu0 %v6669
    %6671 = vmatprep.subr.mxu0 0.0
    %v6672 = vand.u32 %v6368, 4294901760
    %6673 = vmatpush1.msra.mxu0 %v6672
    %6674 = vmatprep.subr.mxu0 0.0
    %v6675 = vand.u32 %v6369, 4294901760
    %6676 = vmatpush1.msra.mxu0 %v6675
    %6677 = vmatprep.subr.mxu0 0.0
    %v6678 = vand.u32 %v6370, 4294901760
    %6679 = vmatpush1.msra.mxu0 %v6678
    %6680 = vmatprep.subr.mxu0 0.0
    %v6681 = vand.u32 %v6371, 4294901760
    %6682 = vmatpush1.msra.mxu0 %v6681
    %6683 = vmatprep.subr.mxu0 0.0
    %v6684 = vand.u32 %v6372, 4294901760
    %6685 = vmatpush1.msra.mxu0 %v6684
    %6686 = vmatprep.subr.mxu0 0.0
    %v6687 = vand.u32 %v6373, 4294901760
    %6688 = vmatpush1.msra.mxu0 %v6687
    %6689 = vmatprep.subr.mxu0 0.0
    %v6690 = vand.u32 %v6374, 4294901760
    %6691 = vmatpush1.msra.mxu0 %v6690
    %6692 = vmatprep.subr.mxu0 0.0
    %6693 = vmatpush1.msra.mxu0 0.0
    %6694 = vmatprep.subr.mxu0 0.0
    %6695 = vmatpush1.msra.mxu0 0.0
    %6696 = vmatprep.subr.mxu0 0.0
    %6697 = vmatpush1.msra.mxu0 0.0
    %6698 = vmatprep.subr.mxu0 0.0
    %6699 = vmatpush1.msra.mxu0 0.0
    %6700 = vmatprep.subr.mxu0 0.0
    %6701 = vmatpush1.msra.mxu0 0.0
    %6702 = vmatprep.subr.mxu0 0.0
    %6703 = vmatpush1.msra.mxu0 0.0
    %6704 = vmatprep.subr.mxu0 0.0
    %6705 = vmatpush1.msra.mxu0 0.0
    %6706 = vmatprep.subr.mxu0 0.0
    %6707 = vmatpush1.msra.mxu0 0.0
    %6708 = vmatprep.subr.mxu0 0.0
    %6709 = vmatpush1.msra.mxu0 0.0
    %6710 = vmatprep.subr.mxu0 0.0
    %6711 = vmatpush1.msra.mxu0 0.0
    %6712 = vmatprep.subr.mxu0 0.0
    %6713 = vmatpush1.msra.mxu0 0.0
    %6714 = vmatprep.subr.mxu0 0.0
    %6715 = vmatpush1.msra.mxu0 0.0
    %6716 = vmatprep.subr.mxu0 0.0
    %6717 = vmatpush1.msra.mxu0 0.0
    %6718 = vmatprep.subr.mxu0 0.0
    %6719 = vmatpush1.msra.mxu0 0.0
    %6720 = vmatprep.subr.mxu0 0.0
    %6721 = vmatpush1.msra.mxu0 0.0
    %6722 = vmatprep.subr.mxu0 0.0
    %6723 = vmatpush1.msra.mxu0 0.0
    %6724 = vmatprep.subr.mxu0 0.0
    %6725 = vmatpush1.msra.mxu0 0.0
    %6726 = vmatprep.subr.mxu0 0.0
    %6727 = vmatpush1.msra.mxu0 0.0
    %6728 = vmatprep.subr.mxu0 0.0
    %6729 = vmatpush1.msra.mxu0 0.0
    %6730 = vmatprep.subr.mxu0 0.0
    %6731 = vmatpush1.msra.mxu0 0.0
    %6732 = vmatprep.subr.mxu0 0.0
    %6733 = vmatpush1.msra.mxu0 0.0
    %6734 = vmatprep.subr.mxu0 0.0
    %6735 = vmatpush1.msra.mxu0 0.0
    %6736 = vmatprep.subr.mxu0 0.0
    %6737 = vmatpush1.msra.mxu0 0.0
    %6738 = vmatprep.subr.mxu0 0.0
    %6739 = vmatpush1.msra.mxu0 0.0
    %6740 = vmatprep.mubr.f32.mxu0 0.0
    %v6741 = vand.u32 %v6384, 4294901760
    %v6742 = vsub.f32 %v6384, %v6741
    %v6743 = vand.u32 %v6742, 4294901760
    %6744 = vmatmul.mubr.f32.gmra.mrb[0].mxu0 %v6743
    %v6745 = vpop.f32.mrb[0].mxu0
    %v6746 = vadd.f32 %v6665, %v6745
    %v6747 = vpop.f32.mrb[0].mxu0
    %6748 = vdwg.mxu0
    %6749 = vmatprep.subr.mxu0 0.0
    %v6750 = vand.u32 %v6367, 4294901760
    %v6751 = vsub.f32 %v6367, %v6750
    %v6752 = vand.u32 %v6751, 4294901760
    %6753 = vmatpush1.msra.mxu0 %v6752
    %6754 = vmatprep.subr.mxu0 0.0
    %v6755 = vand.u32 %v6368, 4294901760
    %v6756 = vsub.f32 %v6368, %v6755
    %v6757 = vand.u32 %v6756, 4294901760
    %6758 = vmatpush1.msra.mxu0 %v6757
    %6759 = vmatprep.subr.mxu0 0.0
    %v6760 = vand.u32 %v6369, 4294901760
    %v6761 = vsub.f32 %v6369, %v6760
    %v6762 = vand.u32 %v6761, 4294901760
    %6763 = vmatpush1.msra.mxu0 %v6762
    %6764 = vmatprep.subr.mxu0 0.0
    %v6765 = vand.u32 %v6370, 4294901760
    %v6766 = vsub.f32 %v6370, %v6765
    %v6767 = vand.u32 %v6766, 4294901760
    %6768 = vmatpush1.msra.mxu0 %v6767
    %6769 = vmatprep.subr.mxu0 0.0
    %v6770 = vand.u32 %v6371, 4294901760
    %v6771 = vsub.f32 %v6371, %v6770
    %v6772 = vand.u32 %v6771, 4294901760
    %6773 = vmatpush1.msra.mxu0 %v6772
    %6774 = vmatprep.subr.mxu0 0.0
    %v6775 = vand.u32 %v6372, 4294901760
    %v6776 = vsub.f32 %v6372, %v6775
    %v6777 = vand.u32 %v6776, 4294901760
    %6778 = vmatpush1.msra.mxu0 %v6777
    %6779 = vmatprep.subr.mxu0 0.0
    %v6780 = vand.u32 %v6373, 4294901760
    %v6781 = vsub.f32 %v6373, %v6780
    %v6782 = vand.u32 %v6781, 4294901760
    %6783 = vmatpush1.msra.mxu0 %v6782
    %6784 = vmatprep.subr.mxu0 0.0
    %v6785 = vand.u32 %v6374, 4294901760
    %v6786 = vsub.f32 %v6374, %v6785
    %v6787 = vand.u32 %v6786, 4294901760
    %6788 = vmatpush1.msra.mxu0 %v6787
    %6789 = vmatprep.subr.mxu0 0.0
    %6790 = vmatpush1.msra.mxu0 0.0
    %6791 = vmatprep.subr.mxu0 0.0
    %6792 = vmatpush1.msra.mxu0 0.0
    %6793 = vmatprep.subr.mxu0 0.0
    %6794 = vmatpush1.msra.mxu0 0.0
    %6795 = vmatprep.subr.mxu0 0.0
    %6796 = vmatpush1.msra.mxu0 0.0
    %6797 = vmatprep.subr.mxu0 0.0
    %6798 = vmatpush1.msra.mxu0 0.0
    %6799 = vmatprep.subr.mxu0 0.0
    %6800 = vmatpush1.msra.mxu0 0.0
    %6801 = vmatprep.subr.mxu0 0.0
    %6802 = vmatpush1.msra.mxu0 0.0
    %6803 = vmatprep.subr.mxu0 0.0
    %6804 = vmatpush1.msra.mxu0 0.0
    %6805 = vmatprep.subr.mxu0 0.0
    %6806 = vmatpush1.msra.mxu0 0.0
    %6807 = vmatprep.subr.mxu0 0.0
    %6808 = vmatpush1.msra.mxu0 0.0
    %6809 = vmatprep.subr.mxu0 0.0
    %6810 = vmatpush1.msra.mxu0 0.0
    %6811 = vmatprep.subr.mxu0 0.0
    %6812 = vmatpush1.msra.mxu0 0.0
    %6813 = vmatprep.subr.mxu0 0.0
    %6814 = vmatpush1.msra.mxu0 0.0
    %6815 = vmatprep.subr.mxu0 0.0
    %6816 = vmatpush1.msra.mxu0 0.0
    %6817 = vmatprep.subr.mxu0 0.0
    %6818 = vmatpush1.msra.mxu0 0.0
    %6819 = vmatprep.subr.mxu0 0.0
    %6820 = vmatpush1.msra.mxu0 0.0
    %6821 = vmatprep.subr.mxu0 0.0
    %6822 = vmatpush1.msra.mxu0 0.0
    %6823 = vmatprep.subr.mxu0 0.0
    %6824 = vmatpush1.msra.mxu0 0.0
    %6825 = vmatprep.subr.mxu0 0.0
    %6826 = vmatpush1.msra.mxu0 0.0
    %6827 = vmatprep.subr.mxu0 0.0
    %6828 = vmatpush1.msra.mxu0 0.0
    %6829 = vmatprep.subr.mxu0 0.0
    %6830 = vmatpush1.msra.mxu0 0.0
    %6831 = vmatprep.subr.mxu0 0.0
    %6832 = vmatpush1.msra.mxu0 0.0
    %6833 = vmatprep.subr.mxu0 0.0
    %6834 = vmatpush1.msra.mxu0 0.0
    %6835 = vmatprep.subr.mxu0 0.0
    %6836 = vmatpush1.msra.mxu0 0.0
    %6837 = vmatprep.mubr.f32.mxu0 0.0
    %v6838 = vand.u32 %v6384, 4294901760
    %6839 = vmatmul.mubr.f32.gmra.mrb[0].mxu0 %v6838
    %v6840 = vpop.f32.mrb[0].mxu0
    %v6841 = vadd.f32 %v6746, %v6840
    %v6842 = vpop.f32.mrb[0].mxu0
    %6843 = vdwg.mxu0
    %6844 = vmatprep.subr.mxu0 0.0
    %v6845 = vand.u32 %v6367, 4294901760
    %6846 = vmatpush1.msra.mxu0 %v6845
    %6847 = vmatprep.subr.mxu0 0.0
    %v6848 = vand.u32 %v6368, 4294901760
    %6849 = vmatpush1.msra.mxu0 %v6848
    %6850 = vmatprep.subr.mxu0 0.0
    %v6851 = vand.u32 %v6369, 4294901760
    %6852 = vmatpush1.msra.mxu0 %v6851
    %6853 = vmatprep.subr.mxu0 0.0
    %v6854 = vand.u32 %v6370, 4294901760
    %6855 = vmatpush1.msra.mxu0 %v6854
    %6856 = vmatprep.subr.mxu0 0.0
    %v6857 = vand.u32 %v6371, 4294901760
    %6858 = vmatpush1.msra.mxu0 %v6857
    %6859 = vmatprep.subr.mxu0 0.0
    %v6860 = vand.u32 %v6372, 4294901760
    %6861 = vmatpush1.msra.mxu0 %v6860
    %6862 = vmatprep.subr.mxu0 0.0
    %v6863 = vand.u32 %v6373, 4294901760
    %6864 = vmatpush1.msra.mxu0 %v6863
    %6865 = vmatprep.subr.mxu0 0.0
    %v6866 = vand.u32 %v6374, 4294901760
    %6867 = vmatpush1.msra.mxu0 %v6866
    %6868 = vmatprep.subr.mxu0 0.0
    %6869 = vmatpush1.msra.mxu0 0.0
    %6870 = vmatprep.subr.mxu0 0.0
    %6871 = vmatpush1.msra.mxu0 0.0
    %6872 = vmatprep.subr.mxu0 0.0
    %6873 = vmatpush1.msra.mxu0 0.0
    %6874 = vmatprep.subr.mxu0 0.0
    %6875 = vmatpush1.msra.mxu0 0.0
    %6876 = vmatprep.subr.mxu0 0.0
    %6877 = vmatpush1.msra.mxu0 0.0
    %6878 = vmatprep.subr.mxu0 0.0
    %6879 = vmatpush1.msra.mxu0 0.0
    %6880 = vmatprep.subr.mxu0 0.0
    %6881 = vmatpush1.msra.mxu0 0.0
    %6882 = vmatprep.subr.mxu0 0.0
    %6883 = vmatpush1.msra.mxu0 0.0
    %6884 = vmatprep.subr.mxu0 0.0
    %6885 = vmatpush1.msra.mxu0 0.0
    %6886 = vmatprep.subr.mxu0 0.0
    %6887 = vmatpush1.msra.mxu0 0.0
    %6888 = vmatprep.subr.mxu0 0.0
    %6889 = vmatpush1.msra.mxu0 0.0
    %6890 = vmatprep.subr.mxu0 0.0
    %6891 = vmatpush1.msra.mxu0 0.0
    %6892 = vmatprep.subr.mxu0 0.0
    %6893 = vmatpush1.msra.mxu0 0.0
    %6894 = vmatprep.subr.mxu0 0.0
    %6895 = vmatpush1.msra.mxu0 0.0
    %6896 = vmatprep.subr.mxu0 0.0
    %6897 = vmatpush1.msra.mxu0 0.0
    %6898 = vmatprep.subr.mxu0 0.0
    %6899 = vmatpush1.msra.mxu0 0.0
    %6900 = vmatprep.subr.mxu0 0.0
    %6901 = vmatpush1.msra.mxu0 0.0
    %6902 = vmatprep.subr.mxu0 0.0
    %6903 = vmatpush1.msra.mxu0 0.0
    %6904 = vmatprep.subr.mxu0 0.0
    %6905 = vmatpush1.msra.mxu0 0.0
    %6906 = vmatprep.subr.mxu0 0.0
    %6907 = vmatpush1.msra.mxu0 0.0
    %6908 = vmatprep.subr.mxu0 0.0
    %6909 = vmatpush1.msra.mxu0 0.0
    %6910 = vmatprep.subr.mxu0 0.0
    %6911 = vmatpush1.msra.mxu0 0.0
    %6912 = vmatprep.subr.mxu0 0.0
    %6913 = vmatpush1.msra.mxu0 0.0
    %6914 = vmatprep.subr.mxu0 0.0
    %6915 = vmatpush1.msra.mxu0 0.0
    %6916 = vmatprep.mubr.f32.mxu0 0.0
    %v6917 = vand.u32 %v6384, 4294901760
    %6918 = vmatmul.mubr.f32.gmra.mrb[0].mxu0 %v6917
    %v6919 = vpop.f32.mrb[0].mxu0
    %v6920 = vadd.f32 %v6841, %v6919
    %v6921 = vpop.f32.mrb[0].mxu0
    %6922 = vdwg.mxu0
    %vm6923 = vcmask 80896
    %6924 = vst.msk [vmem:[#allocation2] sm:$0xff] %vm6923, %v6920
    // Predicated region
    $region26: #{tpu_custom_call.1} parent=1 // pred_check
      _
    $region27: #{tpu_custom_call.1} parent=1 // pred_check_branch
      %6926 = sbr.rel (0) target = $region29
    $region28: #{tpu_custom_call.1} parent=1 // pred_region
      %s6928 = ssub.s32 128, 128
      %6929 = vsyncadd [#allocation3], %s6928
      %s6931 = sshll.u32 [#allocation2], 4
      %s6932 = int_to_ptr.vmem [resolvable:$true] %s6931
      %6934 = dma.vmem_to_hbm [thread:$0]  %s6932, 128, %s6, [#allocation3]
    $region29: #{tpu_custom_call.1} parent=1 // pred_fallthru
      _
    // Predicated region
    $region30: #{tpu_custom_call.1} parent=1 // pred_check
      _
    $region31: #{tpu_custom_call.1} parent=1 // pred_check_branch
      %6936 = sbr.rel (0) target = $region33
    $region32: #{tpu_custom_call.1} parent=1 // pred_region
      %6937 = dma.done [#allocation3], 128
    $region33: #{tpu_custom_call.1} parent=1 // pred_fallthru
      _
    %6938 = vsyncpa [#allocation3], 1

</llo_original>
